<compile_context>
chip_gen: v7x
topology: tpu7x:2x2x1
jax: 0.10.0
libtpu: 0.0.40
codegen_flags: <defaults>
</compile_context>

<pallas_src>
import jax
import jax.numpy as jnp
from jax import lax
from jax.experimental import pallas as pl
from jax.experimental.pallas import tpu as pltpu


# Sub-convolution taps for a stride-2 / k=4 / pad=1 ConvTranspose2d.
# Output row oy = 2q + r receives x[i]*W[k] whenever oy = 2i - 1 + k, so with
# the input padded by one (xp[u] = x[u-1]) the (pad-offset, kernel-tap) pairs:
#   r == 0 -> {(0, 3), (1, 1)}      r == 1 -> {(1, 2), (2, 0)}
_SUBCONV_TAPS = (((0, 3), (1, 1)),
                 ((1, 2), (2, 0)))


def _fused_dcgan_star_kernel(z_ref, w1_ref, s1_ref, b1_ref,
                             w2_ref, s2_ref, b2_ref, w3_ref,
                             o_ref, xpad2_ref, h2p_ref):
    B = z_ref.shape[0]
    c1 = w2_ref.shape[1]        # channels after layer 1
    c2 = w2_ref.shape[2]        # channels after layer 2
    ncol = w3_ref.shape[2]      # 2*n_classes (or 2 when a single class is asked)

    # ---- Layer 1: ConvTranspose2d(nz, c1, 4, 1, 0) on a 1x1 input == one GEMM.
    # Columns of w1_ref are ordered (ky, kx, co); BN folded into scale/shift.
    h1 = jnp.dot(z_ref[...].astype(jnp.bfloat16), w1_ref[...],
                 preferred_element_type=jnp.float32)              # (B, 16*c1) f32
    h1 = jnp.maximum(h1 * s1_ref[...] + b1_ref[...], 0.0)

    # ---- Scatter layer-1 output into the zero-dilated + padded layer-2 input
    # (conv-of-dilated-input formulation of the stride-2 transposed conv).
    xpad2_ref[...] = jnp.zeros(xpad2_ref.shape, xpad2_ref.dtype)   # (B, 11, 11, c1)
    for yy in range(4):
        for xx in range(4):
            sp = yy * 4 + xx
            xpad2_ref[:, 2 + 2 * yy, 2 + 2 * xx, :] = h1[:, sp * c1:(sp + 1) * c1]

    # ---- Layer 2: ConvTranspose2d(c1, c2, 4, 2, 1) as 16 accumulated tap-GEMMs
    # on VMEM-resident patches.  GEMM rows are (b, oy, ox) with oy, ox in [0, 8).
    acc2 = jnp.zeros((B * 64, c2), jnp.float32)
    for ky in range(4):
        for kx in range(4):
            pieces = [xpad2_ref[b, ky + oy, kx:kx + 8, :]          # each (8, c1)
                      for b in range(B) for oy in range(8)]
            patch = jnp.concatenate(pieces, axis=0)                # (B*64, c1)
            acc2 = acc2 + jnp.dot(patch.astype(jnp.bfloat16),
                                  w2_ref[ky * 4 + kx, :, :],
                                  preferred_element_type=jnp.float32)
    h2 = jnp.maximum(acc2 * s2_ref[...] + b2_ref[...], 0.0)        # (B*64, c2) f32

    # ---- Spatially pad layer-2 output by 1 (the sub-convolution form of the
    # last transposed conv needs no dilation).  Rows of h2 for a fixed (b, oy)
    # are contiguous, so this is 16 plain row-block stores.
    h2p_ref[...] = jnp.zeros(h2p_ref.shape, h2p_ref.dtype)         # (B, 10, 10, c2)
    for b in range(B):
        for oy in range(8):
            h2p_ref[b, 1 + oy, 1:9, :] = h2[b * 64 + oy * 8: b * 64 + (oy + 1) * 8, :]

    # ---- Layer 3 + star gather: ConvTranspose2d(c2, n_classes+1, 4, 2, 1),
    # tanh, and the star-shaped channel pairing (already folded into w3_ref's
    # output columns).  Output subgrid (r, s) holds pixels (2q+r, 2p+s) and is
    # the sum of 2x2 taps over the padded layer-2 activation.
    for r in range(2):
        for s in range(2):
            acc3 = jnp.zeros((B * 64, ncol), jnp.float32)
            for ay, ky in _SUBCONV_TAPS[r]:
                for ax, kx in _SUBCONV_TAPS[s]:
                    pieces = [h2p_ref[b, ay + q, ax:ax + 8, :]     # each (8, c2)
                              for b in range(B) for q in range(8)]
                    patch = jnp.concatenate(pieces, axis=0)        # (B*64, c2)
                    acc3 = acc3 + jnp.dot(patch.astype(jnp.bfloat16),
                                          w3_ref[ky * 4 + kx, :, :],
                                          preferred_element_type=jnp.float32)
            o_ref[r, s, :, :] = jnp.tanh(acc3)


def _fused_pallas_call(z2d, w1f, s1c, b1c, w2t, s2, b2, w3t):
    B = z2d.shape[0]
    c1, c2, ncol = w2t.shape[1], w2t.shape[2], w3t.shape[2]

    def _full(arr):
        nd = arr.ndim
        return pl.BlockSpec(arr.shape, lambda i, _nd=nd: (0,) * _nd)

    out_shape = jax.ShapeDtypeStruct((2, 2, B * 64, ncol), jnp.float32)
    return pl.pallas_call(
        _fused_dcgan_star_kernel,
        out_shape=out_shape,
        grid=(1,),
        in_specs=[_full(z2d), _full(w1f), _full(s1c), _full(b1c),
                  _full(w2t), _full(s2), _full(b2), _full(w3t)],
        out_specs=pl.BlockSpec(out_shape.shape, lambda i: (0, 0, 0, 0)),
        scratch_shapes=[pltpu.VMEM((B, 11, 11, c1), jnp.float32),   # dilated+padded h1
                        pltpu.VMEM((B, 10, 10, c2), jnp.float32)],  # padded h2
        compiler_params=pltpu.CompilerParams(
            dimension_semantics=("arbitrary",)),
    )(z2d, w1f, s1c, b1c, w2t, s2, b2, w3t)


def dcgan_g_starshaped_forward(params, z, n_classes, i_class=None):
    """z: (B, nz, 1, 1) -> (n_classes, B, 2, 16, 16) f32, or (B, 2, 16, 16)
    when i_class is given (same semantics as the PyTorch module's forward)."""
    B, nz = z.shape[0], z.shape[1]
    w1, w2, w3 = params["w1"], params["w2"], params["w3"]
    c1, c2, nc = w1.shape[1], w2.shape[1], w3.shape[1]
    assert nc == n_classes + 1

    # Layer-1 GEMM weight, columns ordered (ky, kx, co); BN folded to scale/shift.
    w1f = w1.transpose(0, 2, 3, 1).reshape(nz, 16 * c1).astype(jnp.bfloat16)
    s1c = jnp.tile(params["s1"], 16).reshape(1, 16 * c1).astype(jnp.float32)
    b1c = jnp.tile(params["b1"], 16).reshape(1, 16 * c1).astype(jnp.float32)

    # Layer-2 per-tap weights (conv-of-dilated-input form => flipped kernel).
    w2t = (jnp.flip(w2, axis=(2, 3)).transpose(2, 3, 0, 1)
           .reshape(16, c1, c2).astype(jnp.bfloat16))
    s2 = params["s2"].reshape(1, c2).astype(jnp.float32)
    b2 = params["b2"].reshape(1, c2).astype(jnp.float32)

    # Layer-3 per-tap weights (sub-convolution form => unflipped kernel) with
    # the star-shaped channel gather folded into the output columns:
    # column 2*ic + 0 -> channel 0, column 2*ic + 1 -> channel ic+1.
    if i_class is None:
        cols = []
        for ic in range(n_classes):
            cols += [0, ic + 1]
    else:
        cols = [0, i_class + 1]
    w3t = (w3[:, jnp.asarray(cols), :, :].transpose(2, 3, 0, 1)
           .reshape(16, c2, len(cols)).astype(jnp.bfloat16))

    z2d = z.reshape(B, nz).astype(jnp.float32)
    out_k = _fused_pallas_call(z2d, w1f, s1c, b1c, w2t, s2, b2, w3t)
    # out_k: (2, 2, B*64, len(cols)); rows are (b, q, p); pixel = (2q+r, 2p+s).

    if i_class is None:
        out = out_k.reshape(2, 2, B, 8, 8, n_classes, 2)
        out = out.transpose(5, 2, 6, 3, 0, 4, 1)       # (ic, b, pair, q, r, p, s)
        return out.reshape(n_classes, B, 2, 16, 16)
    out = out_k.reshape(2, 2, B, 8, 8, 2)
    out = out.transpose(2, 5, 3, 0, 4, 1)              # (b, pair, q, r, p, s)
    return out.reshape(B, 2, 16, 16)


# ---------------------------------------------------------------------------
# Parameters (eval-mode BN with running stats (0, 1) folded to scale/shift).
# ---------------------------------------------------------------------------
def init_params(key, nz, ngf, n_classes):
    nc = n_classes + 1
    c1 = 2 * ngf
    ks = jax.random.split(key, 7)
    eps = 1e-5
    w_std = 0.1
    p = {
        "w1": w_std * jax.random.normal(ks[0], (nz, c1, 4, 4), jnp.float32),
        "w2": w_std * jax.random.normal(ks[1], (c1, ngf, 4, 4), jnp.float32),
        "w3": w_std * jax.random.normal(ks[2], (ngf, nc, 4, 4), jnp.float32),
        "bn1_g": 1.0 + 0.3 * jax.random.normal(ks[3], (c1,), jnp.float32),
        "bn1_b": 0.2 * jax.random.normal(ks[4], (c1,), jnp.float32),
        "bn2_g": 1.0 + 0.3 * jax.random.normal(ks[5], (ngf,), jnp.float32),
        "bn2_b": 0.2 * jax.random.normal(ks[6], (ngf,), jnp.float32),
    }
    p["s1"] = p["bn1_g"] / jnp.sqrt(1.0 + eps)
    p["b1"] = p["bn1_b"]
    p["s2"] = p["bn2_g"] / jnp.sqrt(1.0 + eps)
    p["b2"] = p["bn2_b"]
    return p


# ---------------------------------------------------------------------------
# Independent XLA reference (lax.conv_general_dilated) for validation.
# ---------------------------------------------------------------------------
def _conv_transpose_reference(x_nchw, w, stride, pad, use_bf16):
    """PyTorch-style ConvTranspose2d (weight (Cin, Cout, kh, kw), no bias)."""
    kh, kw = w.shape[2], w.shape[3]
    kern = jnp.flip(w, axis=(2, 3)).transpose(1, 0, 2, 3)          # OIHW
    lhs, rhs = x_nchw, kern
    if use_bf16:
        lhs, rhs = lhs.astype(jnp.bfloat16), rhs.astype(jnp.bfloat16)
    return lax.conv_general_dilated(
        lhs, rhs, window_strides=(1, 1),
        padding=((kh - 1 - pad, kh - 1 - pad), (kw - 1 - pad, kw - 1 - pad)),
        lhs_dilation=(stride, stride),
        dimension_numbers=("NCHW", "OIHW", "NCHW"),
        preferred_element_type=jnp.float32)


def reference_forward(params, z, n_classes, i_class=None, use_bf16=True):
    h = _conv_transpose_reference(z, params["w1"], 1, 0, use_bf16)
    h = jnp.maximum(h * params["s1"][None, :, None, None]
                    + params["b1"][None, :, None, None], 0.0)
    h = _conv_transpose_reference(h, params["w2"], 2, 1, use_bf16)
    h = jnp.maximum(h * params["s2"][None, :, None, None]
                    + params["b2"][None, :, None, None], 0.0)
    images = jnp.tanh(_conv_transpose_reference(h, params["w3"], 2, 1, use_bf16))
    if i_class is None:
        outs = [jnp.stack([images[:, 0], images[:, ic + 1]], axis=1)
                for ic in range(n_classes)]
        return jnp.stack(outs, axis=0)
    return jnp.stack([images[:, 0], images[:, i_class + 1]], axis=1)


if __name__ == "__main__":
    n_classes = 3
    nz, ngf, B = 32, 16, 2

    key = jax.random.PRNGKey(0)
    k_z, k_p = jax.random.split(key)
    z = jax.random.normal(k_z, (B, nz, 1, 1), jnp.float32)
    params = init_params(k_p, nz, ngf, n_classes)

    fwd = jax.jit(lambda p, zz: dcgan_g_starshaped_forward(p, zz, n_classes))
    out = jax.block_until_ready(fwd(params, z))
    assert out.shape == (n_classes, B, 2, 16, 16), out.shape
    assert out.dtype == jnp.float32

    # Primary check: against an XLA reference that uses the same bf16 matmul
    # inputs / f32 accumulation as the kernel.
    ref_bf16 = jax.block_until_ready(
        reference_forward(params, z, n_classes, use_bf16=True))
    err = float(jnp.max(jnp.abs(out - ref_bf16)))
    assert jnp.allclose(out, ref_bf16, atol=2e-3, rtol=2e-2), err

    # Sanity check against a full-f32 reference (looser: bf16 quantization).
    ref_f32 = jax.block_until_ready(
        reference_forward(params, z, n_classes, use_bf16=False))
    assert jnp.allclose(out, ref_f32, atol=5e-2, rtol=5e-2), \
        float(jnp.max(jnp.abs(out - ref_f32)))

    # Single-class path (i_class given) must match the stacked output.
    out1 = jax.block_until_ready(
        dcgan_g_starshaped_forward(params, z, n_classes, i_class=1))
    assert out1.shape == (B, 2, 16, 16), out1.shape
    assert jnp.allclose(out1, out[1], atol=1e-5, rtol=1e-5)

    print("KERNEL_OK")
</pallas_src>

<mosaic_0001>
module attributes {stable_mosaic.version = 11 : i64} {
  func.func @_fused_dcgan_star_kernel(%arg0: i32, %arg1: memref<2x32xf32, #tpu.memory_space<vmem>>, %arg2: memref<32x512xbf16, #tpu.memory_space<vmem>>, %arg3: memref<1x512xf32, #tpu.memory_space<vmem>>, %arg4: memref<1x512xf32, #tpu.memory_space<vmem>>, %arg5: memref<16x32x16xbf16, #tpu.memory_space<vmem>>, %arg6: memref<1x16xf32, #tpu.memory_space<vmem>>, %arg7: memref<1x16xf32, #tpu.memory_space<vmem>>, %arg8: memref<16x16x6xbf16, #tpu.memory_space<vmem>>, %arg9: memref<2x2x128x6xf32, #tpu.memory_space<vmem>>, %arg10: memref<2x11x11x32xf32, #tpu.memory_space<vmem>>, %arg11: memref<2x10x10x16xf32, #tpu.memory_space<vmem>>) attributes {dimension_semantics = [#tpu.dimension_semantics<arbitrary>], iteration_bounds = array<i64: 1>, scalar_prefetch = 0 : i64, scratch_operands = 2 : i64, tpu.core_type = #tpu.core_type<tc>, window_params = [{pipeline_mode = #tpu.pipeline_mode<synchronous>, transform_indices = @transform_0, window_bounds = array<i64: 2, 32>}, {pipeline_mode = #tpu.pipeline_mode<synchronous>, transform_indices = @transform_1, window_bounds = array<i64: 32, 512>}, {pipeline_mode = #tpu.pipeline_mode<synchronous>, transform_indices = @transform_2, window_bounds = array<i64: 1, 512>}, {pipeline_mode = #tpu.pipeline_mode<synchronous>, transform_indices = @transform_3, window_bounds = array<i64: 1, 512>}, {pipeline_mode = #tpu.pipeline_mode<synchronous>, transform_indices = @transform_4, window_bounds = array<i64: 16, 32, 16>}, {pipeline_mode = #tpu.pipeline_mode<synchronous>, transform_indices = @transform_5, window_bounds = array<i64: 1, 16>}, {pipeline_mode = #tpu.pipeline_mode<synchronous>, transform_indices = @transform_6, window_bounds = array<i64: 1, 16>}, {pipeline_mode = #tpu.pipeline_mode<synchronous>, transform_indices = @transform_7, window_bounds = array<i64: 16, 16, 6>}, {pipeline_mode = #tpu.pipeline_mode<synchronous>, transform_indices = @transform_8, window_bounds = array<i64: 2, 2, 128, 6>}]} {
    %c0 = arith.constant 0 : index
    %c0_0 = arith.constant 0 : index
    %0 = vector.load %arg1[%c0, %c0_0] : memref<2x32xf32, #tpu.memory_space<vmem>>, vector<2x32xf32>
    %1 = arith.truncf %0 : vector<2x32xf32> to vector<2x32xbf16>
    %c0_1 = arith.constant 0 : index
    %c0_2 = arith.constant 0 : index
    %2 = vector.load %arg2[%c0_1, %c0_2] : memref<32x512xbf16, #tpu.memory_space<vmem>>, vector<32x512xbf16>
    %cst = arith.constant dense<0.000000e+00> : vector<2x512xf32>
    %3 = tpu.matmul %1, %2, %cst {dimension_numbers = #tpu.dot_dimension_numbers<[1], [0], [0], [1], [0, 0, 1, 1], [], []>} : vector<2x32xbf16>, vector<32x512xbf16>, vector<2x512xf32> -> vector<2x512xf32>
    %c0_3 = arith.constant 0 : index
    %c0_4 = arith.constant 0 : index
    %4 = vector.load %arg3[%c0_3, %c0_4] : memref<1x512xf32, #tpu.memory_space<vmem>>, vector<1x512xf32>
    %5 = vector.broadcast %4 : vector<1x512xf32> to vector<2x512xf32>
    %6 = arith.mulf %3, %5 : vector<2x512xf32>
    %c0_5 = arith.constant 0 : index
    %c0_6 = arith.constant 0 : index
    %7 = vector.load %arg4[%c0_5, %c0_6] : memref<1x512xf32, #tpu.memory_space<vmem>>, vector<1x512xf32>
    %8 = vector.broadcast %7 : vector<1x512xf32> to vector<2x512xf32>
    %9 = arith.addf %6, %8 : vector<2x512xf32>
    %cst_7 = arith.constant 0.000000e+00 : f32
    %10 = vector.broadcast %cst_7 : f32 to vector<2x512xf32>
    %11 = arith.maximumf %9, %10 : vector<2x512xf32>
    %cst_8 = arith.constant 0.000000e+00 : f32
    %12 = vector.broadcast %cst_8 : f32 to vector<2x11x11x32xf32>
    %c0_9 = arith.constant 0 : index
    %c0_10 = arith.constant 0 : index
    %c0_11 = arith.constant 0 : index
    %c0_12 = arith.constant 0 : index
    %13 = vector.load %arg10[%c0_9, %c0_10, %c0_11, %c0_12] : memref<2x11x11x32xf32, #tpu.memory_space<vmem>>, vector<2x11x11x32xf32>
    tpu.vector_store %arg10[%c0_9, %c0_10, %c0_11, %c0_12], %12 {strides = array<i32>} : memref<2x11x11x32xf32, #tpu.memory_space<vmem>>, vector<2x11x11x32xf32>,
    %14 = vector.extract_strided_slice %11 {offsets = [0, 0], sizes = [2, 32], strides = [1, 1]} : vector<2x512xf32> to vector<2x32xf32>
    %c0_13 = arith.constant 0 : index
    %c2 = arith.constant 2 : index
    %c2_14 = arith.constant 2 : index
    %c0_15 = arith.constant 0 : index
    %15 = vector.load %arg10[%c0_13, %c2, %c2_14, %c0_15] : memref<2x11x11x32xf32, #tpu.memory_space<vmem>>, vector<2x1x1x32xf32>
    %16 = vector.shape_cast %15 : vector<2x1x1x32xf32> to vector<2x32xf32>
    %17 = vector.shape_cast %14 : vector<2x32xf32> to vector<2x1x1x32xf32>
    tpu.vector_store %arg10[%c0_13, %c2, %c2_14, %c0_15], %17 {strides = array<i32>} : memref<2x11x11x32xf32, #tpu.memory_space<vmem>>, vector<2x1x1x32xf32>,
    %18 = vector.extract_strided_slice %11 {offsets = [0, 32], sizes = [2, 32], strides = [1, 1]} : vector<2x512xf32> to vector<2x32xf32>
    %c0_16 = arith.constant 0 : index
    %c2_17 = arith.constant 2 : index
    %c4 = arith.constant 4 : index
    %c0_18 = arith.constant 0 : index
    %19 = vector.load %arg10[%c0_16, %c2_17, %c4, %c0_18] : memref<2x11x11x32xf32, #tpu.memory_space<vmem>>, vector<2x1x1x32xf32>
    %20 = vector.shape_cast %19 : vector<2x1x1x32xf32> to vector<2x32xf32>
    %21 = vector.shape_cast %18 : vector<2x32xf32> to vector<2x1x1x32xf32>
    tpu.vector_store %arg10[%c0_16, %c2_17, %c4, %c0_18], %21 {strides = array<i32>} : memref<2x11x11x32xf32, #tpu.memory_space<vmem>>, vector<2x1x1x32xf32>,
    %22 = vector.extract_strided_slice %11 {offsets = [0, 64], sizes = [2, 32], strides = [1, 1]} : vector<2x512xf32> to vector<2x32xf32>
    %c0_19 = arith.constant 0 : index
    %c2_20 = arith.constant 2 : index
    %c6 = arith.constant 6 : index
    %c0_21 = arith.constant 0 : index
    %23 = vector.load %arg10[%c0_19, %c2_20, %c6, %c0_21] : memref<2x11x11x32xf32, #tpu.memory_space<vmem>>, vector<2x1x1x32xf32>
    %24 = vector.shape_cast %23 : vector<2x1x1x32xf32> to vector<2x32xf32>
    %25 = vector.shape_cast %22 : vector<2x32xf32> to vector<2x1x1x32xf32>
    tpu.vector_store %arg10[%c0_19, %c2_20, %c6, %c0_21], %25 {strides = array<i32>} : memref<2x11x11x32xf32, #tpu.memory_space<vmem>>, vector<2x1x1x32xf32>,
    %26 = vector.extract_strided_slice %11 {offsets = [0, 96], sizes = [2, 32], strides = [1, 1]} : vector<2x512xf32> to vector<2x32xf32>
    %c0_22 = arith.constant 0 : index
    %c2_23 = arith.constant 2 : index
    %c8 = arith.constant 8 : index
    %c0_24 = arith.constant 0 : index
    %27 = vector.load %arg10[%c0_22, %c2_23, %c8, %c0_24] : memref<2x11x11x32xf32, #tpu.memory_space<vmem>>, vector<2x1x1x32xf32>
    %28 = vector.shape_cast %27 : vector<2x1x1x32xf32> to vector<2x32xf32>
    %29 = vector.shape_cast %26 : vector<2x32xf32> to vector<2x1x1x32xf32>
    tpu.vector_store %arg10[%c0_22, %c2_23, %c8, %c0_24], %29 {strides = array<i32>} : memref<2x11x11x32xf32, #tpu.memory_space<vmem>>, vector<2x1x1x32xf32>,
    %30 = vector.extract_strided_slice %11 {offsets = [0, 128], sizes = [2, 32], strides = [1, 1]} : vector<2x512xf32> to vector<2x32xf32>
    %c0_25 = arith.constant 0 : index
    %c4_26 = arith.constant 4 : index
    %c2_27 = arith.constant 2 : index
    %c0_28 = arith.constant 0 : index
    %31 = vector.load %arg10[%c0_25, %c4_26, %c2_27, %c0_28] : memref<2x11x11x32xf32, #tpu.memory_space<vmem>>, vector<2x1x1x32xf32>
    %32 = vector.shape_cast %31 : vector<2x1x1x32xf32> to vector<2x32xf32>
    %33 = vector.shape_cast %30 : vector<2x32xf32> to vector<2x1x1x32xf32>
    tpu.vector_store %arg10[%c0_25, %c4_26, %c2_27, %c0_28], %33 {strides = array<i32>} : memref<2x11x11x32xf32, #tpu.memory_space<vmem>>, vector<2x1x1x32xf32>,
    %34 = vector.extract_strided_slice %11 {offsets = [0, 160], sizes = [2, 32], strides = [1, 1]} : vector<2x512xf32> to vector<2x32xf32>
    %c0_29 = arith.constant 0 : index
    %c4_30 = arith.constant 4 : index
    %c4_31 = arith.constant 4 : index
    %c0_32 = arith.constant 0 : index
    %35 = vector.load %arg10[%c0_29, %c4_30, %c4_31, %c0_32] : memref<2x11x11x32xf32, #tpu.memory_space<vmem>>, vector<2x1x1x32xf32>
    %36 = vector.shape_cast %35 : vector<2x1x1x32xf32> to vector<2x32xf32>
    %37 = vector.shape_cast %34 : vector<2x32xf32> to vector<2x1x1x32xf32>
    tpu.vector_store %arg10[%c0_29, %c4_30, %c4_31, %c0_32], %37 {strides = array<i32>} : memref<2x11x11x32xf32, #tpu.memory_space<vmem>>, vector<2x1x1x32xf32>,
    %38 = vector.extract_strided_slice %11 {offsets = [0, 192], sizes = [2, 32], strides = [1, 1]} : vector<2x512xf32> to vector<2x32xf32>
    %c0_33 = arith.constant 0 : index
    %c4_34 = arith.constant 4 : index
    %c6_35 = arith.constant 6 : index
    %c0_36 = arith.constant 0 : index
    %39 = vector.load %arg10[%c0_33, %c4_34, %c6_35, %c0_36] : memref<2x11x11x32xf32, #tpu.memory_space<vmem>>, vector<2x1x1x32xf32>
    %40 = vector.shape_cast %39 : vector<2x1x1x32xf32> to vector<2x32xf32>
    %41 = vector.shape_cast %38 : vector<2x32xf32> to vector<2x1x1x32xf32>
    tpu.vector_store %arg10[%c0_33, %c4_34, %c6_35, %c0_36], %41 {strides = array<i32>} : memref<2x11x11x32xf32, #tpu.memory_space<vmem>>, vector<2x1x1x32xf32>,
    %42 = vector.extract_strided_slice %11 {offsets = [0, 224], sizes = [2, 32], strides = [1, 1]} : vector<2x512xf32> to vector<2x32xf32>
    %c0_37 = arith.constant 0 : index
    %c4_38 = arith.constant 4 : index
    %c8_39 = arith.constant 8 : index
    %c0_40 = arith.constant 0 : index
    %43 = vector.load %arg10[%c0_37, %c4_38, %c8_39, %c0_40] : memref<2x11x11x32xf32, #tpu.memory_space<vmem>>, vector<2x1x1x32xf32>
    %44 = vector.shape_cast %43 : vector<2x1x1x32xf32> to vector<2x32xf32>
    %45 = vector.shape_cast %42 : vector<2x32xf32> to vector<2x1x1x32xf32>
    tpu.vector_store %arg10[%c0_37, %c4_38, %c8_39, %c0_40], %45 {strides = array<i32>} : memref<2x11x11x32xf32, #tpu.memory_space<vmem>>, vector<2x1x1x32xf32>,
    %46 = vector.extract_strided_slice %11 {offsets = [0, 256], sizes = [2, 32], strides = [1, 1]} : vector<2x512xf32> to vector<2x32xf32>
    %c0_41 = arith.constant 0 : index
    %c6_42 = arith.constant 6 : index
    %c2_43 = arith.constant 2 : index
    %c0_44 = arith.constant 0 : index
    %47 = vector.load %arg10[%c0_41, %c6_42, %c2_43, %c0_44] : memref<2x11x11x32xf32, #tpu.memory_space<vmem>>, vector<2x1x1x32xf32>
    %48 = vector.shape_cast %47 : vector<2x1x1x32xf32> to vector<2x32xf32>
    %49 = vector.shape_cast %46 : vector<2x32xf32> to vector<2x1x1x32xf32>
    tpu.vector_store %arg10[%c0_41, %c6_42, %c2_43, %c0_44], %49 {strides = array<i32>} : memref<2x11x11x32xf32, #tpu.memory_space<vmem>>, vector<2x1x1x32xf32>,
    %50 = vector.extract_strided_slice %11 {offsets = [0, 288], sizes = [2, 32], strides = [1, 1]} : vector<2x512xf32> to vector<2x32xf32>
    %c0_45 = arith.constant 0 : index
    %c6_46 = arith.constant 6 : index
    %c4_47 = arith.constant 4 : index
    %c0_48 = arith.constant 0 : index
    %51 = vector.load %arg10[%c0_45, %c6_46, %c4_47, %c0_48] : memref<2x11x11x32xf32, #tpu.memory_space<vmem>>, vector<2x1x1x32xf32>
    %52 = vector.shape_cast %51 : vector<2x1x1x32xf32> to vector<2x32xf32>
    %53 = vector.shape_cast %50 : vector<2x32xf32> to vector<2x1x1x32xf32>
    tpu.vector_store %arg10[%c0_45, %c6_46, %c4_47, %c0_48], %53 {strides = array<i32>} : memref<2x11x11x32xf32, #tpu.memory_space<vmem>>, vector<2x1x1x32xf32>,
    %54 = vector.extract_strided_slice %11 {offsets = [0, 320], sizes = [2, 32], strides = [1, 1]} : vector<2x512xf32> to vector<2x32xf32>
    %c0_49 = arith.constant 0 : index
    %c6_50 = arith.constant 6 : index
    %c6_51 = arith.constant 6 : index
    %c0_52 = arith.constant 0 : index
    %55 = vector.load %arg10[%c0_49, %c6_50, %c6_51, %c0_52] : memref<2x11x11x32xf32, #tpu.memory_space<vmem>>, vector<2x1x1x32xf32>
    %56 = vector.shape_cast %55 : vector<2x1x1x32xf32> to vector<2x32xf32>
    %57 = vector.shape_cast %54 : vector<2x32xf32> to vector<2x1x1x32xf32>
    tpu.vector_store %arg10[%c0_49, %c6_50, %c6_51, %c0_52], %57 {strides = array<i32>} : memref<2x11x11x32xf32, #tpu.memory_space<vmem>>, vector<2x1x1x32xf32>,
    %58 = vector.extract_strided_slice %11 {offsets = [0, 352], sizes = [2, 32], strides = [1, 1]} : vector<2x512xf32> to vector<2x32xf32>
    %c0_53 = arith.constant 0 : index
    %c6_54 = arith.constant 6 : index
    %c8_55 = arith.constant 8 : index
    %c0_56 = arith.constant 0 : index
    %59 = vector.load %arg10[%c0_53, %c6_54, %c8_55, %c0_56] : memref<2x11x11x32xf32, #tpu.memory_space<vmem>>, vector<2x1x1x32xf32>
    %60 = vector.shape_cast %59 : vector<2x1x1x32xf32> to vector<2x32xf32>
    %61 = vector.shape_cast %58 : vector<2x32xf32> to vector<2x1x1x32xf32>
    tpu.vector_store %arg10[%c0_53, %c6_54, %c8_55, %c0_56], %61 {strides = array<i32>} : memref<2x11x11x32xf32, #tpu.memory_space<vmem>>, vector<2x1x1x32xf32>,
    %62 = vector.extract_strided_slice %11 {offsets = [0, 384], sizes = [2, 32], strides = [1, 1]} : vector<2x512xf32> to vector<2x32xf32>
    %c0_57 = arith.constant 0 : index
    %c8_58 = arith.constant 8 : index
    %c2_59 = arith.constant 2 : index
    %c0_60 = arith.constant 0 : index
    %63 = vector.load %arg10[%c0_57, %c8_58, %c2_59, %c0_60] : memref<2x11x11x32xf32, #tpu.memory_space<vmem>>, vector<2x1x1x32xf32>
    %64 = vector.shape_cast %63 : vector<2x1x1x32xf32> to vector<2x32xf32>
    %65 = vector.shape_cast %62 : vector<2x32xf32> to vector<2x1x1x32xf32>
    tpu.vector_store %arg10[%c0_57, %c8_58, %c2_59, %c0_60], %65 {strides = array<i32>} : memref<2x11x11x32xf32, #tpu.memory_space<vmem>>, vector<2x1x1x32xf32>,
    %66 = vector.extract_strided_slice %11 {offsets = [0, 416], sizes = [2, 32], strides = [1, 1]} : vector<2x512xf32> to vector<2x32xf32>
    %c0_61 = arith.constant 0 : index
    %c8_62 = arith.constant 8 : index
    %c4_63 = arith.constant 4 : index
    %c0_64 = arith.constant 0 : index
    %67 = vector.load %arg10[%c0_61, %c8_62, %c4_63, %c0_64] : memref<2x11x11x32xf32, #tpu.memory_space<vmem>>, vector<2x1x1x32xf32>
    %68 = vector.shape_cast %67 : vector<2x1x1x32xf32> to vector<2x32xf32>
    %69 = vector.shape_cast %66 : vector<2x32xf32> to vector<2x1x1x32xf32>
    tpu.vector_store %arg10[%c0_61, %c8_62, %c4_63, %c0_64], %69 {strides = array<i32>} : memref<2x11x11x32xf32, #tpu.memory_space<vmem>>, vector<2x1x1x32xf32>,
    %70 = vector.extract_strided_slice %11 {offsets = [0, 448], sizes = [2, 32], strides = [1, 1]} : vector<2x512xf32> to vector<2x32xf32>
    %c0_65 = arith.constant 0 : index
    %c8_66 = arith.constant 8 : index
    %c6_67 = arith.constant 6 : index
    %c0_68 = arith.constant 0 : index
    %71 = vector.load %arg10[%c0_65, %c8_66, %c6_67, %c0_68] : memref<2x11x11x32xf32, #tpu.memory_space<vmem>>, vector<2x1x1x32xf32>
    %72 = vector.shape_cast %71 : vector<2x1x1x32xf32> to vector<2x32xf32>
    %73 = vector.shape_cast %70 : vector<2x32xf32> to vector<2x1x1x32xf32>
    tpu.vector_store %arg10[%c0_65, %c8_66, %c6_67, %c0_68], %73 {strides = array<i32>} : memref<2x11x11x32xf32, #tpu.memory_space<vmem>>, vector<2x1x1x32xf32>,
    %74 = vector.extract_strided_slice %11 {offsets = [0, 480], sizes = [2, 32], strides = [1, 1]} : vector<2x512xf32> to vector<2x32xf32>
    %c0_69 = arith.constant 0 : index
    %c8_70 = arith.constant 8 : index
    %c8_71 = arith.constant 8 : index
    %c0_72 = arith.constant 0 : index
    %75 = vector.load %arg10[%c0_69, %c8_70, %c8_71, %c0_72] : memref<2x11x11x32xf32, #tpu.memory_space<vmem>>, vector<2x1x1x32xf32>
    %76 = vector.shape_cast %75 : vector<2x1x1x32xf32> to vector<2x32xf32>
    %77 = vector.shape_cast %74 : vector<2x32xf32> to vector<2x1x1x32xf32>
    tpu.vector_store %arg10[%c0_69, %c8_70, %c8_71, %c0_72], %77 {strides = array<i32>} : memref<2x11x11x32xf32, #tpu.memory_space<vmem>>, vector<2x1x1x32xf32>,
    %cst_73 = arith.constant 0.000000e+00 : f32
    %78 = vector.broadcast %cst_73 : f32 to vector<128x16xf32>
    %c0_74 = arith.constant 0 : index
    %c0_75 = arith.constant 0 : index
    %c0_76 = arith.constant 0 : index
    %c0_77 = arith.constant 0 : index
    %79 = vector.load %arg10[%c0_74, %c0_75, %c0_76, %c0_77] : memref<2x11x11x32xf32, #tpu.memory_space<vmem>>, vector<1x1x8x32xf32>
    %80 = vector.shape_cast %79 : vector<1x1x8x32xf32> to vector<8x32xf32>
    %c0_78 = arith.constant 0 : index
    %c1 = arith.constant 1 : index
    %c0_79 = arith.constant 0 : index
    %c0_80 = arith.constant 0 : index
    %81 = vector.load %arg10[%c0_78, %c1, %c0_79, %c0_80] : memref<2x11x11x32xf32, #tpu.memory_space<vmem>>, vector<1x1x8x32xf32>
    %82 = vector.shape_cast %81 : vector<1x1x8x32xf32> to vector<8x32xf32>
    %c0_81 = arith.constant 0 : index
    %c2_82 = arith.constant 2 : index
    %c0_83 = arith.constant 0 : index
    %c0_84 = arith.constant 0 : index
    %83 = vector.load %arg10[%c0_81, %c2_82, %c0_83, %c0_84] : memref<2x11x11x32xf32, #tpu.memory_space<vmem>>, vector<1x1x8x32xf32>
    %84 = vector.shape_cast %83 : vector<1x1x8x32xf32> to vector<8x32xf32>
    %c0_85 = arith.constant 0 : index
    %c3 = arith.constant 3 : index
    %c0_86 = arith.constant 0 : index
    %c0_87 = arith.constant 0 : index
    %85 = vector.load %arg10[%c0_85, %c3, %c0_86, %c0_87] : memref<2x11x11x32xf32, #tpu.memory_space<vmem>>, vector<1x1x8x32xf32>
    %86 = vector.shape_cast %85 : vector<1x1x8x32xf32> to vector<8x32xf32>
    %c0_88 = arith.constant 0 : index
    %c4_89 = arith.constant 4 : index
    %c0_90 = arith.constant 0 : index
    %c0_91 = arith.constant 0 : index
    %87 = vector.load %arg10[%c0_88, %c4_89, %c0_90, %c0_91] : memref<2x11x11x32xf32, #tpu.memory_space<vmem>>, vector<1x1x8x32xf32>
    %88 = vector.shape_cast %87 : vector<1x1x8x32xf32> to vector<8x32xf32>
    %c0_92 = arith.constant 0 : index
    %c5 = arith.constant 5 : index
    %c0_93 = arith.constant 0 : index
    %c0_94 = arith.constant 0 : index
    %89 = vector.load %arg10[%c0_92, %c5, %c0_93, %c0_94] : memref<2x11x11x32xf32, #tpu.memory_space<vmem>>, vector<1x1x8x32xf32>
    %90 = vector.shape_cast %89 : vector<1x1x8x32xf32> to vector<8x32xf32>
    %c0_95 = arith.constant 0 : index
    %c6_96 = arith.constant 6 : index
    %c0_97 = arith.constant 0 : index
    %c0_98 = arith.constant 0 : index
    %91 = vector.load %arg10[%c0_95, %c6_96, %c0_97, %c0_98] : memref<2x11x11x32xf32, #tpu.memory_space<vmem>>, vector<1x1x8x32xf32>
    %92 = vector.shape_cast %91 : vector<1x1x8x32xf32> to vector<8x32xf32>
    %c0_99 = arith.constant 0 : index
    %c7 = arith.constant 7 : index
    %c0_100 = arith.constant 0 : index
    %c0_101 = arith.constant 0 : index
    %93 = vector.load %arg10[%c0_99, %c7, %c0_100, %c0_101] : memref<2x11x11x32xf32, #tpu.memory_space<vmem>>, vector<1x1x8x32xf32>
    %94 = vector.shape_cast %93 : vector<1x1x8x32xf32> to vector<8x32xf32>
    %c1_102 = arith.constant 1 : index
    %c0_103 = arith.constant 0 : index
    %c0_104 = arith.constant 0 : index
    %c0_105 = arith.constant 0 : index
    %95 = vector.load %arg10[%c1_102, %c0_103, %c0_104, %c0_105] : memref<2x11x11x32xf32, #tpu.memory_space<vmem>>, vector<1x1x8x32xf32>
    %96 = vector.shape_cast %95 : vector<1x1x8x32xf32> to vector<8x32xf32>
    %c1_106 = arith.constant 1 : index
    %c1_107 = arith.constant 1 : index
    %c0_108 = arith.constant 0 : index
    %c0_109 = arith.constant 0 : index
    %97 = vector.load %arg10[%c1_106, %c1_107, %c0_108, %c0_109] : memref<2x11x11x32xf32, #tpu.memory_space<vmem>>, vector<1x1x8x32xf32>
    %98 = vector.shape_cast %97 : vector<1x1x8x32xf32> to vector<8x32xf32>
    %c1_110 = arith.constant 1 : index
    %c2_111 = arith.constant 2 : index
    %c0_112 = arith.constant 0 : index
    %c0_113 = arith.constant 0 : index
    %99 = vector.load %arg10[%c1_110, %c2_111, %c0_112, %c0_113] : memref<2x11x11x32xf32, #tpu.memory_space<vmem>>, vector<1x1x8x32xf32>
    %100 = vector.shape_cast %99 : vector<1x1x8x32xf32> to vector<8x32xf32>
    %c1_114 = arith.constant 1 : index
    %c3_115 = arith.constant 3 : index
    %c0_116 = arith.constant 0 : index
    %c0_117 = arith.constant 0 : index
    %101 = vector.load %arg10[%c1_114, %c3_115, %c0_116, %c0_117] : memref<2x11x11x32xf32, #tpu.memory_space<vmem>>, vector<1x1x8x32xf32>
    %102 = vector.shape_cast %101 : vector<1x1x8x32xf32> to vector<8x32xf32>
    %c1_118 = arith.constant 1 : index
    %c4_119 = arith.constant 4 : index
    %c0_120 = arith.constant 0 : index
    %c0_121 = arith.constant 0 : index
    %103 = vector.load %arg10[%c1_118, %c4_119, %c0_120, %c0_121] : memref<2x11x11x32xf32, #tpu.memory_space<vmem>>, vector<1x1x8x32xf32>
    %104 = vector.shape_cast %103 : vector<1x1x8x32xf32> to vector<8x32xf32>
    %c1_122 = arith.constant 1 : index
    %c5_123 = arith.constant 5 : index
    %c0_124 = arith.constant 0 : index
    %c0_125 = arith.constant 0 : index
    %105 = vector.load %arg10[%c1_122, %c5_123, %c0_124, %c0_125] : memref<2x11x11x32xf32, #tpu.memory_space<vmem>>, vector<1x1x8x32xf32>
    %106 = vector.shape_cast %105 : vector<1x1x8x32xf32> to vector<8x32xf32>
    %c1_126 = arith.constant 1 : index
    %c6_127 = arith.constant 6 : index
    %c0_128 = arith.constant 0 : index
    %c0_129 = arith.constant 0 : index
    %107 = vector.load %arg10[%c1_126, %c6_127, %c0_128, %c0_129] : memref<2x11x11x32xf32, #tpu.memory_space<vmem>>, vector<1x1x8x32xf32>
    %108 = vector.shape_cast %107 : vector<1x1x8x32xf32> to vector<8x32xf32>
    %c1_130 = arith.constant 1 : index
    %c7_131 = arith.constant 7 : index
    %c0_132 = arith.constant 0 : index
    %c0_133 = arith.constant 0 : index
    %109 = vector.load %arg10[%c1_130, %c7_131, %c0_132, %c0_133] : memref<2x11x11x32xf32, #tpu.memory_space<vmem>>, vector<1x1x8x32xf32>
    %110 = vector.shape_cast %109 : vector<1x1x8x32xf32> to vector<8x32xf32>
    %111 = tpu.concatenate %80, %82, %84, %86, %88, %90, %92, %94, %96, %98, %100, %102, %104, %106, %108, %110 in 0 : vector<8x32xf32>, vector<8x32xf32>, vector<8x32xf32>, vector<8x32xf32>, vector<8x32xf32>, vector<8x32xf32>, vector<8x32xf32>, vector<8x32xf32>, vector<8x32xf32>, vector<8x32xf32>, vector<8x32xf32>, vector<8x32xf32>, vector<8x32xf32>, vector<8x32xf32>, vector<8x32xf32>, vector<8x32xf32> -> vector<128x32xf32>
    %112 = arith.truncf %111 : vector<128x32xf32> to vector<128x32xbf16>
    %c0_134 = arith.constant 0 : index
    %c0_135 = arith.constant 0 : index
    %c0_136 = arith.constant 0 : index
    %113 = vector.load %arg5[%c0_134, %c0_135, %c0_136] : memref<16x32x16xbf16, #tpu.memory_space<vmem>>, vector<1x32x16xbf16>
    %114 = vector.shape_cast %113 : vector<1x32x16xbf16> to vector<32x16xbf16>
    %cst_137 = arith.constant dense<0.000000e+00> : vector<128x16xf32>
    %115 = tpu.matmul %112, %114, %cst_137 {dimension_numbers = #tpu.dot_dimension_numbers<[1], [0], [0], [1], [0, 0, 1, 1], [], []>} : vector<128x32xbf16>, vector<32x16xbf16>, vector<128x16xf32> -> vector<128x16xf32>
    %116 = arith.addf %78, %115 : vector<128x16xf32>
    %c0_138 = arith.constant 0 : index
    %c0_139 = arith.constant 0 : index
    %c1_140 = arith.constant 1 : index
    %c0_141 = arith.constant 0 : index
    %117 = vector.load %arg10[%c0_138, %c0_139, %c1_140, %c0_141] : memref<2x11x11x32xf32, #tpu.memory_space<vmem>>, vector<1x1x8x32xf32>
    %118 = vector.shape_cast %117 : vector<1x1x8x32xf32> to vector<8x32xf32>
    %c0_142 = arith.constant 0 : index
    %c1_143 = arith.constant 1 : index
    %c1_144 = arith.constant 1 : index
    %c0_145 = arith.constant 0 : index
    %119 = vector.load %arg10[%c0_142, %c1_143, %c1_144, %c0_145] : memref<2x11x11x32xf32, #tpu.memory_space<vmem>>, vector<1x1x8x32xf32>
    %120 = vector.shape_cast %119 : vector<1x1x8x32xf32> to vector<8x32xf32>
    %c0_146 = arith.constant 0 : index
    %c2_147 = arith.constant 2 : index
    %c1_148 = arith.constant 1 : index
    %c0_149 = arith.constant 0 : index
    %121 = vector.load %arg10[%c0_146, %c2_147, %c1_148, %c0_149] : memref<2x11x11x32xf32, #tpu.memory_space<vmem>>, vector<1x1x8x32xf32>
    %122 = vector.shape_cast %121 : vector<1x1x8x32xf32> to vector<8x32xf32>
    %c0_150 = arith.constant 0 : index
    %c3_151 = arith.constant 3 : index
    %c1_152 = arith.constant 1 : index
    %c0_153 = arith.constant 0 : index
    %123 = vector.load %arg10[%c0_150, %c3_151, %c1_152, %c0_153] : memref<2x11x11x32xf32, #tpu.memory_space<vmem>>, vector<1x1x8x32xf32>
    %124 = vector.shape_cast %123 : vector<1x1x8x32xf32> to vector<8x32xf32>
    %c0_154 = arith.constant 0 : index
    %c4_155 = arith.constant 4 : index
    %c1_156 = arith.constant 1 : index
    %c0_157 = arith.constant 0 : index
    %125 = vector.load %arg10[%c0_154, %c4_155, %c1_156, %c0_157] : memref<2x11x11x32xf32, #tpu.memory_space<vmem>>, vector<1x1x8x32xf32>
    %126 = vector.shape_cast %125 : vector<1x1x8x32xf32> to vector<8x32xf32>
    %c0_158 = arith.constant 0 : index
    %c5_159 = arith.constant 5 : index
    %c1_160 = arith.constant 1 : index
    %c0_161 = arith.constant 0 : index
    %127 = vector.load %arg10[%c0_158, %c5_159, %c1_160, %c0_161] : memref<2x11x11x32xf32, #tpu.memory_space<vmem>>, vector<1x1x8x32xf32>
    %128 = vector.shape_cast %127 : vector<1x1x8x32xf32> to vector<8x32xf32>
    %c0_162 = arith.constant 0 : index
    %c6_163 = arith.constant 6 : index
    %c1_164 = arith.constant 1 : index
    %c0_165 = arith.constant 0 : index
    %129 = vector.load %arg10[%c0_162, %c6_163, %c1_164, %c0_165] : memref<2x11x11x32xf32, #tpu.memory_space<vmem>>, vector<1x1x8x32xf32>
    %130 = vector.shape_cast %129 : vector<1x1x8x32xf32> to vector<8x32xf32>
    %c0_166 = arith.constant 0 : index
    %c7_167 = arith.constant 7 : index
    %c1_168 = arith.constant 1 : index
    %c0_169 = arith.constant 0 : index
    %131 = vector.load %arg10[%c0_166, %c7_167, %c1_168, %c0_169] : memref<2x11x11x32xf32, #tpu.memory_space<vmem>>, vector<1x1x8x32xf32>
    %132 = vector.shape_cast %131 : vector<1x1x8x32xf32> to vector<8x32xf32>
    %c1_170 = arith.constant 1 : index
    %c0_171 = arith.constant 0 : index
    %c1_172 = arith.constant 1 : index
    %c0_173 = arith.constant 0 : index
    %133 = vector.load %arg10[%c1_170, %c0_171, %c1_172, %c0_173] : memref<2x11x11x32xf32, #tpu.memory_space<vmem>>, vector<1x1x8x32xf32>
    %134 = vector.shape_cast %133 : vector<1x1x8x32xf32> to vector<8x32xf32>
    %c1_174 = arith.constant 1 : index
    %c1_175 = arith.constant 1 : index
    %c1_176 = arith.constant 1 : index
    %c0_177 = arith.constant 0 : index
    %135 = vector.load %arg10[%c1_174, %c1_175, %c1_176, %c0_177] : memref<2x11x11x32xf32, #tpu.memory_space<vmem>>, vector<1x1x8x32xf32>
    %136 = vector.shape_cast %135 : vector<1x1x8x32xf32> to vector<8x32xf32>
    %c1_178 = arith.constant 1 : index
    %c2_179 = arith.constant 2 : index
    %c1_180 = arith.constant 1 : index
    %c0_181 = arith.constant 0 : index
    %137 = vector.load %arg10[%c1_178, %c2_179, %c1_180, %c0_181] : memref<2x11x11x32xf32, #tpu.memory_space<vmem>>, vector<1x1x8x32xf32>
    %138 = vector.shape_cast %137 : vector<1x1x8x32xf32> to vector<8x32xf32>
    %c1_182 = arith.constant 1 : index
    %c3_183 = arith.constant 3 : index
    %c1_184 = arith.constant 1 : index
    %c0_185 = arith.constant 0 : index
    %139 = vector.load %arg10[%c1_182, %c3_183, %c1_184, %c0_185] : memref<2x11x11x32xf32, #tpu.memory_space<vmem>>, vector<1x1x8x32xf32>
    %140 = vector.shape_cast %139 : vector<1x1x8x32xf32> to vector<8x32xf32>
    %c1_186 = arith.constant 1 : index
    %c4_187 = arith.constant 4 : index
    %c1_188 = arith.constant 1 : index
    %c0_189 = arith.constant 0 : index
    %141 = vector.load %arg10[%c1_186, %c4_187, %c1_188, %c0_189] : memref<2x11x11x32xf32, #tpu.memory_space<vmem>>, vector<1x1x8x32xf32>
    %142 = vector.shape_cast %141 : vector<1x1x8x32xf32> to vector<8x32xf32>
    %c1_190 = arith.constant 1 : index
    %c5_191 = arith.constant 5 : index
    %c1_192 = arith.constant 1 : index
    %c0_193 = arith.constant 0 : index
    %143 = vector.load %arg10[%c1_190, %c5_191, %c1_192, %c0_193] : memref<2x11x11x32xf32, #tpu.memory_space<vmem>>, vector<1x1x8x32xf32>
    %144 = vector.shape_cast %143 : vector<1x1x8x32xf32> to vector<8x32xf32>
    %c1_194 = arith.constant 1 : index
    %c6_195 = arith.constant 6 : index
    %c1_196 = arith.constant 1 : index
    %c0_197 = arith.constant 0 : index
    %145 = vector.load %arg10[%c1_194, %c6_195, %c1_196, %c0_197] : memref<2x11x11x32xf32, #tpu.memory_space<vmem>>, vector<1x1x8x32xf32>
    %146 = vector.shape_cast %145 : vector<1x1x8x32xf32> to vector<8x32xf32>
    %c1_198 = arith.constant 1 : index
    %c7_199 = arith.constant 7 : index
    %c1_200 = arith.constant 1 : index
    %c0_201 = arith.constant 0 : index
    %147 = vector.load %arg10[%c1_198, %c7_199, %c1_200, %c0_201] : memref<2x11x11x32xf32, #tpu.memory_space<vmem>>, vector<1x1x8x32xf32>
    %148 = vector.shape_cast %147 : vector<1x1x8x32xf32> to vector<8x32xf32>
    %149 = tpu.concatenate %118, %120, %122, %124, %126, %128, %130, %132, %134, %136, %138, %140, %142, %144, %146, %148 in 0 : vector<8x32xf32>, vector<8x32xf32>, vector<8x32xf32>, vector<8x32xf32>, vector<8x32xf32>, vector<8x32xf32>, vector<8x32xf32>, vector<8x32xf32>, vector<8x32xf32>, vector<8x32xf32>, vector<8x32xf32>, vector<8x32xf32>, vector<8x32xf32>, vector<8x32xf32>, vector<8x32xf32>, vector<8x32xf32> -> vector<128x32xf32>
    %150 = arith.truncf %149 : vector<128x32xf32> to vector<128x32xbf16>
    %c1_202 = arith.constant 1 : index
    %c0_203 = arith.constant 0 : index
    %c0_204 = arith.constant 0 : index
    %151 = vector.load %arg5[%c1_202, %c0_203, %c0_204] : memref<16x32x16xbf16, #tpu.memory_space<vmem>>, vector<1x32x16xbf16>
    %152 = vector.shape_cast %151 : vector<1x32x16xbf16> to vector<32x16xbf16>
    %cst_205 = arith.constant dense<0.000000e+00> : vector<128x16xf32>
    %153 = tpu.matmul %150, %152, %cst_205 {dimension_numbers = #tpu.dot_dimension_numbers<[1], [0], [0], [1], [0, 0, 1, 1], [], []>} : vector<128x32xbf16>, vector<32x16xbf16>, vector<128x16xf32> -> vector<128x16xf32>
    %154 = arith.addf %116, %153 : vector<128x16xf32>
    %c0_206 = arith.constant 0 : index
    %c0_207 = arith.constant 0 : index
    %c2_208 = arith.constant 2 : index
    %c0_209 = arith.constant 0 : index
    %155 = vector.load %arg10[%c0_206, %c0_207, %c2_208, %c0_209] : memref<2x11x11x32xf32, #tpu.memory_space<vmem>>, vector<1x1x8x32xf32>
    %156 = vector.shape_cast %155 : vector<1x1x8x32xf32> to vector<8x32xf32>
    %c0_210 = arith.constant 0 : index
    %c1_211 = arith.constant 1 : index
    %c2_212 = arith.constant 2 : index
    %c0_213 = arith.constant 0 : index
    %157 = vector.load %arg10[%c0_210, %c1_211, %c2_212, %c0_213] : memref<2x11x11x32xf32, #tpu.memory_space<vmem>>, vector<1x1x8x32xf32>
    %158 = vector.shape_cast %157 : vector<1x1x8x32xf32> to vector<8x32xf32>
    %c0_214 = arith.constant 0 : index
    %c2_215 = arith.constant 2 : index
    %c2_216 = arith.constant 2 : index
    %c0_217 = arith.constant 0 : index
    %159 = vector.load %arg10[%c0_214, %c2_215, %c2_216, %c0_217] : memref<2x11x11x32xf32, #tpu.memory_space<vmem>>, vector<1x1x8x32xf32>
    %160 = vector.shape_cast %159 : vector<1x1x8x32xf32> to vector<8x32xf32>
    %c0_218 = arith.constant 0 : index
    %c3_219 = arith.constant 3 : index
    %c2_220 = arith.constant 2 : index
    %c0_221 = arith.constant 0 : index
    %161 = vector.load %arg10[%c0_218, %c3_219, %c2_220, %c0_221] : memref<2x11x11x32xf32, #tpu.memory_space<vmem>>, vector<1x1x8x32xf32>
    %162 = vector.shape_cast %161 : vector<1x1x8x32xf32> to vector<8x32xf32>
    %c0_222 = arith.constant 0 : index
    %c4_223 = arith.constant 4 : index
    %c2_224 = arith.constant 2 : index
    %c0_225 = arith.constant 0 : index
    %163 = vector.load %arg10[%c0_222, %c4_223, %c2_224, %c0_225] : memref<2x11x11x32xf32, #tpu.memory_space<vmem>>, vector<1x1x8x32xf32>
    %164 = vector.shape_cast %163 : vector<1x1x8x32xf32> to vector<8x32xf32>
    %c0_226 = arith.constant 0 : index
    %c5_227 = arith.constant 5 : index
    %c2_228 = arith.constant 2 : index
    %c0_229 = arith.constant 0 : index
    %165 = vector.load %arg10[%c0_226, %c5_227, %c2_228, %c0_229] : memref<2x11x11x32xf32, #tpu.memory_space<vmem>>, vector<1x1x8x32xf32>
    %166 = vector.shape_cast %165 : vector<1x1x8x32xf32> to vector<8x32xf32>
    %c0_230 = arith.constant 0 : index
    %c6_231 = arith.constant 6 : index
    %c2_232 = arith.constant 2 : index
    %c0_233 = arith.constant 0 : index
    %167 = vector.load %arg10[%c0_230, %c6_231, %c2_232, %c0_233] : memref<2x11x11x32xf32, #tpu.memory_space<vmem>>, vector<1x1x8x32xf32>
    %168 = vector.shape_cast %167 : vector<1x1x8x32xf32> to vector<8x32xf32>
    %c0_234 = arith.constant 0 : index
    %c7_235 = arith.constant 7 : index
    %c2_236 = arith.constant 2 : index
    %c0_237 = arith.constant 0 : index
    %169 = vector.load %arg10[%c0_234, %c7_235, %c2_236, %c0_237] : memref<2x11x11x32xf32, #tpu.memory_space<vmem>>, vector<1x1x8x32xf32>
    %170 = vector.shape_cast %169 : vector<1x1x8x32xf32> to vector<8x32xf32>
    %c1_238 = arith.constant 1 : index
    %c0_239 = arith.constant 0 : index
    %c2_240 = arith.constant 2 : index
    %c0_241 = arith.constant 0 : index
    %171 = vector.load %arg10[%c1_238, %c0_239, %c2_240, %c0_241] : memref<2x11x11x32xf32, #tpu.memory_space<vmem>>, vector<1x1x8x32xf32>
    %172 = vector.shape_cast %171 : vector<1x1x8x32xf32> to vector<8x32xf32>
    %c1_242 = arith.constant 1 : index
    %c1_243 = arith.constant 1 : index
    %c2_244 = arith.constant 2 : index
    %c0_245 = arith.constant 0 : index
    %173 = vector.load %arg10[%c1_242, %c1_243, %c2_244, %c0_245] : memref<2x11x11x32xf32, #tpu.memory_space<vmem>>, vector<1x1x8x32xf32>
    %174 = vector.shape_cast %173 : vector<1x1x8x32xf32> to vector<8x32xf32>
    %c1_246 = arith.constant 1 : index
    %c2_247 = arith.constant 2 : index
    %c2_248 = arith.constant 2 : index
    %c0_249 = arith.constant 0 : index
    %175 = vector.load %arg10[%c1_246, %c2_247, %c2_248, %c0_249] : memref<2x11x11x32xf32, #tpu.memory_space<vmem>>, vector<1x1x8x32xf32>
    %176 = vector.shape_cast %175 : vector<1x1x8x32xf32> to vector<8x32xf32>
    %c1_250 = arith.constant 1 : index
    %c3_251 = arith.constant 3 : index
    %c2_252 = arith.constant 2 : index
    %c0_253 = arith.constant 0 : index
    %177 = vector.load %arg10[%c1_250, %c3_251, %c2_252, %c0_253] : memref<2x11x11x32xf32, #tpu.memory_space<vmem>>, vector<1x1x8x32xf32>
    %178 = vector.shape_cast %177 : vector<1x1x8x32xf32> to vector<8x32xf32>
    %c1_254 = arith.constant 1 : index
    %c4_255 = arith.constant 4 : index
    %c2_256 = arith.constant 2 : index
    %c0_257 = arith.constant 0 : index
    %179 = vector.load %arg10[%c1_254, %c4_255, %c2_256, %c0_257] : memref<2x11x11x32xf32, #tpu.memory_space<vmem>>, vector<1x1x8x32xf32>
    %180 = vector.shape_cast %179 : vector<1x1x8x32xf32> to vector<8x32xf32>
    %c1_258 = arith.constant 1 : index
    %c5_259 = arith.constant 5 : index
    %c2_260 = arith.constant 2 : index
    %c0_261 = arith.constant 0 : index
    %181 = vector.load %arg10[%c1_258, %c5_259, %c2_260, %c0_261] : memref<2x11x11x32xf32, #tpu.memory_space<vmem>>, vector<1x1x8x32xf32>
    %182 = vector.shape_cast %181 : vector<1x1x8x32xf32> to vector<8x32xf32>
    %c1_262 = arith.constant 1 : index
    %c6_263 = arith.constant 6 : index
    %c2_264 = arith.constant 2 : index
    %c0_265 = arith.constant 0 : index
    %183 = vector.load %arg10[%c1_262, %c6_263, %c2_264, %c0_265] : memref<2x11x11x32xf32, #tpu.memory_space<vmem>>, vector<1x1x8x32xf32>
    %184 = vector.shape_cast %183 : vector<1x1x8x32xf32> to vector<8x32xf32>
    %c1_266 = arith.constant 1 : index
    %c7_267 = arith.constant 7 : index
    %c2_268 = arith.constant 2 : index
    %c0_269 = arith.constant 0 : index
    %185 = vector.load %arg10[%c1_266, %c7_267, %c2_268, %c0_269] : memref<2x11x11x32xf32, #tpu.memory_space<vmem>>, vector<1x1x8x32xf32>
    %186 = vector.shape_cast %185 : vector<1x1x8x32xf32> to vector<8x32xf32>
    %187 = tpu.concatenate %156, %158, %160, %162, %164, %166, %168, %170, %172, %174, %176, %178, %180, %182, %184, %186 in 0 : vector<8x32xf32>, vector<8x32xf32>, vector<8x32xf32>, vector<8x32xf32>, vector<8x32xf32>, vector<8x32xf32>, vector<8x32xf32>, vector<8x32xf32>, vector<8x32xf32>, vector<8x32xf32>, vector<8x32xf32>, vector<8x32xf32>, vector<8x32xf32>, vector<8x32xf32>, vector<8x32xf32>, vector<8x32xf32> -> vector<128x32xf32>
    %188 = arith.truncf %187 : vector<128x32xf32> to vector<128x32xbf16>
    %c2_270 = arith.constant 2 : index
    %c0_271 = arith.constant 0 : index
    %c0_272 = arith.constant 0 : index
    %189 = vector.load %arg5[%c2_270, %c0_271, %c0_272] : memref<16x32x16xbf16, #tpu.memory_space<vmem>>, vector<1x32x16xbf16>
    %190 = vector.shape_cast %189 : vector<1x32x16xbf16> to vector<32x16xbf16>
    %cst_273 = arith.constant dense<0.000000e+00> : vector<128x16xf32>
    %191 = tpu.matmul %188, %190, %cst_273 {dimension_numbers = #tpu.dot_dimension_numbers<[1], [0], [0], [1], [0, 0, 1, 1], [], []>} : vector<128x32xbf16>, vector<32x16xbf16>, vector<128x16xf32> -> vector<128x16xf32>
    %192 = arith.addf %154, %191 : vector<128x16xf32>
    %c0_274 = arith.constant 0 : index
    %c0_275 = arith.constant 0 : index
    %c3_276 = arith.constant 3 : index
    %c0_277 = arith.constant 0 : index
    %193 = vector.load %arg10[%c0_274, %c0_275, %c3_276, %c0_277] : memref<2x11x11x32xf32, #tpu.memory_space<vmem>>, vector<1x1x8x32xf32>
    %194 = vector.shape_cast %193 : vector<1x1x8x32xf32> to vector<8x32xf32>
    %c0_278 = arith.constant 0 : index
    %c1_279 = arith.constant 1 : index
    %c3_280 = arith.constant 3 : index
    %c0_281 = arith.constant 0 : index
    %195 = vector.load %arg10[%c0_278, %c1_279, %c3_280, %c0_281] : memref<2x11x11x32xf32, #tpu.memory_space<vmem>>, vector<1x1x8x32xf32>
    %196 = vector.shape_cast %195 : vector<1x1x8x32xf32> to vector<8x32xf32>
    %c0_282 = arith.constant 0 : index
    %c2_283 = arith.constant 2 : index
    %c3_284 = arith.constant 3 : index
    %c0_285 = arith.constant 0 : index
    %197 = vector.load %arg10[%c0_282, %c2_283, %c3_284, %c0_285] : memref<2x11x11x32xf32, #tpu.memory_space<vmem>>, vector<1x1x8x32xf32>
    %198 = vector.shape_cast %197 : vector<1x1x8x32xf32> to vector<8x32xf32>
    %c0_286 = arith.constant 0 : index
    %c3_287 = arith.constant 3 : index
    %c3_288 = arith.constant 3 : index
    %c0_289 = arith.constant 0 : index
    %199 = vector.load %arg10[%c0_286, %c3_287, %c3_288, %c0_289] : memref<2x11x11x32xf32, #tpu.memory_space<vmem>>, vector<1x1x8x32xf32>
    %200 = vector.shape_cast %199 : vector<1x1x8x32xf32> to vector<8x32xf32>
    %c0_290 = arith.constant 0 : index
    %c4_291 = arith.constant 4 : index
    %c3_292 = arith.constant 3 : index
    %c0_293 = arith.constant 0 : index
    %201 = vector.load %arg10[%c0_290, %c4_291, %c3_292, %c0_293] : memref<2x11x11x32xf32, #tpu.memory_space<vmem>>, vector<1x1x8x32xf32>
    %202 = vector.shape_cast %201 : vector<1x1x8x32xf32> to vector<8x32xf32>
    %c0_294 = arith.constant 0 : index
    %c5_295 = arith.constant 5 : index
    %c3_296 = arith.constant 3 : index
    %c0_297 = arith.constant 0 : index
    %203 = vector.load %arg10[%c0_294, %c5_295, %c3_296, %c0_297] : memref<2x11x11x32xf32, #tpu.memory_space<vmem>>, vector<1x1x8x32xf32>
    %204 = vector.shape_cast %203 : vector<1x1x8x32xf32> to vector<8x32xf32>
    %c0_298 = arith.constant 0 : index
    %c6_299 = arith.constant 6 : index
    %c3_300 = arith.constant 3 : index
    %c0_301 = arith.constant 0 : index
    %205 = vector.load %arg10[%c0_298, %c6_299, %c3_300, %c0_301] : memref<2x11x11x32xf32, #tpu.memory_space<vmem>>, vector<1x1x8x32xf32>
    %206 = vector.shape_cast %205 : vector<1x1x8x32xf32> to vector<8x32xf32>
    %c0_302 = arith.constant 0 : index
    %c7_303 = arith.constant 7 : index
    %c3_304 = arith.constant 3 : index
    %c0_305 = arith.constant 0 : index
    %207 = vector.load %arg10[%c0_302, %c7_303, %c3_304, %c0_305] : memref<2x11x11x32xf32, #tpu.memory_space<vmem>>, vector<1x1x8x32xf32>
    %208 = vector.shape_cast %207 : vector<1x1x8x32xf32> to vector<8x32xf32>
    %c1_306 = arith.constant 1 : index
    %c0_307 = arith.constant 0 : index
    %c3_308 = arith.constant 3 : index
    %c0_309 = arith.constant 0 : index
    %209 = vector.load %arg10[%c1_306, %c0_307, %c3_308, %c0_309] : memref<2x11x11x32xf32, #tpu.memory_space<vmem>>, vector<1x1x8x32xf32>
    %210 = vector.shape_cast %209 : vector<1x1x8x32xf32> to vector<8x32xf32>
    %c1_310 = arith.constant 1 : index
    %c1_311 = arith.constant 1 : index
    %c3_312 = arith.constant 3 : index
    %c0_313 = arith.constant 0 : index
    %211 = vector.load %arg10[%c1_310, %c1_311, %c3_312, %c0_313] : memref<2x11x11x32xf32, #tpu.memory_space<vmem>>, vector<1x1x8x32xf32>
    %212 = vector.shape_cast %211 : vector<1x1x8x32xf32> to vector<8x32xf32>
    %c1_314 = arith.constant 1 : index
    %c2_315 = arith.constant 2 : index
    %c3_316 = arith.constant 3 : index
    %c0_317 = arith.constant 0 : index
    %213 = vector.load %arg10[%c1_314, %c2_315, %c3_316, %c0_317] : memref<2x11x11x32xf32, #tpu.memory_space<vmem>>, vector<1x1x8x32xf32>
    %214 = vector.shape_cast %213 : vector<1x1x8x32xf32> to vector<8x32xf32>
    %c1_318 = arith.constant 1 : index
    %c3_319 = arith.constant 3 : index
    %c3_320 = arith.constant 3 : index
    %c0_321 = arith.constant 0 : index
    %215 = vector.load %arg10[%c1_318, %c3_319, %c3_320, %c0_321] : memref<2x11x11x32xf32, #tpu.memory_space<vmem>>, vector<1x1x8x32xf32>
    %216 = vector.shape_cast %215 : vector<1x1x8x32xf32> to vector<8x32xf32>
    %c1_322 = arith.constant 1 : index
    %c4_323 = arith.constant 4 : index
    %c3_324 = arith.constant 3 : index
    %c0_325 = arith.constant 0 : index
    %217 = vector.load %arg10[%c1_322, %c4_323, %c3_324, %c0_325] : memref<2x11x11x32xf32, #tpu.memory_space<vmem>>, vector<1x1x8x32xf32>
    %218 = vector.shape_cast %217 : vector<1x1x8x32xf32> to vector<8x32xf32>
    %c1_326 = arith.constant 1 : index
    %c5_327 = arith.constant 5 : index
    %c3_328 = arith.constant 3 : index
    %c0_329 = arith.constant 0 : index
    %219 = vector.load %arg10[%c1_326, %c5_327, %c3_328, %c0_329] : memref<2x11x11x32xf32, #tpu.memory_space<vmem>>, vector<1x1x8x32xf32>
    %220 = vector.shape_cast %219 : vector<1x1x8x32xf32> to vector<8x32xf32>
    %c1_330 = arith.constant 1 : index
    %c6_331 = arith.constant 6 : index
    %c3_332 = arith.constant 3 : index
    %c0_333 = arith.constant 0 : index
    %221 = vector.load %arg10[%c1_330, %c6_331, %c3_332, %c0_333] : memref<2x11x11x32xf32, #tpu.memory_space<vmem>>, vector<1x1x8x32xf32>
    %222 = vector.shape_cast %221 : vector<1x1x8x32xf32> to vector<8x32xf32>
    %c1_334 = arith.constant 1 : index
    %c7_335 = arith.constant 7 : index
    %c3_336 = arith.constant 3 : index
    %c0_337 = arith.constant 0 : index
    %223 = vector.load %arg10[%c1_334, %c7_335, %c3_336, %c0_337] : memref<2x11x11x32xf32, #tpu.memory_space<vmem>>, vector<1x1x8x32xf32>
    %224 = vector.shape_cast %223 : vector<1x1x8x32xf32> to vector<8x32xf32>
    %225 = tpu.concatenate %194, %196, %198, %200, %202, %204, %206, %208, %210, %212, %214, %216, %218, %220, %222, %224 in 0 : vector<8x32xf32>, vector<8x32xf32>, vector<8x32xf32>, vector<8x32xf32>, vector<8x32xf32>, vector<8x32xf32>, vector<8x32xf32>, vector<8x32xf32>, vector<8x32xf32>, vector<8x32xf32>, vector<8x32xf32>, vector<8x32xf32>, vector<8x32xf32>, vector<8x32xf32>, vector<8x32xf32>, vector<8x32xf32> -> vector<128x32xf32>
    %226 = arith.truncf %225 : vector<128x32xf32> to vector<128x32xbf16>
    %c3_338 = arith.constant 3 : index
    %c0_339 = arith.constant 0 : index
    %c0_340 = arith.constant 0 : index
    %227 = vector.load %arg5[%c3_338, %c0_339, %c0_340] : memref<16x32x16xbf16, #tpu.memory_space<vmem>>, vector<1x32x16xbf16>
    %228 = vector.shape_cast %227 : vector<1x32x16xbf16> to vector<32x16xbf16>
    %cst_341 = arith.constant dense<0.000000e+00> : vector<128x16xf32>
    %229 = tpu.matmul %226, %228, %cst_341 {dimension_numbers = #tpu.dot_dimension_numbers<[1], [0], [0], [1], [0, 0, 1, 1], [], []>} : vector<128x32xbf16>, vector<32x16xbf16>, vector<128x16xf32> -> vector<128x16xf32>
    %230 = arith.addf %192, %229 : vector<128x16xf32>
    %c0_342 = arith.constant 0 : index
    %c1_343 = arith.constant 1 : index
    %c0_344 = arith.constant 0 : index
    %c0_345 = arith.constant 0 : index
    %231 = vector.load %arg10[%c0_342, %c1_343, %c0_344, %c0_345] : memref<2x11x11x32xf32, #tpu.memory_space<vmem>>, vector<1x1x8x32xf32>
    %232 = vector.shape_cast %231 : vector<1x1x8x32xf32> to vector<8x32xf32>
    %c0_346 = arith.constant 0 : index
    %c2_347 = arith.constant 2 : index
    %c0_348 = arith.constant 0 : index
    %c0_349 = arith.constant 0 : index
    %233 = vector.load %arg10[%c0_346, %c2_347, %c0_348, %c0_349] : memref<2x11x11x32xf32, #tpu.memory_space<vmem>>, vector<1x1x8x32xf32>
    %234 = vector.shape_cast %233 : vector<1x1x8x32xf32> to vector<8x32xf32>
    %c0_350 = arith.constant 0 : index
    %c3_351 = arith.constant 3 : index
    %c0_352 = arith.constant 0 : index
    %c0_353 = arith.constant 0 : index
    %235 = vector.load %arg10[%c0_350, %c3_351, %c0_352, %c0_353] : memref<2x11x11x32xf32, #tpu.memory_space<vmem>>, vector<1x1x8x32xf32>
    %236 = vector.shape_cast %235 : vector<1x1x8x32xf32> to vector<8x32xf32>
    %c0_354 = arith.constant 0 : index
    %c4_355 = arith.constant 4 : index
    %c0_356 = arith.constant 0 : index
    %c0_357 = arith.constant 0 : index
    %237 = vector.load %arg10[%c0_354, %c4_355, %c0_356, %c0_357] : memref<2x11x11x32xf32, #tpu.memory_space<vmem>>, vector<1x1x8x32xf32>
    %238 = vector.shape_cast %237 : vector<1x1x8x32xf32> to vector<8x32xf32>
    %c0_358 = arith.constant 0 : index
    %c5_359 = arith.constant 5 : index
    %c0_360 = arith.constant 0 : index
    %c0_361 = arith.constant 0 : index
    %239 = vector.load %arg10[%c0_358, %c5_359, %c0_360, %c0_361] : memref<2x11x11x32xf32, #tpu.memory_space<vmem>>, vector<1x1x8x32xf32>
    %240 = vector.shape_cast %239 : vector<1x1x8x32xf32> to vector<8x32xf32>
    %c0_362 = arith.constant 0 : index
    %c6_363 = arith.constant 6 : index
    %c0_364 = arith.constant 0 : index
    %c0_365 = arith.constant 0 : index
    %241 = vector.load %arg10[%c0_362, %c6_363, %c0_364, %c0_365] : memref<2x11x11x32xf32, #tpu.memory_space<vmem>>, vector<1x1x8x32xf32>
    %242 = vector.shape_cast %241 : vector<1x1x8x32xf32> to vector<8x32xf32>
    %c0_366 = arith.constant 0 : index
    %c7_367 = arith.constant 7 : index
    %c0_368 = arith.constant 0 : index
    %c0_369 = arith.constant 0 : index
    %243 = vector.load %arg10[%c0_366, %c7_367, %c0_368, %c0_369] : memref<2x11x11x32xf32, #tpu.memory_space<vmem>>, vector<1x1x8x32xf32>
    %244 = vector.shape_cast %243 : vector<1x1x8x32xf32> to vector<8x32xf32>
    %c0_370 = arith.constant 0 : index
    %c8_371 = arith.constant 8 : index
    %c0_372 = arith.constant 0 : index
    %c0_373 = arith.constant 0 : index
    %245 = vector.load %arg10[%c0_370, %c8_371, %c0_372, %c0_373] : memref<2x11x11x32xf32, #tpu.memory_space<vmem>>, vector<1x1x8x32xf32>
    %246 = vector.shape_cast %245 : vector<1x1x8x32xf32> to vector<8x32xf32>
    %c1_374 = arith.constant 1 : index
    %c1_375 = arith.constant 1 : index
    %c0_376 = arith.constant 0 : index
    %c0_377 = arith.constant 0 : index
    %247 = vector.load %arg10[%c1_374, %c1_375, %c0_376, %c0_377] : memref<2x11x11x32xf32, #tpu.memory_space<vmem>>, vector<1x1x8x32xf32>
    %248 = vector.shape_cast %247 : vector<1x1x8x32xf32> to vector<8x32xf32>
    %c1_378 = arith.constant 1 : index
    %c2_379 = arith.constant 2 : index
    %c0_380 = arith.constant 0 : index
    %c0_381 = arith.constant 0 : index
    %249 = vector.load %arg10[%c1_378, %c2_379, %c0_380, %c0_381] : memref<2x11x11x32xf32, #tpu.memory_space<vmem>>, vector<1x1x8x32xf32>
    %250 = vector.shape_cast %249 : vector<1x1x8x32xf32> to vector<8x32xf32>
    %c1_382 = arith.constant 1 : index
    %c3_383 = arith.constant 3 : index
    %c0_384 = arith.constant 0 : index
    %c0_385 = arith.constant 0 : index
    %251 = vector.load %arg10[%c1_382, %c3_383, %c0_384, %c0_385] : memref<2x11x11x32xf32, #tpu.memory_space<vmem>>, vector<1x1x8x32xf32>
    %252 = vector.shape_cast %251 : vector<1x1x8x32xf32> to vector<8x32xf32>
    %c1_386 = arith.constant 1 : index
    %c4_387 = arith.constant 4 : index
    %c0_388 = arith.constant 0 : index
    %c0_389 = arith.constant 0 : index
    %253 = vector.load %arg10[%c1_386, %c4_387, %c0_388, %c0_389] : memref<2x11x11x32xf32, #tpu.memory_space<vmem>>, vector<1x1x8x32xf32>
    %254 = vector.shape_cast %253 : vector<1x1x8x32xf32> to vector<8x32xf32>
    %c1_390 = arith.constant 1 : index
    %c5_391 = arith.constant 5 : index
    %c0_392 = arith.constant 0 : index
    %c0_393 = arith.constant 0 : index
    %255 = vector.load %arg10[%c1_390, %c5_391, %c0_392, %c0_393] : memref<2x11x11x32xf32, #tpu.memory_space<vmem>>, vector<1x1x8x32xf32>
    %256 = vector.shape_cast %255 : vector<1x1x8x32xf32> to vector<8x32xf32>
    %c1_394 = arith.constant 1 : index
    %c6_395 = arith.constant 6 : index
    %c0_396 = arith.constant 0 : index
    %c0_397 = arith.constant 0 : index
    %257 = vector.load %arg10[%c1_394, %c6_395, %c0_396, %c0_397] : memref<2x11x11x32xf32, #tpu.memory_space<vmem>>, vector<1x1x8x32xf32>
    %258 = vector.shape_cast %257 : vector<1x1x8x32xf32> to vector<8x32xf32>
    %c1_398 = arith.constant 1 : index
    %c7_399 = arith.constant 7 : index
    %c0_400 = arith.constant 0 : index
    %c0_401 = arith.constant 0 : index
    %259 = vector.load %arg10[%c1_398, %c7_399, %c0_400, %c0_401] : memref<2x11x11x32xf32, #tpu.memory_space<vmem>>, vector<1x1x8x32xf32>
    %260 = vector.shape_cast %259 : vector<1x1x8x32xf32> to vector<8x32xf32>
    %c1_402 = arith.constant 1 : index
    %c8_403 = arith.constant 8 : index
    %c0_404 = arith.constant 0 : index
    %c0_405 = arith.constant 0 : index
    %261 = vector.load %arg10[%c1_402, %c8_403, %c0_404, %c0_405] : memref<2x11x11x32xf32, #tpu.memory_space<vmem>>, vector<1x1x8x32xf32>
    %262 = vector.shape_cast %261 : vector<1x1x8x32xf32> to vector<8x32xf32>
    %263 = tpu.concatenate %232, %234, %236, %238, %240, %242, %244, %246, %248, %250, %252, %254, %256, %258, %260, %262 in 0 : vector<8x32xf32>, vector<8x32xf32>, vector<8x32xf32>, vector<8x32xf32>, vector<8x32xf32>, vector<8x32xf32>, vector<8x32xf32>, vector<8x32xf32>, vector<8x32xf32>, vector<8x32xf32>, vector<8x32xf32>, vector<8x32xf32>, vector<8x32xf32>, vector<8x32xf32>, vector<8x32xf32>, vector<8x32xf32> -> vector<128x32xf32>
    %264 = arith.truncf %263 : vector<128x32xf32> to vector<128x32xbf16>
    %c4_406 = arith.constant 4 : index
    %c0_407 = arith.constant 0 : index
    %c0_408 = arith.constant 0 : index
    %265 = vector.load %arg5[%c4_406, %c0_407, %c0_408] : memref<16x32x16xbf16, #tpu.memory_space<vmem>>, vector<1x32x16xbf16>
    %266 = vector.shape_cast %265 : vector<1x32x16xbf16> to vector<32x16xbf16>
    %cst_409 = arith.constant dense<0.000000e+00> : vector<128x16xf32>
    %267 = tpu.matmul %264, %266, %cst_409 {dimension_numbers = #tpu.dot_dimension_numbers<[1], [0], [0], [1], [0, 0, 1, 1], [], []>} : vector<128x32xbf16>, vector<32x16xbf16>, vector<128x16xf32> -> vector<128x16xf32>
    %268 = arith.addf %230, %267 : vector<128x16xf32>
    %c0_410 = arith.constant 0 : index
    %c1_411 = arith.constant 1 : index
    %c1_412 = arith.constant 1 : index
    %c0_413 = arith.constant 0 : index
    %269 = vector.load %arg10[%c0_410, %c1_411, %c1_412, %c0_413] : memref<2x11x11x32xf32, #tpu.memory_space<vmem>>, vector<1x1x8x32xf32>
    %270 = vector.shape_cast %269 : vector<1x1x8x32xf32> to vector<8x32xf32>
    %c0_414 = arith.constant 0 : index
    %c2_415 = arith.constant 2 : index
    %c1_416 = arith.constant 1 : index
    %c0_417 = arith.constant 0 : index
    %271 = vector.load %arg10[%c0_414, %c2_415, %c1_416, %c0_417] : memref<2x11x11x32xf32, #tpu.memory_space<vmem>>, vector<1x1x8x32xf32>
    %272 = vector.shape_cast %271 : vector<1x1x8x32xf32> to vector<8x32xf32>
    %c0_418 = arith.constant 0 : index
    %c3_419 = arith.constant 3 : index
    %c1_420 = arith.constant 1 : index
    %c0_421 = arith.constant 0 : index
    %273 = vector.load %arg10[%c0_418, %c3_419, %c1_420, %c0_421] : memref<2x11x11x32xf32, #tpu.memory_space<vmem>>, vector<1x1x8x32xf32>
    %274 = vector.shape_cast %273 : vector<1x1x8x32xf32> to vector<8x32xf32>
    %c0_422 = arith.constant 0 : index
    %c4_423 = arith.constant 4 : index
    %c1_424 = arith.constant 1 : index
    %c0_425 = arith.constant 0 : index
    %275 = vector.load %arg10[%c0_422, %c4_423, %c1_424, %c0_425] : memref<2x11x11x32xf32, #tpu.memory_space<vmem>>, vector<1x1x8x32xf32>
    %276 = vector.shape_cast %275 : vector<1x1x8x32xf32> to vector<8x32xf32>
    %c0_426 = arith.constant 0 : index
    %c5_427 = arith.constant 5 : index
    %c1_428 = arith.constant 1 : index
    %c0_429 = arith.constant 0 : index
    %277 = vector.load %arg10[%c0_426, %c5_427, %c1_428, %c0_429] : memref<2x11x11x32xf32, #tpu.memory_space<vmem>>, vector<1x1x8x32xf32>
    %278 = vector.shape_cast %277 : vector<1x1x8x32xf32> to vector<8x32xf32>
    %c0_430 = arith.constant 0 : index
    %c6_431 = arith.constant 6 : index
    %c1_432 = arith.constant 1 : index
    %c0_433 = arith.constant 0 : index
    %279 = vector.load %arg10[%c0_430, %c6_431, %c1_432, %c0_433] : memref<2x11x11x32xf32, #tpu.memory_space<vmem>>, vector<1x1x8x32xf32>
    %280 = vector.shape_cast %279 : vector<1x1x8x32xf32> to vector<8x32xf32>
    %c0_434 = arith.constant 0 : index
    %c7_435 = arith.constant 7 : index
    %c1_436 = arith.constant 1 : index
    %c0_437 = arith.constant 0 : index
    %281 = vector.load %arg10[%c0_434, %c7_435, %c1_436, %c0_437] : memref<2x11x11x32xf32, #tpu.memory_space<vmem>>, vector<1x1x8x32xf32>
    %282 = vector.shape_cast %281 : vector<1x1x8x32xf32> to vector<8x32xf32>
    %c0_438 = arith.constant 0 : index
    %c8_439 = arith.constant 8 : index
    %c1_440 = arith.constant 1 : index
    %c0_441 = arith.constant 0 : index
    %283 = vector.load %arg10[%c0_438, %c8_439, %c1_440, %c0_441] : memref<2x11x11x32xf32, #tpu.memory_space<vmem>>, vector<1x1x8x32xf32>
    %284 = vector.shape_cast %283 : vector<1x1x8x32xf32> to vector<8x32xf32>
    %c1_442 = arith.constant 1 : index
    %c1_443 = arith.constant 1 : index
    %c1_444 = arith.constant 1 : index
    %c0_445 = arith.constant 0 : index
    %285 = vector.load %arg10[%c1_442, %c1_443, %c1_444, %c0_445] : memref<2x11x11x32xf32, #tpu.memory_space<vmem>>, vector<1x1x8x32xf32>
    %286 = vector.shape_cast %285 : vector<1x1x8x32xf32> to vector<8x32xf32>
    %c1_446 = arith.constant 1 : index
    %c2_447 = arith.constant 2 : index
    %c1_448 = arith.constant 1 : index
    %c0_449 = arith.constant 0 : index
    %287 = vector.load %arg10[%c1_446, %c2_447, %c1_448, %c0_449] : memref<2x11x11x32xf32, #tpu.memory_space<vmem>>, vector<1x1x8x32xf32>
    %288 = vector.shape_cast %287 : vector<1x1x8x32xf32> to vector<8x32xf32>
    %c1_450 = arith.constant 1 : index
    %c3_451 = arith.constant 3 : index
    %c1_452 = arith.constant 1 : index
    %c0_453 = arith.constant 0 : index
    %289 = vector.load %arg10[%c1_450, %c3_451, %c1_452, %c0_453] : memref<2x11x11x32xf32, #tpu.memory_space<vmem>>, vector<1x1x8x32xf32>
    %290 = vector.shape_cast %289 : vector<1x1x8x32xf32> to vector<8x32xf32>
    %c1_454 = arith.constant 1 : index
    %c4_455 = arith.constant 4 : index
    %c1_456 = arith.constant 1 : index
    %c0_457 = arith.constant 0 : index
    %291 = vector.load %arg10[%c1_454, %c4_455, %c1_456, %c0_457] : memref<2x11x11x32xf32, #tpu.memory_space<vmem>>, vector<1x1x8x32xf32>
    %292 = vector.shape_cast %291 : vector<1x1x8x32xf32> to vector<8x32xf32>
    %c1_458 = arith.constant 1 : index
    %c5_459 = arith.constant 5 : index
    %c1_460 = arith.constant 1 : index
    %c0_461 = arith.constant 0 : index
    %293 = vector.load %arg10[%c1_458, %c5_459, %c1_460, %c0_461] : memref<2x11x11x32xf32, #tpu.memory_space<vmem>>, vector<1x1x8x32xf32>
    %294 = vector.shape_cast %293 : vector<1x1x8x32xf32> to vector<8x32xf32>
    %c1_462 = arith.constant 1 : index
    %c6_463 = arith.constant 6 : index
    %c1_464 = arith.constant 1 : index
    %c0_465 = arith.constant 0 : index
    %295 = vector.load %arg10[%c1_462, %c6_463, %c1_464, %c0_465] : memref<2x11x11x32xf32, #tpu.memory_space<vmem>>, vector<1x1x8x32xf32>
    %296 = vector.shape_cast %295 : vector<1x1x8x32xf32> to vector<8x32xf32>
    %c1_466 = arith.constant 1 : index
    %c7_467 = arith.constant 7 : index
    %c1_468 = arith.constant 1 : index
    %c0_469 = arith.constant 0 : index
    %297 = vector.load %arg10[%c1_466, %c7_467, %c1_468, %c0_469] : memref<2x11x11x32xf32, #tpu.memory_space<vmem>>, vector<1x1x8x32xf32>
    %298 = vector.shape_cast %297 : vector<1x1x8x32xf32> to vector<8x32xf32>
    %c1_470 = arith.constant 1 : index
    %c8_471 = arith.constant 8 : index
    %c1_472 = arith.constant 1 : index
    %c0_473 = arith.constant 0 : index
    %299 = vector.load %arg10[%c1_470, %c8_471, %c1_472, %c0_473] : memref<2x11x11x32xf32, #tpu.memory_space<vmem>>, vector<1x1x8x32xf32>
    %300 = vector.shape_cast %299 : vector<1x1x8x32xf32> to vector<8x32xf32>
    %301 = tpu.concatenate %270, %272, %274, %276, %278, %280, %282, %284, %286, %288, %290, %292, %294, %296, %298, %300 in 0 : vector<8x32xf32>, vector<8x32xf32>, vector<8x32xf32>, vector<8x32xf32>, vector<8x32xf32>, vector<8x32xf32>, vector<8x32xf32>, vector<8x32xf32>, vector<8x32xf32>, vector<8x32xf32>, vector<8x32xf32>, vector<8x32xf32>, vector<8x32xf32>, vector<8x32xf32>, vector<8x32xf32>, vector<8x32xf32> -> vector<128x32xf32>
    %302 = arith.truncf %301 : vector<128x32xf32> to vector<128x32xbf16>
    %c5_474 = arith.constant 5 : index
    %c0_475 = arith.constant 0 : index
    %c0_476 = arith.constant 0 : index
    %303 = vector.load %arg5[%c5_474, %c0_475, %c0_476] : memref<16x32x16xbf16, #tpu.memory_space<vmem>>, vector<1x32x16xbf16>
    %304 = vector.shape_cast %303 : vector<1x32x16xbf16> to vector<32x16xbf16>
    %cst_477 = arith.constant dense<0.000000e+00> : vector<128x16xf32>
    %305 = tpu.matmul %302, %304, %cst_477 {dimension_numbers = #tpu.dot_dimension_numbers<[1], [0], [0], [1], [0, 0, 1, 1], [], []>} : vector<128x32xbf16>, vector<32x16xbf16>, vector<128x16xf32> -> vector<128x16xf32>
    %306 = arith.addf %268, %305 : vector<128x16xf32>
    %c0_478 = arith.constant 0 : index
    %c1_479 = arith.constant 1 : index
    %c2_480 = arith.constant 2 : index
    %c0_481 = arith.constant 0 : index
    %307 = vector.load %arg10[%c0_478, %c1_479, %c2_480, %c0_481] : memref<2x11x11x32xf32, #tpu.memory_space<vmem>>, vector<1x1x8x32xf32>
    %308 = vector.shape_cast %307 : vector<1x1x8x32xf32> to vector<8x32xf32>
    %c0_482 = arith.constant 0 : index
    %c2_483 = arith.constant 2 : index
    %c2_484 = arith.constant 2 : index
    %c0_485 = arith.constant 0 : index
    %309 = vector.load %arg10[%c0_482, %c2_483, %c2_484, %c0_485] : memref<2x11x11x32xf32, #tpu.memory_space<vmem>>, vector<1x1x8x32xf32>
    %310 = vector.shape_cast %309 : vector<1x1x8x32xf32> to vector<8x32xf32>
    %c0_486 = arith.constant 0 : index
    %c3_487 = arith.constant 3 : index
    %c2_488 = arith.constant 2 : index
    %c0_489 = arith.constant 0 : index
    %311 = vector.load %arg10[%c0_486, %c3_487, %c2_488, %c0_489] : memref<2x11x11x32xf32, #tpu.memory_space<vmem>>, vector<1x1x8x32xf32>
    %312 = vector.shape_cast %311 : vector<1x1x8x32xf32> to vector<8x32xf32>
    %c0_490 = arith.constant 0 : index
    %c4_491 = arith.constant 4 : index
    %c2_492 = arith.constant 2 : index
    %c0_493 = arith.constant 0 : index
    %313 = vector.load %arg10[%c0_490, %c4_491, %c2_492, %c0_493] : memref<2x11x11x32xf32, #tpu.memory_space<vmem>>, vector<1x1x8x32xf32>
    %314 = vector.shape_cast %313 : vector<1x1x8x32xf32> to vector<8x32xf32>
    %c0_494 = arith.constant 0 : index
    %c5_495 = arith.constant 5 : index
    %c2_496 = arith.constant 2 : index
    %c0_497 = arith.constant 0 : index
    %315 = vector.load %arg10[%c0_494, %c5_495, %c2_496, %c0_497] : memref<2x11x11x32xf32, #tpu.memory_space<vmem>>, vector<1x1x8x32xf32>
    %316 = vector.shape_cast %315 : vector<1x1x8x32xf32> to vector<8x32xf32>
    %c0_498 = arith.constant 0 : index
    %c6_499 = arith.constant 6 : index
    %c2_500 = arith.constant 2 : index
    %c0_501 = arith.constant 0 : index
    %317 = vector.load %arg10[%c0_498, %c6_499, %c2_500, %c0_501] : memref<2x11x11x32xf32, #tpu.memory_space<vmem>>, vector<1x1x8x32xf32>
    %318 = vector.shape_cast %317 : vector<1x1x8x32xf32> to vector<8x32xf32>
    %c0_502 = arith.constant 0 : index
    %c7_503 = arith.constant 7 : index
    %c2_504 = arith.constant 2 : index
    %c0_505 = arith.constant 0 : index
    %319 = vector.load %arg10[%c0_502, %c7_503, %c2_504, %c0_505] : memref<2x11x11x32xf32, #tpu.memory_space<vmem>>, vector<1x1x8x32xf32>
    %320 = vector.shape_cast %319 : vector<1x1x8x32xf32> to vector<8x32xf32>
    %c0_506 = arith.constant 0 : index
    %c8_507 = arith.constant 8 : index
    %c2_508 = arith.constant 2 : index
    %c0_509 = arith.constant 0 : index
    %321 = vector.load %arg10[%c0_506, %c8_507, %c2_508, %c0_509] : memref<2x11x11x32xf32, #tpu.memory_space<vmem>>, vector<1x1x8x32xf32>
    %322 = vector.shape_cast %321 : vector<1x1x8x32xf32> to vector<8x32xf32>
    %c1_510 = arith.constant 1 : index
    %c1_511 = arith.constant 1 : index
    %c2_512 = arith.constant 2 : index
    %c0_513 = arith.constant 0 : index
    %323 = vector.load %arg10[%c1_510, %c1_511, %c2_512, %c0_513] : memref<2x11x11x32xf32, #tpu.memory_space<vmem>>, vector<1x1x8x32xf32>
    %324 = vector.shape_cast %323 : vector<1x1x8x32xf32> to vector<8x32xf32>
    %c1_514 = arith.constant 1 : index
    %c2_515 = arith.constant 2 : index
    %c2_516 = arith.constant 2 : index
    %c0_517 = arith.constant 0 : index
    %325 = vector.load %arg10[%c1_514, %c2_515, %c2_516, %c0_517] : memref<2x11x11x32xf32, #tpu.memory_space<vmem>>, vector<1x1x8x32xf32>
    %326 = vector.shape_cast %325 : vector<1x1x8x32xf32> to vector<8x32xf32>
    %c1_518 = arith.constant 1 : index
    %c3_519 = arith.constant 3 : index
    %c2_520 = arith.constant 2 : index
    %c0_521 = arith.constant 0 : index
    %327 = vector.load %arg10[%c1_518, %c3_519, %c2_520, %c0_521] : memref<2x11x11x32xf32, #tpu.memory_space<vmem>>, vector<1x1x8x32xf32>
    %328 = vector.shape_cast %327 : vector<1x1x8x32xf32> to vector<8x32xf32>
    %c1_522 = arith.constant 1 : index
    %c4_523 = arith.constant 4 : index
    %c2_524 = arith.constant 2 : index
    %c0_525 = arith.constant 0 : index
    %329 = vector.load %arg10[%c1_522, %c4_523, %c2_524, %c0_525] : memref<2x11x11x32xf32, #tpu.memory_space<vmem>>, vector<1x1x8x32xf32>
    %330 = vector.shape_cast %329 : vector<1x1x8x32xf32> to vector<8x32xf32>
    %c1_526 = arith.constant 1 : index
    %c5_527 = arith.constant 5 : index
    %c2_528 = arith.constant 2 : index
    %c0_529 = arith.constant 0 : index
    %331 = vector.load %arg10[%c1_526, %c5_527, %c2_528, %c0_529] : memref<2x11x11x32xf32, #tpu.memory_space<vmem>>, vector<1x1x8x32xf32>
    %332 = vector.shape_cast %331 : vector<1x1x8x32xf32> to vector<8x32xf32>
    %c1_530 = arith.constant 1 : index
    %c6_531 = arith.constant 6 : index
    %c2_532 = arith.constant 2 : index
    %c0_533 = arith.constant 0 : index
    %333 = vector.load %arg10[%c1_530, %c6_531, %c2_532, %c0_533] : memref<2x11x11x32xf32, #tpu.memory_space<vmem>>, vector<1x1x8x32xf32>
    %334 = vector.shape_cast %333 : vector<1x1x8x32xf32> to vector<8x32xf32>
    %c1_534 = arith.constant 1 : index
    %c7_535 = arith.constant 7 : index
    %c2_536 = arith.constant 2 : index
    %c0_537 = arith.constant 0 : index
    %335 = vector.load %arg10[%c1_534, %c7_535, %c2_536, %c0_537] : memref<2x11x11x32xf32, #tpu.memory_space<vmem>>, vector<1x1x8x32xf32>
    %336 = vector.shape_cast %335 : vector<1x1x8x32xf32> to vector<8x32xf32>
    %c1_538 = arith.constant 1 : index
    %c8_539 = arith.constant 8 : index
    %c2_540 = arith.constant 2 : index
    %c0_541 = arith.constant 0 : index
    %337 = vector.load %arg10[%c1_538, %c8_539, %c2_540, %c0_541] : memref<2x11x11x32xf32, #tpu.memory_space<vmem>>, vector<1x1x8x32xf32>
    %338 = vector.shape_cast %337 : vector<1x1x8x32xf32> to vector<8x32xf32>
    %339 = tpu.concatenate %308, %310, %312, %314, %316, %318, %320, %322, %324, %326, %328, %330, %332, %334, %336, %338 in 0 : vector<8x32xf32>, vector<8x32xf32>, vector<8x32xf32>, vector<8x32xf32>, vector<8x32xf32>, vector<8x32xf32>, vector<8x32xf32>, vector<8x32xf32>, vector<8x32xf32>, vector<8x32xf32>, vector<8x32xf32>, vector<8x32xf32>, vector<8x32xf32>, vector<8x32xf32>, vector<8x32xf32>, vector<8x32xf32> -> vector<128x32xf32>
    %340 = arith.truncf %339 : vector<128x32xf32> to vector<128x32xbf16>
    %c6_542 = arith.constant 6 : index
    %c0_543 = arith.constant 0 : index
    %c0_544 = arith.constant 0 : index
    %341 = vector.load %arg5[%c6_542, %c0_543, %c0_544] : memref<16x32x16xbf16, #tpu.memory_space<vmem>>, vector<1x32x16xbf16>
    %342 = vector.shape_cast %341 : vector<1x32x16xbf16> to vector<32x16xbf16>
    %cst_545 = arith.constant dense<0.000000e+00> : vector<128x16xf32>
    %343 = tpu.matmul %340, %342, %cst_545 {dimension_numbers = #tpu.dot_dimension_numbers<[1], [0], [0], [1], [0, 0, 1, 1], [], []>} : vector<128x32xbf16>, vector<32x16xbf16>, vector<128x16xf32> -> vector<128x16xf32>
    %344 = arith.addf %306, %343 : vector<128x16xf32>
    %c0_546 = arith.constant 0 : index
    %c1_547 = arith.constant 1 : index
    %c3_548 = arith.constant 3 : index
    %c0_549 = arith.constant 0 : index
    %345 = vector.load %arg10[%c0_546, %c1_547, %c3_548, %c0_549] : memref<2x11x11x32xf32, #tpu.memory_space<vmem>>, vector<1x1x8x32xf32>
    %346 = vector.shape_cast %345 : vector<1x1x8x32xf32> to vector<8x32xf32>
    %c0_550 = arith.constant 0 : index
    %c2_551 = arith.constant 2 : index
    %c3_552 = arith.constant 3 : index
    %c0_553 = arith.constant 0 : index
    %347 = vector.load %arg10[%c0_550, %c2_551, %c3_552, %c0_553] : memref<2x11x11x32xf32, #tpu.memory_space<vmem>>, vector<1x1x8x32xf32>
    %348 = vector.shape_cast %347 : vector<1x1x8x32xf32> to vector<8x32xf32>
    %c0_554 = arith.constant 0 : index
    %c3_555 = arith.constant 3 : index
    %c3_556 = arith.constant 3 : index
    %c0_557 = arith.constant 0 : index
    %349 = vector.load %arg10[%c0_554, %c3_555, %c3_556, %c0_557] : memref<2x11x11x32xf32, #tpu.memory_space<vmem>>, vector<1x1x8x32xf32>
    %350 = vector.shape_cast %349 : vector<1x1x8x32xf32> to vector<8x32xf32>
    %c0_558 = arith.constant 0 : index
    %c4_559 = arith.constant 4 : index
    %c3_560 = arith.constant 3 : index
    %c0_561 = arith.constant 0 : index
    %351 = vector.load %arg10[%c0_558, %c4_559, %c3_560, %c0_561] : memref<2x11x11x32xf32, #tpu.memory_space<vmem>>, vector<1x1x8x32xf32>
    %352 = vector.shape_cast %351 : vector<1x1x8x32xf32> to vector<8x32xf32>
    %c0_562 = arith.constant 0 : index
    %c5_563 = arith.constant 5 : index
    %c3_564 = arith.constant 3 : index
    %c0_565 = arith.constant 0 : index
    %353 = vector.load %arg10[%c0_562, %c5_563, %c3_564, %c0_565] : memref<2x11x11x32xf32, #tpu.memory_space<vmem>>, vector<1x1x8x32xf32>
    %354 = vector.shape_cast %353 : vector<1x1x8x32xf32> to vector<8x32xf32>
    %c0_566 = arith.constant 0 : index
    %c6_567 = arith.constant 6 : index
    %c3_568 = arith.constant 3 : index
    %c0_569 = arith.constant 0 : index
    %355 = vector.load %arg10[%c0_566, %c6_567, %c3_568, %c0_569] : memref<2x11x11x32xf32, #tpu.memory_space<vmem>>, vector<1x1x8x32xf32>
    %356 = vector.shape_cast %355 : vector<1x1x8x32xf32> to vector<8x32xf32>
    %c0_570 = arith.constant 0 : index
    %c7_571 = arith.constant 7 : index
    %c3_572 = arith.constant 3 : index
    %c0_573 = arith.constant 0 : index
    %357 = vector.load %arg10[%c0_570, %c7_571, %c3_572, %c0_573] : memref<2x11x11x32xf32, #tpu.memory_space<vmem>>, vector<1x1x8x32xf32>
    %358 = vector.shape_cast %357 : vector<1x1x8x32xf32> to vector<8x32xf32>
    %c0_574 = arith.constant 0 : index
    %c8_575 = arith.constant 8 : index
    %c3_576 = arith.constant 3 : index
    %c0_577 = arith.constant 0 : index
    %359 = vector.load %arg10[%c0_574, %c8_575, %c3_576, %c0_577] : memref<2x11x11x32xf32, #tpu.memory_space<vmem>>, vector<1x1x8x32xf32>
    %360 = vector.shape_cast %359 : vector<1x1x8x32xf32> to vector<8x32xf32>
    %c1_578 = arith.constant 1 : index
    %c1_579 = arith.constant 1 : index
    %c3_580 = arith.constant 3 : index
    %c0_581 = arith.constant 0 : index
    %361 = vector.load %arg10[%c1_578, %c1_579, %c3_580, %c0_581] : memref<2x11x11x32xf32, #tpu.memory_space<vmem>>, vector<1x1x8x32xf32>
    %362 = vector.shape_cast %361 : vector<1x1x8x32xf32> to vector<8x32xf32>
    %c1_582 = arith.constant 1 : index
    %c2_583 = arith.constant 2 : index
    %c3_584 = arith.constant 3 : index
    %c0_585 = arith.constant 0 : index
    %363 = vector.load %arg10[%c1_582, %c2_583, %c3_584, %c0_585] : memref<2x11x11x32xf32, #tpu.memory_space<vmem>>, vector<1x1x8x32xf32>
    %364 = vector.shape_cast %363 : vector<1x1x8x32xf32> to vector<8x32xf32>
    %c1_586 = arith.constant 1 : index
    %c3_587 = arith.constant 3 : index
    %c3_588 = arith.constant 3 : index
    %c0_589 = arith.constant 0 : index
    %365 = vector.load %arg10[%c1_586, %c3_587, %c3_588, %c0_589] : memref<2x11x11x32xf32, #tpu.memory_space<vmem>>, vector<1x1x8x32xf32>
    %366 = vector.shape_cast %365 : vector<1x1x8x32xf32> to vector<8x32xf32>
    %c1_590 = arith.constant 1 : index
    %c4_591 = arith.constant 4 : index
    %c3_592 = arith.constant 3 : index
    %c0_593 = arith.constant 0 : index
    %367 = vector.load %arg10[%c1_590, %c4_591, %c3_592, %c0_593] : memref<2x11x11x32xf32, #tpu.memory_space<vmem>>, vector<1x1x8x32xf32>
    %368 = vector.shape_cast %367 : vector<1x1x8x32xf32> to vector<8x32xf32>
    %c1_594 = arith.constant 1 : index
    %c5_595 = arith.constant 5 : index
    %c3_596 = arith.constant 3 : index
    %c0_597 = arith.constant 0 : index
    %369 = vector.load %arg10[%c1_594, %c5_595, %c3_596, %c0_597] : memref<2x11x11x32xf32, #tpu.memory_space<vmem>>, vector<1x1x8x32xf32>
    %370 = vector.shape_cast %369 : vector<1x1x8x32xf32> to vector<8x32xf32>
    %c1_598 = arith.constant 1 : index
    %c6_599 = arith.constant 6 : index
    %c3_600 = arith.constant 3 : index
    %c0_601 = arith.constant 0 : index
    %371 = vector.load %arg10[%c1_598, %c6_599, %c3_600, %c0_601] : memref<2x11x11x32xf32, #tpu.memory_space<vmem>>, vector<1x1x8x32xf32>
    %372 = vector.shape_cast %371 : vector<1x1x8x32xf32> to vector<8x32xf32>
    %c1_602 = arith.constant 1 : index
    %c7_603 = arith.constant 7 : index
    %c3_604 = arith.constant 3 : index
    %c0_605 = arith.constant 0 : index
    %373 = vector.load %arg10[%c1_602, %c7_603, %c3_604, %c0_605] : memref<2x11x11x32xf32, #tpu.memory_space<vmem>>, vector<1x1x8x32xf32>
    %374 = vector.shape_cast %373 : vector<1x1x8x32xf32> to vector<8x32xf32>
    %c1_606 = arith.constant 1 : index
    %c8_607 = arith.constant 8 : index
    %c3_608 = arith.constant 3 : index
    %c0_609 = arith.constant 0 : index
    %375 = vector.load %arg10[%c1_606, %c8_607, %c3_608, %c0_609] : memref<2x11x11x32xf32, #tpu.memory_space<vmem>>, vector<1x1x8x32xf32>
    %376 = vector.shape_cast %375 : vector<1x1x8x32xf32> to vector<8x32xf32>
    %377 = tpu.concatenate %346, %348, %350, %352, %354, %356, %358, %360, %362, %364, %366, %368, %370, %372, %374, %376 in 0 : vector<8x32xf32>, vector<8x32xf32>, vector<8x32xf32>, vector<8x32xf32>, vector<8x32xf32>, vector<8x32xf32>, vector<8x32xf32>, vector<8x32xf32>, vector<8x32xf32>, vector<8x32xf32>, vector<8x32xf32>, vector<8x32xf32>, vector<8x32xf32>, vector<8x32xf32>, vector<8x32xf32>, vector<8x32xf32> -> vector<128x32xf32>
    %378 = arith.truncf %377 : vector<128x32xf32> to vector<128x32xbf16>
    %c7_610 = arith.constant 7 : index
    %c0_611 = arith.constant 0 : index
    %c0_612 = arith.constant 0 : index
    %379 = vector.load %arg5[%c7_610, %c0_611, %c0_612] : memref<16x32x16xbf16, #tpu.memory_space<vmem>>, vector<1x32x16xbf16>
    %380 = vector.shape_cast %379 : vector<1x32x16xbf16> to vector<32x16xbf16>
    %cst_613 = arith.constant dense<0.000000e+00> : vector<128x16xf32>
    %381 = tpu.matmul %378, %380, %cst_613 {dimension_numbers = #tpu.dot_dimension_numbers<[1], [0], [0], [1], [0, 0, 1, 1], [], []>} : vector<128x32xbf16>, vector<32x16xbf16>, vector<128x16xf32> -> vector<128x16xf32>
    %382 = arith.addf %344, %381 : vector<128x16xf32>
    %c0_614 = arith.constant 0 : index
    %c2_615 = arith.constant 2 : index
    %c0_616 = arith.constant 0 : index
    %c0_617 = arith.constant 0 : index
    %383 = vector.load %arg10[%c0_614, %c2_615, %c0_616, %c0_617] : memref<2x11x11x32xf32, #tpu.memory_space<vmem>>, vector<1x1x8x32xf32>
    %384 = vector.shape_cast %383 : vector<1x1x8x32xf32> to vector<8x32xf32>
    %c0_618 = arith.constant 0 : index
    %c3_619 = arith.constant 3 : index
    %c0_620 = arith.constant 0 : index
    %c0_621 = arith.constant 0 : index
    %385 = vector.load %arg10[%c0_618, %c3_619, %c0_620, %c0_621] : memref<2x11x11x32xf32, #tpu.memory_space<vmem>>, vector<1x1x8x32xf32>
    %386 = vector.shape_cast %385 : vector<1x1x8x32xf32> to vector<8x32xf32>
    %c0_622 = arith.constant 0 : index
    %c4_623 = arith.constant 4 : index
    %c0_624 = arith.constant 0 : index
    %c0_625 = arith.constant 0 : index
    %387 = vector.load %arg10[%c0_622, %c4_623, %c0_624, %c0_625] : memref<2x11x11x32xf32, #tpu.memory_space<vmem>>, vector<1x1x8x32xf32>
    %388 = vector.shape_cast %387 : vector<1x1x8x32xf32> to vector<8x32xf32>
    %c0_626 = arith.constant 0 : index
    %c5_627 = arith.constant 5 : index
    %c0_628 = arith.constant 0 : index
    %c0_629 = arith.constant 0 : index
    %389 = vector.load %arg10[%c0_626, %c5_627, %c0_628, %c0_629] : memref<2x11x11x32xf32, #tpu.memory_space<vmem>>, vector<1x1x8x32xf32>
    %390 = vector.shape_cast %389 : vector<1x1x8x32xf32> to vector<8x32xf32>
    %c0_630 = arith.constant 0 : index
    %c6_631 = arith.constant 6 : index
    %c0_632 = arith.constant 0 : index
    %c0_633 = arith.constant 0 : index
    %391 = vector.load %arg10[%c0_630, %c6_631, %c0_632, %c0_633] : memref<2x11x11x32xf32, #tpu.memory_space<vmem>>, vector<1x1x8x32xf32>
    %392 = vector.shape_cast %391 : vector<1x1x8x32xf32> to vector<8x32xf32>
    %c0_634 = arith.constant 0 : index
    %c7_635 = arith.constant 7 : index
    %c0_636 = arith.constant 0 : index
    %c0_637 = arith.constant 0 : index
    %393 = vector.load %arg10[%c0_634, %c7_635, %c0_636, %c0_637] : memref<2x11x11x32xf32, #tpu.memory_space<vmem>>, vector<1x1x8x32xf32>
    %394 = vector.shape_cast %393 : vector<1x1x8x32xf32> to vector<8x32xf32>
    %c0_638 = arith.constant 0 : index
    %c8_639 = arith.constant 8 : index
    %c0_640 = arith.constant 0 : index
    %c0_641 = arith.constant 0 : index
    %395 = vector.load %arg10[%c0_638, %c8_639, %c0_640, %c0_641] : memref<2x11x11x32xf32, #tpu.memory_space<vmem>>, vector<1x1x8x32xf32>
    %396 = vector.shape_cast %395 : vector<1x1x8x32xf32> to vector<8x32xf32>
    %c0_642 = arith.constant 0 : index
    %c9 = arith.constant 9 : index
    %c0_643 = arith.constant 0 : index
    %c0_644 = arith.constant 0 : index
    %397 = vector.load %arg10[%c0_642, %c9, %c0_643, %c0_644] : memref<2x11x11x32xf32, #tpu.memory_space<vmem>>, vector<1x1x8x32xf32>
    %398 = vector.shape_cast %397 : vector<1x1x8x32xf32> to vector<8x32xf32>
    %c1_645 = arith.constant 1 : index
    %c2_646 = arith.constant 2 : index
    %c0_647 = arith.constant 0 : index
    %c0_648 = arith.constant 0 : index
    %399 = vector.load %arg10[%c1_645, %c2_646, %c0_647, %c0_648] : memref<2x11x11x32xf32, #tpu.memory_space<vmem>>, vector<1x1x8x32xf32>
    %400 = vector.shape_cast %399 : vector<1x1x8x32xf32> to vector<8x32xf32>
    %c1_649 = arith.constant 1 : index
    %c3_650 = arith.constant 3 : index
    %c0_651 = arith.constant 0 : index
    %c0_652 = arith.constant 0 : index
    %401 = vector.load %arg10[%c1_649, %c3_650, %c0_651, %c0_652] : memref<2x11x11x32xf32, #tpu.memory_space<vmem>>, vector<1x1x8x32xf32>
    %402 = vector.shape_cast %401 : vector<1x1x8x32xf32> to vector<8x32xf32>
    %c1_653 = arith.constant 1 : index
    %c4_654 = arith.constant 4 : index
    %c0_655 = arith.constant 0 : index
    %c0_656 = arith.constant 0 : index
    %403 = vector.load %arg10[%c1_653, %c4_654, %c0_655, %c0_656] : memref<2x11x11x32xf32, #tpu.memory_space<vmem>>, vector<1x1x8x32xf32>
    %404 = vector.shape_cast %403 : vector<1x1x8x32xf32> to vector<8x32xf32>
    %c1_657 = arith.constant 1 : index
    %c5_658 = arith.constant 5 : index
    %c0_659 = arith.constant 0 : index
    %c0_660 = arith.constant 0 : index
    %405 = vector.load %arg10[%c1_657, %c5_658, %c0_659, %c0_660] : memref<2x11x11x32xf32, #tpu.memory_space<vmem>>, vector<1x1x8x32xf32>
    %406 = vector.shape_cast %405 : vector<1x1x8x32xf32> to vector<8x32xf32>
    %c1_661 = arith.constant 1 : index
    %c6_662 = arith.constant 6 : index
    %c0_663 = arith.constant 0 : index
    %c0_664 = arith.constant 0 : index
    %407 = vector.load %arg10[%c1_661, %c6_662, %c0_663, %c0_664] : memref<2x11x11x32xf32, #tpu.memory_space<vmem>>, vector<1x1x8x32xf32>
    %408 = vector.shape_cast %407 : vector<1x1x8x32xf32> to vector<8x32xf32>
    %c1_665 = arith.constant 1 : index
    %c7_666 = arith.constant 7 : index
    %c0_667 = arith.constant 0 : index
    %c0_668 = arith.constant 0 : index
    %409 = vector.load %arg10[%c1_665, %c7_666, %c0_667, %c0_668] : memref<2x11x11x32xf32, #tpu.memory_space<vmem>>, vector<1x1x8x32xf32>
    %410 = vector.shape_cast %409 : vector<1x1x8x32xf32> to vector<8x32xf32>
    %c1_669 = arith.constant 1 : index
    %c8_670 = arith.constant 8 : index
    %c0_671 = arith.constant 0 : index
    %c0_672 = arith.constant 0 : index
    %411 = vector.load %arg10[%c1_669, %c8_670, %c0_671, %c0_672] : memref<2x11x11x32xf32, #tpu.memory_space<vmem>>, vector<1x1x8x32xf32>
    %412 = vector.shape_cast %411 : vector<1x1x8x32xf32> to vector<8x32xf32>
    %c1_673 = arith.constant 1 : index
    %c9_674 = arith.constant 9 : index
    %c0_675 = arith.constant 0 : index
    %c0_676 = arith.constant 0 : index
    %413 = vector.load %arg10[%c1_673, %c9_674, %c0_675, %c0_676] : memref<2x11x11x32xf32, #tpu.memory_space<vmem>>, vector<1x1x8x32xf32>
    %414 = vector.shape_cast %413 : vector<1x1x8x32xf32> to vector<8x32xf32>
    %415 = tpu.concatenate %384, %386, %388, %390, %392, %394, %396, %398, %400, %402, %404, %406, %408, %410, %412, %414 in 0 : vector<8x32xf32>, vector<8x32xf32>, vector<8x32xf32>, vector<8x32xf32>, vector<8x32xf32>, vector<8x32xf32>, vector<8x32xf32>, vector<8x32xf32>, vector<8x32xf32>, vector<8x32xf32>, vector<8x32xf32>, vector<8x32xf32>, vector<8x32xf32>, vector<8x32xf32>, vector<8x32xf32>, vector<8x32xf32> -> vector<128x32xf32>
    %416 = arith.truncf %415 : vector<128x32xf32> to vector<128x32xbf16>
    %c8_677 = arith.constant 8 : index
    %c0_678 = arith.constant 0 : index
    %c0_679 = arith.constant 0 : index
    %417 = vector.load %arg5[%c8_677, %c0_678, %c0_679] : memref<16x32x16xbf16, #tpu.memory_space<vmem>>, vector<1x32x16xbf16>
    %418 = vector.shape_cast %417 : vector<1x32x16xbf16> to vector<32x16xbf16>
    %cst_680 = arith.constant dense<0.000000e+00> : vector<128x16xf32>
    %419 = tpu.matmul %416, %418, %cst_680 {dimension_numbers = #tpu.dot_dimension_numbers<[1], [0], [0], [1], [0, 0, 1, 1], [], []>} : vector<128x32xbf16>, vector<32x16xbf16>, vector<128x16xf32> -> vector<128x16xf32>
    %420 = arith.addf %382, %419 : vector<128x16xf32>
    %c0_681 = arith.constant 0 : index
    %c2_682 = arith.constant 2 : index
    %c1_683 = arith.constant 1 : index
    %c0_684 = arith.constant 0 : index
    %421 = vector.load %arg10[%c0_681, %c2_682, %c1_683, %c0_684] : memref<2x11x11x32xf32, #tpu.memory_space<vmem>>, vector<1x1x8x32xf32>
    %422 = vector.shape_cast %421 : vector<1x1x8x32xf32> to vector<8x32xf32>
    %c0_685 = arith.constant 0 : index
    %c3_686 = arith.constant 3 : index
    %c1_687 = arith.constant 1 : index
    %c0_688 = arith.constant 0 : index
    %423 = vector.load %arg10[%c0_685, %c3_686, %c1_687, %c0_688] : memref<2x11x11x32xf32, #tpu.memory_space<vmem>>, vector<1x1x8x32xf32>
    %424 = vector.shape_cast %423 : vector<1x1x8x32xf32> to vector<8x32xf32>
    %c0_689 = arith.constant 0 : index
    %c4_690 = arith.constant 4 : index
    %c1_691 = arith.constant 1 : index
    %c0_692 = arith.constant 0 : index
    %425 = vector.load %arg10[%c0_689, %c4_690, %c1_691, %c0_692] : memref<2x11x11x32xf32, #tpu.memory_space<vmem>>, vector<1x1x8x32xf32>
    %426 = vector.shape_cast %425 : vector<1x1x8x32xf32> to vector<8x32xf32>
    %c0_693 = arith.constant 0 : index
    %c5_694 = arith.constant 5 : index
    %c1_695 = arith.constant 1 : index
    %c0_696 = arith.constant 0 : index
    %427 = vector.load %arg10[%c0_693, %c5_694, %c1_695, %c0_696] : memref<2x11x11x32xf32, #tpu.memory_space<vmem>>, vector<1x1x8x32xf32>
    %428 = vector.shape_cast %427 : vector<1x1x8x32xf32> to vector<8x32xf32>
    %c0_697 = arith.constant 0 : index
    %c6_698 = arith.constant 6 : index
    %c1_699 = arith.constant 1 : index
    %c0_700 = arith.constant 0 : index
    %429 = vector.load %arg10[%c0_697, %c6_698, %c1_699, %c0_700] : memref<2x11x11x32xf32, #tpu.memory_space<vmem>>, vector<1x1x8x32xf32>
    %430 = vector.shape_cast %429 : vector<1x1x8x32xf32> to vector<8x32xf32>
    %c0_701 = arith.constant 0 : index
    %c7_702 = arith.constant 7 : index
    %c1_703 = arith.constant 1 : index
    %c0_704 = arith.constant 0 : index
    %431 = vector.load %arg10[%c0_701, %c7_702, %c1_703, %c0_704] : memref<2x11x11x32xf32, #tpu.memory_space<vmem>>, vector<1x1x8x32xf32>
    %432 = vector.shape_cast %431 : vector<1x1x8x32xf32> to vector<8x32xf32>
    %c0_705 = arith.constant 0 : index
    %c8_706 = arith.constant 8 : index
    %c1_707 = arith.constant 1 : index
    %c0_708 = arith.constant 0 : index
    %433 = vector.load %arg10[%c0_705, %c8_706, %c1_707, %c0_708] : memref<2x11x11x32xf32, #tpu.memory_space<vmem>>, vector<1x1x8x32xf32>
    %434 = vector.shape_cast %433 : vector<1x1x8x32xf32> to vector<8x32xf32>
    %c0_709 = arith.constant 0 : index
    %c9_710 = arith.constant 9 : index
    %c1_711 = arith.constant 1 : index
    %c0_712 = arith.constant 0 : index
    %435 = vector.load %arg10[%c0_709, %c9_710, %c1_711, %c0_712] : memref<2x11x11x32xf32, #tpu.memory_space<vmem>>, vector<1x1x8x32xf32>
    %436 = vector.shape_cast %435 : vector<1x1x8x32xf32> to vector<8x32xf32>
    %c1_713 = arith.constant 1 : index
    %c2_714 = arith.constant 2 : index
    %c1_715 = arith.constant 1 : index
    %c0_716 = arith.constant 0 : index
    %437 = vector.load %arg10[%c1_713, %c2_714, %c1_715, %c0_716] : memref<2x11x11x32xf32, #tpu.memory_space<vmem>>, vector<1x1x8x32xf32>
    %438 = vector.shape_cast %437 : vector<1x1x8x32xf32> to vector<8x32xf32>
    %c1_717 = arith.constant 1 : index
    %c3_718 = arith.constant 3 : index
    %c1_719 = arith.constant 1 : index
    %c0_720 = arith.constant 0 : index
    %439 = vector.load %arg10[%c1_717, %c3_718, %c1_719, %c0_720] : memref<2x11x11x32xf32, #tpu.memory_space<vmem>>, vector<1x1x8x32xf32>
    %440 = vector.shape_cast %439 : vector<1x1x8x32xf32> to vector<8x32xf32>
    %c1_721 = arith.constant 1 : index
    %c4_722 = arith.constant 4 : index
    %c1_723 = arith.constant 1 : index
    %c0_724 = arith.constant 0 : index
    %441 = vector.load %arg10[%c1_721, %c4_722, %c1_723, %c0_724] : memref<2x11x11x32xf32, #tpu.memory_space<vmem>>, vector<1x1x8x32xf32>
    %442 = vector.shape_cast %441 : vector<1x1x8x32xf32> to vector<8x32xf32>
    %c1_725 = arith.constant 1 : index
    %c5_726 = arith.constant 5 : index
    %c1_727 = arith.constant 1 : index
    %c0_728 = arith.constant 0 : index
    %443 = vector.load %arg10[%c1_725, %c5_726, %c1_727, %c0_728] : memref<2x11x11x32xf32, #tpu.memory_space<vmem>>, vector<1x1x8x32xf32>
    %444 = vector.shape_cast %443 : vector<1x1x8x32xf32> to vector<8x32xf32>
    %c1_729 = arith.constant 1 : index
    %c6_730 = arith.constant 6 : index
    %c1_731 = arith.constant 1 : index
    %c0_732 = arith.constant 0 : index
    %445 = vector.load %arg10[%c1_729, %c6_730, %c1_731, %c0_732] : memref<2x11x11x32xf32, #tpu.memory_space<vmem>>, vector<1x1x8x32xf32>
    %446 = vector.shape_cast %445 : vector<1x1x8x32xf32> to vector<8x32xf32>
    %c1_733 = arith.constant 1 : index
    %c7_734 = arith.constant 7 : index
    %c1_735 = arith.constant 1 : index
    %c0_736 = arith.constant 0 : index
    %447 = vector.load %arg10[%c1_733, %c7_734, %c1_735, %c0_736] : memref<2x11x11x32xf32, #tpu.memory_space<vmem>>, vector<1x1x8x32xf32>
    %448 = vector.shape_cast %447 : vector<1x1x8x32xf32> to vector<8x32xf32>
    %c1_737 = arith.constant 1 : index
    %c8_738 = arith.constant 8 : index
    %c1_739 = arith.constant 1 : index
    %c0_740 = arith.constant 0 : index
    %449 = vector.load %arg10[%c1_737, %c8_738, %c1_739, %c0_740] : memref<2x11x11x32xf32, #tpu.memory_space<vmem>>, vector<1x1x8x32xf32>
    %450 = vector.shape_cast %449 : vector<1x1x8x32xf32> to vector<8x32xf32>
    %c1_741 = arith.constant 1 : index
    %c9_742 = arith.constant 9 : index
    %c1_743 = arith.constant 1 : index
    %c0_744 = arith.constant 0 : index
    %451 = vector.load %arg10[%c1_741, %c9_742, %c1_743, %c0_744] : memref<2x11x11x32xf32, #tpu.memory_space<vmem>>, vector<1x1x8x32xf32>
    %452 = vector.shape_cast %451 : vector<1x1x8x32xf32> to vector<8x32xf32>
    %453 = tpu.concatenate %422, %424, %426, %428, %430, %432, %434, %436, %438, %440, %442, %444, %446, %448, %450, %452 in 0 : vector<8x32xf32>, vector<8x32xf32>, vector<8x32xf32>, vector<8x32xf32>, vector<8x32xf32>, vector<8x32xf32>, vector<8x32xf32>, vector<8x32xf32>, vector<8x32xf32>, vector<8x32xf32>, vector<8x32xf32>, vector<8x32xf32>, vector<8x32xf32>, vector<8x32xf32>, vector<8x32xf32>, vector<8x32xf32> -> vector<128x32xf32>
    %454 = arith.truncf %453 : vector<128x32xf32> to vector<128x32xbf16>
    %c9_745 = arith.constant 9 : index
    %c0_746 = arith.constant 0 : index
    %c0_747 = arith.constant 0 : index
    %455 = vector.load %arg5[%c9_745, %c0_746, %c0_747] : memref<16x32x16xbf16, #tpu.memory_space<vmem>>, vector<1x32x16xbf16>
    %456 = vector.shape_cast %455 : vector<1x32x16xbf16> to vector<32x16xbf16>
    %cst_748 = arith.constant dense<0.000000e+00> : vector<128x16xf32>
    %457 = tpu.matmul %454, %456, %cst_748 {dimension_numbers = #tpu.dot_dimension_numbers<[1], [0], [0], [1], [0, 0, 1, 1], [], []>} : vector<128x32xbf16>, vector<32x16xbf16>, vector<128x16xf32> -> vector<128x16xf32>
    %458 = arith.addf %420, %457 : vector<128x16xf32>
    %c0_749 = arith.constant 0 : index
    %c2_750 = arith.constant 2 : index
    %c2_751 = arith.constant 2 : index
    %c0_752 = arith.constant 0 : index
    %459 = vector.load %arg10[%c0_749, %c2_750, %c2_751, %c0_752] : memref<2x11x11x32xf32, #tpu.memory_space<vmem>>, vector<1x1x8x32xf32>
    %460 = vector.shape_cast %459 : vector<1x1x8x32xf32> to vector<8x32xf32>
    %c0_753 = arith.constant 0 : index
    %c3_754 = arith.constant 3 : index
    %c2_755 = arith.constant 2 : index
    %c0_756 = arith.constant 0 : index
    %461 = vector.load %arg10[%c0_753, %c3_754, %c2_755, %c0_756] : memref<2x11x11x32xf32, #tpu.memory_space<vmem>>, vector<1x1x8x32xf32>
    %462 = vector.shape_cast %461 : vector<1x1x8x32xf32> to vector<8x32xf32>
    %c0_757 = arith.constant 0 : index
    %c4_758 = arith.constant 4 : index
    %c2_759 = arith.constant 2 : index
    %c0_760 = arith.constant 0 : index
    %463 = vector.load %arg10[%c0_757, %c4_758, %c2_759, %c0_760] : memref<2x11x11x32xf32, #tpu.memory_space<vmem>>, vector<1x1x8x32xf32>
    %464 = vector.shape_cast %463 : vector<1x1x8x32xf32> to vector<8x32xf32>
    %c0_761 = arith.constant 0 : index
    %c5_762 = arith.constant 5 : index
    %c2_763 = arith.constant 2 : index
    %c0_764 = arith.constant 0 : index
    %465 = vector.load %arg10[%c0_761, %c5_762, %c2_763, %c0_764] : memref<2x11x11x32xf32, #tpu.memory_space<vmem>>, vector<1x1x8x32xf32>
    %466 = vector.shape_cast %465 : vector<1x1x8x32xf32> to vector<8x32xf32>
    %c0_765 = arith.constant 0 : index
    %c6_766 = arith.constant 6 : index
    %c2_767 = arith.constant 2 : index
    %c0_768 = arith.constant 0 : index
    %467 = vector.load %arg10[%c0_765, %c6_766, %c2_767, %c0_768] : memref<2x11x11x32xf32, #tpu.memory_space<vmem>>, vector<1x1x8x32xf32>
    %468 = vector.shape_cast %467 : vector<1x1x8x32xf32> to vector<8x32xf32>
    %c0_769 = arith.constant 0 : index
    %c7_770 = arith.constant 7 : index
    %c2_771 = arith.constant 2 : index
    %c0_772 = arith.constant 0 : index
    %469 = vector.load %arg10[%c0_769, %c7_770, %c2_771, %c0_772] : memref<2x11x11x32xf32, #tpu.memory_space<vmem>>, vector<1x1x8x32xf32>
    %470 = vector.shape_cast %469 : vector<1x1x8x32xf32> to vector<8x32xf32>
    %c0_773 = arith.constant 0 : index
    %c8_774 = arith.constant 8 : index
    %c2_775 = arith.constant 2 : index
    %c0_776 = arith.constant 0 : index
    %471 = vector.load %arg10[%c0_773, %c8_774, %c2_775, %c0_776] : memref<2x11x11x32xf32, #tpu.memory_space<vmem>>, vector<1x1x8x32xf32>
    %472 = vector.shape_cast %471 : vector<1x1x8x32xf32> to vector<8x32xf32>
    %c0_777 = arith.constant 0 : index
    %c9_778 = arith.constant 9 : index
    %c2_779 = arith.constant 2 : index
    %c0_780 = arith.constant 0 : index
    %473 = vector.load %arg10[%c0_777, %c9_778, %c2_779, %c0_780] : memref<2x11x11x32xf32, #tpu.memory_space<vmem>>, vector<1x1x8x32xf32>
    %474 = vector.shape_cast %473 : vector<1x1x8x32xf32> to vector<8x32xf32>
    %c1_781 = arith.constant 1 : index
    %c2_782 = arith.constant 2 : index
    %c2_783 = arith.constant 2 : index
    %c0_784 = arith.constant 0 : index
    %475 = vector.load %arg10[%c1_781, %c2_782, %c2_783, %c0_784] : memref<2x11x11x32xf32, #tpu.memory_space<vmem>>, vector<1x1x8x32xf32>
    %476 = vector.shape_cast %475 : vector<1x1x8x32xf32> to vector<8x32xf32>
    %c1_785 = arith.constant 1 : index
    %c3_786 = arith.constant 3 : index
    %c2_787 = arith.constant 2 : index
    %c0_788 = arith.constant 0 : index
    %477 = vector.load %arg10[%c1_785, %c3_786, %c2_787, %c0_788] : memref<2x11x11x32xf32, #tpu.memory_space<vmem>>, vector<1x1x8x32xf32>
    %478 = vector.shape_cast %477 : vector<1x1x8x32xf32> to vector<8x32xf32>
    %c1_789 = arith.constant 1 : index
    %c4_790 = arith.constant 4 : index
    %c2_791 = arith.constant 2 : index
    %c0_792 = arith.constant 0 : index
    %479 = vector.load %arg10[%c1_789, %c4_790, %c2_791, %c0_792] : memref<2x11x11x32xf32, #tpu.memory_space<vmem>>, vector<1x1x8x32xf32>
    %480 = vector.shape_cast %479 : vector<1x1x8x32xf32> to vector<8x32xf32>
    %c1_793 = arith.constant 1 : index
    %c5_794 = arith.constant 5 : index
    %c2_795 = arith.constant 2 : index
    %c0_796 = arith.constant 0 : index
    %481 = vector.load %arg10[%c1_793, %c5_794, %c2_795, %c0_796] : memref<2x11x11x32xf32, #tpu.memory_space<vmem>>, vector<1x1x8x32xf32>
    %482 = vector.shape_cast %481 : vector<1x1x8x32xf32> to vector<8x32xf32>
    %c1_797 = arith.constant 1 : index
    %c6_798 = arith.constant 6 : index
    %c2_799 = arith.constant 2 : index
    %c0_800 = arith.constant 0 : index
    %483 = vector.load %arg10[%c1_797, %c6_798, %c2_799, %c0_800] : memref<2x11x11x32xf32, #tpu.memory_space<vmem>>, vector<1x1x8x32xf32>
    %484 = vector.shape_cast %483 : vector<1x1x8x32xf32> to vector<8x32xf32>
    %c1_801 = arith.constant 1 : index
    %c7_802 = arith.constant 7 : index
    %c2_803 = arith.constant 2 : index
    %c0_804 = arith.constant 0 : index
    %485 = vector.load %arg10[%c1_801, %c7_802, %c2_803, %c0_804] : memref<2x11x11x32xf32, #tpu.memory_space<vmem>>, vector<1x1x8x32xf32>
    %486 = vector.shape_cast %485 : vector<1x1x8x32xf32> to vector<8x32xf32>
    %c1_805 = arith.constant 1 : index
    %c8_806 = arith.constant 8 : index
    %c2_807 = arith.constant 2 : index
    %c0_808 = arith.constant 0 : index
    %487 = vector.load %arg10[%c1_805, %c8_806, %c2_807, %c0_808] : memref<2x11x11x32xf32, #tpu.memory_space<vmem>>, vector<1x1x8x32xf32>
    %488 = vector.shape_cast %487 : vector<1x1x8x32xf32> to vector<8x32xf32>
    %c1_809 = arith.constant 1 : index
    %c9_810 = arith.constant 9 : index
    %c2_811 = arith.constant 2 : index
    %c0_812 = arith.constant 0 : index
    %489 = vector.load %arg10[%c1_809, %c9_810, %c2_811, %c0_812] : memref<2x11x11x32xf32, #tpu.memory_space<vmem>>, vector<1x1x8x32xf32>
    %490 = vector.shape_cast %489 : vector<1x1x8x32xf32> to vector<8x32xf32>
    %491 = tpu.concatenate %460, %462, %464, %466, %468, %470, %472, %474, %476, %478, %480, %482, %484, %486, %488, %490 in 0 : vector<8x32xf32>, vector<8x32xf32>, vector<8x32xf32>, vector<8x32xf32>, vector<8x32xf32>, vector<8x32xf32>, vector<8x32xf32>, vector<8x32xf32>, vector<8x32xf32>, vector<8x32xf32>, vector<8x32xf32>, vector<8x32xf32>, vector<8x32xf32>, vector<8x32xf32>, vector<8x32xf32>, vector<8x32xf32> -> vector<128x32xf32>
    %492 = arith.truncf %491 : vector<128x32xf32> to vector<128x32xbf16>
    %c10 = arith.constant 10 : index
    %c0_813 = arith.constant 0 : index
    %c0_814 = arith.constant 0 : index
    %493 = vector.load %arg5[%c10, %c0_813, %c0_814] : memref<16x32x16xbf16, #tpu.memory_space<vmem>>, vector<1x32x16xbf16>
    %494 = vector.shape_cast %493 : vector<1x32x16xbf16> to vector<32x16xbf16>
    %cst_815 = arith.constant dense<0.000000e+00> : vector<128x16xf32>
    %495 = tpu.matmul %492, %494, %cst_815 {dimension_numbers = #tpu.dot_dimension_numbers<[1], [0], [0], [1], [0, 0, 1, 1], [], []>} : vector<128x32xbf16>, vector<32x16xbf16>, vector<128x16xf32> -> vector<128x16xf32>
    %496 = arith.addf %458, %495 : vector<128x16xf32>
    %c0_816 = arith.constant 0 : index
    %c2_817 = arith.constant 2 : index
    %c3_818 = arith.constant 3 : index
    %c0_819 = arith.constant 0 : index
    %497 = vector.load %arg10[%c0_816, %c2_817, %c3_818, %c0_819] : memref<2x11x11x32xf32, #tpu.memory_space<vmem>>, vector<1x1x8x32xf32>
    %498 = vector.shape_cast %497 : vector<1x1x8x32xf32> to vector<8x32xf32>
    %c0_820 = arith.constant 0 : index
    %c3_821 = arith.constant 3 : index
    %c3_822 = arith.constant 3 : index
    %c0_823 = arith.constant 0 : index
    %499 = vector.load %arg10[%c0_820, %c3_821, %c3_822, %c0_823] : memref<2x11x11x32xf32, #tpu.memory_space<vmem>>, vector<1x1x8x32xf32>
    %500 = vector.shape_cast %499 : vector<1x1x8x32xf32> to vector<8x32xf32>
    %c0_824 = arith.constant 0 : index
    %c4_825 = arith.constant 4 : index
    %c3_826 = arith.constant 3 : index
    %c0_827 = arith.constant 0 : index
    %501 = vector.load %arg10[%c0_824, %c4_825, %c3_826, %c0_827] : memref<2x11x11x32xf32, #tpu.memory_space<vmem>>, vector<1x1x8x32xf32>
    %502 = vector.shape_cast %501 : vector<1x1x8x32xf32> to vector<8x32xf32>
    %c0_828 = arith.constant 0 : index
    %c5_829 = arith.constant 5 : index
    %c3_830 = arith.constant 3 : index
    %c0_831 = arith.constant 0 : index
    %503 = vector.load %arg10[%c0_828, %c5_829, %c3_830, %c0_831] : memref<2x11x11x32xf32, #tpu.memory_space<vmem>>, vector<1x1x8x32xf32>
    %504 = vector.shape_cast %503 : vector<1x1x8x32xf32> to vector<8x32xf32>
    %c0_832 = arith.constant 0 : index
    %c6_833 = arith.constant 6 : index
    %c3_834 = arith.constant 3 : index
    %c0_835 = arith.constant 0 : index
    %505 = vector.load %arg10[%c0_832, %c6_833, %c3_834, %c0_835] : memref<2x11x11x32xf32, #tpu.memory_space<vmem>>, vector<1x1x8x32xf32>
    %506 = vector.shape_cast %505 : vector<1x1x8x32xf32> to vector<8x32xf32>
    %c0_836 = arith.constant 0 : index
    %c7_837 = arith.constant 7 : index
    %c3_838 = arith.constant 3 : index
    %c0_839 = arith.constant 0 : index
    %507 = vector.load %arg10[%c0_836, %c7_837, %c3_838, %c0_839] : memref<2x11x11x32xf32, #tpu.memory_space<vmem>>, vector<1x1x8x32xf32>
    %508 = vector.shape_cast %507 : vector<1x1x8x32xf32> to vector<8x32xf32>
    %c0_840 = arith.constant 0 : index
    %c8_841 = arith.constant 8 : index
    %c3_842 = arith.constant 3 : index
    %c0_843 = arith.constant 0 : index
    %509 = vector.load %arg10[%c0_840, %c8_841, %c3_842, %c0_843] : memref<2x11x11x32xf32, #tpu.memory_space<vmem>>, vector<1x1x8x32xf32>
    %510 = vector.shape_cast %509 : vector<1x1x8x32xf32> to vector<8x32xf32>
    %c0_844 = arith.constant 0 : index
    %c9_845 = arith.constant 9 : index
    %c3_846 = arith.constant 3 : index
    %c0_847 = arith.constant 0 : index
    %511 = vector.load %arg10[%c0_844, %c9_845, %c3_846, %c0_847] : memref<2x11x11x32xf32, #tpu.memory_space<vmem>>, vector<1x1x8x32xf32>
    %512 = vector.shape_cast %511 : vector<1x1x8x32xf32> to vector<8x32xf32>
    %c1_848 = arith.constant 1 : index
    %c2_849 = arith.constant 2 : index
    %c3_850 = arith.constant 3 : index
    %c0_851 = arith.constant 0 : index
    %513 = vector.load %arg10[%c1_848, %c2_849, %c3_850, %c0_851] : memref<2x11x11x32xf32, #tpu.memory_space<vmem>>, vector<1x1x8x32xf32>
    %514 = vector.shape_cast %513 : vector<1x1x8x32xf32> to vector<8x32xf32>
    %c1_852 = arith.constant 1 : index
    %c3_853 = arith.constant 3 : index
    %c3_854 = arith.constant 3 : index
    %c0_855 = arith.constant 0 : index
    %515 = vector.load %arg10[%c1_852, %c3_853, %c3_854, %c0_855] : memref<2x11x11x32xf32, #tpu.memory_space<vmem>>, vector<1x1x8x32xf32>
    %516 = vector.shape_cast %515 : vector<1x1x8x32xf32> to vector<8x32xf32>
    %c1_856 = arith.constant 1 : index
    %c4_857 = arith.constant 4 : index
    %c3_858 = arith.constant 3 : index
    %c0_859 = arith.constant 0 : index
    %517 = vector.load %arg10[%c1_856, %c4_857, %c3_858, %c0_859] : memref<2x11x11x32xf32, #tpu.memory_space<vmem>>, vector<1x1x8x32xf32>
    %518 = vector.shape_cast %517 : vector<1x1x8x32xf32> to vector<8x32xf32>
    %c1_860 = arith.constant 1 : index
    %c5_861 = arith.constant 5 : index
    %c3_862 = arith.constant 3 : index
    %c0_863 = arith.constant 0 : index
    %519 = vector.load %arg10[%c1_860, %c5_861, %c3_862, %c0_863] : memref<2x11x11x32xf32, #tpu.memory_space<vmem>>, vector<1x1x8x32xf32>
    %520 = vector.shape_cast %519 : vector<1x1x8x32xf32> to vector<8x32xf32>
    %c1_864 = arith.constant 1 : index
    %c6_865 = arith.constant 6 : index
    %c3_866 = arith.constant 3 : index
    %c0_867 = arith.constant 0 : index
    %521 = vector.load %arg10[%c1_864, %c6_865, %c3_866, %c0_867] : memref<2x11x11x32xf32, #tpu.memory_space<vmem>>, vector<1x1x8x32xf32>
    %522 = vector.shape_cast %521 : vector<1x1x8x32xf32> to vector<8x32xf32>
    %c1_868 = arith.constant 1 : index
    %c7_869 = arith.constant 7 : index
    %c3_870 = arith.constant 3 : index
    %c0_871 = arith.constant 0 : index
    %523 = vector.load %arg10[%c1_868, %c7_869, %c3_870, %c0_871] : memref<2x11x11x32xf32, #tpu.memory_space<vmem>>, vector<1x1x8x32xf32>
    %524 = vector.shape_cast %523 : vector<1x1x8x32xf32> to vector<8x32xf32>
    %c1_872 = arith.constant 1 : index
    %c8_873 = arith.constant 8 : index
    %c3_874 = arith.constant 3 : index
    %c0_875 = arith.constant 0 : index
    %525 = vector.load %arg10[%c1_872, %c8_873, %c3_874, %c0_875] : memref<2x11x11x32xf32, #tpu.memory_space<vmem>>, vector<1x1x8x32xf32>
    %526 = vector.shape_cast %525 : vector<1x1x8x32xf32> to vector<8x32xf32>
    %c1_876 = arith.constant 1 : index
    %c9_877 = arith.constant 9 : index
    %c3_878 = arith.constant 3 : index
    %c0_879 = arith.constant 0 : index
    %527 = vector.load %arg10[%c1_876, %c9_877, %c3_878, %c0_879] : memref<2x11x11x32xf32, #tpu.memory_space<vmem>>, vector<1x1x8x32xf32>
    %528 = vector.shape_cast %527 : vector<1x1x8x32xf32> to vector<8x32xf32>
    %529 = tpu.concatenate %498, %500, %502, %504, %506, %508, %510, %512, %514, %516, %518, %520, %522, %524, %526, %528 in 0 : vector<8x32xf32>, vector<8x32xf32>, vector<8x32xf32>, vector<8x32xf32>, vector<8x32xf32>, vector<8x32xf32>, vector<8x32xf32>, vector<8x32xf32>, vector<8x32xf32>, vector<8x32xf32>, vector<8x32xf32>, vector<8x32xf32>, vector<8x32xf32>, vector<8x32xf32>, vector<8x32xf32>, vector<8x32xf32> -> vector<128x32xf32>
    %530 = arith.truncf %529 : vector<128x32xf32> to vector<128x32xbf16>
    %c11 = arith.constant 11 : index
    %c0_880 = arith.constant 0 : index
    %c0_881 = arith.constant 0 : index
    %531 = vector.load %arg5[%c11, %c0_880, %c0_881] : memref<16x32x16xbf16, #tpu.memory_space<vmem>>, vector<1x32x16xbf16>
    %532 = vector.shape_cast %531 : vector<1x32x16xbf16> to vector<32x16xbf16>
    %cst_882 = arith.constant dense<0.000000e+00> : vector<128x16xf32>
    %533 = tpu.matmul %530, %532, %cst_882 {dimension_numbers = #tpu.dot_dimension_numbers<[1], [0], [0], [1], [0, 0, 1, 1], [], []>} : vector<128x32xbf16>, vector<32x16xbf16>, vector<128x16xf32> -> vector<128x16xf32>
    %534 = arith.addf %496, %533 : vector<128x16xf32>
    %c0_883 = arith.constant 0 : index
    %c3_884 = arith.constant 3 : index
    %c0_885 = arith.constant 0 : index
    %c0_886 = arith.constant 0 : index
    %535 = vector.load %arg10[%c0_883, %c3_884, %c0_885, %c0_886] : memref<2x11x11x32xf32, #tpu.memory_space<vmem>>, vector<1x1x8x32xf32>
    %536 = vector.shape_cast %535 : vector<1x1x8x32xf32> to vector<8x32xf32>
    %c0_887 = arith.constant 0 : index
    %c4_888 = arith.constant 4 : index
    %c0_889 = arith.constant 0 : index
    %c0_890 = arith.constant 0 : index
    %537 = vector.load %arg10[%c0_887, %c4_888, %c0_889, %c0_890] : memref<2x11x11x32xf32, #tpu.memory_space<vmem>>, vector<1x1x8x32xf32>
    %538 = vector.shape_cast %537 : vector<1x1x8x32xf32> to vector<8x32xf32>
    %c0_891 = arith.constant 0 : index
    %c5_892 = arith.constant 5 : index
    %c0_893 = arith.constant 0 : index
    %c0_894 = arith.constant 0 : index
    %539 = vector.load %arg10[%c0_891, %c5_892, %c0_893, %c0_894] : memref<2x11x11x32xf32, #tpu.memory_space<vmem>>, vector<1x1x8x32xf32>
    %540 = vector.shape_cast %539 : vector<1x1x8x32xf32> to vector<8x32xf32>
    %c0_895 = arith.constant 0 : index
    %c6_896 = arith.constant 6 : index
    %c0_897 = arith.constant 0 : index
    %c0_898 = arith.constant 0 : index
    %541 = vector.load %arg10[%c0_895, %c6_896, %c0_897, %c0_898] : memref<2x11x11x32xf32, #tpu.memory_space<vmem>>, vector<1x1x8x32xf32>
    %542 = vector.shape_cast %541 : vector<1x1x8x32xf32> to vector<8x32xf32>
    %c0_899 = arith.constant 0 : index
    %c7_900 = arith.constant 7 : index
    %c0_901 = arith.constant 0 : index
    %c0_902 = arith.constant 0 : index
    %543 = vector.load %arg10[%c0_899, %c7_900, %c0_901, %c0_902] : memref<2x11x11x32xf32, #tpu.memory_space<vmem>>, vector<1x1x8x32xf32>
    %544 = vector.shape_cast %543 : vector<1x1x8x32xf32> to vector<8x32xf32>
    %c0_903 = arith.constant 0 : index
    %c8_904 = arith.constant 8 : index
    %c0_905 = arith.constant 0 : index
    %c0_906 = arith.constant 0 : index
    %545 = vector.load %arg10[%c0_903, %c8_904, %c0_905, %c0_906] : memref<2x11x11x32xf32, #tpu.memory_space<vmem>>, vector<1x1x8x32xf32>
    %546 = vector.shape_cast %545 : vector<1x1x8x32xf32> to vector<8x32xf32>
    %c0_907 = arith.constant 0 : index
    %c9_908 = arith.constant 9 : index
    %c0_909 = arith.constant 0 : index
    %c0_910 = arith.constant 0 : index
    %547 = vector.load %arg10[%c0_907, %c9_908, %c0_909, %c0_910] : memref<2x11x11x32xf32, #tpu.memory_space<vmem>>, vector<1x1x8x32xf32>
    %548 = vector.shape_cast %547 : vector<1x1x8x32xf32> to vector<8x32xf32>
    %c0_911 = arith.constant 0 : index
    %c10_912 = arith.constant 10 : index
    %c0_913 = arith.constant 0 : index
    %c0_914 = arith.constant 0 : index
    %549 = vector.load %arg10[%c0_911, %c10_912, %c0_913, %c0_914] : memref<2x11x11x32xf32, #tpu.memory_space<vmem>>, vector<1x1x8x32xf32>
    %550 = vector.shape_cast %549 : vector<1x1x8x32xf32> to vector<8x32xf32>
    %c1_915 = arith.constant 1 : index
    %c3_916 = arith.constant 3 : index
    %c0_917 = arith.constant 0 : index
    %c0_918 = arith.constant 0 : index
    %551 = vector.load %arg10[%c1_915, %c3_916, %c0_917, %c0_918] : memref<2x11x11x32xf32, #tpu.memory_space<vmem>>, vector<1x1x8x32xf32>
    %552 = vector.shape_cast %551 : vector<1x1x8x32xf32> to vector<8x32xf32>
    %c1_919 = arith.constant 1 : index
    %c4_920 = arith.constant 4 : index
    %c0_921 = arith.constant 0 : index
    %c0_922 = arith.constant 0 : index
    %553 = vector.load %arg10[%c1_919, %c4_920, %c0_921, %c0_922] : memref<2x11x11x32xf32, #tpu.memory_space<vmem>>, vector<1x1x8x32xf32>
    %554 = vector.shape_cast %553 : vector<1x1x8x32xf32> to vector<8x32xf32>
    %c1_923 = arith.constant 1 : index
    %c5_924 = arith.constant 5 : index
    %c0_925 = arith.constant 0 : index
    %c0_926 = arith.constant 0 : index
    %555 = vector.load %arg10[%c1_923, %c5_924, %c0_925, %c0_926] : memref<2x11x11x32xf32, #tpu.memory_space<vmem>>, vector<1x1x8x32xf32>
    %556 = vector.shape_cast %555 : vector<1x1x8x32xf32> to vector<8x32xf32>
    %c1_927 = arith.constant 1 : index
    %c6_928 = arith.constant 6 : index
    %c0_929 = arith.constant 0 : index
    %c0_930 = arith.constant 0 : index
    %557 = vector.load %arg10[%c1_927, %c6_928, %c0_929, %c0_930] : memref<2x11x11x32xf32, #tpu.memory_space<vmem>>, vector<1x1x8x32xf32>
    %558 = vector.shape_cast %557 : vector<1x1x8x32xf32> to vector<8x32xf32>
    %c1_931 = arith.constant 1 : index
    %c7_932 = arith.constant 7 : index
    %c0_933 = arith.constant 0 : index
    %c0_934 = arith.constant 0 : index
    %559 = vector.load %arg10[%c1_931, %c7_932, %c0_933, %c0_934] : memref<2x11x11x32xf32, #tpu.memory_space<vmem>>, vector<1x1x8x32xf32>
    %560 = vector.shape_cast %559 : vector<1x1x8x32xf32> to vector<8x32xf32>
    %c1_935 = arith.constant 1 : index
    %c8_936 = arith.constant 8 : index
    %c0_937 = arith.constant 0 : index
    %c0_938 = arith.constant 0 : index
    %561 = vector.load %arg10[%c1_935, %c8_936, %c0_937, %c0_938] : memref<2x11x11x32xf32, #tpu.memory_space<vmem>>, vector<1x1x8x32xf32>
    %562 = vector.shape_cast %561 : vector<1x1x8x32xf32> to vector<8x32xf32>
    %c1_939 = arith.constant 1 : index
    %c9_940 = arith.constant 9 : index
    %c0_941 = arith.constant 0 : index
    %c0_942 = arith.constant 0 : index
    %563 = vector.load %arg10[%c1_939, %c9_940, %c0_941, %c0_942] : memref<2x11x11x32xf32, #tpu.memory_space<vmem>>, vector<1x1x8x32xf32>
    %564 = vector.shape_cast %563 : vector<1x1x8x32xf32> to vector<8x32xf32>
    %c1_943 = arith.constant 1 : index
    %c10_944 = arith.constant 10 : index
    %c0_945 = arith.constant 0 : index
    %c0_946 = arith.constant 0 : index
    %565 = vector.load %arg10[%c1_943, %c10_944, %c0_945, %c0_946] : memref<2x11x11x32xf32, #tpu.memory_space<vmem>>, vector<1x1x8x32xf32>
    %566 = vector.shape_cast %565 : vector<1x1x8x32xf32> to vector<8x32xf32>
    %567 = tpu.concatenate %536, %538, %540, %542, %544, %546, %548, %550, %552, %554, %556, %558, %560, %562, %564, %566 in 0 : vector<8x32xf32>, vector<8x32xf32>, vector<8x32xf32>, vector<8x32xf32>, vector<8x32xf32>, vector<8x32xf32>, vector<8x32xf32>, vector<8x32xf32>, vector<8x32xf32>, vector<8x32xf32>, vector<8x32xf32>, vector<8x32xf32>, vector<8x32xf32>, vector<8x32xf32>, vector<8x32xf32>, vector<8x32xf32> -> vector<128x32xf32>
    %568 = arith.truncf %567 : vector<128x32xf32> to vector<128x32xbf16>
    %c12 = arith.constant 12 : index
    %c0_947 = arith.constant 0 : index
    %c0_948 = arith.constant 0 : index
    %569 = vector.load %arg5[%c12, %c0_947, %c0_948] : memref<16x32x16xbf16, #tpu.memory_space<vmem>>, vector<1x32x16xbf16>
    %570 = vector.shape_cast %569 : vector<1x32x16xbf16> to vector<32x16xbf16>
    %cst_949 = arith.constant dense<0.000000e+00> : vector<128x16xf32>
    %571 = tpu.matmul %568, %570, %cst_949 {dimension_numbers = #tpu.dot_dimension_numbers<[1], [0], [0], [1], [0, 0, 1, 1], [], []>} : vector<128x32xbf16>, vector<32x16xbf16>, vector<128x16xf32> -> vector<128x16xf32>
    %572 = arith.addf %534, %571 : vector<128x16xf32>
    %c0_950 = arith.constant 0 : index
    %c3_951 = arith.constant 3 : index
    %c1_952 = arith.constant 1 : index
    %c0_953 = arith.constant 0 : index
    %573 = vector.load %arg10[%c0_950, %c3_951, %c1_952, %c0_953] : memref<2x11x11x32xf32, #tpu.memory_space<vmem>>, vector<1x1x8x32xf32>
    %574 = vector.shape_cast %573 : vector<1x1x8x32xf32> to vector<8x32xf32>
    %c0_954 = arith.constant 0 : index
    %c4_955 = arith.constant 4 : index
    %c1_956 = arith.constant 1 : index
    %c0_957 = arith.constant 0 : index
    %575 = vector.load %arg10[%c0_954, %c4_955, %c1_956, %c0_957] : memref<2x11x11x32xf32, #tpu.memory_space<vmem>>, vector<1x1x8x32xf32>
    %576 = vector.shape_cast %575 : vector<1x1x8x32xf32> to vector<8x32xf32>
    %c0_958 = arith.constant 0 : index
    %c5_959 = arith.constant 5 : index
    %c1_960 = arith.constant 1 : index
    %c0_961 = arith.constant 0 : index
    %577 = vector.load %arg10[%c0_958, %c5_959, %c1_960, %c0_961] : memref<2x11x11x32xf32, #tpu.memory_space<vmem>>, vector<1x1x8x32xf32>
    %578 = vector.shape_cast %577 : vector<1x1x8x32xf32> to vector<8x32xf32>
    %c0_962 = arith.constant 0 : index
    %c6_963 = arith.constant 6 : index
    %c1_964 = arith.constant 1 : index
    %c0_965 = arith.constant 0 : index
    %579 = vector.load %arg10[%c0_962, %c6_963, %c1_964, %c0_965] : memref<2x11x11x32xf32, #tpu.memory_space<vmem>>, vector<1x1x8x32xf32>
    %580 = vector.shape_cast %579 : vector<1x1x8x32xf32> to vector<8x32xf32>
    %c0_966 = arith.constant 0 : index
    %c7_967 = arith.constant 7 : index
    %c1_968 = arith.constant 1 : index
    %c0_969 = arith.constant 0 : index
    %581 = vector.load %arg10[%c0_966, %c7_967, %c1_968, %c0_969] : memref<2x11x11x32xf32, #tpu.memory_space<vmem>>, vector<1x1x8x32xf32>
    %582 = vector.shape_cast %581 : vector<1x1x8x32xf32> to vector<8x32xf32>
    %c0_970 = arith.constant 0 : index
    %c8_971 = arith.constant 8 : index
    %c1_972 = arith.constant 1 : index
    %c0_973 = arith.constant 0 : index
    %583 = vector.load %arg10[%c0_970, %c8_971, %c1_972, %c0_973] : memref<2x11x11x32xf32, #tpu.memory_space<vmem>>, vector<1x1x8x32xf32>
    %584 = vector.shape_cast %583 : vector<1x1x8x32xf32> to vector<8x32xf32>
    %c0_974 = arith.constant 0 : index
    %c9_975 = arith.constant 9 : index
    %c1_976 = arith.constant 1 : index
    %c0_977 = arith.constant 0 : index
    %585 = vector.load %arg10[%c0_974, %c9_975, %c1_976, %c0_977] : memref<2x11x11x32xf32, #tpu.memory_space<vmem>>, vector<1x1x8x32xf32>
    %586 = vector.shape_cast %585 : vector<1x1x8x32xf32> to vector<8x32xf32>
    %c0_978 = arith.constant 0 : index
    %c10_979 = arith.constant 10 : index
    %c1_980 = arith.constant 1 : index
    %c0_981 = arith.constant 0 : index
    %587 = vector.load %arg10[%c0_978, %c10_979, %c1_980, %c0_981] : memref<2x11x11x32xf32, #tpu.memory_space<vmem>>, vector<1x1x8x32xf32>
    %588 = vector.shape_cast %587 : vector<1x1x8x32xf32> to vector<8x32xf32>
    %c1_982 = arith.constant 1 : index
    %c3_983 = arith.constant 3 : index
    %c1_984 = arith.constant 1 : index
    %c0_985 = arith.constant 0 : index
    %589 = vector.load %arg10[%c1_982, %c3_983, %c1_984, %c0_985] : memref<2x11x11x32xf32, #tpu.memory_space<vmem>>, vector<1x1x8x32xf32>
    %590 = vector.shape_cast %589 : vector<1x1x8x32xf32> to vector<8x32xf32>
    %c1_986 = arith.constant 1 : index
    %c4_987 = arith.constant 4 : index
    %c1_988 = arith.constant 1 : index
    %c0_989 = arith.constant 0 : index
    %591 = vector.load %arg10[%c1_986, %c4_987, %c1_988, %c0_989] : memref<2x11x11x32xf32, #tpu.memory_space<vmem>>, vector<1x1x8x32xf32>
    %592 = vector.shape_cast %591 : vector<1x1x8x32xf32> to vector<8x32xf32>
    %c1_990 = arith.constant 1 : index
    %c5_991 = arith.constant 5 : index
    %c1_992 = arith.constant 1 : index
    %c0_993 = arith.constant 0 : index
    %593 = vector.load %arg10[%c1_990, %c5_991, %c1_992, %c0_993] : memref<2x11x11x32xf32, #tpu.memory_space<vmem>>, vector<1x1x8x32xf32>
    %594 = vector.shape_cast %593 : vector<1x1x8x32xf32> to vector<8x32xf32>
    %c1_994 = arith.constant 1 : index
    %c6_995 = arith.constant 6 : index
    %c1_996 = arith.constant 1 : index
    %c0_997 = arith.constant 0 : index
    %595 = vector.load %arg10[%c1_994, %c6_995, %c1_996, %c0_997] : memref<2x11x11x32xf32, #tpu.memory_space<vmem>>, vector<1x1x8x32xf32>
    %596 = vector.shape_cast %595 : vector<1x1x8x32xf32> to vector<8x32xf32>
    %c1_998 = arith.constant 1 : index
    %c7_999 = arith.constant 7 : index
    %c1_1000 = arith.constant 1 : index
    %c0_1001 = arith.constant 0 : index
    %597 = vector.load %arg10[%c1_998, %c7_999, %c1_1000, %c0_1001] : memref<2x11x11x32xf32, #tpu.memory_space<vmem>>, vector<1x1x8x32xf32>
    %598 = vector.shape_cast %597 : vector<1x1x8x32xf32> to vector<8x32xf32>
    %c1_1002 = arith.constant 1 : index
    %c8_1003 = arith.constant 8 : index
    %c1_1004 = arith.constant 1 : index
    %c0_1005 = arith.constant 0 : index
    %599 = vector.load %arg10[%c1_1002, %c8_1003, %c1_1004, %c0_1005] : memref<2x11x11x32xf32, #tpu.memory_space<vmem>>, vector<1x1x8x32xf32>
    %600 = vector.shape_cast %599 : vector<1x1x8x32xf32> to vector<8x32xf32>
    %c1_1006 = arith.constant 1 : index
    %c9_1007 = arith.constant 9 : index
    %c1_1008 = arith.constant 1 : index
    %c0_1009 = arith.constant 0 : index
    %601 = vector.load %arg10[%c1_1006, %c9_1007, %c1_1008, %c0_1009] : memref<2x11x11x32xf32, #tpu.memory_space<vmem>>, vector<1x1x8x32xf32>
    %602 = vector.shape_cast %601 : vector<1x1x8x32xf32> to vector<8x32xf32>
    %c1_1010 = arith.constant 1 : index
    %c10_1011 = arith.constant 10 : index
    %c1_1012 = arith.constant 1 : index
    %c0_1013 = arith.constant 0 : index
    %603 = vector.load %arg10[%c1_1010, %c10_1011, %c1_1012, %c0_1013] : memref<2x11x11x32xf32, #tpu.memory_space<vmem>>, vector<1x1x8x32xf32>
    %604 = vector.shape_cast %603 : vector<1x1x8x32xf32> to vector<8x32xf32>
    %605 = tpu.concatenate %574, %576, %578, %580, %582, %584, %586, %588, %590, %592, %594, %596, %598, %600, %602, %604 in 0 : vector<8x32xf32>, vector<8x32xf32>, vector<8x32xf32>, vector<8x32xf32>, vector<8x32xf32>, vector<8x32xf32>, vector<8x32xf32>, vector<8x32xf32>, vector<8x32xf32>, vector<8x32xf32>, vector<8x32xf32>, vector<8x32xf32>, vector<8x32xf32>, vector<8x32xf32>, vector<8x32xf32>, vector<8x32xf32> -> vector<128x32xf32>
    %606 = arith.truncf %605 : vector<128x32xf32> to vector<128x32xbf16>
    %c13 = arith.constant 13 : index
    %c0_1014 = arith.constant 0 : index
    %c0_1015 = arith.constant 0 : index
    %607 = vector.load %arg5[%c13, %c0_1014, %c0_1015] : memref<16x32x16xbf16, #tpu.memory_space<vmem>>, vector<1x32x16xbf16>
    %608 = vector.shape_cast %607 : vector<1x32x16xbf16> to vector<32x16xbf16>
    %cst_1016 = arith.constant dense<0.000000e+00> : vector<128x16xf32>
    %609 = tpu.matmul %606, %608, %cst_1016 {dimension_numbers = #tpu.dot_dimension_numbers<[1], [0], [0], [1], [0, 0, 1, 1], [], []>} : vector<128x32xbf16>, vector<32x16xbf16>, vector<128x16xf32> -> vector<128x16xf32>
    %610 = arith.addf %572, %609 : vector<128x16xf32>
    %c0_1017 = arith.constant 0 : index
    %c3_1018 = arith.constant 3 : index
    %c2_1019 = arith.constant 2 : index
    %c0_1020 = arith.constant 0 : index
    %611 = vector.load %arg10[%c0_1017, %c3_1018, %c2_1019, %c0_1020] : memref<2x11x11x32xf32, #tpu.memory_space<vmem>>, vector<1x1x8x32xf32>
    %612 = vector.shape_cast %611 : vector<1x1x8x32xf32> to vector<8x32xf32>
    %c0_1021 = arith.constant 0 : index
    %c4_1022 = arith.constant 4 : index
    %c2_1023 = arith.constant 2 : index
    %c0_1024 = arith.constant 0 : index
    %613 = vector.load %arg10[%c0_1021, %c4_1022, %c2_1023, %c0_1024] : memref<2x11x11x32xf32, #tpu.memory_space<vmem>>, vector<1x1x8x32xf32>
    %614 = vector.shape_cast %613 : vector<1x1x8x32xf32> to vector<8x32xf32>
    %c0_1025 = arith.constant 0 : index
    %c5_1026 = arith.constant 5 : index
    %c2_1027 = arith.constant 2 : index
    %c0_1028 = arith.constant 0 : index
    %615 = vector.load %arg10[%c0_1025, %c5_1026, %c2_1027, %c0_1028] : memref<2x11x11x32xf32, #tpu.memory_space<vmem>>, vector<1x1x8x32xf32>
    %616 = vector.shape_cast %615 : vector<1x1x8x32xf32> to vector<8x32xf32>
    %c0_1029 = arith.constant 0 : index
    %c6_1030 = arith.constant 6 : index
    %c2_1031 = arith.constant 2 : index
    %c0_1032 = arith.constant 0 : index
    %617 = vector.load %arg10[%c0_1029, %c6_1030, %c2_1031, %c0_1032] : memref<2x11x11x32xf32, #tpu.memory_space<vmem>>, vector<1x1x8x32xf32>
    %618 = vector.shape_cast %617 : vector<1x1x8x32xf32> to vector<8x32xf32>
    %c0_1033 = arith.constant 0 : index
    %c7_1034 = arith.constant 7 : index
    %c2_1035 = arith.constant 2 : index
    %c0_1036 = arith.constant 0 : index
    %619 = vector.load %arg10[%c0_1033, %c7_1034, %c2_1035, %c0_1036] : memref<2x11x11x32xf32, #tpu.memory_space<vmem>>, vector<1x1x8x32xf32>
    %620 = vector.shape_cast %619 : vector<1x1x8x32xf32> to vector<8x32xf32>
    %c0_1037 = arith.constant 0 : index
    %c8_1038 = arith.constant 8 : index
    %c2_1039 = arith.constant 2 : index
    %c0_1040 = arith.constant 0 : index
    %621 = vector.load %arg10[%c0_1037, %c8_1038, %c2_1039, %c0_1040] : memref<2x11x11x32xf32, #tpu.memory_space<vmem>>, vector<1x1x8x32xf32>
    %622 = vector.shape_cast %621 : vector<1x1x8x32xf32> to vector<8x32xf32>
    %c0_1041 = arith.constant 0 : index
    %c9_1042 = arith.constant 9 : index
    %c2_1043 = arith.constant 2 : index
    %c0_1044 = arith.constant 0 : index
    %623 = vector.load %arg10[%c0_1041, %c9_1042, %c2_1043, %c0_1044] : memref<2x11x11x32xf32, #tpu.memory_space<vmem>>, vector<1x1x8x32xf32>
    %624 = vector.shape_cast %623 : vector<1x1x8x32xf32> to vector<8x32xf32>
    %c0_1045 = arith.constant 0 : index
    %c10_1046 = arith.constant 10 : index
    %c2_1047 = arith.constant 2 : index
    %c0_1048 = arith.constant 0 : index
    %625 = vector.load %arg10[%c0_1045, %c10_1046, %c2_1047, %c0_1048] : memref<2x11x11x32xf32, #tpu.memory_space<vmem>>, vector<1x1x8x32xf32>
    %626 = vector.shape_cast %625 : vector<1x1x8x32xf32> to vector<8x32xf32>
    %c1_1049 = arith.constant 1 : index
    %c3_1050 = arith.constant 3 : index
    %c2_1051 = arith.constant 2 : index
    %c0_1052 = arith.constant 0 : index
    %627 = vector.load %arg10[%c1_1049, %c3_1050, %c2_1051, %c0_1052] : memref<2x11x11x32xf32, #tpu.memory_space<vmem>>, vector<1x1x8x32xf32>
    %628 = vector.shape_cast %627 : vector<1x1x8x32xf32> to vector<8x32xf32>
    %c1_1053 = arith.constant 1 : index
    %c4_1054 = arith.constant 4 : index
    %c2_1055 = arith.constant 2 : index
    %c0_1056 = arith.constant 0 : index
    %629 = vector.load %arg10[%c1_1053, %c4_1054, %c2_1055, %c0_1056] : memref<2x11x11x32xf32, #tpu.memory_space<vmem>>, vector<1x1x8x32xf32>
    %630 = vector.shape_cast %629 : vector<1x1x8x32xf32> to vector<8x32xf32>
    %c1_1057 = arith.constant 1 : index
    %c5_1058 = arith.constant 5 : index
    %c2_1059 = arith.constant 2 : index
    %c0_1060 = arith.constant 0 : index
    %631 = vector.load %arg10[%c1_1057, %c5_1058, %c2_1059, %c0_1060] : memref<2x11x11x32xf32, #tpu.memory_space<vmem>>, vector<1x1x8x32xf32>
    %632 = vector.shape_cast %631 : vector<1x1x8x32xf32> to vector<8x32xf32>
    %c1_1061 = arith.constant 1 : index
    %c6_1062 = arith.constant 6 : index
    %c2_1063 = arith.constant 2 : index
    %c0_1064 = arith.constant 0 : index
    %633 = vector.load %arg10[%c1_1061, %c6_1062, %c2_1063, %c0_1064] : memref<2x11x11x32xf32, #tpu.memory_space<vmem>>, vector<1x1x8x32xf32>
    %634 = vector.shape_cast %633 : vector<1x1x8x32xf32> to vector<8x32xf32>
    %c1_1065 = arith.constant 1 : index
    %c7_1066 = arith.constant 7 : index
    %c2_1067 = arith.constant 2 : index
    %c0_1068 = arith.constant 0 : index
    %635 = vector.load %arg10[%c1_1065, %c7_1066, %c2_1067, %c0_1068] : memref<2x11x11x32xf32, #tpu.memory_space<vmem>>, vector<1x1x8x32xf32>
    %636 = vector.shape_cast %635 : vector<1x1x8x32xf32> to vector<8x32xf32>
    %c1_1069 = arith.constant 1 : index
    %c8_1070 = arith.constant 8 : index
    %c2_1071 = arith.constant 2 : index
    %c0_1072 = arith.constant 0 : index
    %637 = vector.load %arg10[%c1_1069, %c8_1070, %c2_1071, %c0_1072] : memref<2x11x11x32xf32, #tpu.memory_space<vmem>>, vector<1x1x8x32xf32>
    %638 = vector.shape_cast %637 : vector<1x1x8x32xf32> to vector<8x32xf32>
    %c1_1073 = arith.constant 1 : index
    %c9_1074 = arith.constant 9 : index
    %c2_1075 = arith.constant 2 : index
    %c0_1076 = arith.constant 0 : index
    %639 = vector.load %arg10[%c1_1073, %c9_1074, %c2_1075, %c0_1076] : memref<2x11x11x32xf32, #tpu.memory_space<vmem>>, vector<1x1x8x32xf32>
    %640 = vector.shape_cast %639 : vector<1x1x8x32xf32> to vector<8x32xf32>
    %c1_1077 = arith.constant 1 : index
    %c10_1078 = arith.constant 10 : index
    %c2_1079 = arith.constant 2 : index
    %c0_1080 = arith.constant 0 : index
    %641 = vector.load %arg10[%c1_1077, %c10_1078, %c2_1079, %c0_1080] : memref<2x11x11x32xf32, #tpu.memory_space<vmem>>, vector<1x1x8x32xf32>
    %642 = vector.shape_cast %641 : vector<1x1x8x32xf32> to vector<8x32xf32>
    %643 = tpu.concatenate %612, %614, %616, %618, %620, %622, %624, %626, %628, %630, %632, %634, %636, %638, %640, %642 in 0 : vector<8x32xf32>, vector<8x32xf32>, vector<8x32xf32>, vector<8x32xf32>, vector<8x32xf32>, vector<8x32xf32>, vector<8x32xf32>, vector<8x32xf32>, vector<8x32xf32>, vector<8x32xf32>, vector<8x32xf32>, vector<8x32xf32>, vector<8x32xf32>, vector<8x32xf32>, vector<8x32xf32>, vector<8x32xf32> -> vector<128x32xf32>
    %644 = arith.truncf %643 : vector<128x32xf32> to vector<128x32xbf16>
    %c14 = arith.constant 14 : index
    %c0_1081 = arith.constant 0 : index
    %c0_1082 = arith.constant 0 : index
    %645 = vector.load %arg5[%c14, %c0_1081, %c0_1082] : memref<16x32x16xbf16, #tpu.memory_space<vmem>>, vector<1x32x16xbf16>
    %646 = vector.shape_cast %645 : vector<1x32x16xbf16> to vector<32x16xbf16>
    %cst_1083 = arith.constant dense<0.000000e+00> : vector<128x16xf32>
    %647 = tpu.matmul %644, %646, %cst_1083 {dimension_numbers = #tpu.dot_dimension_numbers<[1], [0], [0], [1], [0, 0, 1, 1], [], []>} : vector<128x32xbf16>, vector<32x16xbf16>, vector<128x16xf32> -> vector<128x16xf32>
    %648 = arith.addf %610, %647 : vector<128x16xf32>
    %c0_1084 = arith.constant 0 : index
    %c3_1085 = arith.constant 3 : index
    %c3_1086 = arith.constant 3 : index
    %c0_1087 = arith.constant 0 : index
    %649 = vector.load %arg10[%c0_1084, %c3_1085, %c3_1086, %c0_1087] : memref<2x11x11x32xf32, #tpu.memory_space<vmem>>, vector<1x1x8x32xf32>
    %650 = vector.shape_cast %649 : vector<1x1x8x32xf32> to vector<8x32xf32>
    %c0_1088 = arith.constant 0 : index
    %c4_1089 = arith.constant 4 : index
    %c3_1090 = arith.constant 3 : index
    %c0_1091 = arith.constant 0 : index
    %651 = vector.load %arg10[%c0_1088, %c4_1089, %c3_1090, %c0_1091] : memref<2x11x11x32xf32, #tpu.memory_space<vmem>>, vector<1x1x8x32xf32>
    %652 = vector.shape_cast %651 : vector<1x1x8x32xf32> to vector<8x32xf32>
    %c0_1092 = arith.constant 0 : index
    %c5_1093 = arith.constant 5 : index
    %c3_1094 = arith.constant 3 : index
    %c0_1095 = arith.constant 0 : index
    %653 = vector.load %arg10[%c0_1092, %c5_1093, %c3_1094, %c0_1095] : memref<2x11x11x32xf32, #tpu.memory_space<vmem>>, vector<1x1x8x32xf32>
    %654 = vector.shape_cast %653 : vector<1x1x8x32xf32> to vector<8x32xf32>
    %c0_1096 = arith.constant 0 : index
    %c6_1097 = arith.constant 6 : index
    %c3_1098 = arith.constant 3 : index
    %c0_1099 = arith.constant 0 : index
    %655 = vector.load %arg10[%c0_1096, %c6_1097, %c3_1098, %c0_1099] : memref<2x11x11x32xf32, #tpu.memory_space<vmem>>, vector<1x1x8x32xf32>
    %656 = vector.shape_cast %655 : vector<1x1x8x32xf32> to vector<8x32xf32>
    %c0_1100 = arith.constant 0 : index
    %c7_1101 = arith.constant 7 : index
    %c3_1102 = arith.constant 3 : index
    %c0_1103 = arith.constant 0 : index
    %657 = vector.load %arg10[%c0_1100, %c7_1101, %c3_1102, %c0_1103] : memref<2x11x11x32xf32, #tpu.memory_space<vmem>>, vector<1x1x8x32xf32>
    %658 = vector.shape_cast %657 : vector<1x1x8x32xf32> to vector<8x32xf32>
    %c0_1104 = arith.constant 0 : index
    %c8_1105 = arith.constant 8 : index
    %c3_1106 = arith.constant 3 : index
    %c0_1107 = arith.constant 0 : index
    %659 = vector.load %arg10[%c0_1104, %c8_1105, %c3_1106, %c0_1107] : memref<2x11x11x32xf32, #tpu.memory_space<vmem>>, vector<1x1x8x32xf32>
    %660 = vector.shape_cast %659 : vector<1x1x8x32xf32> to vector<8x32xf32>
    %c0_1108 = arith.constant 0 : index
    %c9_1109 = arith.constant 9 : index
    %c3_1110 = arith.constant 3 : index
    %c0_1111 = arith.constant 0 : index
    %661 = vector.load %arg10[%c0_1108, %c9_1109, %c3_1110, %c0_1111] : memref<2x11x11x32xf32, #tpu.memory_space<vmem>>, vector<1x1x8x32xf32>
    %662 = vector.shape_cast %661 : vector<1x1x8x32xf32> to vector<8x32xf32>
    %c0_1112 = arith.constant 0 : index
    %c10_1113 = arith.constant 10 : index
    %c3_1114 = arith.constant 3 : index
    %c0_1115 = arith.constant 0 : index
    %663 = vector.load %arg10[%c0_1112, %c10_1113, %c3_1114, %c0_1115] : memref<2x11x11x32xf32, #tpu.memory_space<vmem>>, vector<1x1x8x32xf32>
    %664 = vector.shape_cast %663 : vector<1x1x8x32xf32> to vector<8x32xf32>
    %c1_1116 = arith.constant 1 : index
    %c3_1117 = arith.constant 3 : index
    %c3_1118 = arith.constant 3 : index
    %c0_1119 = arith.constant 0 : index
    %665 = vector.load %arg10[%c1_1116, %c3_1117, %c3_1118, %c0_1119] : memref<2x11x11x32xf32, #tpu.memory_space<vmem>>, vector<1x1x8x32xf32>
    %666 = vector.shape_cast %665 : vector<1x1x8x32xf32> to vector<8x32xf32>
    %c1_1120 = arith.constant 1 : index
    %c4_1121 = arith.constant 4 : index
    %c3_1122 = arith.constant 3 : index
    %c0_1123 = arith.constant 0 : index
    %667 = vector.load %arg10[%c1_1120, %c4_1121, %c3_1122, %c0_1123] : memref<2x11x11x32xf32, #tpu.memory_space<vmem>>, vector<1x1x8x32xf32>
    %668 = vector.shape_cast %667 : vector<1x1x8x32xf32> to vector<8x32xf32>
    %c1_1124 = arith.constant 1 : index
    %c5_1125 = arith.constant 5 : index
    %c3_1126 = arith.constant 3 : index
    %c0_1127 = arith.constant 0 : index
    %669 = vector.load %arg10[%c1_1124, %c5_1125, %c3_1126, %c0_1127] : memref<2x11x11x32xf32, #tpu.memory_space<vmem>>, vector<1x1x8x32xf32>
    %670 = vector.shape_cast %669 : vector<1x1x8x32xf32> to vector<8x32xf32>
    %c1_1128 = arith.constant 1 : index
    %c6_1129 = arith.constant 6 : index
    %c3_1130 = arith.constant 3 : index
    %c0_1131 = arith.constant 0 : index
    %671 = vector.load %arg10[%c1_1128, %c6_1129, %c3_1130, %c0_1131] : memref<2x11x11x32xf32, #tpu.memory_space<vmem>>, vector<1x1x8x32xf32>
    %672 = vector.shape_cast %671 : vector<1x1x8x32xf32> to vector<8x32xf32>
    %c1_1132 = arith.constant 1 : index
    %c7_1133 = arith.constant 7 : index
    %c3_1134 = arith.constant 3 : index
    %c0_1135 = arith.constant 0 : index
    %673 = vector.load %arg10[%c1_1132, %c7_1133, %c3_1134, %c0_1135] : memref<2x11x11x32xf32, #tpu.memory_space<vmem>>, vector<1x1x8x32xf32>
    %674 = vector.shape_cast %673 : vector<1x1x8x32xf32> to vector<8x32xf32>
    %c1_1136 = arith.constant 1 : index
    %c8_1137 = arith.constant 8 : index
    %c3_1138 = arith.constant 3 : index
    %c0_1139 = arith.constant 0 : index
    %675 = vector.load %arg10[%c1_1136, %c8_1137, %c3_1138, %c0_1139] : memref<2x11x11x32xf32, #tpu.memory_space<vmem>>, vector<1x1x8x32xf32>
    %676 = vector.shape_cast %675 : vector<1x1x8x32xf32> to vector<8x32xf32>
    %c1_1140 = arith.constant 1 : index
    %c9_1141 = arith.constant 9 : index
    %c3_1142 = arith.constant 3 : index
    %c0_1143 = arith.constant 0 : index
    %677 = vector.load %arg10[%c1_1140, %c9_1141, %c3_1142, %c0_1143] : memref<2x11x11x32xf32, #tpu.memory_space<vmem>>, vector<1x1x8x32xf32>
    %678 = vector.shape_cast %677 : vector<1x1x8x32xf32> to vector<8x32xf32>
    %c1_1144 = arith.constant 1 : index
    %c10_1145 = arith.constant 10 : index
    %c3_1146 = arith.constant 3 : index
    %c0_1147 = arith.constant 0 : index
    %679 = vector.load %arg10[%c1_1144, %c10_1145, %c3_1146, %c0_1147] : memref<2x11x11x32xf32, #tpu.memory_space<vmem>>, vector<1x1x8x32xf32>
    %680 = vector.shape_cast %679 : vector<1x1x8x32xf32> to vector<8x32xf32>
    %681 = tpu.concatenate %650, %652, %654, %656, %658, %660, %662, %664, %666, %668, %670, %672, %674, %676, %678, %680 in 0 : vector<8x32xf32>, vector<8x32xf32>, vector<8x32xf32>, vector<8x32xf32>, vector<8x32xf32>, vector<8x32xf32>, vector<8x32xf32>, vector<8x32xf32>, vector<8x32xf32>, vector<8x32xf32>, vector<8x32xf32>, vector<8x32xf32>, vector<8x32xf32>, vector<8x32xf32>, vector<8x32xf32>, vector<8x32xf32> -> vector<128x32xf32>
    %682 = arith.truncf %681 : vector<128x32xf32> to vector<128x32xbf16>
    %c15 = arith.constant 15 : index
    %c0_1148 = arith.constant 0 : index
    %c0_1149 = arith.constant 0 : index
    %683 = vector.load %arg5[%c15, %c0_1148, %c0_1149] : memref<16x32x16xbf16, #tpu.memory_space<vmem>>, vector<1x32x16xbf16>
    %684 = vector.shape_cast %683 : vector<1x32x16xbf16> to vector<32x16xbf16>
    %cst_1150 = arith.constant dense<0.000000e+00> : vector<128x16xf32>
    %685 = tpu.matmul %682, %684, %cst_1150 {dimension_numbers = #tpu.dot_dimension_numbers<[1], [0], [0], [1], [0, 0, 1, 1], [], []>} : vector<128x32xbf16>, vector<32x16xbf16>, vector<128x16xf32> -> vector<128x16xf32>
    %686 = arith.addf %648, %685 : vector<128x16xf32>
    %c0_1151 = arith.constant 0 : index
    %c0_1152 = arith.constant 0 : index
    %687 = vector.load %arg6[%c0_1151, %c0_1152] : memref<1x16xf32, #tpu.memory_space<vmem>>, vector<1x16xf32>
    %688 = vector.broadcast %687 : vector<1x16xf32> to vector<128x16xf32>
    %689 = arith.mulf %686, %688 : vector<128x16xf32>
    %c0_1153 = arith.constant 0 : index
    %c0_1154 = arith.constant 0 : index
    %690 = vector.load %arg7[%c0_1153, %c0_1154] : memref<1x16xf32, #tpu.memory_space<vmem>>, vector<1x16xf32>
    %691 = vector.broadcast %690 : vector<1x16xf32> to vector<128x16xf32>
    %692 = arith.addf %689, %691 : vector<128x16xf32>
    %cst_1155 = arith.constant 0.000000e+00 : f32
    %693 = vector.broadcast %cst_1155 : f32 to vector<128x16xf32>
    %694 = arith.maximumf %692, %693 : vector<128x16xf32>
    %cst_1156 = arith.constant 0.000000e+00 : f32
    %695 = vector.broadcast %cst_1156 : f32 to vector<2x10x10x16xf32>
    %c0_1157 = arith.constant 0 : index
    %c0_1158 = arith.constant 0 : index
    %c0_1159 = arith.constant 0 : index
    %c0_1160 = arith.constant 0 : index
    %696 = vector.load %arg11[%c0_1157, %c0_1158, %c0_1159, %c0_1160] : memref<2x10x10x16xf32, #tpu.memory_space<vmem>>, vector<2x10x10x16xf32>
    tpu.vector_store %arg11[%c0_1157, %c0_1158, %c0_1159, %c0_1160], %695 {strides = array<i32>} : memref<2x10x10x16xf32, #tpu.memory_space<vmem>>, vector<2x10x10x16xf32>,
    %697 = vector.extract_strided_slice %694 {offsets = [0, 0], sizes = [8, 16], strides = [1, 1]} : vector<128x16xf32> to vector<8x16xf32>
    %c0_1161 = arith.constant 0 : index
    %c1_1162 = arith.constant 1 : index
    %c1_1163 = arith.constant 1 : index
    %c0_1164 = arith.constant 0 : index
    %698 = vector.load %arg11[%c0_1161, %c1_1162, %c1_1163, %c0_1164] : memref<2x10x10x16xf32, #tpu.memory_space<vmem>>, vector<1x1x8x16xf32>
    %699 = vector.shape_cast %698 : vector<1x1x8x16xf32> to vector<8x16xf32>
    %700 = vector.shape_cast %697 : vector<8x16xf32> to vector<1x1x8x16xf32>
    tpu.vector_store %arg11[%c0_1161, %c1_1162, %c1_1163, %c0_1164], %700 {strides = array<i32>} : memref<2x10x10x16xf32, #tpu.memory_space<vmem>>, vector<1x1x8x16xf32>,
    %701 = vector.extract_strided_slice %694 {offsets = [8, 0], sizes = [8, 16], strides = [1, 1]} : vector<128x16xf32> to vector<8x16xf32>
    %c0_1165 = arith.constant 0 : index
    %c2_1166 = arith.constant 2 : index
    %c1_1167 = arith.constant 1 : index
    %c0_1168 = arith.constant 0 : index
    %702 = vector.load %arg11[%c0_1165, %c2_1166, %c1_1167, %c0_1168] : memref<2x10x10x16xf32, #tpu.memory_space<vmem>>, vector<1x1x8x16xf32>
    %703 = vector.shape_cast %702 : vector<1x1x8x16xf32> to vector<8x16xf32>
    %704 = vector.shape_cast %701 : vector<8x16xf32> to vector<1x1x8x16xf32>
    tpu.vector_store %arg11[%c0_1165, %c2_1166, %c1_1167, %c0_1168], %704 {strides = array<i32>} : memref<2x10x10x16xf32, #tpu.memory_space<vmem>>, vector<1x1x8x16xf32>,
    %705 = vector.extract_strided_slice %694 {offsets = [16, 0], sizes = [8, 16], strides = [1, 1]} : vector<128x16xf32> to vector<8x16xf32>
    %c0_1169 = arith.constant 0 : index
    %c3_1170 = arith.constant 3 : index
    %c1_1171 = arith.constant 1 : index
    %c0_1172 = arith.constant 0 : index
    %706 = vector.load %arg11[%c0_1169, %c3_1170, %c1_1171, %c0_1172] : memref<2x10x10x16xf32, #tpu.memory_space<vmem>>, vector<1x1x8x16xf32>
    %707 = vector.shape_cast %706 : vector<1x1x8x16xf32> to vector<8x16xf32>
    %708 = vector.shape_cast %705 : vector<8x16xf32> to vector<1x1x8x16xf32>
    tpu.vector_store %arg11[%c0_1169, %c3_1170, %c1_1171, %c0_1172], %708 {strides = array<i32>} : memref<2x10x10x16xf32, #tpu.memory_space<vmem>>, vector<1x1x8x16xf32>,
    %709 = vector.extract_strided_slice %694 {offsets = [24, 0], sizes = [8, 16], strides = [1, 1]} : vector<128x16xf32> to vector<8x16xf32>
    %c0_1173 = arith.constant 0 : index
    %c4_1174 = arith.constant 4 : index
    %c1_1175 = arith.constant 1 : index
    %c0_1176 = arith.constant 0 : index
    %710 = vector.load %arg11[%c0_1173, %c4_1174, %c1_1175, %c0_1176] : memref<2x10x10x16xf32, #tpu.memory_space<vmem>>, vector<1x1x8x16xf32>
    %711 = vector.shape_cast %710 : vector<1x1x8x16xf32> to vector<8x16xf32>
    %712 = vector.shape_cast %709 : vector<8x16xf32> to vector<1x1x8x16xf32>
    tpu.vector_store %arg11[%c0_1173, %c4_1174, %c1_1175, %c0_1176], %712 {strides = array<i32>} : memref<2x10x10x16xf32, #tpu.memory_space<vmem>>, vector<1x1x8x16xf32>,
    %713 = vector.extract_strided_slice %694 {offsets = [32, 0], sizes = [8, 16], strides = [1, 1]} : vector<128x16xf32> to vector<8x16xf32>
    %c0_1177 = arith.constant 0 : index
    %c5_1178 = arith.constant 5 : index
    %c1_1179 = arith.constant 1 : index
    %c0_1180 = arith.constant 0 : index
    %714 = vector.load %arg11[%c0_1177, %c5_1178, %c1_1179, %c0_1180] : memref<2x10x10x16xf32, #tpu.memory_space<vmem>>, vector<1x1x8x16xf32>
    %715 = vector.shape_cast %714 : vector<1x1x8x16xf32> to vector<8x16xf32>
    %716 = vector.shape_cast %713 : vector<8x16xf32> to vector<1x1x8x16xf32>
    tpu.vector_store %arg11[%c0_1177, %c5_1178, %c1_1179, %c0_1180], %716 {strides = array<i32>} : memref<2x10x10x16xf32, #tpu.memory_space<vmem>>, vector<1x1x8x16xf32>,
    %717 = vector.extract_strided_slice %694 {offsets = [40, 0], sizes = [8, 16], strides = [1, 1]} : vector<128x16xf32> to vector<8x16xf32>
    %c0_1181 = arith.constant 0 : index
    %c6_1182 = arith.constant 6 : index
    %c1_1183 = arith.constant 1 : index
    %c0_1184 = arith.constant 0 : index
    %718 = vector.load %arg11[%c0_1181, %c6_1182, %c1_1183, %c0_1184] : memref<2x10x10x16xf32, #tpu.memory_space<vmem>>, vector<1x1x8x16xf32>
    %719 = vector.shape_cast %718 : vector<1x1x8x16xf32> to vector<8x16xf32>
    %720 = vector.shape_cast %717 : vector<8x16xf32> to vector<1x1x8x16xf32>
    tpu.vector_store %arg11[%c0_1181, %c6_1182, %c1_1183, %c0_1184], %720 {strides = array<i32>} : memref<2x10x10x16xf32, #tpu.memory_space<vmem>>, vector<1x1x8x16xf32>,
    %721 = vector.extract_strided_slice %694 {offsets = [48, 0], sizes = [8, 16], strides = [1, 1]} : vector<128x16xf32> to vector<8x16xf32>
    %c0_1185 = arith.constant 0 : index
    %c7_1186 = arith.constant 7 : index
    %c1_1187 = arith.constant 1 : index
    %c0_1188 = arith.constant 0 : index
    %722 = vector.load %arg11[%c0_1185, %c7_1186, %c1_1187, %c0_1188] : memref<2x10x10x16xf32, #tpu.memory_space<vmem>>, vector<1x1x8x16xf32>
    %723 = vector.shape_cast %722 : vector<1x1x8x16xf32> to vector<8x16xf32>
    %724 = vector.shape_cast %721 : vector<8x16xf32> to vector<1x1x8x16xf32>
    tpu.vector_store %arg11[%c0_1185, %c7_1186, %c1_1187, %c0_1188], %724 {strides = array<i32>} : memref<2x10x10x16xf32, #tpu.memory_space<vmem>>, vector<1x1x8x16xf32>,
    %725 = vector.extract_strided_slice %694 {offsets = [56, 0], sizes = [8, 16], strides = [1, 1]} : vector<128x16xf32> to vector<8x16xf32>
    %c0_1189 = arith.constant 0 : index
    %c8_1190 = arith.constant 8 : index
    %c1_1191 = arith.constant 1 : index
    %c0_1192 = arith.constant 0 : index
    %726 = vector.load %arg11[%c0_1189, %c8_1190, %c1_1191, %c0_1192] : memref<2x10x10x16xf32, #tpu.memory_space<vmem>>, vector<1x1x8x16xf32>
    %727 = vector.shape_cast %726 : vector<1x1x8x16xf32> to vector<8x16xf32>
    %728 = vector.shape_cast %725 : vector<8x16xf32> to vector<1x1x8x16xf32>
    tpu.vector_store %arg11[%c0_1189, %c8_1190, %c1_1191, %c0_1192], %728 {strides = array<i32>} : memref<2x10x10x16xf32, #tpu.memory_space<vmem>>, vector<1x1x8x16xf32>,
    %729 = vector.extract_strided_slice %694 {offsets = [64, 0], sizes = [8, 16], strides = [1, 1]} : vector<128x16xf32> to vector<8x16xf32>
    %c1_1193 = arith.constant 1 : index
    %c1_1194 = arith.constant 1 : index
    %c1_1195 = arith.constant 1 : index
    %c0_1196 = arith.constant 0 : index
    %730 = vector.load %arg11[%c1_1193, %c1_1194, %c1_1195, %c0_1196] : memref<2x10x10x16xf32, #tpu.memory_space<vmem>>, vector<1x1x8x16xf32>
    %731 = vector.shape_cast %730 : vector<1x1x8x16xf32> to vector<8x16xf32>
    %732 = vector.shape_cast %729 : vector<8x16xf32> to vector<1x1x8x16xf32>
    tpu.vector_store %arg11[%c1_1193, %c1_1194, %c1_1195, %c0_1196], %732 {strides = array<i32>} : memref<2x10x10x16xf32, #tpu.memory_space<vmem>>, vector<1x1x8x16xf32>,
    %733 = vector.extract_strided_slice %694 {offsets = [72, 0], sizes = [8, 16], strides = [1, 1]} : vector<128x16xf32> to vector<8x16xf32>
    %c1_1197 = arith.constant 1 : index
    %c2_1198 = arith.constant 2 : index
    %c1_1199 = arith.constant 1 : index
    %c0_1200 = arith.constant 0 : index
    %734 = vector.load %arg11[%c1_1197, %c2_1198, %c1_1199, %c0_1200] : memref<2x10x10x16xf32, #tpu.memory_space<vmem>>, vector<1x1x8x16xf32>
    %735 = vector.shape_cast %734 : vector<1x1x8x16xf32> to vector<8x16xf32>
    %736 = vector.shape_cast %733 : vector<8x16xf32> to vector<1x1x8x16xf32>
    tpu.vector_store %arg11[%c1_1197, %c2_1198, %c1_1199, %c0_1200], %736 {strides = array<i32>} : memref<2x10x10x16xf32, #tpu.memory_space<vmem>>, vector<1x1x8x16xf32>,
    %737 = vector.extract_strided_slice %694 {offsets = [80, 0], sizes = [8, 16], strides = [1, 1]} : vector<128x16xf32> to vector<8x16xf32>
    %c1_1201 = arith.constant 1 : index
    %c3_1202 = arith.constant 3 : index
    %c1_1203 = arith.constant 1 : index
    %c0_1204 = arith.constant 0 : index
    %738 = vector.load %arg11[%c1_1201, %c3_1202, %c1_1203, %c0_1204] : memref<2x10x10x16xf32, #tpu.memory_space<vmem>>, vector<1x1x8x16xf32>
    %739 = vector.shape_cast %738 : vector<1x1x8x16xf32> to vector<8x16xf32>
    %740 = vector.shape_cast %737 : vector<8x16xf32> to vector<1x1x8x16xf32>
    tpu.vector_store %arg11[%c1_1201, %c3_1202, %c1_1203, %c0_1204], %740 {strides = array<i32>} : memref<2x10x10x16xf32, #tpu.memory_space<vmem>>, vector<1x1x8x16xf32>,
    %741 = vector.extract_strided_slice %694 {offsets = [88, 0], sizes = [8, 16], strides = [1, 1]} : vector<128x16xf32> to vector<8x16xf32>
    %c1_1205 = arith.constant 1 : index
    %c4_1206 = arith.constant 4 : index
    %c1_1207 = arith.constant 1 : index
    %c0_1208 = arith.constant 0 : index
    %742 = vector.load %arg11[%c1_1205, %c4_1206, %c1_1207, %c0_1208] : memref<2x10x10x16xf32, #tpu.memory_space<vmem>>, vector<1x1x8x16xf32>
    %743 = vector.shape_cast %742 : vector<1x1x8x16xf32> to vector<8x16xf32>
    %744 = vector.shape_cast %741 : vector<8x16xf32> to vector<1x1x8x16xf32>
    tpu.vector_store %arg11[%c1_1205, %c4_1206, %c1_1207, %c0_1208], %744 {strides = array<i32>} : memref<2x10x10x16xf32, #tpu.memory_space<vmem>>, vector<1x1x8x16xf32>,
    %745 = vector.extract_strided_slice %694 {offsets = [96, 0], sizes = [8, 16], strides = [1, 1]} : vector<128x16xf32> to vector<8x16xf32>
    %c1_1209 = arith.constant 1 : index
    %c5_1210 = arith.constant 5 : index
    %c1_1211 = arith.constant 1 : index
    %c0_1212 = arith.constant 0 : index
    %746 = vector.load %arg11[%c1_1209, %c5_1210, %c1_1211, %c0_1212] : memref<2x10x10x16xf32, #tpu.memory_space<vmem>>, vector<1x1x8x16xf32>
    %747 = vector.shape_cast %746 : vector<1x1x8x16xf32> to vector<8x16xf32>
    %748 = vector.shape_cast %745 : vector<8x16xf32> to vector<1x1x8x16xf32>
    tpu.vector_store %arg11[%c1_1209, %c5_1210, %c1_1211, %c0_1212], %748 {strides = array<i32>} : memref<2x10x10x16xf32, #tpu.memory_space<vmem>>, vector<1x1x8x16xf32>,
    %749 = vector.extract_strided_slice %694 {offsets = [104, 0], sizes = [8, 16], strides = [1, 1]} : vector<128x16xf32> to vector<8x16xf32>
    %c1_1213 = arith.constant 1 : index
    %c6_1214 = arith.constant 6 : index
    %c1_1215 = arith.constant 1 : index
    %c0_1216 = arith.constant 0 : index
    %750 = vector.load %arg11[%c1_1213, %c6_1214, %c1_1215, %c0_1216] : memref<2x10x10x16xf32, #tpu.memory_space<vmem>>, vector<1x1x8x16xf32>
    %751 = vector.shape_cast %750 : vector<1x1x8x16xf32> to vector<8x16xf32>
    %752 = vector.shape_cast %749 : vector<8x16xf32> to vector<1x1x8x16xf32>
    tpu.vector_store %arg11[%c1_1213, %c6_1214, %c1_1215, %c0_1216], %752 {strides = array<i32>} : memref<2x10x10x16xf32, #tpu.memory_space<vmem>>, vector<1x1x8x16xf32>,
    %753 = vector.extract_strided_slice %694 {offsets = [112, 0], sizes = [8, 16], strides = [1, 1]} : vector<128x16xf32> to vector<8x16xf32>
    %c1_1217 = arith.constant 1 : index
    %c7_1218 = arith.constant 7 : index
    %c1_1219 = arith.constant 1 : index
    %c0_1220 = arith.constant 0 : index
    %754 = vector.load %arg11[%c1_1217, %c7_1218, %c1_1219, %c0_1220] : memref<2x10x10x16xf32, #tpu.memory_space<vmem>>, vector<1x1x8x16xf32>
    %755 = vector.shape_cast %754 : vector<1x1x8x16xf32> to vector<8x16xf32>
    %756 = vector.shape_cast %753 : vector<8x16xf32> to vector<1x1x8x16xf32>
    tpu.vector_store %arg11[%c1_1217, %c7_1218, %c1_1219, %c0_1220], %756 {strides = array<i32>} : memref<2x10x10x16xf32, #tpu.memory_space<vmem>>, vector<1x1x8x16xf32>,
    %757 = vector.extract_strided_slice %694 {offsets = [120, 0], sizes = [8, 16], strides = [1, 1]} : vector<128x16xf32> to vector<8x16xf32>
    %c1_1221 = arith.constant 1 : index
    %c8_1222 = arith.constant 8 : index
    %c1_1223 = arith.constant 1 : index
    %c0_1224 = arith.constant 0 : index
    %758 = vector.load %arg11[%c1_1221, %c8_1222, %c1_1223, %c0_1224] : memref<2x10x10x16xf32, #tpu.memory_space<vmem>>, vector<1x1x8x16xf32>
    %759 = vector.shape_cast %758 : vector<1x1x8x16xf32> to vector<8x16xf32>
    %760 = vector.shape_cast %757 : vector<8x16xf32> to vector<1x1x8x16xf32>
    tpu.vector_store %arg11[%c1_1221, %c8_1222, %c1_1223, %c0_1224], %760 {strides = array<i32>} : memref<2x10x10x16xf32, #tpu.memory_space<vmem>>, vector<1x1x8x16xf32>,
    %cst_1225 = arith.constant 0.000000e+00 : f32
    %761 = vector.broadcast %cst_1225 : f32 to vector<128x6xf32>
    %c0_1226 = arith.constant 0 : index
    %c0_1227 = arith.constant 0 : index
    %c0_1228 = arith.constant 0 : index
    %c0_1229 = arith.constant 0 : index
    %762 = vector.load %arg11[%c0_1226, %c0_1227, %c0_1228, %c0_1229] : memref<2x10x10x16xf32, #tpu.memory_space<vmem>>, vector<1x1x8x16xf32>
    %763 = vector.shape_cast %762 : vector<1x1x8x16xf32> to vector<8x16xf32>
    %c0_1230 = arith.constant 0 : index
    %c1_1231 = arith.constant 1 : index
    %c0_1232 = arith.constant 0 : index
    %c0_1233 = arith.constant 0 : index
    %764 = vector.load %arg11[%c0_1230, %c1_1231, %c0_1232, %c0_1233] : memref<2x10x10x16xf32, #tpu.memory_space<vmem>>, vector<1x1x8x16xf32>
    %765 = vector.shape_cast %764 : vector<1x1x8x16xf32> to vector<8x16xf32>
    %c0_1234 = arith.constant 0 : index
    %c2_1235 = arith.constant 2 : index
    %c0_1236 = arith.constant 0 : index
    %c0_1237 = arith.constant 0 : index
    %766 = vector.load %arg11[%c0_1234, %c2_1235, %c0_1236, %c0_1237] : memref<2x10x10x16xf32, #tpu.memory_space<vmem>>, vector<1x1x8x16xf32>
    %767 = vector.shape_cast %766 : vector<1x1x8x16xf32> to vector<8x16xf32>
    %c0_1238 = arith.constant 0 : index
    %c3_1239 = arith.constant 3 : index
    %c0_1240 = arith.constant 0 : index
    %c0_1241 = arith.constant 0 : index
    %768 = vector.load %arg11[%c0_1238, %c3_1239, %c0_1240, %c0_1241] : memref<2x10x10x16xf32, #tpu.memory_space<vmem>>, vector<1x1x8x16xf32>
    %769 = vector.shape_cast %768 : vector<1x1x8x16xf32> to vector<8x16xf32>
    %c0_1242 = arith.constant 0 : index
    %c4_1243 = arith.constant 4 : index
    %c0_1244 = arith.constant 0 : index
    %c0_1245 = arith.constant 0 : index
    %770 = vector.load %arg11[%c0_1242, %c4_1243, %c0_1244, %c0_1245] : memref<2x10x10x16xf32, #tpu.memory_space<vmem>>, vector<1x1x8x16xf32>
    %771 = vector.shape_cast %770 : vector<1x1x8x16xf32> to vector<8x16xf32>
    %c0_1246 = arith.constant 0 : index
    %c5_1247 = arith.constant 5 : index
    %c0_1248 = arith.constant 0 : index
    %c0_1249 = arith.constant 0 : index
    %772 = vector.load %arg11[%c0_1246, %c5_1247, %c0_1248, %c0_1249] : memref<2x10x10x16xf32, #tpu.memory_space<vmem>>, vector<1x1x8x16xf32>
    %773 = vector.shape_cast %772 : vector<1x1x8x16xf32> to vector<8x16xf32>
    %c0_1250 = arith.constant 0 : index
    %c6_1251 = arith.constant 6 : index
    %c0_1252 = arith.constant 0 : index
    %c0_1253 = arith.constant 0 : index
    %774 = vector.load %arg11[%c0_1250, %c6_1251, %c0_1252, %c0_1253] : memref<2x10x10x16xf32, #tpu.memory_space<vmem>>, vector<1x1x8x16xf32>
    %775 = vector.shape_cast %774 : vector<1x1x8x16xf32> to vector<8x16xf32>
    %c0_1254 = arith.constant 0 : index
    %c7_1255 = arith.constant 7 : index
    %c0_1256 = arith.constant 0 : index
    %c0_1257 = arith.constant 0 : index
    %776 = vector.load %arg11[%c0_1254, %c7_1255, %c0_1256, %c0_1257] : memref<2x10x10x16xf32, #tpu.memory_space<vmem>>, vector<1x1x8x16xf32>
    %777 = vector.shape_cast %776 : vector<1x1x8x16xf32> to vector<8x16xf32>
    %c1_1258 = arith.constant 1 : index
    %c0_1259 = arith.constant 0 : index
    %c0_1260 = arith.constant 0 : index
    %c0_1261 = arith.constant 0 : index
    %778 = vector.load %arg11[%c1_1258, %c0_1259, %c0_1260, %c0_1261] : memref<2x10x10x16xf32, #tpu.memory_space<vmem>>, vector<1x1x8x16xf32>
    %779 = vector.shape_cast %778 : vector<1x1x8x16xf32> to vector<8x16xf32>
    %c1_1262 = arith.constant 1 : index
    %c1_1263 = arith.constant 1 : index
    %c0_1264 = arith.constant 0 : index
    %c0_1265 = arith.constant 0 : index
    %780 = vector.load %arg11[%c1_1262, %c1_1263, %c0_1264, %c0_1265] : memref<2x10x10x16xf32, #tpu.memory_space<vmem>>, vector<1x1x8x16xf32>
    %781 = vector.shape_cast %780 : vector<1x1x8x16xf32> to vector<8x16xf32>
    %c1_1266 = arith.constant 1 : index
    %c2_1267 = arith.constant 2 : index
    %c0_1268 = arith.constant 0 : index
    %c0_1269 = arith.constant 0 : index
    %782 = vector.load %arg11[%c1_1266, %c2_1267, %c0_1268, %c0_1269] : memref<2x10x10x16xf32, #tpu.memory_space<vmem>>, vector<1x1x8x16xf32>
    %783 = vector.shape_cast %782 : vector<1x1x8x16xf32> to vector<8x16xf32>
    %c1_1270 = arith.constant 1 : index
    %c3_1271 = arith.constant 3 : index
    %c0_1272 = arith.constant 0 : index
    %c0_1273 = arith.constant 0 : index
    %784 = vector.load %arg11[%c1_1270, %c3_1271, %c0_1272, %c0_1273] : memref<2x10x10x16xf32, #tpu.memory_space<vmem>>, vector<1x1x8x16xf32>
    %785 = vector.shape_cast %784 : vector<1x1x8x16xf32> to vector<8x16xf32>
    %c1_1274 = arith.constant 1 : index
    %c4_1275 = arith.constant 4 : index
    %c0_1276 = arith.constant 0 : index
    %c0_1277 = arith.constant 0 : index
    %786 = vector.load %arg11[%c1_1274, %c4_1275, %c0_1276, %c0_1277] : memref<2x10x10x16xf32, #tpu.memory_space<vmem>>, vector<1x1x8x16xf32>
    %787 = vector.shape_cast %786 : vector<1x1x8x16xf32> to vector<8x16xf32>
    %c1_1278 = arith.constant 1 : index
    %c5_1279 = arith.constant 5 : index
    %c0_1280 = arith.constant 0 : index
    %c0_1281 = arith.constant 0 : index
    %788 = vector.load %arg11[%c1_1278, %c5_1279, %c0_1280, %c0_1281] : memref<2x10x10x16xf32, #tpu.memory_space<vmem>>, vector<1x1x8x16xf32>
    %789 = vector.shape_cast %788 : vector<1x1x8x16xf32> to vector<8x16xf32>
    %c1_1282 = arith.constant 1 : index
    %c6_1283 = arith.constant 6 : index
    %c0_1284 = arith.constant 0 : index
    %c0_1285 = arith.constant 0 : index
    %790 = vector.load %arg11[%c1_1282, %c6_1283, %c0_1284, %c0_1285] : memref<2x10x10x16xf32, #tpu.memory_space<vmem>>, vector<1x1x8x16xf32>
    %791 = vector.shape_cast %790 : vector<1x1x8x16xf32> to vector<8x16xf32>
    %c1_1286 = arith.constant 1 : index
    %c7_1287 = arith.constant 7 : index
    %c0_1288 = arith.constant 0 : index
    %c0_1289 = arith.constant 0 : index
    %792 = vector.load %arg11[%c1_1286, %c7_1287, %c0_1288, %c0_1289] : memref<2x10x10x16xf32, #tpu.memory_space<vmem>>, vector<1x1x8x16xf32>
    %793 = vector.shape_cast %792 : vector<1x1x8x16xf32> to vector<8x16xf32>
    %794 = tpu.concatenate %763, %765, %767, %769, %771, %773, %775, %777, %779, %781, %783, %785, %787, %789, %791, %793 in 0 : vector<8x16xf32>, vector<8x16xf32>, vector<8x16xf32>, vector<8x16xf32>, vector<8x16xf32>, vector<8x16xf32>, vector<8x16xf32>, vector<8x16xf32>, vector<8x16xf32>, vector<8x16xf32>, vector<8x16xf32>, vector<8x16xf32>, vector<8x16xf32>, vector<8x16xf32>, vector<8x16xf32>, vector<8x16xf32> -> vector<128x16xf32>
    %795 = arith.truncf %794 : vector<128x16xf32> to vector<128x16xbf16>
    %c15_1290 = arith.constant 15 : index
    %c0_1291 = arith.constant 0 : index
    %c0_1292 = arith.constant 0 : index
    %796 = vector.load %arg8[%c15_1290, %c0_1291, %c0_1292] : memref<16x16x6xbf16, #tpu.memory_space<vmem>>, vector<1x16x6xbf16>
    %797 = vector.shape_cast %796 : vector<1x16x6xbf16> to vector<16x6xbf16>
    %cst_1293 = arith.constant dense<0.000000e+00> : vector<128x6xf32>
    %798 = tpu.matmul %795, %797, %cst_1293 {dimension_numbers = #tpu.dot_dimension_numbers<[1], [0], [0], [1], [0, 0, 1, 1], [], []>} : vector<128x16xbf16>, vector<16x6xbf16>, vector<128x6xf32> -> vector<128x6xf32>
    %799 = arith.addf %761, %798 : vector<128x6xf32>
    %c0_1294 = arith.constant 0 : index
    %c0_1295 = arith.constant 0 : index
    %c1_1296 = arith.constant 1 : index
    %c0_1297 = arith.constant 0 : index
    %800 = vector.load %arg11[%c0_1294, %c0_1295, %c1_1296, %c0_1297] : memref<2x10x10x16xf32, #tpu.memory_space<vmem>>, vector<1x1x8x16xf32>
    %801 = vector.shape_cast %800 : vector<1x1x8x16xf32> to vector<8x16xf32>
    %c0_1298 = arith.constant 0 : index
    %c1_1299 = arith.constant 1 : index
    %c1_1300 = arith.constant 1 : index
    %c0_1301 = arith.constant 0 : index
    %802 = vector.load %arg11[%c0_1298, %c1_1299, %c1_1300, %c0_1301] : memref<2x10x10x16xf32, #tpu.memory_space<vmem>>, vector<1x1x8x16xf32>
    %803 = vector.shape_cast %802 : vector<1x1x8x16xf32> to vector<8x16xf32>
    %c0_1302 = arith.constant 0 : index
    %c2_1303 = arith.constant 2 : index
    %c1_1304 = arith.constant 1 : index
    %c0_1305 = arith.constant 0 : index
    %804 = vector.load %arg11[%c0_1302, %c2_1303, %c1_1304, %c0_1305] : memref<2x10x10x16xf32, #tpu.memory_space<vmem>>, vector<1x1x8x16xf32>
    %805 = vector.shape_cast %804 : vector<1x1x8x16xf32> to vector<8x16xf32>
    %c0_1306 = arith.constant 0 : index
    %c3_1307 = arith.constant 3 : index
    %c1_1308 = arith.constant 1 : index
    %c0_1309 = arith.constant 0 : index
    %806 = vector.load %arg11[%c0_1306, %c3_1307, %c1_1308, %c0_1309] : memref<2x10x10x16xf32, #tpu.memory_space<vmem>>, vector<1x1x8x16xf32>
    %807 = vector.shape_cast %806 : vector<1x1x8x16xf32> to vector<8x16xf32>
    %c0_1310 = arith.constant 0 : index
    %c4_1311 = arith.constant 4 : index
    %c1_1312 = arith.constant 1 : index
    %c0_1313 = arith.constant 0 : index
    %808 = vector.load %arg11[%c0_1310, %c4_1311, %c1_1312, %c0_1313] : memref<2x10x10x16xf32, #tpu.memory_space<vmem>>, vector<1x1x8x16xf32>
    %809 = vector.shape_cast %808 : vector<1x1x8x16xf32> to vector<8x16xf32>
    %c0_1314 = arith.constant 0 : index
    %c5_1315 = arith.constant 5 : index
    %c1_1316 = arith.constant 1 : index
    %c0_1317 = arith.constant 0 : index
    %810 = vector.load %arg11[%c0_1314, %c5_1315, %c1_1316, %c0_1317] : memref<2x10x10x16xf32, #tpu.memory_space<vmem>>, vector<1x1x8x16xf32>
    %811 = vector.shape_cast %810 : vector<1x1x8x16xf32> to vector<8x16xf32>
    %c0_1318 = arith.constant 0 : index
    %c6_1319 = arith.constant 6 : index
    %c1_1320 = arith.constant 1 : index
    %c0_1321 = arith.constant 0 : index
    %812 = vector.load %arg11[%c0_1318, %c6_1319, %c1_1320, %c0_1321] : memref<2x10x10x16xf32, #tpu.memory_space<vmem>>, vector<1x1x8x16xf32>
    %813 = vector.shape_cast %812 : vector<1x1x8x16xf32> to vector<8x16xf32>
    %c0_1322 = arith.constant 0 : index
    %c7_1323 = arith.constant 7 : index
    %c1_1324 = arith.constant 1 : index
    %c0_1325 = arith.constant 0 : index
    %814 = vector.load %arg11[%c0_1322, %c7_1323, %c1_1324, %c0_1325] : memref<2x10x10x16xf32, #tpu.memory_space<vmem>>, vector<1x1x8x16xf32>
    %815 = vector.shape_cast %814 : vector<1x1x8x16xf32> to vector<8x16xf32>
    %c1_1326 = arith.constant 1 : index
    %c0_1327 = arith.constant 0 : index
    %c1_1328 = arith.constant 1 : index
    %c0_1329 = arith.constant 0 : index
    %816 = vector.load %arg11[%c1_1326, %c0_1327, %c1_1328, %c0_1329] : memref<2x10x10x16xf32, #tpu.memory_space<vmem>>, vector<1x1x8x16xf32>
    %817 = vector.shape_cast %816 : vector<1x1x8x16xf32> to vector<8x16xf32>
    %c1_1330 = arith.constant 1 : index
    %c1_1331 = arith.constant 1 : index
    %c1_1332 = arith.constant 1 : index
    %c0_1333 = arith.constant 0 : index
    %818 = vector.load %arg11[%c1_1330, %c1_1331, %c1_1332, %c0_1333] : memref<2x10x10x16xf32, #tpu.memory_space<vmem>>, vector<1x1x8x16xf32>
    %819 = vector.shape_cast %818 : vector<1x1x8x16xf32> to vector<8x16xf32>
    %c1_1334 = arith.constant 1 : index
    %c2_1335 = arith.constant 2 : index
    %c1_1336 = arith.constant 1 : index
    %c0_1337 = arith.constant 0 : index
    %820 = vector.load %arg11[%c1_1334, %c2_1335, %c1_1336, %c0_1337] : memref<2x10x10x16xf32, #tpu.memory_space<vmem>>, vector<1x1x8x16xf32>
    %821 = vector.shape_cast %820 : vector<1x1x8x16xf32> to vector<8x16xf32>
    %c1_1338 = arith.constant 1 : index
    %c3_1339 = arith.constant 3 : index
    %c1_1340 = arith.constant 1 : index
    %c0_1341 = arith.constant 0 : index
    %822 = vector.load %arg11[%c1_1338, %c3_1339, %c1_1340, %c0_1341] : memref<2x10x10x16xf32, #tpu.memory_space<vmem>>, vector<1x1x8x16xf32>
    %823 = vector.shape_cast %822 : vector<1x1x8x16xf32> to vector<8x16xf32>
    %c1_1342 = arith.constant 1 : index
    %c4_1343 = arith.constant 4 : index
    %c1_1344 = arith.constant 1 : index
    %c0_1345 = arith.constant 0 : index
    %824 = vector.load %arg11[%c1_1342, %c4_1343, %c1_1344, %c0_1345] : memref<2x10x10x16xf32, #tpu.memory_space<vmem>>, vector<1x1x8x16xf32>
    %825 = vector.shape_cast %824 : vector<1x1x8x16xf32> to vector<8x16xf32>
    %c1_1346 = arith.constant 1 : index
    %c5_1347 = arith.constant 5 : index
    %c1_1348 = arith.constant 1 : index
    %c0_1349 = arith.constant 0 : index
    %826 = vector.load %arg11[%c1_1346, %c5_1347, %c1_1348, %c0_1349] : memref<2x10x10x16xf32, #tpu.memory_space<vmem>>, vector<1x1x8x16xf32>
    %827 = vector.shape_cast %826 : vector<1x1x8x16xf32> to vector<8x16xf32>
    %c1_1350 = arith.constant 1 : index
    %c6_1351 = arith.constant 6 : index
    %c1_1352 = arith.constant 1 : index
    %c0_1353 = arith.constant 0 : index
    %828 = vector.load %arg11[%c1_1350, %c6_1351, %c1_1352, %c0_1353] : memref<2x10x10x16xf32, #tpu.memory_space<vmem>>, vector<1x1x8x16xf32>
    %829 = vector.shape_cast %828 : vector<1x1x8x16xf32> to vector<8x16xf32>
    %c1_1354 = arith.constant 1 : index
    %c7_1355 = arith.constant 7 : index
    %c1_1356 = arith.constant 1 : index
    %c0_1357 = arith.constant 0 : index
    %830 = vector.load %arg11[%c1_1354, %c7_1355, %c1_1356, %c0_1357] : memref<2x10x10x16xf32, #tpu.memory_space<vmem>>, vector<1x1x8x16xf32>
    %831 = vector.shape_cast %830 : vector<1x1x8x16xf32> to vector<8x16xf32>
    %832 = tpu.concatenate %801, %803, %805, %807, %809, %811, %813, %815, %817, %819, %821, %823, %825, %827, %829, %831 in 0 : vector<8x16xf32>, vector<8x16xf32>, vector<8x16xf32>, vector<8x16xf32>, vector<8x16xf32>, vector<8x16xf32>, vector<8x16xf32>, vector<8x16xf32>, vector<8x16xf32>, vector<8x16xf32>, vector<8x16xf32>, vector<8x16xf32>, vector<8x16xf32>, vector<8x16xf32>, vector<8x16xf32>, vector<8x16xf32> -> vector<128x16xf32>
    %833 = arith.truncf %832 : vector<128x16xf32> to vector<128x16xbf16>
    %c13_1358 = arith.constant 13 : index
    %c0_1359 = arith.constant 0 : index
    %c0_1360 = arith.constant 0 : index
    %834 = vector.load %arg8[%c13_1358, %c0_1359, %c0_1360] : memref<16x16x6xbf16, #tpu.memory_space<vmem>>, vector<1x16x6xbf16>
    %835 = vector.shape_cast %834 : vector<1x16x6xbf16> to vector<16x6xbf16>
    %cst_1361 = arith.constant dense<0.000000e+00> : vector<128x6xf32>
    %836 = tpu.matmul %833, %835, %cst_1361 {dimension_numbers = #tpu.dot_dimension_numbers<[1], [0], [0], [1], [0, 0, 1, 1], [], []>} : vector<128x16xbf16>, vector<16x6xbf16>, vector<128x6xf32> -> vector<128x6xf32>
    %837 = arith.addf %799, %836 : vector<128x6xf32>
    %c0_1362 = arith.constant 0 : index
    %c1_1363 = arith.constant 1 : index
    %c0_1364 = arith.constant 0 : index
    %c0_1365 = arith.constant 0 : index
    %838 = vector.load %arg11[%c0_1362, %c1_1363, %c0_1364, %c0_1365] : memref<2x10x10x16xf32, #tpu.memory_space<vmem>>, vector<1x1x8x16xf32>
    %839 = vector.shape_cast %838 : vector<1x1x8x16xf32> to vector<8x16xf32>
    %c0_1366 = arith.constant 0 : index
    %c2_1367 = arith.constant 2 : index
    %c0_1368 = arith.constant 0 : index
    %c0_1369 = arith.constant 0 : index
    %840 = vector.load %arg11[%c0_1366, %c2_1367, %c0_1368, %c0_1369] : memref<2x10x10x16xf32, #tpu.memory_space<vmem>>, vector<1x1x8x16xf32>
    %841 = vector.shape_cast %840 : vector<1x1x8x16xf32> to vector<8x16xf32>
    %c0_1370 = arith.constant 0 : index
    %c3_1371 = arith.constant 3 : index
    %c0_1372 = arith.constant 0 : index
    %c0_1373 = arith.constant 0 : index
    %842 = vector.load %arg11[%c0_1370, %c3_1371, %c0_1372, %c0_1373] : memref<2x10x10x16xf32, #tpu.memory_space<vmem>>, vector<1x1x8x16xf32>
    %843 = vector.shape_cast %842 : vector<1x1x8x16xf32> to vector<8x16xf32>
    %c0_1374 = arith.constant 0 : index
    %c4_1375 = arith.constant 4 : index
    %c0_1376 = arith.constant 0 : index
    %c0_1377 = arith.constant 0 : index
    %844 = vector.load %arg11[%c0_1374, %c4_1375, %c0_1376, %c0_1377] : memref<2x10x10x16xf32, #tpu.memory_space<vmem>>, vector<1x1x8x16xf32>
    %845 = vector.shape_cast %844 : vector<1x1x8x16xf32> to vector<8x16xf32>
    %c0_1378 = arith.constant 0 : index
    %c5_1379 = arith.constant 5 : index
    %c0_1380 = arith.constant 0 : index
    %c0_1381 = arith.constant 0 : index
    %846 = vector.load %arg11[%c0_1378, %c5_1379, %c0_1380, %c0_1381] : memref<2x10x10x16xf32, #tpu.memory_space<vmem>>, vector<1x1x8x16xf32>
    %847 = vector.shape_cast %846 : vector<1x1x8x16xf32> to vector<8x16xf32>
    %c0_1382 = arith.constant 0 : index
    %c6_1383 = arith.constant 6 : index
    %c0_1384 = arith.constant 0 : index
    %c0_1385 = arith.constant 0 : index
    %848 = vector.load %arg11[%c0_1382, %c6_1383, %c0_1384, %c0_1385] : memref<2x10x10x16xf32, #tpu.memory_space<vmem>>, vector<1x1x8x16xf32>
    %849 = vector.shape_cast %848 : vector<1x1x8x16xf32> to vector<8x16xf32>
    %c0_1386 = arith.constant 0 : index
    %c7_1387 = arith.constant 7 : index
    %c0_1388 = arith.constant 0 : index
    %c0_1389 = arith.constant 0 : index
    %850 = vector.load %arg11[%c0_1386, %c7_1387, %c0_1388, %c0_1389] : memref<2x10x10x16xf32, #tpu.memory_space<vmem>>, vector<1x1x8x16xf32>
    %851 = vector.shape_cast %850 : vector<1x1x8x16xf32> to vector<8x16xf32>
    %c0_1390 = arith.constant 0 : index
    %c8_1391 = arith.constant 8 : index
    %c0_1392 = arith.constant 0 : index
    %c0_1393 = arith.constant 0 : index
    %852 = vector.load %arg11[%c0_1390, %c8_1391, %c0_1392, %c0_1393] : memref<2x10x10x16xf32, #tpu.memory_space<vmem>>, vector<1x1x8x16xf32>
    %853 = vector.shape_cast %852 : vector<1x1x8x16xf32> to vector<8x16xf32>
    %c1_1394 = arith.constant 1 : index
    %c1_1395 = arith.constant 1 : index
    %c0_1396 = arith.constant 0 : index
    %c0_1397 = arith.constant 0 : index
    %854 = vector.load %arg11[%c1_1394, %c1_1395, %c0_1396, %c0_1397] : memref<2x10x10x16xf32, #tpu.memory_space<vmem>>, vector<1x1x8x16xf32>
    %855 = vector.shape_cast %854 : vector<1x1x8x16xf32> to vector<8x16xf32>
    %c1_1398 = arith.constant 1 : index
    %c2_1399 = arith.constant 2 : index
    %c0_1400 = arith.constant 0 : index
    %c0_1401 = arith.constant 0 : index
    %856 = vector.load %arg11[%c1_1398, %c2_1399, %c0_1400, %c0_1401] : memref<2x10x10x16xf32, #tpu.memory_space<vmem>>, vector<1x1x8x16xf32>
    %857 = vector.shape_cast %856 : vector<1x1x8x16xf32> to vector<8x16xf32>
    %c1_1402 = arith.constant 1 : index
    %c3_1403 = arith.constant 3 : index
    %c0_1404 = arith.constant 0 : index
    %c0_1405 = arith.constant 0 : index
    %858 = vector.load %arg11[%c1_1402, %c3_1403, %c0_1404, %c0_1405] : memref<2x10x10x16xf32, #tpu.memory_space<vmem>>, vector<1x1x8x16xf32>
    %859 = vector.shape_cast %858 : vector<1x1x8x16xf32> to vector<8x16xf32>
    %c1_1406 = arith.constant 1 : index
    %c4_1407 = arith.constant 4 : index
    %c0_1408 = arith.constant 0 : index
    %c0_1409 = arith.constant 0 : index
    %860 = vector.load %arg11[%c1_1406, %c4_1407, %c0_1408, %c0_1409] : memref<2x10x10x16xf32, #tpu.memory_space<vmem>>, vector<1x1x8x16xf32>
    %861 = vector.shape_cast %860 : vector<1x1x8x16xf32> to vector<8x16xf32>
    %c1_1410 = arith.constant 1 : index
    %c5_1411 = arith.constant 5 : index
    %c0_1412 = arith.constant 0 : index
    %c0_1413 = arith.constant 0 : index
    %862 = vector.load %arg11[%c1_1410, %c5_1411, %c0_1412, %c0_1413] : memref<2x10x10x16xf32, #tpu.memory_space<vmem>>, vector<1x1x8x16xf32>
    %863 = vector.shape_cast %862 : vector<1x1x8x16xf32> to vector<8x16xf32>
    %c1_1414 = arith.constant 1 : index
    %c6_1415 = arith.constant 6 : index
    %c0_1416 = arith.constant 0 : index
    %c0_1417 = arith.constant 0 : index
    %864 = vector.load %arg11[%c1_1414, %c6_1415, %c0_1416, %c0_1417] : memref<2x10x10x16xf32, #tpu.memory_space<vmem>>, vector<1x1x8x16xf32>
    %865 = vector.shape_cast %864 : vector<1x1x8x16xf32> to vector<8x16xf32>
    %c1_1418 = arith.constant 1 : index
    %c7_1419 = arith.constant 7 : index
    %c0_1420 = arith.constant 0 : index
    %c0_1421 = arith.constant 0 : index
    %866 = vector.load %arg11[%c1_1418, %c7_1419, %c0_1420, %c0_1421] : memref<2x10x10x16xf32, #tpu.memory_space<vmem>>, vector<1x1x8x16xf32>
    %867 = vector.shape_cast %866 : vector<1x1x8x16xf32> to vector<8x16xf32>
    %c1_1422 = arith.constant 1 : index
    %c8_1423 = arith.constant 8 : index
    %c0_1424 = arith.constant 0 : index
    %c0_1425 = arith.constant 0 : index
    %868 = vector.load %arg11[%c1_1422, %c8_1423, %c0_1424, %c0_1425] : memref<2x10x10x16xf32, #tpu.memory_space<vmem>>, vector<1x1x8x16xf32>
    %869 = vector.shape_cast %868 : vector<1x1x8x16xf32> to vector<8x16xf32>
    %870 = tpu.concatenate %839, %841, %843, %845, %847, %849, %851, %853, %855, %857, %859, %861, %863, %865, %867, %869 in 0 : vector<8x16xf32>, vector<8x16xf32>, vector<8x16xf32>, vector<8x16xf32>, vector<8x16xf32>, vector<8x16xf32>, vector<8x16xf32>, vector<8x16xf32>, vector<8x16xf32>, vector<8x16xf32>, vector<8x16xf32>, vector<8x16xf32>, vector<8x16xf32>, vector<8x16xf32>, vector<8x16xf32>, vector<8x16xf32> -> vector<128x16xf32>
    %871 = arith.truncf %870 : vector<128x16xf32> to vector<128x16xbf16>
    %c7_1426 = arith.constant 7 : index
    %c0_1427 = arith.constant 0 : index
    %c0_1428 = arith.constant 0 : index
    %872 = vector.load %arg8[%c7_1426, %c0_1427, %c0_1428] : memref<16x16x6xbf16, #tpu.memory_space<vmem>>, vector<1x16x6xbf16>
    %873 = vector.shape_cast %872 : vector<1x16x6xbf16> to vector<16x6xbf16>
    %cst_1429 = arith.constant dense<0.000000e+00> : vector<128x6xf32>
    %874 = tpu.matmul %871, %873, %cst_1429 {dimension_numbers = #tpu.dot_dimension_numbers<[1], [0], [0], [1], [0, 0, 1, 1], [], []>} : vector<128x16xbf16>, vector<16x6xbf16>, vector<128x6xf32> -> vector<128x6xf32>
    %875 = arith.addf %837, %874 : vector<128x6xf32>
    %c0_1430 = arith.constant 0 : index
    %c1_1431 = arith.constant 1 : index
    %c1_1432 = arith.constant 1 : index
    %c0_1433 = arith.constant 0 : index
    %876 = vector.load %arg11[%c0_1430, %c1_1431, %c1_1432, %c0_1433] : memref<2x10x10x16xf32, #tpu.memory_space<vmem>>, vector<1x1x8x16xf32>
    %877 = vector.shape_cast %876 : vector<1x1x8x16xf32> to vector<8x16xf32>
    %c0_1434 = arith.constant 0 : index
    %c2_1435 = arith.constant 2 : index
    %c1_1436 = arith.constant 1 : index
    %c0_1437 = arith.constant 0 : index
    %878 = vector.load %arg11[%c0_1434, %c2_1435, %c1_1436, %c0_1437] : memref<2x10x10x16xf32, #tpu.memory_space<vmem>>, vector<1x1x8x16xf32>
    %879 = vector.shape_cast %878 : vector<1x1x8x16xf32> to vector<8x16xf32>
    %c0_1438 = arith.constant 0 : index
    %c3_1439 = arith.constant 3 : index
    %c1_1440 = arith.constant 1 : index
    %c0_1441 = arith.constant 0 : index
    %880 = vector.load %arg11[%c0_1438, %c3_1439, %c1_1440, %c0_1441] : memref<2x10x10x16xf32, #tpu.memory_space<vmem>>, vector<1x1x8x16xf32>
    %881 = vector.shape_cast %880 : vector<1x1x8x16xf32> to vector<8x16xf32>
    %c0_1442 = arith.constant 0 : index
    %c4_1443 = arith.constant 4 : index
    %c1_1444 = arith.constant 1 : index
    %c0_1445 = arith.constant 0 : index
    %882 = vector.load %arg11[%c0_1442, %c4_1443, %c1_1444, %c0_1445] : memref<2x10x10x16xf32, #tpu.memory_space<vmem>>, vector<1x1x8x16xf32>
    %883 = vector.shape_cast %882 : vector<1x1x8x16xf32> to vector<8x16xf32>
    %c0_1446 = arith.constant 0 : index
    %c5_1447 = arith.constant 5 : index
    %c1_1448 = arith.constant 1 : index
    %c0_1449 = arith.constant 0 : index
    %884 = vector.load %arg11[%c0_1446, %c5_1447, %c1_1448, %c0_1449] : memref<2x10x10x16xf32, #tpu.memory_space<vmem>>, vector<1x1x8x16xf32>
    %885 = vector.shape_cast %884 : vector<1x1x8x16xf32> to vector<8x16xf32>
    %c0_1450 = arith.constant 0 : index
    %c6_1451 = arith.constant 6 : index
    %c1_1452 = arith.constant 1 : index
    %c0_1453 = arith.constant 0 : index
    %886 = vector.load %arg11[%c0_1450, %c6_1451, %c1_1452, %c0_1453] : memref<2x10x10x16xf32, #tpu.memory_space<vmem>>, vector<1x1x8x16xf32>
    %887 = vector.shape_cast %886 : vector<1x1x8x16xf32> to vector<8x16xf32>
    %c0_1454 = arith.constant 0 : index
    %c7_1455 = arith.constant 7 : index
    %c1_1456 = arith.constant 1 : index
    %c0_1457 = arith.constant 0 : index
    %888 = vector.load %arg11[%c0_1454, %c7_1455, %c1_1456, %c0_1457] : memref<2x10x10x16xf32, #tpu.memory_space<vmem>>, vector<1x1x8x16xf32>
    %889 = vector.shape_cast %888 : vector<1x1x8x16xf32> to vector<8x16xf32>
    %c0_1458 = arith.constant 0 : index
    %c8_1459 = arith.constant 8 : index
    %c1_1460 = arith.constant 1 : index
    %c0_1461 = arith.constant 0 : index
    %890 = vector.load %arg11[%c0_1458, %c8_1459, %c1_1460, %c0_1461] : memref<2x10x10x16xf32, #tpu.memory_space<vmem>>, vector<1x1x8x16xf32>
    %891 = vector.shape_cast %890 : vector<1x1x8x16xf32> to vector<8x16xf32>
    %c1_1462 = arith.constant 1 : index
    %c1_1463 = arith.constant 1 : index
    %c1_1464 = arith.constant 1 : index
    %c0_1465 = arith.constant 0 : index
    %892 = vector.load %arg11[%c1_1462, %c1_1463, %c1_1464, %c0_1465] : memref<2x10x10x16xf32, #tpu.memory_space<vmem>>, vector<1x1x8x16xf32>
    %893 = vector.shape_cast %892 : vector<1x1x8x16xf32> to vector<8x16xf32>
    %c1_1466 = arith.constant 1 : index
    %c2_1467 = arith.constant 2 : index
    %c1_1468 = arith.constant 1 : index
    %c0_1469 = arith.constant 0 : index
    %894 = vector.load %arg11[%c1_1466, %c2_1467, %c1_1468, %c0_1469] : memref<2x10x10x16xf32, #tpu.memory_space<vmem>>, vector<1x1x8x16xf32>
    %895 = vector.shape_cast %894 : vector<1x1x8x16xf32> to vector<8x16xf32>
    %c1_1470 = arith.constant 1 : index
    %c3_1471 = arith.constant 3 : index
    %c1_1472 = arith.constant 1 : index
    %c0_1473 = arith.constant 0 : index
    %896 = vector.load %arg11[%c1_1470, %c3_1471, %c1_1472, %c0_1473] : memref<2x10x10x16xf32, #tpu.memory_space<vmem>>, vector<1x1x8x16xf32>
    %897 = vector.shape_cast %896 : vector<1x1x8x16xf32> to vector<8x16xf32>
    %c1_1474 = arith.constant 1 : index
    %c4_1475 = arith.constant 4 : index
    %c1_1476 = arith.constant 1 : index
    %c0_1477 = arith.constant 0 : index
    %898 = vector.load %arg11[%c1_1474, %c4_1475, %c1_1476, %c0_1477] : memref<2x10x10x16xf32, #tpu.memory_space<vmem>>, vector<1x1x8x16xf32>
    %899 = vector.shape_cast %898 : vector<1x1x8x16xf32> to vector<8x16xf32>
    %c1_1478 = arith.constant 1 : index
    %c5_1479 = arith.constant 5 : index
    %c1_1480 = arith.constant 1 : index
    %c0_1481 = arith.constant 0 : index
    %900 = vector.load %arg11[%c1_1478, %c5_1479, %c1_1480, %c0_1481] : memref<2x10x10x16xf32, #tpu.memory_space<vmem>>, vector<1x1x8x16xf32>
    %901 = vector.shape_cast %900 : vector<1x1x8x16xf32> to vector<8x16xf32>
    %c1_1482 = arith.constant 1 : index
    %c6_1483 = arith.constant 6 : index
    %c1_1484 = arith.constant 1 : index
    %c0_1485 = arith.constant 0 : index
    %902 = vector.load %arg11[%c1_1482, %c6_1483, %c1_1484, %c0_1485] : memref<2x10x10x16xf32, #tpu.memory_space<vmem>>, vector<1x1x8x16xf32>
    %903 = vector.shape_cast %902 : vector<1x1x8x16xf32> to vector<8x16xf32>
    %c1_1486 = arith.constant 1 : index
    %c7_1487 = arith.constant 7 : index
    %c1_1488 = arith.constant 1 : index
    %c0_1489 = arith.constant 0 : index
    %904 = vector.load %arg11[%c1_1486, %c7_1487, %c1_1488, %c0_1489] : memref<2x10x10x16xf32, #tpu.memory_space<vmem>>, vector<1x1x8x16xf32>
    %905 = vector.shape_cast %904 : vector<1x1x8x16xf32> to vector<8x16xf32>
    %c1_1490 = arith.constant 1 : index
    %c8_1491 = arith.constant 8 : index
    %c1_1492 = arith.constant 1 : index
    %c0_1493 = arith.constant 0 : index
    %906 = vector.load %arg11[%c1_1490, %c8_1491, %c1_1492, %c0_1493] : memref<2x10x10x16xf32, #tpu.memory_space<vmem>>, vector<1x1x8x16xf32>
    %907 = vector.shape_cast %906 : vector<1x1x8x16xf32> to vector<8x16xf32>
    %908 = tpu.concatenate %877, %879, %881, %883, %885, %887, %889, %891, %893, %895, %897, %899, %901, %903, %905, %907 in 0 : vector<8x16xf32>, vector<8x16xf32>, vector<8x16xf32>, vector<8x16xf32>, vector<8x16xf32>, vector<8x16xf32>, vector<8x16xf32>, vector<8x16xf32>, vector<8x16xf32>, vector<8x16xf32>, vector<8x16xf32>, vector<8x16xf32>, vector<8x16xf32>, vector<8x16xf32>, vector<8x16xf32>, vector<8x16xf32> -> vector<128x16xf32>
    %909 = arith.truncf %908 : vector<128x16xf32> to vector<128x16xbf16>
    %c5_1494 = arith.constant 5 : index
    %c0_1495 = arith.constant 0 : index
    %c0_1496 = arith.constant 0 : index
    %910 = vector.load %arg8[%c5_1494, %c0_1495, %c0_1496] : memref<16x16x6xbf16, #tpu.memory_space<vmem>>, vector<1x16x6xbf16>
    %911 = vector.shape_cast %910 : vector<1x16x6xbf16> to vector<16x6xbf16>
    %cst_1497 = arith.constant dense<0.000000e+00> : vector<128x6xf32>
    %912 = tpu.matmul %909, %911, %cst_1497 {dimension_numbers = #tpu.dot_dimension_numbers<[1], [0], [0], [1], [0, 0, 1, 1], [], []>} : vector<128x16xbf16>, vector<16x6xbf16>, vector<128x6xf32> -> vector<128x6xf32>
    %913 = arith.addf %875, %912 : vector<128x6xf32>
    %914 = math.tanh %913 : vector<128x6xf32>
    %c0_1498 = arith.constant 0 : index
    %c0_1499 = arith.constant 0 : index
    %c0_1500 = arith.constant 0 : index
    %c0_1501 = arith.constant 0 : index
    %915 = vector.load %arg9[%c0_1498, %c0_1499, %c0_1500, %c0_1501] : memref<2x2x128x6xf32, #tpu.memory_space<vmem>>, vector<1x1x128x6xf32>
    %916 = vector.shape_cast %915 : vector<1x1x128x6xf32> to vector<128x6xf32>
    %917 = vector.shape_cast %914 : vector<128x6xf32> to vector<1x1x128x6xf32>
    tpu.vector_store %arg9[%c0_1498, %c0_1499, %c0_1500, %c0_1501], %917 {strides = array<i32>} : memref<2x2x128x6xf32, #tpu.memory_space<vmem>>, vector<1x1x128x6xf32>,
    %cst_1502 = arith.constant 0.000000e+00 : f32
    %918 = vector.broadcast %cst_1502 : f32 to vector<128x6xf32>
    %c0_1503 = arith.constant 0 : index
    %c0_1504 = arith.constant 0 : index
    %c1_1505 = arith.constant 1 : index
    %c0_1506 = arith.constant 0 : index
    %919 = vector.load %arg11[%c0_1503, %c0_1504, %c1_1505, %c0_1506] : memref<2x10x10x16xf32, #tpu.memory_space<vmem>>, vector<1x1x8x16xf32>
    %920 = vector.shape_cast %919 : vector<1x1x8x16xf32> to vector<8x16xf32>
    %c0_1507 = arith.constant 0 : index
    %c1_1508 = arith.constant 1 : index
    %c1_1509 = arith.constant 1 : index
    %c0_1510 = arith.constant 0 : index
    %921 = vector.load %arg11[%c0_1507, %c1_1508, %c1_1509, %c0_1510] : memref<2x10x10x16xf32, #tpu.memory_space<vmem>>, vector<1x1x8x16xf32>
    %922 = vector.shape_cast %921 : vector<1x1x8x16xf32> to vector<8x16xf32>
    %c0_1511 = arith.constant 0 : index
    %c2_1512 = arith.constant 2 : index
    %c1_1513 = arith.constant 1 : index
    %c0_1514 = arith.constant 0 : index
    %923 = vector.load %arg11[%c0_1511, %c2_1512, %c1_1513, %c0_1514] : memref<2x10x10x16xf32, #tpu.memory_space<vmem>>, vector<1x1x8x16xf32>
    %924 = vector.shape_cast %923 : vector<1x1x8x16xf32> to vector<8x16xf32>
    %c0_1515 = arith.constant 0 : index
    %c3_1516 = arith.constant 3 : index
    %c1_1517 = arith.constant 1 : index
    %c0_1518 = arith.constant 0 : index
    %925 = vector.load %arg11[%c0_1515, %c3_1516, %c1_1517, %c0_1518] : memref<2x10x10x16xf32, #tpu.memory_space<vmem>>, vector<1x1x8x16xf32>
    %926 = vector.shape_cast %925 : vector<1x1x8x16xf32> to vector<8x16xf32>
    %c0_1519 = arith.constant 0 : index
    %c4_1520 = arith.constant 4 : index
    %c1_1521 = arith.constant 1 : index
    %c0_1522 = arith.constant 0 : index
    %927 = vector.load %arg11[%c0_1519, %c4_1520, %c1_1521, %c0_1522] : memref<2x10x10x16xf32, #tpu.memory_space<vmem>>, vector<1x1x8x16xf32>
    %928 = vector.shape_cast %927 : vector<1x1x8x16xf32> to vector<8x16xf32>
    %c0_1523 = arith.constant 0 : index
    %c5_1524 = arith.constant 5 : index
    %c1_1525 = arith.constant 1 : index
    %c0_1526 = arith.constant 0 : index
    %929 = vector.load %arg11[%c0_1523, %c5_1524, %c1_1525, %c0_1526] : memref<2x10x10x16xf32, #tpu.memory_space<vmem>>, vector<1x1x8x16xf32>
    %930 = vector.shape_cast %929 : vector<1x1x8x16xf32> to vector<8x16xf32>
    %c0_1527 = arith.constant 0 : index
    %c6_1528 = arith.constant 6 : index
    %c1_1529 = arith.constant 1 : index
    %c0_1530 = arith.constant 0 : index
    %931 = vector.load %arg11[%c0_1527, %c6_1528, %c1_1529, %c0_1530] : memref<2x10x10x16xf32, #tpu.memory_space<vmem>>, vector<1x1x8x16xf32>
    %932 = vector.shape_cast %931 : vector<1x1x8x16xf32> to vector<8x16xf32>
    %c0_1531 = arith.constant 0 : index
    %c7_1532 = arith.constant 7 : index
    %c1_1533 = arith.constant 1 : index
    %c0_1534 = arith.constant 0 : index
    %933 = vector.load %arg11[%c0_1531, %c7_1532, %c1_1533, %c0_1534] : memref<2x10x10x16xf32, #tpu.memory_space<vmem>>, vector<1x1x8x16xf32>
    %934 = vector.shape_cast %933 : vector<1x1x8x16xf32> to vector<8x16xf32>
    %c1_1535 = arith.constant 1 : index
    %c0_1536 = arith.constant 0 : index
    %c1_1537 = arith.constant 1 : index
    %c0_1538 = arith.constant 0 : index
    %935 = vector.load %arg11[%c1_1535, %c0_1536, %c1_1537, %c0_1538] : memref<2x10x10x16xf32, #tpu.memory_space<vmem>>, vector<1x1x8x16xf32>
    %936 = vector.shape_cast %935 : vector<1x1x8x16xf32> to vector<8x16xf32>
    %c1_1539 = arith.constant 1 : index
    %c1_1540 = arith.constant 1 : index
    %c1_1541 = arith.constant 1 : index
    %c0_1542 = arith.constant 0 : index
    %937 = vector.load %arg11[%c1_1539, %c1_1540, %c1_1541, %c0_1542] : memref<2x10x10x16xf32, #tpu.memory_space<vmem>>, vector<1x1x8x16xf32>
    %938 = vector.shape_cast %937 : vector<1x1x8x16xf32> to vector<8x16xf32>
    %c1_1543 = arith.constant 1 : index
    %c2_1544 = arith.constant 2 : index
    %c1_1545 = arith.constant 1 : index
    %c0_1546 = arith.constant 0 : index
    %939 = vector.load %arg11[%c1_1543, %c2_1544, %c1_1545, %c0_1546] : memref<2x10x10x16xf32, #tpu.memory_space<vmem>>, vector<1x1x8x16xf32>
    %940 = vector.shape_cast %939 : vector<1x1x8x16xf32> to vector<8x16xf32>
    %c1_1547 = arith.constant 1 : index
    %c3_1548 = arith.constant 3 : index
    %c1_1549 = arith.constant 1 : index
    %c0_1550 = arith.constant 0 : index
    %941 = vector.load %arg11[%c1_1547, %c3_1548, %c1_1549, %c0_1550] : memref<2x10x10x16xf32, #tpu.memory_space<vmem>>, vector<1x1x8x16xf32>
    %942 = vector.shape_cast %941 : vector<1x1x8x16xf32> to vector<8x16xf32>
    %c1_1551 = arith.constant 1 : index
    %c4_1552 = arith.constant 4 : index
    %c1_1553 = arith.constant 1 : index
    %c0_1554 = arith.constant 0 : index
    %943 = vector.load %arg11[%c1_1551, %c4_1552, %c1_1553, %c0_1554] : memref<2x10x10x16xf32, #tpu.memory_space<vmem>>, vector<1x1x8x16xf32>
    %944 = vector.shape_cast %943 : vector<1x1x8x16xf32> to vector<8x16xf32>
    %c1_1555 = arith.constant 1 : index
    %c5_1556 = arith.constant 5 : index
    %c1_1557 = arith.constant 1 : index
    %c0_1558 = arith.constant 0 : index
    %945 = vector.load %arg11[%c1_1555, %c5_1556, %c1_1557, %c0_1558] : memref<2x10x10x16xf32, #tpu.memory_space<vmem>>, vector<1x1x8x16xf32>
    %946 = vector.shape_cast %945 : vector<1x1x8x16xf32> to vector<8x16xf32>
    %c1_1559 = arith.constant 1 : index
    %c6_1560 = arith.constant 6 : index
    %c1_1561 = arith.constant 1 : index
    %c0_1562 = arith.constant 0 : index
    %947 = vector.load %arg11[%c1_1559, %c6_1560, %c1_1561, %c0_1562] : memref<2x10x10x16xf32, #tpu.memory_space<vmem>>, vector<1x1x8x16xf32>
    %948 = vector.shape_cast %947 : vector<1x1x8x16xf32> to vector<8x16xf32>
    %c1_1563 = arith.constant 1 : index
    %c7_1564 = arith.constant 7 : index
    %c1_1565 = arith.constant 1 : index
    %c0_1566 = arith.constant 0 : index
    %949 = vector.load %arg11[%c1_1563, %c7_1564, %c1_1565, %c0_1566] : memref<2x10x10x16xf32, #tpu.memory_space<vmem>>, vector<1x1x8x16xf32>
    %950 = vector.shape_cast %949 : vector<1x1x8x16xf32> to vector<8x16xf32>
    %951 = tpu.concatenate %920, %922, %924, %926, %928, %930, %932, %934, %936, %938, %940, %942, %944, %946, %948, %950 in 0 : vector<8x16xf32>, vector<8x16xf32>, vector<8x16xf32>, vector<8x16xf32>, vector<8x16xf32>, vector<8x16xf32>, vector<8x16xf32>, vector<8x16xf32>, vector<8x16xf32>, vector<8x16xf32>, vector<8x16xf32>, vector<8x16xf32>, vector<8x16xf32>, vector<8x16xf32>, vector<8x16xf32>, vector<8x16xf32> -> vector<128x16xf32>
    %952 = arith.truncf %951 : vector<128x16xf32> to vector<128x16xbf16>
    %c14_1567 = arith.constant 14 : index
    %c0_1568 = arith.constant 0 : index
    %c0_1569 = arith.constant 0 : index
    %953 = vector.load %arg8[%c14_1567, %c0_1568, %c0_1569] : memref<16x16x6xbf16, #tpu.memory_space<vmem>>, vector<1x16x6xbf16>
    %954 = vector.shape_cast %953 : vector<1x16x6xbf16> to vector<16x6xbf16>
    %cst_1570 = arith.constant dense<0.000000e+00> : vector<128x6xf32>
    %955 = tpu.matmul %952, %954, %cst_1570 {dimension_numbers = #tpu.dot_dimension_numbers<[1], [0], [0], [1], [0, 0, 1, 1], [], []>} : vector<128x16xbf16>, vector<16x6xbf16>, vector<128x6xf32> -> vector<128x6xf32>
    %956 = arith.addf %918, %955 : vector<128x6xf32>
    %c0_1571 = arith.constant 0 : index
    %c0_1572 = arith.constant 0 : index
    %c2_1573 = arith.constant 2 : index
    %c0_1574 = arith.constant 0 : index
    %957 = vector.load %arg11[%c0_1571, %c0_1572, %c2_1573, %c0_1574] : memref<2x10x10x16xf32, #tpu.memory_space<vmem>>, vector<1x1x8x16xf32>
    %958 = vector.shape_cast %957 : vector<1x1x8x16xf32> to vector<8x16xf32>
    %c0_1575 = arith.constant 0 : index
    %c1_1576 = arith.constant 1 : index
    %c2_1577 = arith.constant 2 : index
    %c0_1578 = arith.constant 0 : index
    %959 = vector.load %arg11[%c0_1575, %c1_1576, %c2_1577, %c0_1578] : memref<2x10x10x16xf32, #tpu.memory_space<vmem>>, vector<1x1x8x16xf32>
    %960 = vector.shape_cast %959 : vector<1x1x8x16xf32> to vector<8x16xf32>
    %c0_1579 = arith.constant 0 : index
    %c2_1580 = arith.constant 2 : index
    %c2_1581 = arith.constant 2 : index
    %c0_1582 = arith.constant 0 : index
    %961 = vector.load %arg11[%c0_1579, %c2_1580, %c2_1581, %c0_1582] : memref<2x10x10x16xf32, #tpu.memory_space<vmem>>, vector<1x1x8x16xf32>
    %962 = vector.shape_cast %961 : vector<1x1x8x16xf32> to vector<8x16xf32>
    %c0_1583 = arith.constant 0 : index
    %c3_1584 = arith.constant 3 : index
    %c2_1585 = arith.constant 2 : index
    %c0_1586 = arith.constant 0 : index
    %963 = vector.load %arg11[%c0_1583, %c3_1584, %c2_1585, %c0_1586] : memref<2x10x10x16xf32, #tpu.memory_space<vmem>>, vector<1x1x8x16xf32>
    %964 = vector.shape_cast %963 : vector<1x1x8x16xf32> to vector<8x16xf32>
    %c0_1587 = arith.constant 0 : index
    %c4_1588 = arith.constant 4 : index
    %c2_1589 = arith.constant 2 : index
    %c0_1590 = arith.constant 0 : index
    %965 = vector.load %arg11[%c0_1587, %c4_1588, %c2_1589, %c0_1590] : memref<2x10x10x16xf32, #tpu.memory_space<vmem>>, vector<1x1x8x16xf32>
    %966 = vector.shape_cast %965 : vector<1x1x8x16xf32> to vector<8x16xf32>
    %c0_1591 = arith.constant 0 : index
    %c5_1592 = arith.constant 5 : index
    %c2_1593 = arith.constant 2 : index
    %c0_1594 = arith.constant 0 : index
    %967 = vector.load %arg11[%c0_1591, %c5_1592, %c2_1593, %c0_1594] : memref<2x10x10x16xf32, #tpu.memory_space<vmem>>, vector<1x1x8x16xf32>
    %968 = vector.shape_cast %967 : vector<1x1x8x16xf32> to vector<8x16xf32>
    %c0_1595 = arith.constant 0 : index
    %c6_1596 = arith.constant 6 : index
    %c2_1597 = arith.constant 2 : index
    %c0_1598 = arith.constant 0 : index
    %969 = vector.load %arg11[%c0_1595, %c6_1596, %c2_1597, %c0_1598] : memref<2x10x10x16xf32, #tpu.memory_space<vmem>>, vector<1x1x8x16xf32>
    %970 = vector.shape_cast %969 : vector<1x1x8x16xf32> to vector<8x16xf32>
    %c0_1599 = arith.constant 0 : index
    %c7_1600 = arith.constant 7 : index
    %c2_1601 = arith.constant 2 : index
    %c0_1602 = arith.constant 0 : index
    %971 = vector.load %arg11[%c0_1599, %c7_1600, %c2_1601, %c0_1602] : memref<2x10x10x16xf32, #tpu.memory_space<vmem>>, vector<1x1x8x16xf32>
    %972 = vector.shape_cast %971 : vector<1x1x8x16xf32> to vector<8x16xf32>
    %c1_1603 = arith.constant 1 : index
    %c0_1604 = arith.constant 0 : index
    %c2_1605 = arith.constant 2 : index
    %c0_1606 = arith.constant 0 : index
    %973 = vector.load %arg11[%c1_1603, %c0_1604, %c2_1605, %c0_1606] : memref<2x10x10x16xf32, #tpu.memory_space<vmem>>, vector<1x1x8x16xf32>
    %974 = vector.shape_cast %973 : vector<1x1x8x16xf32> to vector<8x16xf32>
    %c1_1607 = arith.constant 1 : index
    %c1_1608 = arith.constant 1 : index
    %c2_1609 = arith.constant 2 : index
    %c0_1610 = arith.constant 0 : index
    %975 = vector.load %arg11[%c1_1607, %c1_1608, %c2_1609, %c0_1610] : memref<2x10x10x16xf32, #tpu.memory_space<vmem>>, vector<1x1x8x16xf32>
    %976 = vector.shape_cast %975 : vector<1x1x8x16xf32> to vector<8x16xf32>
    %c1_1611 = arith.constant 1 : index
    %c2_1612 = arith.constant 2 : index
    %c2_1613 = arith.constant 2 : index
    %c0_1614 = arith.constant 0 : index
    %977 = vector.load %arg11[%c1_1611, %c2_1612, %c2_1613, %c0_1614] : memref<2x10x10x16xf32, #tpu.memory_space<vmem>>, vector<1x1x8x16xf32>
    %978 = vector.shape_cast %977 : vector<1x1x8x16xf32> to vector<8x16xf32>
    %c1_1615 = arith.constant 1 : index
    %c3_1616 = arith.constant 3 : index
    %c2_1617 = arith.constant 2 : index
    %c0_1618 = arith.constant 0 : index
    %979 = vector.load %arg11[%c1_1615, %c3_1616, %c2_1617, %c0_1618] : memref<2x10x10x16xf32, #tpu.memory_space<vmem>>, vector<1x1x8x16xf32>
    %980 = vector.shape_cast %979 : vector<1x1x8x16xf32> to vector<8x16xf32>
    %c1_1619 = arith.constant 1 : index
    %c4_1620 = arith.constant 4 : index
    %c2_1621 = arith.constant 2 : index
    %c0_1622 = arith.constant 0 : index
    %981 = vector.load %arg11[%c1_1619, %c4_1620, %c2_1621, %c0_1622] : memref<2x10x10x16xf32, #tpu.memory_space<vmem>>, vector<1x1x8x16xf32>
    %982 = vector.shape_cast %981 : vector<1x1x8x16xf32> to vector<8x16xf32>
    %c1_1623 = arith.constant 1 : index
    %c5_1624 = arith.constant 5 : index
    %c2_1625 = arith.constant 2 : index
    %c0_1626 = arith.constant 0 : index
    %983 = vector.load %arg11[%c1_1623, %c5_1624, %c2_1625, %c0_1626] : memref<2x10x10x16xf32, #tpu.memory_space<vmem>>, vector<1x1x8x16xf32>
    %984 = vector.shape_cast %983 : vector<1x1x8x16xf32> to vector<8x16xf32>
    %c1_1627 = arith.constant 1 : index
    %c6_1628 = arith.constant 6 : index
    %c2_1629 = arith.constant 2 : index
    %c0_1630 = arith.constant 0 : index
    %985 = vector.load %arg11[%c1_1627, %c6_1628, %c2_1629, %c0_1630] : memref<2x10x10x16xf32, #tpu.memory_space<vmem>>, vector<1x1x8x16xf32>
    %986 = vector.shape_cast %985 : vector<1x1x8x16xf32> to vector<8x16xf32>
    %c1_1631 = arith.constant 1 : index
    %c7_1632 = arith.constant 7 : index
    %c2_1633 = arith.constant 2 : index
    %c0_1634 = arith.constant 0 : index
    %987 = vector.load %arg11[%c1_1631, %c7_1632, %c2_1633, %c0_1634] : memref<2x10x10x16xf32, #tpu.memory_space<vmem>>, vector<1x1x8x16xf32>
    %988 = vector.shape_cast %987 : vector<1x1x8x16xf32> to vector<8x16xf32>
    %989 = tpu.concatenate %958, %960, %962, %964, %966, %968, %970, %972, %974, %976, %978, %980, %982, %984, %986, %988 in 0 : vector<8x16xf32>, vector<8x16xf32>, vector<8x16xf32>, vector<8x16xf32>, vector<8x16xf32>, vector<8x16xf32>, vector<8x16xf32>, vector<8x16xf32>, vector<8x16xf32>, vector<8x16xf32>, vector<8x16xf32>, vector<8x16xf32>, vector<8x16xf32>, vector<8x16xf32>, vector<8x16xf32>, vector<8x16xf32> -> vector<128x16xf32>
    %990 = arith.truncf %989 : vector<128x16xf32> to vector<128x16xbf16>
    %c12_1635 = arith.constant 12 : index
    %c0_1636 = arith.constant 0 : index
    %c0_1637 = arith.constant 0 : index
    %991 = vector.load %arg8[%c12_1635, %c0_1636, %c0_1637] : memref<16x16x6xbf16, #tpu.memory_space<vmem>>, vector<1x16x6xbf16>
    %992 = vector.shape_cast %991 : vector<1x16x6xbf16> to vector<16x6xbf16>
    %cst_1638 = arith.constant dense<0.000000e+00> : vector<128x6xf32>
    %993 = tpu.matmul %990, %992, %cst_1638 {dimension_numbers = #tpu.dot_dimension_numbers<[1], [0], [0], [1], [0, 0, 1, 1], [], []>} : vector<128x16xbf16>, vector<16x6xbf16>, vector<128x6xf32> -> vector<128x6xf32>
    %994 = arith.addf %956, %993 : vector<128x6xf32>
    %c0_1639 = arith.constant 0 : index
    %c1_1640 = arith.constant 1 : index
    %c1_1641 = arith.constant 1 : index
    %c0_1642 = arith.constant 0 : index
    %995 = vector.load %arg11[%c0_1639, %c1_1640, %c1_1641, %c0_1642] : memref<2x10x10x16xf32, #tpu.memory_space<vmem>>, vector<1x1x8x16xf32>
    %996 = vector.shape_cast %995 : vector<1x1x8x16xf32> to vector<8x16xf32>
    %c0_1643 = arith.constant 0 : index
    %c2_1644 = arith.constant 2 : index
    %c1_1645 = arith.constant 1 : index
    %c0_1646 = arith.constant 0 : index
    %997 = vector.load %arg11[%c0_1643, %c2_1644, %c1_1645, %c0_1646] : memref<2x10x10x16xf32, #tpu.memory_space<vmem>>, vector<1x1x8x16xf32>
    %998 = vector.shape_cast %997 : vector<1x1x8x16xf32> to vector<8x16xf32>
    %c0_1647 = arith.constant 0 : index
    %c3_1648 = arith.constant 3 : index
    %c1_1649 = arith.constant 1 : index
    %c0_1650 = arith.constant 0 : index
    %999 = vector.load %arg11[%c0_1647, %c3_1648, %c1_1649, %c0_1650] : memref<2x10x10x16xf32, #tpu.memory_space<vmem>>, vector<1x1x8x16xf32>
    %1000 = vector.shape_cast %999 : vector<1x1x8x16xf32> to vector<8x16xf32>
    %c0_1651 = arith.constant 0 : index
    %c4_1652 = arith.constant 4 : index
    %c1_1653 = arith.constant 1 : index
    %c0_1654 = arith.constant 0 : index
    %1001 = vector.load %arg11[%c0_1651, %c4_1652, %c1_1653, %c0_1654] : memref<2x10x10x16xf32, #tpu.memory_space<vmem>>, vector<1x1x8x16xf32>
    %1002 = vector.shape_cast %1001 : vector<1x1x8x16xf32> to vector<8x16xf32>
    %c0_1655 = arith.constant 0 : index
    %c5_1656 = arith.constant 5 : index
    %c1_1657 = arith.constant 1 : index
    %c0_1658 = arith.constant 0 : index
    %1003 = vector.load %arg11[%c0_1655, %c5_1656, %c1_1657, %c0_1658] : memref<2x10x10x16xf32, #tpu.memory_space<vmem>>, vector<1x1x8x16xf32>
    %1004 = vector.shape_cast %1003 : vector<1x1x8x16xf32> to vector<8x16xf32>
    %c0_1659 = arith.constant 0 : index
    %c6_1660 = arith.constant 6 : index
    %c1_1661 = arith.constant 1 : index
    %c0_1662 = arith.constant 0 : index
    %1005 = vector.load %arg11[%c0_1659, %c6_1660, %c1_1661, %c0_1662] : memref<2x10x10x16xf32, #tpu.memory_space<vmem>>, vector<1x1x8x16xf32>
    %1006 = vector.shape_cast %1005 : vector<1x1x8x16xf32> to vector<8x16xf32>
    %c0_1663 = arith.constant 0 : index
    %c7_1664 = arith.constant 7 : index
    %c1_1665 = arith.constant 1 : index
    %c0_1666 = arith.constant 0 : index
    %1007 = vector.load %arg11[%c0_1663, %c7_1664, %c1_1665, %c0_1666] : memref<2x10x10x16xf32, #tpu.memory_space<vmem>>, vector<1x1x8x16xf32>
    %1008 = vector.shape_cast %1007 : vector<1x1x8x16xf32> to vector<8x16xf32>
    %c0_1667 = arith.constant 0 : index
    %c8_1668 = arith.constant 8 : index
    %c1_1669 = arith.constant 1 : index
    %c0_1670 = arith.constant 0 : index
    %1009 = vector.load %arg11[%c0_1667, %c8_1668, %c1_1669, %c0_1670] : memref<2x10x10x16xf32, #tpu.memory_space<vmem>>, vector<1x1x8x16xf32>
    %1010 = vector.shape_cast %1009 : vector<1x1x8x16xf32> to vector<8x16xf32>
    %c1_1671 = arith.constant 1 : index
    %c1_1672 = arith.constant 1 : index
    %c1_1673 = arith.constant 1 : index
    %c0_1674 = arith.constant 0 : index
    %1011 = vector.load %arg11[%c1_1671, %c1_1672, %c1_1673, %c0_1674] : memref<2x10x10x16xf32, #tpu.memory_space<vmem>>, vector<1x1x8x16xf32>
    %1012 = vector.shape_cast %1011 : vector<1x1x8x16xf32> to vector<8x16xf32>
    %c1_1675 = arith.constant 1 : index
    %c2_1676 = arith.constant 2 : index
    %c1_1677 = arith.constant 1 : index
    %c0_1678 = arith.constant 0 : index
    %1013 = vector.load %arg11[%c1_1675, %c2_1676, %c1_1677, %c0_1678] : memref<2x10x10x16xf32, #tpu.memory_space<vmem>>, vector<1x1x8x16xf32>
    %1014 = vector.shape_cast %1013 : vector<1x1x8x16xf32> to vector<8x16xf32>
    %c1_1679 = arith.constant 1 : index
    %c3_1680 = arith.constant 3 : index
    %c1_1681 = arith.constant 1 : index
    %c0_1682 = arith.constant 0 : index
    %1015 = vector.load %arg11[%c1_1679, %c3_1680, %c1_1681, %c0_1682] : memref<2x10x10x16xf32, #tpu.memory_space<vmem>>, vector<1x1x8x16xf32>
    %1016 = vector.shape_cast %1015 : vector<1x1x8x16xf32> to vector<8x16xf32>
    %c1_1683 = arith.constant 1 : index
    %c4_1684 = arith.constant 4 : index
    %c1_1685 = arith.constant 1 : index
    %c0_1686 = arith.constant 0 : index
    %1017 = vector.load %arg11[%c1_1683, %c4_1684, %c1_1685, %c0_1686] : memref<2x10x10x16xf32, #tpu.memory_space<vmem>>, vector<1x1x8x16xf32>
    %1018 = vector.shape_cast %1017 : vector<1x1x8x16xf32> to vector<8x16xf32>
    %c1_1687 = arith.constant 1 : index
    %c5_1688 = arith.constant 5 : index
    %c1_1689 = arith.constant 1 : index
    %c0_1690 = arith.constant 0 : index
    %1019 = vector.load %arg11[%c1_1687, %c5_1688, %c1_1689, %c0_1690] : memref<2x10x10x16xf32, #tpu.memory_space<vmem>>, vector<1x1x8x16xf32>
    %1020 = vector.shape_cast %1019 : vector<1x1x8x16xf32> to vector<8x16xf32>
    %c1_1691 = arith.constant 1 : index
    %c6_1692 = arith.constant 6 : index
    %c1_1693 = arith.constant 1 : index
    %c0_1694 = arith.constant 0 : index
    %1021 = vector.load %arg11[%c1_1691, %c6_1692, %c1_1693, %c0_1694] : memref<2x10x10x16xf32, #tpu.memory_space<vmem>>, vector<1x1x8x16xf32>
    %1022 = vector.shape_cast %1021 : vector<1x1x8x16xf32> to vector<8x16xf32>
    %c1_1695 = arith.constant 1 : index
    %c7_1696 = arith.constant 7 : index
    %c1_1697 = arith.constant 1 : index
    %c0_1698 = arith.constant 0 : index
    %1023 = vector.load %arg11[%c1_1695, %c7_1696, %c1_1697, %c0_1698] : memref<2x10x10x16xf32, #tpu.memory_space<vmem>>, vector<1x1x8x16xf32>
    %1024 = vector.shape_cast %1023 : vector<1x1x8x16xf32> to vector<8x16xf32>
    %c1_1699 = arith.constant 1 : index
    %c8_1700 = arith.constant 8 : index
    %c1_1701 = arith.constant 1 : index
    %c0_1702 = arith.constant 0 : index
    %1025 = vector.load %arg11[%c1_1699, %c8_1700, %c1_1701, %c0_1702] : memref<2x10x10x16xf32, #tpu.memory_space<vmem>>, vector<1x1x8x16xf32>
    %1026 = vector.shape_cast %1025 : vector<1x1x8x16xf32> to vector<8x16xf32>
    %1027 = tpu.concatenate %996, %998, %1000, %1002, %1004, %1006, %1008, %1010, %1012, %1014, %1016, %1018, %1020, %1022, %1024, %1026 in 0 : vector<8x16xf32>, vector<8x16xf32>, vector<8x16xf32>, vector<8x16xf32>, vector<8x16xf32>, vector<8x16xf32>, vector<8x16xf32>, vector<8x16xf32>, vector<8x16xf32>, vector<8x16xf32>, vector<8x16xf32>, vector<8x16xf32>, vector<8x16xf32>, vector<8x16xf32>, vector<8x16xf32>, vector<8x16xf32> -> vector<128x16xf32>
    %1028 = arith.truncf %1027 : vector<128x16xf32> to vector<128x16xbf16>
    %c6_1703 = arith.constant 6 : index
    %c0_1704 = arith.constant 0 : index
    %c0_1705 = arith.constant 0 : index
    %1029 = vector.load %arg8[%c6_1703, %c0_1704, %c0_1705] : memref<16x16x6xbf16, #tpu.memory_space<vmem>>, vector<1x16x6xbf16>
    %1030 = vector.shape_cast %1029 : vector<1x16x6xbf16> to vector<16x6xbf16>
    %cst_1706 = arith.constant dense<0.000000e+00> : vector<128x6xf32>
    %1031 = tpu.matmul %1028, %1030, %cst_1706 {dimension_numbers = #tpu.dot_dimension_numbers<[1], [0], [0], [1], [0, 0, 1, 1], [], []>} : vector<128x16xbf16>, vector<16x6xbf16>, vector<128x6xf32> -> vector<128x6xf32>
    %1032 = arith.addf %994, %1031 : vector<128x6xf32>
    %c0_1707 = arith.constant 0 : index
    %c1_1708 = arith.constant 1 : index
    %c2_1709 = arith.constant 2 : index
    %c0_1710 = arith.constant 0 : index
    %1033 = vector.load %arg11[%c0_1707, %c1_1708, %c2_1709, %c0_1710] : memref<2x10x10x16xf32, #tpu.memory_space<vmem>>, vector<1x1x8x16xf32>
    %1034 = vector.shape_cast %1033 : vector<1x1x8x16xf32> to vector<8x16xf32>
    %c0_1711 = arith.constant 0 : index
    %c2_1712 = arith.constant 2 : index
    %c2_1713 = arith.constant 2 : index
    %c0_1714 = arith.constant 0 : index
    %1035 = vector.load %arg11[%c0_1711, %c2_1712, %c2_1713, %c0_1714] : memref<2x10x10x16xf32, #tpu.memory_space<vmem>>, vector<1x1x8x16xf32>
    %1036 = vector.shape_cast %1035 : vector<1x1x8x16xf32> to vector<8x16xf32>
    %c0_1715 = arith.constant 0 : index
    %c3_1716 = arith.constant 3 : index
    %c2_1717 = arith.constant 2 : index
    %c0_1718 = arith.constant 0 : index
    %1037 = vector.load %arg11[%c0_1715, %c3_1716, %c2_1717, %c0_1718] : memref<2x10x10x16xf32, #tpu.memory_space<vmem>>, vector<1x1x8x16xf32>
    %1038 = vector.shape_cast %1037 : vector<1x1x8x16xf32> to vector<8x16xf32>
    %c0_1719 = arith.constant 0 : index
    %c4_1720 = arith.constant 4 : index
    %c2_1721 = arith.constant 2 : index
    %c0_1722 = arith.constant 0 : index
    %1039 = vector.load %arg11[%c0_1719, %c4_1720, %c2_1721, %c0_1722] : memref<2x10x10x16xf32, #tpu.memory_space<vmem>>, vector<1x1x8x16xf32>
    %1040 = vector.shape_cast %1039 : vector<1x1x8x16xf32> to vector<8x16xf32>
    %c0_1723 = arith.constant 0 : index
    %c5_1724 = arith.constant 5 : index
    %c2_1725 = arith.constant 2 : index
    %c0_1726 = arith.constant 0 : index
    %1041 = vector.load %arg11[%c0_1723, %c5_1724, %c2_1725, %c0_1726] : memref<2x10x10x16xf32, #tpu.memory_space<vmem>>, vector<1x1x8x16xf32>
    %1042 = vector.shape_cast %1041 : vector<1x1x8x16xf32> to vector<8x16xf32>
    %c0_1727 = arith.constant 0 : index
    %c6_1728 = arith.constant 6 : index
    %c2_1729 = arith.constant 2 : index
    %c0_1730 = arith.constant 0 : index
    %1043 = vector.load %arg11[%c0_1727, %c6_1728, %c2_1729, %c0_1730] : memref<2x10x10x16xf32, #tpu.memory_space<vmem>>, vector<1x1x8x16xf32>
    %1044 = vector.shape_cast %1043 : vector<1x1x8x16xf32> to vector<8x16xf32>
    %c0_1731 = arith.constant 0 : index
    %c7_1732 = arith.constant 7 : index
    %c2_1733 = arith.constant 2 : index
    %c0_1734 = arith.constant 0 : index
    %1045 = vector.load %arg11[%c0_1731, %c7_1732, %c2_1733, %c0_1734] : memref<2x10x10x16xf32, #tpu.memory_space<vmem>>, vector<1x1x8x16xf32>
    %1046 = vector.shape_cast %1045 : vector<1x1x8x16xf32> to vector<8x16xf32>
    %c0_1735 = arith.constant 0 : index
    %c8_1736 = arith.constant 8 : index
    %c2_1737 = arith.constant 2 : index
    %c0_1738 = arith.constant 0 : index
    %1047 = vector.load %arg11[%c0_1735, %c8_1736, %c2_1737, %c0_1738] : memref<2x10x10x16xf32, #tpu.memory_space<vmem>>, vector<1x1x8x16xf32>
    %1048 = vector.shape_cast %1047 : vector<1x1x8x16xf32> to vector<8x16xf32>
    %c1_1739 = arith.constant 1 : index
    %c1_1740 = arith.constant 1 : index
    %c2_1741 = arith.constant 2 : index
    %c0_1742 = arith.constant 0 : index
    %1049 = vector.load %arg11[%c1_1739, %c1_1740, %c2_1741, %c0_1742] : memref<2x10x10x16xf32, #tpu.memory_space<vmem>>, vector<1x1x8x16xf32>
    %1050 = vector.shape_cast %1049 : vector<1x1x8x16xf32> to vector<8x16xf32>
    %c1_1743 = arith.constant 1 : index
    %c2_1744 = arith.constant 2 : index
    %c2_1745 = arith.constant 2 : index
    %c0_1746 = arith.constant 0 : index
    %1051 = vector.load %arg11[%c1_1743, %c2_1744, %c2_1745, %c0_1746] : memref<2x10x10x16xf32, #tpu.memory_space<vmem>>, vector<1x1x8x16xf32>
    %1052 = vector.shape_cast %1051 : vector<1x1x8x16xf32> to vector<8x16xf32>
    %c1_1747 = arith.constant 1 : index
    %c3_1748 = arith.constant 3 : index
    %c2_1749 = arith.constant 2 : index
    %c0_1750 = arith.constant 0 : index
    %1053 = vector.load %arg11[%c1_1747, %c3_1748, %c2_1749, %c0_1750] : memref<2x10x10x16xf32, #tpu.memory_space<vmem>>, vector<1x1x8x16xf32>
    %1054 = vector.shape_cast %1053 : vector<1x1x8x16xf32> to vector<8x16xf32>
    %c1_1751 = arith.constant 1 : index
    %c4_1752 = arith.constant 4 : index
    %c2_1753 = arith.constant 2 : index
    %c0_1754 = arith.constant 0 : index
    %1055 = vector.load %arg11[%c1_1751, %c4_1752, %c2_1753, %c0_1754] : memref<2x10x10x16xf32, #tpu.memory_space<vmem>>, vector<1x1x8x16xf32>
    %1056 = vector.shape_cast %1055 : vector<1x1x8x16xf32> to vector<8x16xf32>
    %c1_1755 = arith.constant 1 : index
    %c5_1756 = arith.constant 5 : index
    %c2_1757 = arith.constant 2 : index
    %c0_1758 = arith.constant 0 : index
    %1057 = vector.load %arg11[%c1_1755, %c5_1756, %c2_1757, %c0_1758] : memref<2x10x10x16xf32, #tpu.memory_space<vmem>>, vector<1x1x8x16xf32>
    %1058 = vector.shape_cast %1057 : vector<1x1x8x16xf32> to vector<8x16xf32>
    %c1_1759 = arith.constant 1 : index
    %c6_1760 = arith.constant 6 : index
    %c2_1761 = arith.constant 2 : index
    %c0_1762 = arith.constant 0 : index
    %1059 = vector.load %arg11[%c1_1759, %c6_1760, %c2_1761, %c0_1762] : memref<2x10x10x16xf32, #tpu.memory_space<vmem>>, vector<1x1x8x16xf32>
    %1060 = vector.shape_cast %1059 : vector<1x1x8x16xf32> to vector<8x16xf32>
    %c1_1763 = arith.constant 1 : index
    %c7_1764 = arith.constant 7 : index
    %c2_1765 = arith.constant 2 : index
    %c0_1766 = arith.constant 0 : index
    %1061 = vector.load %arg11[%c1_1763, %c7_1764, %c2_1765, %c0_1766] : memref<2x10x10x16xf32, #tpu.memory_space<vmem>>, vector<1x1x8x16xf32>
    %1062 = vector.shape_cast %1061 : vector<1x1x8x16xf32> to vector<8x16xf32>
    %c1_1767 = arith.constant 1 : index
    %c8_1768 = arith.constant 8 : index
    %c2_1769 = arith.constant 2 : index
    %c0_1770 = arith.constant 0 : index
    %1063 = vector.load %arg11[%c1_1767, %c8_1768, %c2_1769, %c0_1770] : memref<2x10x10x16xf32, #tpu.memory_space<vmem>>, vector<1x1x8x16xf32>
    %1064 = vector.shape_cast %1063 : vector<1x1x8x16xf32> to vector<8x16xf32>
    %1065 = tpu.concatenate %1034, %1036, %1038, %1040, %1042, %1044, %1046, %1048, %1050, %1052, %1054, %1056, %1058, %1060, %1062, %1064 in 0 : vector<8x16xf32>, vector<8x16xf32>, vector<8x16xf32>, vector<8x16xf32>, vector<8x16xf32>, vector<8x16xf32>, vector<8x16xf32>, vector<8x16xf32>, vector<8x16xf32>, vector<8x16xf32>, vector<8x16xf32>, vector<8x16xf32>, vector<8x16xf32>, vector<8x16xf32>, vector<8x16xf32>, vector<8x16xf32> -> vector<128x16xf32>
    %1066 = arith.truncf %1065 : vector<128x16xf32> to vector<128x16xbf16>
    %c4_1771 = arith.constant 4 : index
    %c0_1772 = arith.constant 0 : index
    %c0_1773 = arith.constant 0 : index
    %1067 = vector.load %arg8[%c4_1771, %c0_1772, %c0_1773] : memref<16x16x6xbf16, #tpu.memory_space<vmem>>, vector<1x16x6xbf16>
    %1068 = vector.shape_cast %1067 : vector<1x16x6xbf16> to vector<16x6xbf16>
    %cst_1774 = arith.constant dense<0.000000e+00> : vector<128x6xf32>
    %1069 = tpu.matmul %1066, %1068, %cst_1774 {dimension_numbers = #tpu.dot_dimension_numbers<[1], [0], [0], [1], [0, 0, 1, 1], [], []>} : vector<128x16xbf16>, vector<16x6xbf16>, vector<128x6xf32> -> vector<128x6xf32>
    %1070 = arith.addf %1032, %1069 : vector<128x6xf32>
    %1071 = math.tanh %1070 : vector<128x6xf32>
    %c0_1775 = arith.constant 0 : index
    %c1_1776 = arith.constant 1 : index
    %c0_1777 = arith.constant 0 : index
    %c0_1778 = arith.constant 0 : index
    %1072 = vector.load %arg9[%c0_1775, %c1_1776, %c0_1777, %c0_1778] : memref<2x2x128x6xf32, #tpu.memory_space<vmem>>, vector<1x1x128x6xf32>
    %1073 = vector.shape_cast %1072 : vector<1x1x128x6xf32> to vector<128x6xf32>
    %1074 = vector.shape_cast %1071 : vector<128x6xf32> to vector<1x1x128x6xf32>
    tpu.vector_store %arg9[%c0_1775, %c1_1776, %c0_1777, %c0_1778], %1074 {strides = array<i32>} : memref<2x2x128x6xf32, #tpu.memory_space<vmem>>, vector<1x1x128x6xf32>,
    %cst_1779 = arith.constant 0.000000e+00 : f32
    %1075 = vector.broadcast %cst_1779 : f32 to vector<128x6xf32>
    %c0_1780 = arith.constant 0 : index
    %c1_1781 = arith.constant 1 : index
    %c0_1782 = arith.constant 0 : index
    %c0_1783 = arith.constant 0 : index
    %1076 = vector.load %arg11[%c0_1780, %c1_1781, %c0_1782, %c0_1783] : memref<2x10x10x16xf32, #tpu.memory_space<vmem>>, vector<1x1x8x16xf32>
    %1077 = vector.shape_cast %1076 : vector<1x1x8x16xf32> to vector<8x16xf32>
    %c0_1784 = arith.constant 0 : index
    %c2_1785 = arith.constant 2 : index
    %c0_1786 = arith.constant 0 : index
    %c0_1787 = arith.constant 0 : index
    %1078 = vector.load %arg11[%c0_1784, %c2_1785, %c0_1786, %c0_1787] : memref<2x10x10x16xf32, #tpu.memory_space<vmem>>, vector<1x1x8x16xf32>
    %1079 = vector.shape_cast %1078 : vector<1x1x8x16xf32> to vector<8x16xf32>
    %c0_1788 = arith.constant 0 : index
    %c3_1789 = arith.constant 3 : index
    %c0_1790 = arith.constant 0 : index
    %c0_1791 = arith.constant 0 : index
    %1080 = vector.load %arg11[%c0_1788, %c3_1789, %c0_1790, %c0_1791] : memref<2x10x10x16xf32, #tpu.memory_space<vmem>>, vector<1x1x8x16xf32>
    %1081 = vector.shape_cast %1080 : vector<1x1x8x16xf32> to vector<8x16xf32>
    %c0_1792 = arith.constant 0 : index
    %c4_1793 = arith.constant 4 : index
    %c0_1794 = arith.constant 0 : index
    %c0_1795 = arith.constant 0 : index
    %1082 = vector.load %arg11[%c0_1792, %c4_1793, %c0_1794, %c0_1795] : memref<2x10x10x16xf32, #tpu.memory_space<vmem>>, vector<1x1x8x16xf32>
    %1083 = vector.shape_cast %1082 : vector<1x1x8x16xf32> to vector<8x16xf32>
    %c0_1796 = arith.constant 0 : index
    %c5_1797 = arith.constant 5 : index
    %c0_1798 = arith.constant 0 : index
    %c0_1799 = arith.constant 0 : index
    %1084 = vector.load %arg11[%c0_1796, %c5_1797, %c0_1798, %c0_1799] : memref<2x10x10x16xf32, #tpu.memory_space<vmem>>, vector<1x1x8x16xf32>
    %1085 = vector.shape_cast %1084 : vector<1x1x8x16xf32> to vector<8x16xf32>
    %c0_1800 = arith.constant 0 : index
    %c6_1801 = arith.constant 6 : index
    %c0_1802 = arith.constant 0 : index
    %c0_1803 = arith.constant 0 : index
    %1086 = vector.load %arg11[%c0_1800, %c6_1801, %c0_1802, %c0_1803] : memref<2x10x10x16xf32, #tpu.memory_space<vmem>>, vector<1x1x8x16xf32>
    %1087 = vector.shape_cast %1086 : vector<1x1x8x16xf32> to vector<8x16xf32>
    %c0_1804 = arith.constant 0 : index
    %c7_1805 = arith.constant 7 : index
    %c0_1806 = arith.constant 0 : index
    %c0_1807 = arith.constant 0 : index
    %1088 = vector.load %arg11[%c0_1804, %c7_1805, %c0_1806, %c0_1807] : memref<2x10x10x16xf32, #tpu.memory_space<vmem>>, vector<1x1x8x16xf32>
    %1089 = vector.shape_cast %1088 : vector<1x1x8x16xf32> to vector<8x16xf32>
    %c0_1808 = arith.constant 0 : index
    %c8_1809 = arith.constant 8 : index
    %c0_1810 = arith.constant 0 : index
    %c0_1811 = arith.constant 0 : index
    %1090 = vector.load %arg11[%c0_1808, %c8_1809, %c0_1810, %c0_1811] : memref<2x10x10x16xf32, #tpu.memory_space<vmem>>, vector<1x1x8x16xf32>
    %1091 = vector.shape_cast %1090 : vector<1x1x8x16xf32> to vector<8x16xf32>
    %c1_1812 = arith.constant 1 : index
    %c1_1813 = arith.constant 1 : index
    %c0_1814 = arith.constant 0 : index
    %c0_1815 = arith.constant 0 : index
    %1092 = vector.load %arg11[%c1_1812, %c1_1813, %c0_1814, %c0_1815] : memref<2x10x10x16xf32, #tpu.memory_space<vmem>>, vector<1x1x8x16xf32>
    %1093 = vector.shape_cast %1092 : vector<1x1x8x16xf32> to vector<8x16xf32>
    %c1_1816 = arith.constant 1 : index
    %c2_1817 = arith.constant 2 : index
    %c0_1818 = arith.constant 0 : index
    %c0_1819 = arith.constant 0 : index
    %1094 = vector.load %arg11[%c1_1816, %c2_1817, %c0_1818, %c0_1819] : memref<2x10x10x16xf32, #tpu.memory_space<vmem>>, vector<1x1x8x16xf32>
    %1095 = vector.shape_cast %1094 : vector<1x1x8x16xf32> to vector<8x16xf32>
    %c1_1820 = arith.constant 1 : index
    %c3_1821 = arith.constant 3 : index
    %c0_1822 = arith.constant 0 : index
    %c0_1823 = arith.constant 0 : index
    %1096 = vector.load %arg11[%c1_1820, %c3_1821, %c0_1822, %c0_1823] : memref<2x10x10x16xf32, #tpu.memory_space<vmem>>, vector<1x1x8x16xf32>
    %1097 = vector.shape_cast %1096 : vector<1x1x8x16xf32> to vector<8x16xf32>
    %c1_1824 = arith.constant 1 : index
    %c4_1825 = arith.constant 4 : index
    %c0_1826 = arith.constant 0 : index
    %c0_1827 = arith.constant 0 : index
    %1098 = vector.load %arg11[%c1_1824, %c4_1825, %c0_1826, %c0_1827] : memref<2x10x10x16xf32, #tpu.memory_space<vmem>>, vector<1x1x8x16xf32>
    %1099 = vector.shape_cast %1098 : vector<1x1x8x16xf32> to vector<8x16xf32>
    %c1_1828 = arith.constant 1 : index
    %c5_1829 = arith.constant 5 : index
    %c0_1830 = arith.constant 0 : index
    %c0_1831 = arith.constant 0 : index
    %1100 = vector.load %arg11[%c1_1828, %c5_1829, %c0_1830, %c0_1831] : memref<2x10x10x16xf32, #tpu.memory_space<vmem>>, vector<1x1x8x16xf32>
    %1101 = vector.shape_cast %1100 : vector<1x1x8x16xf32> to vector<8x16xf32>
    %c1_1832 = arith.constant 1 : index
    %c6_1833 = arith.constant 6 : index
    %c0_1834 = arith.constant 0 : index
    %c0_1835 = arith.constant 0 : index
    %1102 = vector.load %arg11[%c1_1832, %c6_1833, %c0_1834, %c0_1835] : memref<2x10x10x16xf32, #tpu.memory_space<vmem>>, vector<1x1x8x16xf32>
    %1103 = vector.shape_cast %1102 : vector<1x1x8x16xf32> to vector<8x16xf32>
    %c1_1836 = arith.constant 1 : index
    %c7_1837 = arith.constant 7 : index
    %c0_1838 = arith.constant 0 : index
    %c0_1839 = arith.constant 0 : index
    %1104 = vector.load %arg11[%c1_1836, %c7_1837, %c0_1838, %c0_1839] : memref<2x10x10x16xf32, #tpu.memory_space<vmem>>, vector<1x1x8x16xf32>
    %1105 = vector.shape_cast %1104 : vector<1x1x8x16xf32> to vector<8x16xf32>
    %c1_1840 = arith.constant 1 : index
    %c8_1841 = arith.constant 8 : index
    %c0_1842 = arith.constant 0 : index
    %c0_1843 = arith.constant 0 : index
    %1106 = vector.load %arg11[%c1_1840, %c8_1841, %c0_1842, %c0_1843] : memref<2x10x10x16xf32, #tpu.memory_space<vmem>>, vector<1x1x8x16xf32>
    %1107 = vector.shape_cast %1106 : vector<1x1x8x16xf32> to vector<8x16xf32>
    %1108 = tpu.concatenate %1077, %1079, %1081, %1083, %1085, %1087, %1089, %1091, %1093, %1095, %1097, %1099, %1101, %1103, %1105, %1107 in 0 : vector<8x16xf32>, vector<8x16xf32>, vector<8x16xf32>, vector<8x16xf32>, vector<8x16xf32>, vector<8x16xf32>, vector<8x16xf32>, vector<8x16xf32>, vector<8x16xf32>, vector<8x16xf32>, vector<8x16xf32>, vector<8x16xf32>, vector<8x16xf32>, vector<8x16xf32>, vector<8x16xf32>, vector<8x16xf32> -> vector<128x16xf32>
    %1109 = arith.truncf %1108 : vector<128x16xf32> to vector<128x16xbf16>
    %c11_1844 = arith.constant 11 : index
    %c0_1845 = arith.constant 0 : index
    %c0_1846 = arith.constant 0 : index
    %1110 = vector.load %arg8[%c11_1844, %c0_1845, %c0_1846] : memref<16x16x6xbf16, #tpu.memory_space<vmem>>, vector<1x16x6xbf16>
    %1111 = vector.shape_cast %1110 : vector<1x16x6xbf16> to vector<16x6xbf16>
    %cst_1847 = arith.constant dense<0.000000e+00> : vector<128x6xf32>
    %1112 = tpu.matmul %1109, %1111, %cst_1847 {dimension_numbers = #tpu.dot_dimension_numbers<[1], [0], [0], [1], [0, 0, 1, 1], [], []>} : vector<128x16xbf16>, vector<16x6xbf16>, vector<128x6xf32> -> vector<128x6xf32>
    %1113 = arith.addf %1075, %1112 : vector<128x6xf32>
    %c0_1848 = arith.constant 0 : index
    %c1_1849 = arith.constant 1 : index
    %c1_1850 = arith.constant 1 : index
    %c0_1851 = arith.constant 0 : index
    %1114 = vector.load %arg11[%c0_1848, %c1_1849, %c1_1850, %c0_1851] : memref<2x10x10x16xf32, #tpu.memory_space<vmem>>, vector<1x1x8x16xf32>
    %1115 = vector.shape_cast %1114 : vector<1x1x8x16xf32> to vector<8x16xf32>
    %c0_1852 = arith.constant 0 : index
    %c2_1853 = arith.constant 2 : index
    %c1_1854 = arith.constant 1 : index
    %c0_1855 = arith.constant 0 : index
    %1116 = vector.load %arg11[%c0_1852, %c2_1853, %c1_1854, %c0_1855] : memref<2x10x10x16xf32, #tpu.memory_space<vmem>>, vector<1x1x8x16xf32>
    %1117 = vector.shape_cast %1116 : vector<1x1x8x16xf32> to vector<8x16xf32>
    %c0_1856 = arith.constant 0 : index
    %c3_1857 = arith.constant 3 : index
    %c1_1858 = arith.constant 1 : index
    %c0_1859 = arith.constant 0 : index
    %1118 = vector.load %arg11[%c0_1856, %c3_1857, %c1_1858, %c0_1859] : memref<2x10x10x16xf32, #tpu.memory_space<vmem>>, vector<1x1x8x16xf32>
    %1119 = vector.shape_cast %1118 : vector<1x1x8x16xf32> to vector<8x16xf32>
    %c0_1860 = arith.constant 0 : index
    %c4_1861 = arith.constant 4 : index
    %c1_1862 = arith.constant 1 : index
    %c0_1863 = arith.constant 0 : index
    %1120 = vector.load %arg11[%c0_1860, %c4_1861, %c1_1862, %c0_1863] : memref<2x10x10x16xf32, #tpu.memory_space<vmem>>, vector<1x1x8x16xf32>
    %1121 = vector.shape_cast %1120 : vector<1x1x8x16xf32> to vector<8x16xf32>
    %c0_1864 = arith.constant 0 : index
    %c5_1865 = arith.constant 5 : index
    %c1_1866 = arith.constant 1 : index
    %c0_1867 = arith.constant 0 : index
    %1122 = vector.load %arg11[%c0_1864, %c5_1865, %c1_1866, %c0_1867] : memref<2x10x10x16xf32, #tpu.memory_space<vmem>>, vector<1x1x8x16xf32>
    %1123 = vector.shape_cast %1122 : vector<1x1x8x16xf32> to vector<8x16xf32>
    %c0_1868 = arith.constant 0 : index
    %c6_1869 = arith.constant 6 : index
    %c1_1870 = arith.constant 1 : index
    %c0_1871 = arith.constant 0 : index
    %1124 = vector.load %arg11[%c0_1868, %c6_1869, %c1_1870, %c0_1871] : memref<2x10x10x16xf32, #tpu.memory_space<vmem>>, vector<1x1x8x16xf32>
    %1125 = vector.shape_cast %1124 : vector<1x1x8x16xf32> to vector<8x16xf32>
    %c0_1872 = arith.constant 0 : index
    %c7_1873 = arith.constant 7 : index
    %c1_1874 = arith.constant 1 : index
    %c0_1875 = arith.constant 0 : index
    %1126 = vector.load %arg11[%c0_1872, %c7_1873, %c1_1874, %c0_1875] : memref<2x10x10x16xf32, #tpu.memory_space<vmem>>, vector<1x1x8x16xf32>
    %1127 = vector.shape_cast %1126 : vector<1x1x8x16xf32> to vector<8x16xf32>
    %c0_1876 = arith.constant 0 : index
    %c8_1877 = arith.constant 8 : index
    %c1_1878 = arith.constant 1 : index
    %c0_1879 = arith.constant 0 : index
    %1128 = vector.load %arg11[%c0_1876, %c8_1877, %c1_1878, %c0_1879] : memref<2x10x10x16xf32, #tpu.memory_space<vmem>>, vector<1x1x8x16xf32>
    %1129 = vector.shape_cast %1128 : vector<1x1x8x16xf32> to vector<8x16xf32>
    %c1_1880 = arith.constant 1 : index
    %c1_1881 = arith.constant 1 : index
    %c1_1882 = arith.constant 1 : index
    %c0_1883 = arith.constant 0 : index
    %1130 = vector.load %arg11[%c1_1880, %c1_1881, %c1_1882, %c0_1883] : memref<2x10x10x16xf32, #tpu.memory_space<vmem>>, vector<1x1x8x16xf32>
    %1131 = vector.shape_cast %1130 : vector<1x1x8x16xf32> to vector<8x16xf32>
    %c1_1884 = arith.constant 1 : index
    %c2_1885 = arith.constant 2 : index
    %c1_1886 = arith.constant 1 : index
    %c0_1887 = arith.constant 0 : index
    %1132 = vector.load %arg11[%c1_1884, %c2_1885, %c1_1886, %c0_1887] : memref<2x10x10x16xf32, #tpu.memory_space<vmem>>, vector<1x1x8x16xf32>
    %1133 = vector.shape_cast %1132 : vector<1x1x8x16xf32> to vector<8x16xf32>
    %c1_1888 = arith.constant 1 : index
    %c3_1889 = arith.constant 3 : index
    %c1_1890 = arith.constant 1 : index
    %c0_1891 = arith.constant 0 : index
    %1134 = vector.load %arg11[%c1_1888, %c3_1889, %c1_1890, %c0_1891] : memref<2x10x10x16xf32, #tpu.memory_space<vmem>>, vector<1x1x8x16xf32>
    %1135 = vector.shape_cast %1134 : vector<1x1x8x16xf32> to vector<8x16xf32>
    %c1_1892 = arith.constant 1 : index
    %c4_1893 = arith.constant 4 : index
    %c1_1894 = arith.constant 1 : index
    %c0_1895 = arith.constant 0 : index
    %1136 = vector.load %arg11[%c1_1892, %c4_1893, %c1_1894, %c0_1895] : memref<2x10x10x16xf32, #tpu.memory_space<vmem>>, vector<1x1x8x16xf32>
    %1137 = vector.shape_cast %1136 : vector<1x1x8x16xf32> to vector<8x16xf32>
    %c1_1896 = arith.constant 1 : index
    %c5_1897 = arith.constant 5 : index
    %c1_1898 = arith.constant 1 : index
    %c0_1899 = arith.constant 0 : index
    %1138 = vector.load %arg11[%c1_1896, %c5_1897, %c1_1898, %c0_1899] : memref<2x10x10x16xf32, #tpu.memory_space<vmem>>, vector<1x1x8x16xf32>
    %1139 = vector.shape_cast %1138 : vector<1x1x8x16xf32> to vector<8x16xf32>
    %c1_1900 = arith.constant 1 : index
    %c6_1901 = arith.constant 6 : index
    %c1_1902 = arith.constant 1 : index
    %c0_1903 = arith.constant 0 : index
    %1140 = vector.load %arg11[%c1_1900, %c6_1901, %c1_1902, %c0_1903] : memref<2x10x10x16xf32, #tpu.memory_space<vmem>>, vector<1x1x8x16xf32>
    %1141 = vector.shape_cast %1140 : vector<1x1x8x16xf32> to vector<8x16xf32>
    %c1_1904 = arith.constant 1 : index
    %c7_1905 = arith.constant 7 : index
    %c1_1906 = arith.constant 1 : index
    %c0_1907 = arith.constant 0 : index
    %1142 = vector.load %arg11[%c1_1904, %c7_1905, %c1_1906, %c0_1907] : memref<2x10x10x16xf32, #tpu.memory_space<vmem>>, vector<1x1x8x16xf32>
    %1143 = vector.shape_cast %1142 : vector<1x1x8x16xf32> to vector<8x16xf32>
    %c1_1908 = arith.constant 1 : index
    %c8_1909 = arith.constant 8 : index
    %c1_1910 = arith.constant 1 : index
    %c0_1911 = arith.constant 0 : index
    %1144 = vector.load %arg11[%c1_1908, %c8_1909, %c1_1910, %c0_1911] : memref<2x10x10x16xf32, #tpu.memory_space<vmem>>, vector<1x1x8x16xf32>
    %1145 = vector.shape_cast %1144 : vector<1x1x8x16xf32> to vector<8x16xf32>
    %1146 = tpu.concatenate %1115, %1117, %1119, %1121, %1123, %1125, %1127, %1129, %1131, %1133, %1135, %1137, %1139, %1141, %1143, %1145 in 0 : vector<8x16xf32>, vector<8x16xf32>, vector<8x16xf32>, vector<8x16xf32>, vector<8x16xf32>, vector<8x16xf32>, vector<8x16xf32>, vector<8x16xf32>, vector<8x16xf32>, vector<8x16xf32>, vector<8x16xf32>, vector<8x16xf32>, vector<8x16xf32>, vector<8x16xf32>, vector<8x16xf32>, vector<8x16xf32> -> vector<128x16xf32>
    %1147 = arith.truncf %1146 : vector<128x16xf32> to vector<128x16xbf16>
    %c9_1912 = arith.constant 9 : index
    %c0_1913 = arith.constant 0 : index
    %c0_1914 = arith.constant 0 : index
    %1148 = vector.load %arg8[%c9_1912, %c0_1913, %c0_1914] : memref<16x16x6xbf16, #tpu.memory_space<vmem>>, vector<1x16x6xbf16>
    %1149 = vector.shape_cast %1148 : vector<1x16x6xbf16> to vector<16x6xbf16>
    %cst_1915 = arith.constant dense<0.000000e+00> : vector<128x6xf32>
    %1150 = tpu.matmul %1147, %1149, %cst_1915 {dimension_numbers = #tpu.dot_dimension_numbers<[1], [0], [0], [1], [0, 0, 1, 1], [], []>} : vector<128x16xbf16>, vector<16x6xbf16>, vector<128x6xf32> -> vector<128x6xf32>
    %1151 = arith.addf %1113, %1150 : vector<128x6xf32>
    %c0_1916 = arith.constant 0 : index
    %c2_1917 = arith.constant 2 : index
    %c0_1918 = arith.constant 0 : index
    %c0_1919 = arith.constant 0 : index
    %1152 = vector.load %arg11[%c0_1916, %c2_1917, %c0_1918, %c0_1919] : memref<2x10x10x16xf32, #tpu.memory_space<vmem>>, vector<1x1x8x16xf32>
    %1153 = vector.shape_cast %1152 : vector<1x1x8x16xf32> to vector<8x16xf32>
    %c0_1920 = arith.constant 0 : index
    %c3_1921 = arith.constant 3 : index
    %c0_1922 = arith.constant 0 : index
    %c0_1923 = arith.constant 0 : index
    %1154 = vector.load %arg11[%c0_1920, %c3_1921, %c0_1922, %c0_1923] : memref<2x10x10x16xf32, #tpu.memory_space<vmem>>, vector<1x1x8x16xf32>
    %1155 = vector.shape_cast %1154 : vector<1x1x8x16xf32> to vector<8x16xf32>
    %c0_1924 = arith.constant 0 : index
    %c4_1925 = arith.constant 4 : index
    %c0_1926 = arith.constant 0 : index
    %c0_1927 = arith.constant 0 : index
    %1156 = vector.load %arg11[%c0_1924, %c4_1925, %c0_1926, %c0_1927] : memref<2x10x10x16xf32, #tpu.memory_space<vmem>>, vector<1x1x8x16xf32>
    %1157 = vector.shape_cast %1156 : vector<1x1x8x16xf32> to vector<8x16xf32>
    %c0_1928 = arith.constant 0 : index
    %c5_1929 = arith.constant 5 : index
    %c0_1930 = arith.constant 0 : index
    %c0_1931 = arith.constant 0 : index
    %1158 = vector.load %arg11[%c0_1928, %c5_1929, %c0_1930, %c0_1931] : memref<2x10x10x16xf32, #tpu.memory_space<vmem>>, vector<1x1x8x16xf32>
    %1159 = vector.shape_cast %1158 : vector<1x1x8x16xf32> to vector<8x16xf32>
    %c0_1932 = arith.constant 0 : index
    %c6_1933 = arith.constant 6 : index
    %c0_1934 = arith.constant 0 : index
    %c0_1935 = arith.constant 0 : index
    %1160 = vector.load %arg11[%c0_1932, %c6_1933, %c0_1934, %c0_1935] : memref<2x10x10x16xf32, #tpu.memory_space<vmem>>, vector<1x1x8x16xf32>
    %1161 = vector.shape_cast %1160 : vector<1x1x8x16xf32> to vector<8x16xf32>
    %c0_1936 = arith.constant 0 : index
    %c7_1937 = arith.constant 7 : index
    %c0_1938 = arith.constant 0 : index
    %c0_1939 = arith.constant 0 : index
    %1162 = vector.load %arg11[%c0_1936, %c7_1937, %c0_1938, %c0_1939] : memref<2x10x10x16xf32, #tpu.memory_space<vmem>>, vector<1x1x8x16xf32>
    %1163 = vector.shape_cast %1162 : vector<1x1x8x16xf32> to vector<8x16xf32>
    %c0_1940 = arith.constant 0 : index
    %c8_1941 = arith.constant 8 : index
    %c0_1942 = arith.constant 0 : index
    %c0_1943 = arith.constant 0 : index
    %1164 = vector.load %arg11[%c0_1940, %c8_1941, %c0_1942, %c0_1943] : memref<2x10x10x16xf32, #tpu.memory_space<vmem>>, vector<1x1x8x16xf32>
    %1165 = vector.shape_cast %1164 : vector<1x1x8x16xf32> to vector<8x16xf32>
    %c0_1944 = arith.constant 0 : index
    %c9_1945 = arith.constant 9 : index
    %c0_1946 = arith.constant 0 : index
    %c0_1947 = arith.constant 0 : index
    %1166 = vector.load %arg11[%c0_1944, %c9_1945, %c0_1946, %c0_1947] : memref<2x10x10x16xf32, #tpu.memory_space<vmem>>, vector<1x1x8x16xf32>
    %1167 = vector.shape_cast %1166 : vector<1x1x8x16xf32> to vector<8x16xf32>
    %c1_1948 = arith.constant 1 : index
    %c2_1949 = arith.constant 2 : index
    %c0_1950 = arith.constant 0 : index
    %c0_1951 = arith.constant 0 : index
    %1168 = vector.load %arg11[%c1_1948, %c2_1949, %c0_1950, %c0_1951] : memref<2x10x10x16xf32, #tpu.memory_space<vmem>>, vector<1x1x8x16xf32>
    %1169 = vector.shape_cast %1168 : vector<1x1x8x16xf32> to vector<8x16xf32>
    %c1_1952 = arith.constant 1 : index
    %c3_1953 = arith.constant 3 : index
    %c0_1954 = arith.constant 0 : index
    %c0_1955 = arith.constant 0 : index
    %1170 = vector.load %arg11[%c1_1952, %c3_1953, %c0_1954, %c0_1955] : memref<2x10x10x16xf32, #tpu.memory_space<vmem>>, vector<1x1x8x16xf32>
    %1171 = vector.shape_cast %1170 : vector<1x1x8x16xf32> to vector<8x16xf32>
    %c1_1956 = arith.constant 1 : index
    %c4_1957 = arith.constant 4 : index
    %c0_1958 = arith.constant 0 : index
    %c0_1959 = arith.constant 0 : index
    %1172 = vector.load %arg11[%c1_1956, %c4_1957, %c0_1958, %c0_1959] : memref<2x10x10x16xf32, #tpu.memory_space<vmem>>, vector<1x1x8x16xf32>
    %1173 = vector.shape_cast %1172 : vector<1x1x8x16xf32> to vector<8x16xf32>
    %c1_1960 = arith.constant 1 : index
    %c5_1961 = arith.constant 5 : index
    %c0_1962 = arith.constant 0 : index
    %c0_1963 = arith.constant 0 : index
    %1174 = vector.load %arg11[%c1_1960, %c5_1961, %c0_1962, %c0_1963] : memref<2x10x10x16xf32, #tpu.memory_space<vmem>>, vector<1x1x8x16xf32>
    %1175 = vector.shape_cast %1174 : vector<1x1x8x16xf32> to vector<8x16xf32>
    %c1_1964 = arith.constant 1 : index
    %c6_1965 = arith.constant 6 : index
    %c0_1966 = arith.constant 0 : index
    %c0_1967 = arith.constant 0 : index
    %1176 = vector.load %arg11[%c1_1964, %c6_1965, %c0_1966, %c0_1967] : memref<2x10x10x16xf32, #tpu.memory_space<vmem>>, vector<1x1x8x16xf32>
    %1177 = vector.shape_cast %1176 : vector<1x1x8x16xf32> to vector<8x16xf32>
    %c1_1968 = arith.constant 1 : index
    %c7_1969 = arith.constant 7 : index
    %c0_1970 = arith.constant 0 : index
    %c0_1971 = arith.constant 0 : index
    %1178 = vector.load %arg11[%c1_1968, %c7_1969, %c0_1970, %c0_1971] : memref<2x10x10x16xf32, #tpu.memory_space<vmem>>, vector<1x1x8x16xf32>
    %1179 = vector.shape_cast %1178 : vector<1x1x8x16xf32> to vector<8x16xf32>
    %c1_1972 = arith.constant 1 : index
    %c8_1973 = arith.constant 8 : index
    %c0_1974 = arith.constant 0 : index
    %c0_1975 = arith.constant 0 : index
    %1180 = vector.load %arg11[%c1_1972, %c8_1973, %c0_1974, %c0_1975] : memref<2x10x10x16xf32, #tpu.memory_space<vmem>>, vector<1x1x8x16xf32>
    %1181 = vector.shape_cast %1180 : vector<1x1x8x16xf32> to vector<8x16xf32>
    %c1_1976 = arith.constant 1 : index
    %c9_1977 = arith.constant 9 : index
    %c0_1978 = arith.constant 0 : index
    %c0_1979 = arith.constant 0 : index
    %1182 = vector.load %arg11[%c1_1976, %c9_1977, %c0_1978, %c0_1979] : memref<2x10x10x16xf32, #tpu.memory_space<vmem>>, vector<1x1x8x16xf32>
    %1183 = vector.shape_cast %1182 : vector<1x1x8x16xf32> to vector<8x16xf32>
    %1184 = tpu.concatenate %1153, %1155, %1157, %1159, %1161, %1163, %1165, %1167, %1169, %1171, %1173, %1175, %1177, %1179, %1181, %1183 in 0 : vector<8x16xf32>, vector<8x16xf32>, vector<8x16xf32>, vector<8x16xf32>, vector<8x16xf32>, vector<8x16xf32>, vector<8x16xf32>, vector<8x16xf32>, vector<8x16xf32>, vector<8x16xf32>, vector<8x16xf32>, vector<8x16xf32>, vector<8x16xf32>, vector<8x16xf32>, vector<8x16xf32>, vector<8x16xf32> -> vector<128x16xf32>
    %1185 = arith.truncf %1184 : vector<128x16xf32> to vector<128x16xbf16>
    %c3_1980 = arith.constant 3 : index
    %c0_1981 = arith.constant 0 : index
    %c0_1982 = arith.constant 0 : index
    %1186 = vector.load %arg8[%c3_1980, %c0_1981, %c0_1982] : memref<16x16x6xbf16, #tpu.memory_space<vmem>>, vector<1x16x6xbf16>
    %1187 = vector.shape_cast %1186 : vector<1x16x6xbf16> to vector<16x6xbf16>
    %cst_1983 = arith.constant dense<0.000000e+00> : vector<128x6xf32>
    %1188 = tpu.matmul %1185, %1187, %cst_1983 {dimension_numbers = #tpu.dot_dimension_numbers<[1], [0], [0], [1], [0, 0, 1, 1], [], []>} : vector<128x16xbf16>, vector<16x6xbf16>, vector<128x6xf32> -> vector<128x6xf32>
    %1189 = arith.addf %1151, %1188 : vector<128x6xf32>
    %c0_1984 = arith.constant 0 : index
    %c2_1985 = arith.constant 2 : index
    %c1_1986 = arith.constant 1 : index
    %c0_1987 = arith.constant 0 : index
    %1190 = vector.load %arg11[%c0_1984, %c2_1985, %c1_1986, %c0_1987] : memref<2x10x10x16xf32, #tpu.memory_space<vmem>>, vector<1x1x8x16xf32>
    %1191 = vector.shape_cast %1190 : vector<1x1x8x16xf32> to vector<8x16xf32>
    %c0_1988 = arith.constant 0 : index
    %c3_1989 = arith.constant 3 : index
    %c1_1990 = arith.constant 1 : index
    %c0_1991 = arith.constant 0 : index
    %1192 = vector.load %arg11[%c0_1988, %c3_1989, %c1_1990, %c0_1991] : memref<2x10x10x16xf32, #tpu.memory_space<vmem>>, vector<1x1x8x16xf32>
    %1193 = vector.shape_cast %1192 : vector<1x1x8x16xf32> to vector<8x16xf32>
    %c0_1992 = arith.constant 0 : index
    %c4_1993 = arith.constant 4 : index
    %c1_1994 = arith.constant 1 : index
    %c0_1995 = arith.constant 0 : index
    %1194 = vector.load %arg11[%c0_1992, %c4_1993, %c1_1994, %c0_1995] : memref<2x10x10x16xf32, #tpu.memory_space<vmem>>, vector<1x1x8x16xf32>
    %1195 = vector.shape_cast %1194 : vector<1x1x8x16xf32> to vector<8x16xf32>
    %c0_1996 = arith.constant 0 : index
    %c5_1997 = arith.constant 5 : index
    %c1_1998 = arith.constant 1 : index
    %c0_1999 = arith.constant 0 : index
    %1196 = vector.load %arg11[%c0_1996, %c5_1997, %c1_1998, %c0_1999] : memref<2x10x10x16xf32, #tpu.memory_space<vmem>>, vector<1x1x8x16xf32>
    %1197 = vector.shape_cast %1196 : vector<1x1x8x16xf32> to vector<8x16xf32>
    %c0_2000 = arith.constant 0 : index
    %c6_2001 = arith.constant 6 : index
    %c1_2002 = arith.constant 1 : index
    %c0_2003 = arith.constant 0 : index
    %1198 = vector.load %arg11[%c0_2000, %c6_2001, %c1_2002, %c0_2003] : memref<2x10x10x16xf32, #tpu.memory_space<vmem>>, vector<1x1x8x16xf32>
    %1199 = vector.shape_cast %1198 : vector<1x1x8x16xf32> to vector<8x16xf32>
    %c0_2004 = arith.constant 0 : index
    %c7_2005 = arith.constant 7 : index
    %c1_2006 = arith.constant 1 : index
    %c0_2007 = arith.constant 0 : index
    %1200 = vector.load %arg11[%c0_2004, %c7_2005, %c1_2006, %c0_2007] : memref<2x10x10x16xf32, #tpu.memory_space<vmem>>, vector<1x1x8x16xf32>
    %1201 = vector.shape_cast %1200 : vector<1x1x8x16xf32> to vector<8x16xf32>
    %c0_2008 = arith.constant 0 : index
    %c8_2009 = arith.constant 8 : index
    %c1_2010 = arith.constant 1 : index
    %c0_2011 = arith.constant 0 : index
    %1202 = vector.load %arg11[%c0_2008, %c8_2009, %c1_2010, %c0_2011] : memref<2x10x10x16xf32, #tpu.memory_space<vmem>>, vector<1x1x8x16xf32>
    %1203 = vector.shape_cast %1202 : vector<1x1x8x16xf32> to vector<8x16xf32>
    %c0_2012 = arith.constant 0 : index
    %c9_2013 = arith.constant 9 : index
    %c1_2014 = arith.constant 1 : index
    %c0_2015 = arith.constant 0 : index
    %1204 = vector.load %arg11[%c0_2012, %c9_2013, %c1_2014, %c0_2015] : memref<2x10x10x16xf32, #tpu.memory_space<vmem>>, vector<1x1x8x16xf32>
    %1205 = vector.shape_cast %1204 : vector<1x1x8x16xf32> to vector<8x16xf32>
    %c1_2016 = arith.constant 1 : index
    %c2_2017 = arith.constant 2 : index
    %c1_2018 = arith.constant 1 : index
    %c0_2019 = arith.constant 0 : index
    %1206 = vector.load %arg11[%c1_2016, %c2_2017, %c1_2018, %c0_2019] : memref<2x10x10x16xf32, #tpu.memory_space<vmem>>, vector<1x1x8x16xf32>
    %1207 = vector.shape_cast %1206 : vector<1x1x8x16xf32> to vector<8x16xf32>
    %c1_2020 = arith.constant 1 : index
    %c3_2021 = arith.constant 3 : index
    %c1_2022 = arith.constant 1 : index
    %c0_2023 = arith.constant 0 : index
    %1208 = vector.load %arg11[%c1_2020, %c3_2021, %c1_2022, %c0_2023] : memref<2x10x10x16xf32, #tpu.memory_space<vmem>>, vector<1x1x8x16xf32>
    %1209 = vector.shape_cast %1208 : vector<1x1x8x16xf32> to vector<8x16xf32>
    %c1_2024 = arith.constant 1 : index
    %c4_2025 = arith.constant 4 : index
    %c1_2026 = arith.constant 1 : index
    %c0_2027 = arith.constant 0 : index
    %1210 = vector.load %arg11[%c1_2024, %c4_2025, %c1_2026, %c0_2027] : memref<2x10x10x16xf32, #tpu.memory_space<vmem>>, vector<1x1x8x16xf32>
    %1211 = vector.shape_cast %1210 : vector<1x1x8x16xf32> to vector<8x16xf32>
    %c1_2028 = arith.constant 1 : index
    %c5_2029 = arith.constant 5 : index
    %c1_2030 = arith.constant 1 : index
    %c0_2031 = arith.constant 0 : index
    %1212 = vector.load %arg11[%c1_2028, %c5_2029, %c1_2030, %c0_2031] : memref<2x10x10x16xf32, #tpu.memory_space<vmem>>, vector<1x1x8x16xf32>
    %1213 = vector.shape_cast %1212 : vector<1x1x8x16xf32> to vector<8x16xf32>
    %c1_2032 = arith.constant 1 : index
    %c6_2033 = arith.constant 6 : index
    %c1_2034 = arith.constant 1 : index
    %c0_2035 = arith.constant 0 : index
    %1214 = vector.load %arg11[%c1_2032, %c6_2033, %c1_2034, %c0_2035] : memref<2x10x10x16xf32, #tpu.memory_space<vmem>>, vector<1x1x8x16xf32>
    %1215 = vector.shape_cast %1214 : vector<1x1x8x16xf32> to vector<8x16xf32>
    %c1_2036 = arith.constant 1 : index
    %c7_2037 = arith.constant 7 : index
    %c1_2038 = arith.constant 1 : index
    %c0_2039 = arith.constant 0 : index
    %1216 = vector.load %arg11[%c1_2036, %c7_2037, %c1_2038, %c0_2039] : memref<2x10x10x16xf32, #tpu.memory_space<vmem>>, vector<1x1x8x16xf32>
    %1217 = vector.shape_cast %1216 : vector<1x1x8x16xf32> to vector<8x16xf32>
    %c1_2040 = arith.constant 1 : index
    %c8_2041 = arith.constant 8 : index
    %c1_2042 = arith.constant 1 : index
    %c0_2043 = arith.constant 0 : index
    %1218 = vector.load %arg11[%c1_2040, %c8_2041, %c1_2042, %c0_2043] : memref<2x10x10x16xf32, #tpu.memory_space<vmem>>, vector<1x1x8x16xf32>
    %1219 = vector.shape_cast %1218 : vector<1x1x8x16xf32> to vector<8x16xf32>
    %c1_2044 = arith.constant 1 : index
    %c9_2045 = arith.constant 9 : index
    %c1_2046 = arith.constant 1 : index
    %c0_2047 = arith.constant 0 : index
    %1220 = vector.load %arg11[%c1_2044, %c9_2045, %c1_2046, %c0_2047] : memref<2x10x10x16xf32, #tpu.memory_space<vmem>>, vector<1x1x8x16xf32>
    %1221 = vector.shape_cast %1220 : vector<1x1x8x16xf32> to vector<8x16xf32>
    %1222 = tpu.concatenate %1191, %1193, %1195, %1197, %1199, %1201, %1203, %1205, %1207, %1209, %1211, %1213, %1215, %1217, %1219, %1221 in 0 : vector<8x16xf32>, vector<8x16xf32>, vector<8x16xf32>, vector<8x16xf32>, vector<8x16xf32>, vector<8x16xf32>, vector<8x16xf32>, vector<8x16xf32>, vector<8x16xf32>, vector<8x16xf32>, vector<8x16xf32>, vector<8x16xf32>, vector<8x16xf32>, vector<8x16xf32>, vector<8x16xf32>, vector<8x16xf32> -> vector<128x16xf32>
    %1223 = arith.truncf %1222 : vector<128x16xf32> to vector<128x16xbf16>
    %c1_2048 = arith.constant 1 : index
    %c0_2049 = arith.constant 0 : index
    %c0_2050 = arith.constant 0 : index
    %1224 = vector.load %arg8[%c1_2048, %c0_2049, %c0_2050] : memref<16x16x6xbf16, #tpu.memory_space<vmem>>, vector<1x16x6xbf16>
    %1225 = vector.shape_cast %1224 : vector<1x16x6xbf16> to vector<16x6xbf16>
    %cst_2051 = arith.constant dense<0.000000e+00> : vector<128x6xf32>
    %1226 = tpu.matmul %1223, %1225, %cst_2051 {dimension_numbers = #tpu.dot_dimension_numbers<[1], [0], [0], [1], [0, 0, 1, 1], [], []>} : vector<128x16xbf16>, vector<16x6xbf16>, vector<128x6xf32> -> vector<128x6xf32>
    %1227 = arith.addf %1189, %1226 : vector<128x6xf32>
    %1228 = math.tanh %1227 : vector<128x6xf32>
    %c1_2052 = arith.constant 1 : index
    %c0_2053 = arith.constant 0 : index
    %c0_2054 = arith.constant 0 : index
    %c0_2055 = arith.constant 0 : index
    %1229 = vector.load %arg9[%c1_2052, %c0_2053, %c0_2054, %c0_2055] : memref<2x2x128x6xf32, #tpu.memory_space<vmem>>, vector<1x1x128x6xf32>
    %1230 = vector.shape_cast %1229 : vector<1x1x128x6xf32> to vector<128x6xf32>
    %1231 = vector.shape_cast %1228 : vector<128x6xf32> to vector<1x1x128x6xf32>
    tpu.vector_store %arg9[%c1_2052, %c0_2053, %c0_2054, %c0_2055], %1231 {strides = array<i32>} : memref<2x2x128x6xf32, #tpu.memory_space<vmem>>, vector<1x1x128x6xf32>,
    %cst_2056 = arith.constant 0.000000e+00 : f32
    %1232 = vector.broadcast %cst_2056 : f32 to vector<128x6xf32>
    %c0_2057 = arith.constant 0 : index
    %c1_2058 = arith.constant 1 : index
    %c1_2059 = arith.constant 1 : index
    %c0_2060 = arith.constant 0 : index
    %1233 = vector.load %arg11[%c0_2057, %c1_2058, %c1_2059, %c0_2060] : memref<2x10x10x16xf32, #tpu.memory_space<vmem>>, vector<1x1x8x16xf32>
    %1234 = vector.shape_cast %1233 : vector<1x1x8x16xf32> to vector<8x16xf32>
    %c0_2061 = arith.constant 0 : index
    %c2_2062 = arith.constant 2 : index
    %c1_2063 = arith.constant 1 : index
    %c0_2064 = arith.constant 0 : index
    %1235 = vector.load %arg11[%c0_2061, %c2_2062, %c1_2063, %c0_2064] : memref<2x10x10x16xf32, #tpu.memory_space<vmem>>, vector<1x1x8x16xf32>
    %1236 = vector.shape_cast %1235 : vector<1x1x8x16xf32> to vector<8x16xf32>
    %c0_2065 = arith.constant 0 : index
    %c3_2066 = arith.constant 3 : index
    %c1_2067 = arith.constant 1 : index
    %c0_2068 = arith.constant 0 : index
    %1237 = vector.load %arg11[%c0_2065, %c3_2066, %c1_2067, %c0_2068] : memref<2x10x10x16xf32, #tpu.memory_space<vmem>>, vector<1x1x8x16xf32>
    %1238 = vector.shape_cast %1237 : vector<1x1x8x16xf32> to vector<8x16xf32>
    %c0_2069 = arith.constant 0 : index
    %c4_2070 = arith.constant 4 : index
    %c1_2071 = arith.constant 1 : index
    %c0_2072 = arith.constant 0 : index
    %1239 = vector.load %arg11[%c0_2069, %c4_2070, %c1_2071, %c0_2072] : memref<2x10x10x16xf32, #tpu.memory_space<vmem>>, vector<1x1x8x16xf32>
    %1240 = vector.shape_cast %1239 : vector<1x1x8x16xf32> to vector<8x16xf32>
    %c0_2073 = arith.constant 0 : index
    %c5_2074 = arith.constant 5 : index
    %c1_2075 = arith.constant 1 : index
    %c0_2076 = arith.constant 0 : index
    %1241 = vector.load %arg11[%c0_2073, %c5_2074, %c1_2075, %c0_2076] : memref<2x10x10x16xf32, #tpu.memory_space<vmem>>, vector<1x1x8x16xf32>
    %1242 = vector.shape_cast %1241 : vector<1x1x8x16xf32> to vector<8x16xf32>
    %c0_2077 = arith.constant 0 : index
    %c6_2078 = arith.constant 6 : index
    %c1_2079 = arith.constant 1 : index
    %c0_2080 = arith.constant 0 : index
    %1243 = vector.load %arg11[%c0_2077, %c6_2078, %c1_2079, %c0_2080] : memref<2x10x10x16xf32, #tpu.memory_space<vmem>>, vector<1x1x8x16xf32>
    %1244 = vector.shape_cast %1243 : vector<1x1x8x16xf32> to vector<8x16xf32>
    %c0_2081 = arith.constant 0 : index
    %c7_2082 = arith.constant 7 : index
    %c1_2083 = arith.constant 1 : index
    %c0_2084 = arith.constant 0 : index
    %1245 = vector.load %arg11[%c0_2081, %c7_2082, %c1_2083, %c0_2084] : memref<2x10x10x16xf32, #tpu.memory_space<vmem>>, vector<1x1x8x16xf32>
    %1246 = vector.shape_cast %1245 : vector<1x1x8x16xf32> to vector<8x16xf32>
    %c0_2085 = arith.constant 0 : index
    %c8_2086 = arith.constant 8 : index
    %c1_2087 = arith.constant 1 : index
    %c0_2088 = arith.constant 0 : index
    %1247 = vector.load %arg11[%c0_2085, %c8_2086, %c1_2087, %c0_2088] : memref<2x10x10x16xf32, #tpu.memory_space<vmem>>, vector<1x1x8x16xf32>
    %1248 = vector.shape_cast %1247 : vector<1x1x8x16xf32> to vector<8x16xf32>
    %c1_2089 = arith.constant 1 : index
    %c1_2090 = arith.constant 1 : index
    %c1_2091 = arith.constant 1 : index
    %c0_2092 = arith.constant 0 : index
    %1249 = vector.load %arg11[%c1_2089, %c1_2090, %c1_2091, %c0_2092] : memref<2x10x10x16xf32, #tpu.memory_space<vmem>>, vector<1x1x8x16xf32>
    %1250 = vector.shape_cast %1249 : vector<1x1x8x16xf32> to vector<8x16xf32>
    %c1_2093 = arith.constant 1 : index
    %c2_2094 = arith.constant 2 : index
    %c1_2095 = arith.constant 1 : index
    %c0_2096 = arith.constant 0 : index
    %1251 = vector.load %arg11[%c1_2093, %c2_2094, %c1_2095, %c0_2096] : memref<2x10x10x16xf32, #tpu.memory_space<vmem>>, vector<1x1x8x16xf32>
    %1252 = vector.shape_cast %1251 : vector<1x1x8x16xf32> to vector<8x16xf32>
    %c1_2097 = arith.constant 1 : index
    %c3_2098 = arith.constant 3 : index
    %c1_2099 = arith.constant 1 : index
    %c0_2100 = arith.constant 0 : index
    %1253 = vector.load %arg11[%c1_2097, %c3_2098, %c1_2099, %c0_2100] : memref<2x10x10x16xf32, #tpu.memory_space<vmem>>, vector<1x1x8x16xf32>
    %1254 = vector.shape_cast %1253 : vector<1x1x8x16xf32> to vector<8x16xf32>
    %c1_2101 = arith.constant 1 : index
    %c4_2102 = arith.constant 4 : index
    %c1_2103 = arith.constant 1 : index
    %c0_2104 = arith.constant 0 : index
    %1255 = vector.load %arg11[%c1_2101, %c4_2102, %c1_2103, %c0_2104] : memref<2x10x10x16xf32, #tpu.memory_space<vmem>>, vector<1x1x8x16xf32>
    %1256 = vector.shape_cast %1255 : vector<1x1x8x16xf32> to vector<8x16xf32>
    %c1_2105 = arith.constant 1 : index
    %c5_2106 = arith.constant 5 : index
    %c1_2107 = arith.constant 1 : index
    %c0_2108 = arith.constant 0 : index
    %1257 = vector.load %arg11[%c1_2105, %c5_2106, %c1_2107, %c0_2108] : memref<2x10x10x16xf32, #tpu.memory_space<vmem>>, vector<1x1x8x16xf32>
    %1258 = vector.shape_cast %1257 : vector<1x1x8x16xf32> to vector<8x16xf32>
    %c1_2109 = arith.constant 1 : index
    %c6_2110 = arith.constant 6 : index
    %c1_2111 = arith.constant 1 : index
    %c0_2112 = arith.constant 0 : index
    %1259 = vector.load %arg11[%c1_2109, %c6_2110, %c1_2111, %c0_2112] : memref<2x10x10x16xf32, #tpu.memory_space<vmem>>, vector<1x1x8x16xf32>
    %1260 = vector.shape_cast %1259 : vector<1x1x8x16xf32> to vector<8x16xf32>
    %c1_2113 = arith.constant 1 : index
    %c7_2114 = arith.constant 7 : index
    %c1_2115 = arith.constant 1 : index
    %c0_2116 = arith.constant 0 : index
    %1261 = vector.load %arg11[%c1_2113, %c7_2114, %c1_2115, %c0_2116] : memref<2x10x10x16xf32, #tpu.memory_space<vmem>>, vector<1x1x8x16xf32>
    %1262 = vector.shape_cast %1261 : vector<1x1x8x16xf32> to vector<8x16xf32>
    %c1_2117 = arith.constant 1 : index
    %c8_2118 = arith.constant 8 : index
    %c1_2119 = arith.constant 1 : index
    %c0_2120 = arith.constant 0 : index
    %1263 = vector.load %arg11[%c1_2117, %c8_2118, %c1_2119, %c0_2120] : memref<2x10x10x16xf32, #tpu.memory_space<vmem>>, vector<1x1x8x16xf32>
    %1264 = vector.shape_cast %1263 : vector<1x1x8x16xf32> to vector<8x16xf32>
    %1265 = tpu.concatenate %1234, %1236, %1238, %1240, %1242, %1244, %1246, %1248, %1250, %1252, %1254, %1256, %1258, %1260, %1262, %1264 in 0 : vector<8x16xf32>, vector<8x16xf32>, vector<8x16xf32>, vector<8x16xf32>, vector<8x16xf32>, vector<8x16xf32>, vector<8x16xf32>, vector<8x16xf32>, vector<8x16xf32>, vector<8x16xf32>, vector<8x16xf32>, vector<8x16xf32>, vector<8x16xf32>, vector<8x16xf32>, vector<8x16xf32>, vector<8x16xf32> -> vector<128x16xf32>
    %1266 = arith.truncf %1265 : vector<128x16xf32> to vector<128x16xbf16>
    %c10_2121 = arith.constant 10 : index
    %c0_2122 = arith.constant 0 : index
    %c0_2123 = arith.constant 0 : index
    %1267 = vector.load %arg8[%c10_2121, %c0_2122, %c0_2123] : memref<16x16x6xbf16, #tpu.memory_space<vmem>>, vector<1x16x6xbf16>
    %1268 = vector.shape_cast %1267 : vector<1x16x6xbf16> to vector<16x6xbf16>
    %cst_2124 = arith.constant dense<0.000000e+00> : vector<128x6xf32>
    %1269 = tpu.matmul %1266, %1268, %cst_2124 {dimension_numbers = #tpu.dot_dimension_numbers<[1], [0], [0], [1], [0, 0, 1, 1], [], []>} : vector<128x16xbf16>, vector<16x6xbf16>, vector<128x6xf32> -> vector<128x6xf32>
    %1270 = arith.addf %1232, %1269 : vector<128x6xf32>
    %c0_2125 = arith.constant 0 : index
    %c1_2126 = arith.constant 1 : index
    %c2_2127 = arith.constant 2 : index
    %c0_2128 = arith.constant 0 : index
    %1271 = vector.load %arg11[%c0_2125, %c1_2126, %c2_2127, %c0_2128] : memref<2x10x10x16xf32, #tpu.memory_space<vmem>>, vector<1x1x8x16xf32>
    %1272 = vector.shape_cast %1271 : vector<1x1x8x16xf32> to vector<8x16xf32>
    %c0_2129 = arith.constant 0 : index
    %c2_2130 = arith.constant 2 : index
    %c2_2131 = arith.constant 2 : index
    %c0_2132 = arith.constant 0 : index
    %1273 = vector.load %arg11[%c0_2129, %c2_2130, %c2_2131, %c0_2132] : memref<2x10x10x16xf32, #tpu.memory_space<vmem>>, vector<1x1x8x16xf32>
    %1274 = vector.shape_cast %1273 : vector<1x1x8x16xf32> to vector<8x16xf32>
    %c0_2133 = arith.constant 0 : index
    %c3_2134 = arith.constant 3 : index
    %c2_2135 = arith.constant 2 : index
    %c0_2136 = arith.constant 0 : index
    %1275 = vector.load %arg11[%c0_2133, %c3_2134, %c2_2135, %c0_2136] : memref<2x10x10x16xf32, #tpu.memory_space<vmem>>, vector<1x1x8x16xf32>
    %1276 = vector.shape_cast %1275 : vector<1x1x8x16xf32> to vector<8x16xf32>
    %c0_2137 = arith.constant 0 : index
    %c4_2138 = arith.constant 4 : index
    %c2_2139 = arith.constant 2 : index
    %c0_2140 = arith.constant 0 : index
    %1277 = vector.load %arg11[%c0_2137, %c4_2138, %c2_2139, %c0_2140] : memref<2x10x10x16xf32, #tpu.memory_space<vmem>>, vector<1x1x8x16xf32>
    %1278 = vector.shape_cast %1277 : vector<1x1x8x16xf32> to vector<8x16xf32>
    %c0_2141 = arith.constant 0 : index
    %c5_2142 = arith.constant 5 : index
    %c2_2143 = arith.constant 2 : index
    %c0_2144 = arith.constant 0 : index
    %1279 = vector.load %arg11[%c0_2141, %c5_2142, %c2_2143, %c0_2144] : memref<2x10x10x16xf32, #tpu.memory_space<vmem>>, vector<1x1x8x16xf32>
    %1280 = vector.shape_cast %1279 : vector<1x1x8x16xf32> to vector<8x16xf32>
    %c0_2145 = arith.constant 0 : index
    %c6_2146 = arith.constant 6 : index
    %c2_2147 = arith.constant 2 : index
    %c0_2148 = arith.constant 0 : index
    %1281 = vector.load %arg11[%c0_2145, %c6_2146, %c2_2147, %c0_2148] : memref<2x10x10x16xf32, #tpu.memory_space<vmem>>, vector<1x1x8x16xf32>
    %1282 = vector.shape_cast %1281 : vector<1x1x8x16xf32> to vector<8x16xf32>
    %c0_2149 = arith.constant 0 : index
    %c7_2150 = arith.constant 7 : index
    %c2_2151 = arith.constant 2 : index
    %c0_2152 = arith.constant 0 : index
    %1283 = vector.load %arg11[%c0_2149, %c7_2150, %c2_2151, %c0_2152] : memref<2x10x10x16xf32, #tpu.memory_space<vmem>>, vector<1x1x8x16xf32>
    %1284 = vector.shape_cast %1283 : vector<1x1x8x16xf32> to vector<8x16xf32>
    %c0_2153 = arith.constant 0 : index
    %c8_2154 = arith.constant 8 : index
    %c2_2155 = arith.constant 2 : index
    %c0_2156 = arith.constant 0 : index
    %1285 = vector.load %arg11[%c0_2153, %c8_2154, %c2_2155, %c0_2156] : memref<2x10x10x16xf32, #tpu.memory_space<vmem>>, vector<1x1x8x16xf32>
    %1286 = vector.shape_cast %1285 : vector<1x1x8x16xf32> to vector<8x16xf32>
    %c1_2157 = arith.constant 1 : index
    %c1_2158 = arith.constant 1 : index
    %c2_2159 = arith.constant 2 : index
    %c0_2160 = arith.constant 0 : index
    %1287 = vector.load %arg11[%c1_2157, %c1_2158, %c2_2159, %c0_2160] : memref<2x10x10x16xf32, #tpu.memory_space<vmem>>, vector<1x1x8x16xf32>
    %1288 = vector.shape_cast %1287 : vector<1x1x8x16xf32> to vector<8x16xf32>
    %c1_2161 = arith.constant 1 : index
    %c2_2162 = arith.constant 2 : index
    %c2_2163 = arith.constant 2 : index
    %c0_2164 = arith.constant 0 : index
    %1289 = vector.load %arg11[%c1_2161, %c2_2162, %c2_2163, %c0_2164] : memref<2x10x10x16xf32, #tpu.memory_space<vmem>>, vector<1x1x8x16xf32>
    %1290 = vector.shape_cast %1289 : vector<1x1x8x16xf32> to vector<8x16xf32>
    %c1_2165 = arith.constant 1 : index
    %c3_2166 = arith.constant 3 : index
    %c2_2167 = arith.constant 2 : index
    %c0_2168 = arith.constant 0 : index
    %1291 = vector.load %arg11[%c1_2165, %c3_2166, %c2_2167, %c0_2168] : memref<2x10x10x16xf32, #tpu.memory_space<vmem>>, vector<1x1x8x16xf32>
    %1292 = vector.shape_cast %1291 : vector<1x1x8x16xf32> to vector<8x16xf32>
    %c1_2169 = arith.constant 1 : index
    %c4_2170 = arith.constant 4 : index
    %c2_2171 = arith.constant 2 : index
    %c0_2172 = arith.constant 0 : index
    %1293 = vector.load %arg11[%c1_2169, %c4_2170, %c2_2171, %c0_2172] : memref<2x10x10x16xf32, #tpu.memory_space<vmem>>, vector<1x1x8x16xf32>
    %1294 = vector.shape_cast %1293 : vector<1x1x8x16xf32> to vector<8x16xf32>
    %c1_2173 = arith.constant 1 : index
    %c5_2174 = arith.constant 5 : index
    %c2_2175 = arith.constant 2 : index
    %c0_2176 = arith.constant 0 : index
    %1295 = vector.load %arg11[%c1_2173, %c5_2174, %c2_2175, %c0_2176] : memref<2x10x10x16xf32, #tpu.memory_space<vmem>>, vector<1x1x8x16xf32>
    %1296 = vector.shape_cast %1295 : vector<1x1x8x16xf32> to vector<8x16xf32>
    %c1_2177 = arith.constant 1 : index
    %c6_2178 = arith.constant 6 : index
    %c2_2179 = arith.constant 2 : index
    %c0_2180 = arith.constant 0 : index
    %1297 = vector.load %arg11[%c1_2177, %c6_2178, %c2_2179, %c0_2180] : memref<2x10x10x16xf32, #tpu.memory_space<vmem>>, vector<1x1x8x16xf32>
    %1298 = vector.shape_cast %1297 : vector<1x1x8x16xf32> to vector<8x16xf32>
    %c1_2181 = arith.constant 1 : index
    %c7_2182 = arith.constant 7 : index
    %c2_2183 = arith.constant 2 : index
    %c0_2184 = arith.constant 0 : index
    %1299 = vector.load %arg11[%c1_2181, %c7_2182, %c2_2183, %c0_2184] : memref<2x10x10x16xf32, #tpu.memory_space<vmem>>, vector<1x1x8x16xf32>
    %1300 = vector.shape_cast %1299 : vector<1x1x8x16xf32> to vector<8x16xf32>
    %c1_2185 = arith.constant 1 : index
    %c8_2186 = arith.constant 8 : index
    %c2_2187 = arith.constant 2 : index
    %c0_2188 = arith.constant 0 : index
    %1301 = vector.load %arg11[%c1_2185, %c8_2186, %c2_2187, %c0_2188] : memref<2x10x10x16xf32, #tpu.memory_space<vmem>>, vector<1x1x8x16xf32>
    %1302 = vector.shape_cast %1301 : vector<1x1x8x16xf32> to vector<8x16xf32>
    %1303 = tpu.concatenate %1272, %1274, %1276, %1278, %1280, %1282, %1284, %1286, %1288, %1290, %1292, %1294, %1296, %1298, %1300, %1302 in 0 : vector<8x16xf32>, vector<8x16xf32>, vector<8x16xf32>, vector<8x16xf32>, vector<8x16xf32>, vector<8x16xf32>, vector<8x16xf32>, vector<8x16xf32>, vector<8x16xf32>, vector<8x16xf32>, vector<8x16xf32>, vector<8x16xf32>, vector<8x16xf32>, vector<8x16xf32>, vector<8x16xf32>, vector<8x16xf32> -> vector<128x16xf32>
    %1304 = arith.truncf %1303 : vector<128x16xf32> to vector<128x16xbf16>
    %c8_2189 = arith.constant 8 : index
    %c0_2190 = arith.constant 0 : index
    %c0_2191 = arith.constant 0 : index
    %1305 = vector.load %arg8[%c8_2189, %c0_2190, %c0_2191] : memref<16x16x6xbf16, #tpu.memory_space<vmem>>, vector<1x16x6xbf16>
    %1306 = vector.shape_cast %1305 : vector<1x16x6xbf16> to vector<16x6xbf16>
    %cst_2192 = arith.constant dense<0.000000e+00> : vector<128x6xf32>
    %1307 = tpu.matmul %1304, %1306, %cst_2192 {dimension_numbers = #tpu.dot_dimension_numbers<[1], [0], [0], [1], [0, 0, 1, 1], [], []>} : vector<128x16xbf16>, vector<16x6xbf16>, vector<128x6xf32> -> vector<128x6xf32>
    %1308 = arith.addf %1270, %1307 : vector<128x6xf32>
    %c0_2193 = arith.constant 0 : index
    %c2_2194 = arith.constant 2 : index
    %c1_2195 = arith.constant 1 : index
    %c0_2196 = arith.constant 0 : index
    %1309 = vector.load %arg11[%c0_2193, %c2_2194, %c1_2195, %c0_2196] : memref<2x10x10x16xf32, #tpu.memory_space<vmem>>, vector<1x1x8x16xf32>
    %1310 = vector.shape_cast %1309 : vector<1x1x8x16xf32> to vector<8x16xf32>
    %c0_2197 = arith.constant 0 : index
    %c3_2198 = arith.constant 3 : index
    %c1_2199 = arith.constant 1 : index
    %c0_2200 = arith.constant 0 : index
    %1311 = vector.load %arg11[%c0_2197, %c3_2198, %c1_2199, %c0_2200] : memref<2x10x10x16xf32, #tpu.memory_space<vmem>>, vector<1x1x8x16xf32>
    %1312 = vector.shape_cast %1311 : vector<1x1x8x16xf32> to vector<8x16xf32>
    %c0_2201 = arith.constant 0 : index
    %c4_2202 = arith.constant 4 : index
    %c1_2203 = arith.constant 1 : index
    %c0_2204 = arith.constant 0 : index
    %1313 = vector.load %arg11[%c0_2201, %c4_2202, %c1_2203, %c0_2204] : memref<2x10x10x16xf32, #tpu.memory_space<vmem>>, vector<1x1x8x16xf32>
    %1314 = vector.shape_cast %1313 : vector<1x1x8x16xf32> to vector<8x16xf32>
    %c0_2205 = arith.constant 0 : index
    %c5_2206 = arith.constant 5 : index
    %c1_2207 = arith.constant 1 : index
    %c0_2208 = arith.constant 0 : index
    %1315 = vector.load %arg11[%c0_2205, %c5_2206, %c1_2207, %c0_2208] : memref<2x10x10x16xf32, #tpu.memory_space<vmem>>, vector<1x1x8x16xf32>
    %1316 = vector.shape_cast %1315 : vector<1x1x8x16xf32> to vector<8x16xf32>
    %c0_2209 = arith.constant 0 : index
    %c6_2210 = arith.constant 6 : index
    %c1_2211 = arith.constant 1 : index
    %c0_2212 = arith.constant 0 : index
    %1317 = vector.load %arg11[%c0_2209, %c6_2210, %c1_2211, %c0_2212] : memref<2x10x10x16xf32, #tpu.memory_space<vmem>>, vector<1x1x8x16xf32>
    %1318 = vector.shape_cast %1317 : vector<1x1x8x16xf32> to vector<8x16xf32>
    %c0_2213 = arith.constant 0 : index
    %c7_2214 = arith.constant 7 : index
    %c1_2215 = arith.constant 1 : index
    %c0_2216 = arith.constant 0 : index
    %1319 = vector.load %arg11[%c0_2213, %c7_2214, %c1_2215, %c0_2216] : memref<2x10x10x16xf32, #tpu.memory_space<vmem>>, vector<1x1x8x16xf32>
    %1320 = vector.shape_cast %1319 : vector<1x1x8x16xf32> to vector<8x16xf32>
    %c0_2217 = arith.constant 0 : index
    %c8_2218 = arith.constant 8 : index
    %c1_2219 = arith.constant 1 : index
    %c0_2220 = arith.constant 0 : index
    %1321 = vector.load %arg11[%c0_2217, %c8_2218, %c1_2219, %c0_2220] : memref<2x10x10x16xf32, #tpu.memory_space<vmem>>, vector<1x1x8x16xf32>
    %1322 = vector.shape_cast %1321 : vector<1x1x8x16xf32> to vector<8x16xf32>
    %c0_2221 = arith.constant 0 : index
    %c9_2222 = arith.constant 9 : index
    %c1_2223 = arith.constant 1 : index
    %c0_2224 = arith.constant 0 : index
    %1323 = vector.load %arg11[%c0_2221, %c9_2222, %c1_2223, %c0_2224] : memref<2x10x10x16xf32, #tpu.memory_space<vmem>>, vector<1x1x8x16xf32>
    %1324 = vector.shape_cast %1323 : vector<1x1x8x16xf32> to vector<8x16xf32>
    %c1_2225 = arith.constant 1 : index
    %c2_2226 = arith.constant 2 : index
    %c1_2227 = arith.constant 1 : index
    %c0_2228 = arith.constant 0 : index
    %1325 = vector.load %arg11[%c1_2225, %c2_2226, %c1_2227, %c0_2228] : memref<2x10x10x16xf32, #tpu.memory_space<vmem>>, vector<1x1x8x16xf32>
    %1326 = vector.shape_cast %1325 : vector<1x1x8x16xf32> to vector<8x16xf32>
    %c1_2229 = arith.constant 1 : index
    %c3_2230 = arith.constant 3 : index
    %c1_2231 = arith.constant 1 : index
    %c0_2232 = arith.constant 0 : index
    %1327 = vector.load %arg11[%c1_2229, %c3_2230, %c1_2231, %c0_2232] : memref<2x10x10x16xf32, #tpu.memory_space<vmem>>, vector<1x1x8x16xf32>
    %1328 = vector.shape_cast %1327 : vector<1x1x8x16xf32> to vector<8x16xf32>
    %c1_2233 = arith.constant 1 : index
    %c4_2234 = arith.constant 4 : index
    %c1_2235 = arith.constant 1 : index
    %c0_2236 = arith.constant 0 : index
    %1329 = vector.load %arg11[%c1_2233, %c4_2234, %c1_2235, %c0_2236] : memref<2x10x10x16xf32, #tpu.memory_space<vmem>>, vector<1x1x8x16xf32>
    %1330 = vector.shape_cast %1329 : vector<1x1x8x16xf32> to vector<8x16xf32>
    %c1_2237 = arith.constant 1 : index
    %c5_2238 = arith.constant 5 : index
    %c1_2239 = arith.constant 1 : index
    %c0_2240 = arith.constant 0 : index
    %1331 = vector.load %arg11[%c1_2237, %c5_2238, %c1_2239, %c0_2240] : memref<2x10x10x16xf32, #tpu.memory_space<vmem>>, vector<1x1x8x16xf32>
    %1332 = vector.shape_cast %1331 : vector<1x1x8x16xf32> to vector<8x16xf32>
    %c1_2241 = arith.constant 1 : index
    %c6_2242 = arith.constant 6 : index
    %c1_2243 = arith.constant 1 : index
    %c0_2244 = arith.constant 0 : index
    %1333 = vector.load %arg11[%c1_2241, %c6_2242, %c1_2243, %c0_2244] : memref<2x10x10x16xf32, #tpu.memory_space<vmem>>, vector<1x1x8x16xf32>
    %1334 = vector.shape_cast %1333 : vector<1x1x8x16xf32> to vector<8x16xf32>
    %c1_2245 = arith.constant 1 : index
    %c7_2246 = arith.constant 7 : index
    %c1_2247 = arith.constant 1 : index
    %c0_2248 = arith.constant 0 : index
    %1335 = vector.load %arg11[%c1_2245, %c7_2246, %c1_2247, %c0_2248] : memref<2x10x10x16xf32, #tpu.memory_space<vmem>>, vector<1x1x8x16xf32>
    %1336 = vector.shape_cast %1335 : vector<1x1x8x16xf32> to vector<8x16xf32>
    %c1_2249 = arith.constant 1 : index
    %c8_2250 = arith.constant 8 : index
    %c1_2251 = arith.constant 1 : index
    %c0_2252 = arith.constant 0 : index
    %1337 = vector.load %arg11[%c1_2249, %c8_2250, %c1_2251, %c0_2252] : memref<2x10x10x16xf32, #tpu.memory_space<vmem>>, vector<1x1x8x16xf32>
    %1338 = vector.shape_cast %1337 : vector<1x1x8x16xf32> to vector<8x16xf32>
    %c1_2253 = arith.constant 1 : index
    %c9_2254 = arith.constant 9 : index
    %c1_2255 = arith.constant 1 : index
    %c0_2256 = arith.constant 0 : index
    %1339 = vector.load %arg11[%c1_2253, %c9_2254, %c1_2255, %c0_2256] : memref<2x10x10x16xf32, #tpu.memory_space<vmem>>, vector<1x1x8x16xf32>
    %1340 = vector.shape_cast %1339 : vector<1x1x8x16xf32> to vector<8x16xf32>
    %1341 = tpu.concatenate %1310, %1312, %1314, %1316, %1318, %1320, %1322, %1324, %1326, %1328, %1330, %1332, %1334, %1336, %1338, %1340 in 0 : vector<8x16xf32>, vector<8x16xf32>, vector<8x16xf32>, vector<8x16xf32>, vector<8x16xf32>, vector<8x16xf32>, vector<8x16xf32>, vector<8x16xf32>, vector<8x16xf32>, vector<8x16xf32>, vector<8x16xf32>, vector<8x16xf32>, vector<8x16xf32>, vector<8x16xf32>, vector<8x16xf32>, vector<8x16xf32> -> vector<128x16xf32>
    %1342 = arith.truncf %1341 : vector<128x16xf32> to vector<128x16xbf16>
    %c2_2257 = arith.constant 2 : index
    %c0_2258 = arith.constant 0 : index
    %c0_2259 = arith.constant 0 : index
    %1343 = vector.load %arg8[%c2_2257, %c0_2258, %c0_2259] : memref<16x16x6xbf16, #tpu.memory_space<vmem>>, vector<1x16x6xbf16>
    %1344 = vector.shape_cast %1343 : vector<1x16x6xbf16> to vector<16x6xbf16>
    %cst_2260 = arith.constant dense<0.000000e+00> : vector<128x6xf32>
    %1345 = tpu.matmul %1342, %1344, %cst_2260 {dimension_numbers = #tpu.dot_dimension_numbers<[1], [0], [0], [1], [0, 0, 1, 1], [], []>} : vector<128x16xbf16>, vector<16x6xbf16>, vector<128x6xf32> -> vector<128x6xf32>
    %1346 = arith.addf %1308, %1345 : vector<128x6xf32>
    %c0_2261 = arith.constant 0 : index
    %c2_2262 = arith.constant 2 : index
    %c2_2263 = arith.constant 2 : index
    %c0_2264 = arith.constant 0 : index
    %1347 = vector.load %arg11[%c0_2261, %c2_2262, %c2_2263, %c0_2264] : memref<2x10x10x16xf32, #tpu.memory_space<vmem>>, vector<1x1x8x16xf32>
    %1348 = vector.shape_cast %1347 : vector<1x1x8x16xf32> to vector<8x16xf32>
    %c0_2265 = arith.constant 0 : index
    %c3_2266 = arith.constant 3 : index
    %c2_2267 = arith.constant 2 : index
    %c0_2268 = arith.constant 0 : index
    %1349 = vector.load %arg11[%c0_2265, %c3_2266, %c2_2267, %c0_2268] : memref<2x10x10x16xf32, #tpu.memory_space<vmem>>, vector<1x1x8x16xf32>
    %1350 = vector.shape_cast %1349 : vector<1x1x8x16xf32> to vector<8x16xf32>
    %c0_2269 = arith.constant 0 : index
    %c4_2270 = arith.constant 4 : index
    %c2_2271 = arith.constant 2 : index
    %c0_2272 = arith.constant 0 : index
    %1351 = vector.load %arg11[%c0_2269, %c4_2270, %c2_2271, %c0_2272] : memref<2x10x10x16xf32, #tpu.memory_space<vmem>>, vector<1x1x8x16xf32>
    %1352 = vector.shape_cast %1351 : vector<1x1x8x16xf32> to vector<8x16xf32>
    %c0_2273 = arith.constant 0 : index
    %c5_2274 = arith.constant 5 : index
    %c2_2275 = arith.constant 2 : index
    %c0_2276 = arith.constant 0 : index
    %1353 = vector.load %arg11[%c0_2273, %c5_2274, %c2_2275, %c0_2276] : memref<2x10x10x16xf32, #tpu.memory_space<vmem>>, vector<1x1x8x16xf32>
    %1354 = vector.shape_cast %1353 : vector<1x1x8x16xf32> to vector<8x16xf32>
    %c0_2277 = arith.constant 0 : index
    %c6_2278 = arith.constant 6 : index
    %c2_2279 = arith.constant 2 : index
    %c0_2280 = arith.constant 0 : index
    %1355 = vector.load %arg11[%c0_2277, %c6_2278, %c2_2279, %c0_2280] : memref<2x10x10x16xf32, #tpu.memory_space<vmem>>, vector<1x1x8x16xf32>
    %1356 = vector.shape_cast %1355 : vector<1x1x8x16xf32> to vector<8x16xf32>
    %c0_2281 = arith.constant 0 : index
    %c7_2282 = arith.constant 7 : index
    %c2_2283 = arith.constant 2 : index
    %c0_2284 = arith.constant 0 : index
    %1357 = vector.load %arg11[%c0_2281, %c7_2282, %c2_2283, %c0_2284] : memref<2x10x10x16xf32, #tpu.memory_space<vmem>>, vector<1x1x8x16xf32>
    %1358 = vector.shape_cast %1357 : vector<1x1x8x16xf32> to vector<8x16xf32>
    %c0_2285 = arith.constant 0 : index
    %c8_2286 = arith.constant 8 : index
    %c2_2287 = arith.constant 2 : index
    %c0_2288 = arith.constant 0 : index
    %1359 = vector.load %arg11[%c0_2285, %c8_2286, %c2_2287, %c0_2288] : memref<2x10x10x16xf32, #tpu.memory_space<vmem>>, vector<1x1x8x16xf32>
    %1360 = vector.shape_cast %1359 : vector<1x1x8x16xf32> to vector<8x16xf32>
    %c0_2289 = arith.constant 0 : index
    %c9_2290 = arith.constant 9 : index
    %c2_2291 = arith.constant 2 : index
    %c0_2292 = arith.constant 0 : index
    %1361 = vector.load %arg11[%c0_2289, %c9_2290, %c2_2291, %c0_2292] : memref<2x10x10x16xf32, #tpu.memory_space<vmem>>, vector<1x1x8x16xf32>
    %1362 = vector.shape_cast %1361 : vector<1x1x8x16xf32> to vector<8x16xf32>
    %c1_2293 = arith.constant 1 : index
    %c2_2294 = arith.constant 2 : index
    %c2_2295 = arith.constant 2 : index
    %c0_2296 = arith.constant 0 : index
    %1363 = vector.load %arg11[%c1_2293, %c2_2294, %c2_2295, %c0_2296] : memref<2x10x10x16xf32, #tpu.memory_space<vmem>>, vector<1x1x8x16xf32>
    %1364 = vector.shape_cast %1363 : vector<1x1x8x16xf32> to vector<8x16xf32>
    %c1_2297 = arith.constant 1 : index
    %c3_2298 = arith.constant 3 : index
    %c2_2299 = arith.constant 2 : index
    %c0_2300 = arith.constant 0 : index
    %1365 = vector.load %arg11[%c1_2297, %c3_2298, %c2_2299, %c0_2300] : memref<2x10x10x16xf32, #tpu.memory_space<vmem>>, vector<1x1x8x16xf32>
    %1366 = vector.shape_cast %1365 : vector<1x1x8x16xf32> to vector<8x16xf32>
    %c1_2301 = arith.constant 1 : index
    %c4_2302 = arith.constant 4 : index
    %c2_2303 = arith.constant 2 : index
    %c0_2304 = arith.constant 0 : index
    %1367 = vector.load %arg11[%c1_2301, %c4_2302, %c2_2303, %c0_2304] : memref<2x10x10x16xf32, #tpu.memory_space<vmem>>, vector<1x1x8x16xf32>
    %1368 = vector.shape_cast %1367 : vector<1x1x8x16xf32> to vector<8x16xf32>
    %c1_2305 = arith.constant 1 : index
    %c5_2306 = arith.constant 5 : index
    %c2_2307 = arith.constant 2 : index
    %c0_2308 = arith.constant 0 : index
    %1369 = vector.load %arg11[%c1_2305, %c5_2306, %c2_2307, %c0_2308] : memref<2x10x10x16xf32, #tpu.memory_space<vmem>>, vector<1x1x8x16xf32>
    %1370 = vector.shape_cast %1369 : vector<1x1x8x16xf32> to vector<8x16xf32>
    %c1_2309 = arith.constant 1 : index
    %c6_2310 = arith.constant 6 : index
    %c2_2311 = arith.constant 2 : index
    %c0_2312 = arith.constant 0 : index
    %1371 = vector.load %arg11[%c1_2309, %c6_2310, %c2_2311, %c0_2312] : memref<2x10x10x16xf32, #tpu.memory_space<vmem>>, vector<1x1x8x16xf32>
    %1372 = vector.shape_cast %1371 : vector<1x1x8x16xf32> to vector<8x16xf32>
    %c1_2313 = arith.constant 1 : index
    %c7_2314 = arith.constant 7 : index
    %c2_2315 = arith.constant 2 : index
    %c0_2316 = arith.constant 0 : index
    %1373 = vector.load %arg11[%c1_2313, %c7_2314, %c2_2315, %c0_2316] : memref<2x10x10x16xf32, #tpu.memory_space<vmem>>, vector<1x1x8x16xf32>
    %1374 = vector.shape_cast %1373 : vector<1x1x8x16xf32> to vector<8x16xf32>
    %c1_2317 = arith.constant 1 : index
    %c8_2318 = arith.constant 8 : index
    %c2_2319 = arith.constant 2 : index
    %c0_2320 = arith.constant 0 : index
    %1375 = vector.load %arg11[%c1_2317, %c8_2318, %c2_2319, %c0_2320] : memref<2x10x10x16xf32, #tpu.memory_space<vmem>>, vector<1x1x8x16xf32>
    %1376 = vector.shape_cast %1375 : vector<1x1x8x16xf32> to vector<8x16xf32>
    %c1_2321 = arith.constant 1 : index
    %c9_2322 = arith.constant 9 : index
    %c2_2323 = arith.constant 2 : index
    %c0_2324 = arith.constant 0 : index
    %1377 = vector.load %arg11[%c1_2321, %c9_2322, %c2_2323, %c0_2324] : memref<2x10x10x16xf32, #tpu.memory_space<vmem>>, vector<1x1x8x16xf32>
    %1378 = vector.shape_cast %1377 : vector<1x1x8x16xf32> to vector<8x16xf32>
    %1379 = tpu.concatenate %1348, %1350, %1352, %1354, %1356, %1358, %1360, %1362, %1364, %1366, %1368, %1370, %1372, %1374, %1376, %1378 in 0 : vector<8x16xf32>, vector<8x16xf32>, vector<8x16xf32>, vector<8x16xf32>, vector<8x16xf32>, vector<8x16xf32>, vector<8x16xf32>, vector<8x16xf32>, vector<8x16xf32>, vector<8x16xf32>, vector<8x16xf32>, vector<8x16xf32>, vector<8x16xf32>, vector<8x16xf32>, vector<8x16xf32>, vector<8x16xf32> -> vector<128x16xf32>
    %1380 = arith.truncf %1379 : vector<128x16xf32> to vector<128x16xbf16>
    %c0_2325 = arith.constant 0 : index
    %c0_2326 = arith.constant 0 : index
    %c0_2327 = arith.constant 0 : index
    %1381 = vector.load %arg8[%c0_2325, %c0_2326, %c0_2327] : memref<16x16x6xbf16, #tpu.memory_space<vmem>>, vector<1x16x6xbf16>
    %1382 = vector.shape_cast %1381 : vector<1x16x6xbf16> to vector<16x6xbf16>
    %cst_2328 = arith.constant dense<0.000000e+00> : vector<128x6xf32>
    %1383 = tpu.matmul %1380, %1382, %cst_2328 {dimension_numbers = #tpu.dot_dimension_numbers<[1], [0], [0], [1], [0, 0, 1, 1], [], []>} : vector<128x16xbf16>, vector<16x6xbf16>, vector<128x6xf32> -> vector<128x6xf32>
    %1384 = arith.addf %1346, %1383 : vector<128x6xf32>
    %1385 = math.tanh %1384 : vector<128x6xf32>
    %c1_2329 = arith.constant 1 : index
    %c1_2330 = arith.constant 1 : index
    %c0_2331 = arith.constant 0 : index
    %c0_2332 = arith.constant 0 : index
    %1386 = vector.load %arg9[%c1_2329, %c1_2330, %c0_2331, %c0_2332] : memref<2x2x128x6xf32, #tpu.memory_space<vmem>>, vector<1x1x128x6xf32>
    %1387 = vector.shape_cast %1386 : vector<1x1x128x6xf32> to vector<128x6xf32>
    %1388 = vector.shape_cast %1385 : vector<128x6xf32> to vector<1x1x128x6xf32>
    tpu.vector_store %arg9[%c1_2329, %c1_2330, %c0_2331, %c0_2332], %1388 {strides = array<i32>} : memref<2x2x128x6xf32, #tpu.memory_space<vmem>>, vector<1x1x128x6xf32>,
    return
  }
  func.func @transform_0(%arg0: i32) -> (i32, i32) {
    %c0_i32 = arith.constant 0 : i32
    %c0_i32_0 = arith.constant 0 : i32
    %c0_i32_1 = arith.constant 0 : i32
    return %c0_i32, %c0_i32_0 : i32, i32
  }
  func.func @transform_1(%arg0: i32) -> (i32, i32) {
    %c0_i32 = arith.constant 0 : i32
    %c0_i32_0 = arith.constant 0 : i32
    %c0_i32_1 = arith.constant 0 : i32
    return %c0_i32, %c0_i32_0 : i32, i32
  }
  func.func @transform_2(%arg0: i32) -> (i32, i32) {
    %c0_i32 = arith.constant 0 : i32
    %c0_i32_0 = arith.constant 0 : i32
    %c0_i32_1 = arith.constant 0 : i32
    return %c0_i32, %c0_i32_0 : i32, i32
  }
  func.func @transform_3(%arg0: i32) -> (i32, i32) {
    %c0_i32 = arith.constant 0 : i32
    %c0_i32_0 = arith.constant 0 : i32
    %c0_i32_1 = arith.constant 0 : i32
    return %c0_i32, %c0_i32_0 : i32, i32
  }
  func.func @transform_4(%arg0: i32) -> (i32, i32, i32) {
    %c0_i32 = arith.constant 0 : i32
    %c0_i32_0 = arith.constant 0 : i32
    %c0_i32_1 = arith.constant 0 : i32
    %c0_i32_2 = arith.constant 0 : i32
    return %c0_i32, %c0_i32_0, %c0_i32_1 : i32, i32, i32
  }
  func.func @transform_5(%arg0: i32) -> (i32, i32) {
    %c0_i32 = arith.constant 0 : i32
    %c0_i32_0 = arith.constant 0 : i32
    %c0_i32_1 = arith.constant 0 : i32
    return %c0_i32, %c0_i32_0 : i32, i32
  }
  func.func @transform_6(%arg0: i32) -> (i32, i32) {
    %c0_i32 = arith.constant 0 : i32
    %c0_i32_0 = arith.constant 0 : i32
    %c0_i32_1 = arith.constant 0 : i32
    return %c0_i32, %c0_i32_0 : i32, i32
  }
  func.func @transform_7(%arg0: i32) -> (i32, i32, i32) {
    %c0_i32 = arith.constant 0 : i32
    %c0_i32_0 = arith.constant 0 : i32
    %c0_i32_1 = arith.constant 0 : i32
    %c0_i32_2 = arith.constant 0 : i32
    return %c0_i32, %c0_i32_0, %c0_i32_1 : i32, i32, i32
  }
  func.func @transform_8(%arg0: i32) -> (i32, i32, i32, i32) {
    %c0_i32 = arith.constant 0 : i32
    %c0_i32_0 = arith.constant 0 : i32
    %c0_i32_1 = arith.constant 0 : i32
    %c0_i32_2 = arith.constant 0 : i32
    %c0_i32_3 = arith.constant 0 : i32
    return %c0_i32, %c0_i32_0, %c0_i32_1, %c0_i32_2 : i32, i32, i32, i32
  }
}

</mosaic_0001>

<llo_original>
// kernel: tile.18
$region0: #{tile.18}
  #allocation0 [shape = 's32[1]{0}', space=sflag, size = 0x4, scoped, tag = 'scoped memory for tile.18']
  %s0 = inlined_call_operand.vmem [shape: f32[32], index: 0, kind: input, shape index: {}]
  %s1 = inlined_call_operand.vmem [shape: f32[16,32], index: 1, kind: output, shape index: {}]
  // Predicated region
  $region2: #{tile.18} parent=0 // pred_check
    _
  $region3: #{tile.18} parent=0 // pred_check_branch
    %3 = sbr.rel (0) target = $region5
  $region4: #{tile.18} parent=0 // pred_region
    _
  $region5: #{tile.18} parent=0 // pred_fallthru
    _
  %v4 = vld [vmem:[%s0] ss:$0 sm:$0xff]
  %5 = vst [vmem:[%s1] sm:$0xff] %v4
  %s6 = scalar_lea.vmem %s1, 8
  %7 = vst [vmem:[%s6] sm:$0xff] %v4

// kernel: tile.19
$region0: #{tile.19}
  %s0 = inlined_call_operand.vmem [shape: f32[16,32], index: 0, kind: input, shape index: {}]
  %s1 = inlined_call_operand.vmem [shape: f32[1,512], index: 1, kind: output, shape index: {}]
  $region1: #{tile.19} parent=0
    #allocation0 [shape = 'u8[16384]{0}', space=vmem, size = 0x4000, scoped, tag = 'scoped mem for output reshape']
    %v2 = vld [vmem:[%s0] ss:$4 sm:$0xf]
    %vm3 = vcmask 261120
    %4 = vst.msk [vmem:[#allocation0] ss:$8 sm:$0xf] %vm3, %v2
    %s5 = scalar_lea.vmem %s0, 3
    %v6 = vld [vmem:[%s5] ss:$4 sm:$0xf]
    %7 = vrot.lane.b32.xlu0 %v6, 96
    %v8 = vpop.permute.xlu0 %7
    %vm9 = vcmask 1048320
    %10 = vst.msk [vmem:[#allocation0] ss:$8 sm:$0xf] %vm9, %v8
    %s11 = scalar_lea.vmem %s0, 2
    %v12 = vld [vmem:[%s11] ss:$4 sm:$0xf]
    %13 = vrot.lane.b32.xlu0 %v12, 64
    %v14 = vpop.permute.xlu0 %13
    %vm15 = vcmask 785920
    %16 = vst.msk [vmem:[#allocation0] ss:$8 sm:$0xf] %vm15, %v14
    %s17 = scalar_lea.vmem %s0, 1
    %v18 = vld [vmem:[%s17] ss:$4 sm:$0xf]
    %19 = vrot.lane.b32.xlu0 %v18, 32
    %v20 = vpop.permute.xlu0 %19
    %vm21 = vcmask 523520
    %22 = vst.msk [vmem:[#allocation0] ss:$8 sm:$0xf] %vm21, %v20
    %s24 = sshllo.u32 0, 1
    %v26 = vld [vmem:[#allocation0] sm:%s24]
    %s27 = sshllo.u32 0, 1
    %28 = vst [vmem:[%s1] sm:%s27] %v26
    %s29 = scalar_lea.vmem [#allocation0], 8
    %v30 = vld [vmem:[%s29] sm:%s24]
    %s31 = sshllo.u32 0, 1
    %s32 = scalar_lea.vmem %s1, 1
    %33 = vst [vmem:[%s32] sm:%s31] %v30
    %s34 = scalar_lea.vmem [#allocation0], 16
    %v35 = vld [vmem:[%s34] sm:%s24]
    %s36 = sshllo.u32 0, 1
    %s37 = smul.addr 1, 2
    %s38 = scalar_lea.vmem %s1, %s37
    %39 = vst [vmem:[%s38] sm:%s36] %v35
    %s40 = scalar_lea.vmem [#allocation0], 24
    %v41 = vld [vmem:[%s40] sm:%s24]
    %s42 = sshllo.u32 0, 1
    %s43 = smul.addr 1, 3
    %s44 = scalar_lea.vmem %s1, %s43
    %45 = vst [vmem:[%s44] sm:%s42] %v41

// kernel: _lambda_.1
$region0: #{_lambda_.1}
  #allocation0 [shape = 'u32[]', space=smem, size = 0x4, offset = 0x4, fixed_abs, tag = 'smem constant byte address 0x4 - core index']
  #allocation1 [shape = 'u32[144,128]{1,0:T(1,128)}', space=vmem, size = 0x12000, scoped, tag = 'internal scratch']
  #allocation2 [shape = 'f32[2,11,11,32]{3,2,1,0:T(8,128)}', space=vmem, size = 0x2c000, scoped, tag = 'scratch operand']
  #allocation3 [shape = 'f32[2,10,10,16]{3,2,1,0:T(8,128)}', space=vmem, size = 0x28000, scoped, tag = 'scratch operand']
  %s0 = inlined_call_operand.vmem [shape: f32[2,32], index: 0, kind: input, shape index: {}]
  %s1 = inlined_call_operand.vmem [shape: bf16[32,512], index: 1, kind: input, shape index: {}]
  %s2 = inlined_call_operand.vmem [shape: f32[1,512], index: 2, kind: input, shape index: {}]
  %s3 = inlined_call_operand.vmem [shape: f32[1,512], index: 3, kind: input, shape index: {}]
  %s4 = inlined_call_operand.vmem [shape: bf16[16,32,16], index: 4, kind: input, shape index: {}]
  %s5 = inlined_call_operand.vmem [shape: f32[1,16], index: 5, kind: input, shape index: {}]
  %s6 = inlined_call_operand.vmem [shape: f32[1,16], index: 6, kind: input, shape index: {}]
  %s7 = inlined_call_operand.vmem [shape: bf16[16,16,6], index: 7, kind: input, shape index: {}]
  %s8 = inlined_call_operand.vmem [shape: f32[2,2,128,6], index: 8, kind: output, shape index: {}]
  %s9 = sld [smem:[#allocation0]]
  $region42: #{_lambda_.1} parent=0
    _
  %s11 = ssub.s32 1, %s9
  %s12 = scalar_select 0, %s11, %s9
  // Predicated region
  $region2: #{_lambda_.1} parent=0 // pred_check
    _
  $region3: #{_lambda_.1} parent=0 // pred_check_branch
    %14 = sbr.rel (0) target = $region5
  $region4: #{_lambda_.1} parent=0 // pred_region
    _
  $region5: #{_lambda_.1} parent=0 // pred_fallthru
    _
  // Predicated region
  $region6: #{_lambda_.1} parent=0 // pred_check
    _
  $region7: #{_lambda_.1} parent=0 // pred_check_branch
    %16 = sbr.rel (0) target = $region9
  $region8: #{_lambda_.1} parent=0 // pred_region
    _
  $region9: #{_lambda_.1} parent=0 // pred_fallthru
    _
  // Predicated region
  $region10: #{_lambda_.1} parent=0 // pred_check
    _
  $region11: #{_lambda_.1} parent=0 // pred_check_branch
    %18 = sbr.rel (0) target = $region13
  $region12: #{_lambda_.1} parent=0 // pred_region
    _
  $region13: #{_lambda_.1} parent=0 // pred_fallthru
    _
  // Predicated region
  $region14: #{_lambda_.1} parent=0 // pred_check
    _
  $region15: #{_lambda_.1} parent=0 // pred_check_branch
    %20 = sbr.rel (0) target = $region17
  $region16: #{_lambda_.1} parent=0 // pred_region
    _
  $region17: #{_lambda_.1} parent=0 // pred_fallthru
    _
  // Predicated region
  $region18: #{_lambda_.1} parent=0 // pred_check
    _
  $region19: #{_lambda_.1} parent=0 // pred_check_branch
    %22 = sbr.rel (0) target = $region21
  $region20: #{_lambda_.1} parent=0 // pred_region
    _
  $region21: #{_lambda_.1} parent=0 // pred_fallthru
    _
  // Predicated region
  $region22: #{_lambda_.1} parent=0 // pred_check
    _
  $region23: #{_lambda_.1} parent=0 // pred_check_branch
    %24 = sbr.rel (0) target = $region25
  $region24: #{_lambda_.1} parent=0 // pred_region
    _
  $region25: #{_lambda_.1} parent=0 // pred_fallthru
    _
  // Predicated region
  $region26: #{_lambda_.1} parent=0 // pred_check
    _
  $region27: #{_lambda_.1} parent=0 // pred_check_branch
    %26 = sbr.rel (0) target = $region29
  $region28: #{_lambda_.1} parent=0 // pred_region
    _
  $region29: #{_lambda_.1} parent=0 // pred_fallthru
    _
  // Predicated region
  $region30: #{_lambda_.1} parent=0 // pred_check
    _
  $region31: #{_lambda_.1} parent=0 // pred_check_branch
    %28 = sbr.rel (0) target = $region33
  $region32: #{_lambda_.1} parent=0 // pred_region
    _
  $region33: #{_lambda_.1} parent=0 // pred_fallthru
    _
  %v30 = vld [vmem:[%s0] sm:$0x3]
  %v31 = vpack.c.bf16 %v30, %v30
  %v32 = vld [vmem:[%s1] sm:$0xff]
  %v33 = vld [vmem:[%s1 + $0x8] sm:$0xff]
  %v34 = vld [vmem:[%s1 + $0x10] sm:$0xff]
  %v35 = vld [vmem:[%s1 + $0x18] sm:$0xff]
  %v36 = vld [vmem:[%s1 + $0x20] sm:$0xff]
  %v37 = vld [vmem:[%s1 + $0x28] sm:$0xff]
  %v38 = vld [vmem:[%s1 + $0x30] sm:$0xff]
  %v39 = vld [vmem:[%s1 + $0x38] sm:$0xff]
  %v48 = vunpack.c.l.b16 %v32
  %v49 = vunpack.c.h.b16 %v32
  %v50 = vunpack.c.l.b16 %v33
  %v51 = vunpack.c.h.b16 %v33
  %v52 = vunpack.c.l.b16 %v34
  %v53 = vunpack.c.h.b16 %v34
  %v54 = vunpack.c.l.b16 %v35
  %v55 = vunpack.c.h.b16 %v35
  %v56 = vunpack.c.l.b16 %v36
  %v57 = vunpack.c.h.b16 %v36
  %v58 = vunpack.c.l.b16 %v37
  %v59 = vunpack.c.h.b16 %v37
  %v60 = vunpack.c.l.b16 %v38
  %v61 = vunpack.c.h.b16 %v38
  %v62 = vunpack.c.l.b16 %v39
  %v63 = vunpack.c.h.b16 %v39
  %v64 = vpack.c.b16 %v52, %v48
  %v65 = vpack.c.b16 %v53, %v49
  %v66 = vpack.c.b16 %v54, %v50
  %v67 = vpack.c.b16 %v55, %v51
  %v68 = vpack.c.b16 %v60, %v56
  %v69 = vpack.c.b16 %v61, %v57
  %v70 = vpack.c.b16 %v62, %v58
  %v71 = vpack.c.b16 %v63, %v59
  %vm80 = vcmask 261120
  %v82 = vsel %vm80, %v31, 0
  %84 = vmatprep.subr.bf16.mxu0 %v65
  %85 = vmatpush1.bf16.msra.mxu0 %v64
  %86 = vmatprep.subr.bf16.mxu0 %v69
  %87 = vmatpush1.bf16.msra.mxu0 %v68
  %88 = vmatprep.subr.bf16.mxu0 0
  %89 = vmatpush1.bf16.msra.mxu0 0
  %90 = vmatprep.subr.bf16.mxu0 0
  %91 = vmatpush1.bf16.msra.mxu0 0
  %92 = vmatprep.subr.bf16.mxu0 0
  %93 = vmatpush1.bf16.msra.mxu0 0
  %94 = vmatprep.subr.bf16.mxu0 0
  %95 = vmatpush1.bf16.msra.mxu0 0
  %96 = vmatprep.subr.bf16.mxu0 0
  %97 = vmatpush1.bf16.msra.mxu0 0
  %98 = vmatprep.subr.bf16.mxu0 0
  %99 = vmatpush1.bf16.msra.mxu0 0
  %100 = vmatprep.subr.bf16.mxu0 0
  %101 = vmatpush1.bf16.msra.mxu0 0
  %102 = vmatprep.subr.bf16.mxu0 0
  %103 = vmatpush1.bf16.msra.mxu0 0
  %104 = vmatprep.subr.bf16.mxu0 0
  %105 = vmatpush1.bf16.msra.mxu0 0
  %106 = vmatprep.subr.bf16.mxu0 0
  %107 = vmatpush1.bf16.msra.mxu0 0
  %108 = vmatprep.subr.bf16.mxu0 0
  %109 = vmatpush1.bf16.msra.mxu0 0
  %110 = vmatprep.subr.bf16.mxu0 0
  %111 = vmatpush1.bf16.msra.mxu0 0
  %112 = vmatprep.subr.bf16.mxu0 0
  %113 = vmatpush1.bf16.msra.mxu0 0
  %114 = vmatprep.subr.bf16.mxu0 0
  %115 = vmatpush1.bf16.msra.mxu0 0
  %116 = vmatprep.mubr.bf16.mxu0 0
  %117 = vmatmul.mubr.bf16.gmra.mrb[0].mxu0 %v82
  %v118 = vpop.f32.mrb[0].mxu0
  %v119 = vadd.f32 0.0, %v118
  %v120 = vpop.f32.mrb[0].mxu0
  %v121 = vadd.f32 0.0, %v120
  %v122 = vpop.f32.mrb[0].mxu0
  %v123 = vpop.f32.mrb[0].mxu0
  %124 = vdwg.mxu0
  %125 = vmatprep.subr.bf16.mxu0 %v67
  %126 = vmatpush1.bf16.msra.mxu0 %v66
  %127 = vmatprep.subr.bf16.mxu0 %v71
  %128 = vmatpush1.bf16.msra.mxu0 %v70
  %129 = vmatprep.subr.bf16.mxu0 0
  %130 = vmatpush1.bf16.msra.mxu0 0
  %131 = vmatprep.subr.bf16.mxu0 0
  %132 = vmatpush1.bf16.msra.mxu0 0
  %133 = vmatprep.subr.bf16.mxu0 0
  %134 = vmatpush1.bf16.msra.mxu0 0
  %135 = vmatprep.subr.bf16.mxu0 0
  %136 = vmatpush1.bf16.msra.mxu0 0
  %137 = vmatprep.subr.bf16.mxu0 0
  %138 = vmatpush1.bf16.msra.mxu0 0
  %139 = vmatprep.subr.bf16.mxu0 0
  %140 = vmatpush1.bf16.msra.mxu0 0
  %141 = vmatprep.subr.bf16.mxu0 0
  %142 = vmatpush1.bf16.msra.mxu0 0
  %143 = vmatprep.subr.bf16.mxu0 0
  %144 = vmatpush1.bf16.msra.mxu0 0
  %145 = vmatprep.subr.bf16.mxu0 0
  %146 = vmatpush1.bf16.msra.mxu0 0
  %147 = vmatprep.subr.bf16.mxu0 0
  %148 = vmatpush1.bf16.msra.mxu0 0
  %149 = vmatprep.subr.bf16.mxu0 0
  %150 = vmatpush1.bf16.msra.mxu0 0
  %151 = vmatprep.subr.bf16.mxu0 0
  %152 = vmatpush1.bf16.msra.mxu0 0
  %153 = vmatprep.subr.bf16.mxu0 0
  %154 = vmatpush1.bf16.msra.mxu0 0
  %155 = vmatprep.subr.bf16.mxu0 0
  %156 = vmatpush1.bf16.msra.mxu0 0
  %157 = vmatprep.mubr.bf16.mxu0 0
  %158 = vmatmul.mubr.bf16.gmra.mrb[0].mxu0 %v82
  %v159 = vpop.f32.mrb[0].mxu0
  %v160 = vadd.f32 0.0, %v159
  %v161 = vpop.f32.mrb[0].mxu0
  %v162 = vadd.f32 0.0, %v161
  %v163 = vpop.f32.mrb[0].mxu0
  %v164 = vpop.f32.mrb[0].mxu0
  %165 = vdwg.mxu0
  %v166 = vld [vmem:[%s2] sm:$0xf]
  %v168 = vlaneseq
  %v169 = vshrl.u32 %v168, 7
  %v170 = vsub.s32 0, %v169
  %v171 = vrot.slane %v166, %v170
  %v172 = vlaneseq
  %v173 = vshrl.u32 %v172, 7
  %v174 = vsub.s32 1, %v173
  %v175 = vrot.slane %v166, %v174
  %v176 = vlaneseq
  %v177 = vshrl.u32 %v176, 7
  %v178 = vsub.s32 2, %v177
  %v179 = vrot.slane %v166, %v178
  %v180 = vlaneseq
  %v181 = vshrl.u32 %v180, 7
  %v182 = vsub.s32 3, %v181
  %v183 = vrot.slane %v166, %v182
  %v188 = vmul.f32 %v119, %v171
  %v189 = vmul.f32 %v121, %v175
  %v190 = vmul.f32 %v160, %v179
  %v191 = vmul.f32 %v162, %v183
  %v192 = vld [vmem:[%s3] sm:$0xf]
  %v194 = vlaneseq
  %v195 = vshrl.u32 %v194, 7
  %v196 = vsub.s32 0, %v195
  %v197 = vrot.slane %v192, %v196
  %v198 = vlaneseq
  %v199 = vshrl.u32 %v198, 7
  %v200 = vsub.s32 1, %v199
  %v201 = vrot.slane %v192, %v200
  %v202 = vlaneseq
  %v203 = vshrl.u32 %v202, 7
  %v204 = vsub.s32 2, %v203
  %v205 = vrot.slane %v192, %v204
  %v206 = vlaneseq
  %v207 = vshrl.u32 %v206, 7
  %v208 = vsub.s32 3, %v207
  %v209 = vrot.slane %v192, %v208
  %v214 = vadd.f32 %v188, %v197
  %v215 = vadd.f32 %v189, %v201
  %v216 = vadd.f32 %v190, %v205
  %v217 = vadd.f32 %v191, %v209
  %v218 = vmax.f32 %v214, 0.0
  %v219 = vmax.f32 %v215, 0.0
  %v220 = vmax.f32 %v216, 0.0
  %v221 = vmax.f32 %v217, 0.0
  %222 = vst.msk [vmem:[#allocation2] sm:$0xff] %vm80, 0.0
  %vm223 = vcmask 256000
  %224 = vst.msk [vmem:[#allocation2 + $0x8] sm:$0x7] %vm223, 0.0
  %225 = vst.msk [vmem:[#allocation2 + $0x10] sm:$0xff] %vm80, 0.0
  %226 = vst.msk [vmem:[#allocation2 + $0x18] sm:$0x7] %vm223, 0.0
  %227 = vst.msk [vmem:[#allocation2 + $0x20] sm:$0xff] %vm80, 0.0
  %228 = vst.msk [vmem:[#allocation2 + $0x28] sm:$0x7] %vm223, 0.0
  %229 = vst.msk [vmem:[#allocation2 + $0x30] sm:$0xff] %vm80, 0.0
  %230 = vst.msk [vmem:[#allocation2 + $0x38] sm:$0x7] %vm223, 0.0
  %231 = vst.msk [vmem:[#allocation2 + $0x40] sm:$0xff] %vm80, 0.0
  %232 = vst.msk [vmem:[#allocation2 + $0x48] sm:$0x7] %vm223, 0.0
  %233 = vst.msk [vmem:[#allocation2 + $0x50] sm:$0xff] %vm80, 0.0
  %234 = vst.msk [vmem:[#allocation2 + $0x58] sm:$0x7] %vm223, 0.0
  %235 = vst.msk [vmem:[#allocation2 + $0x60] sm:$0xff] %vm80, 0.0
  %236 = vst.msk [vmem:[#allocation2 + $0x68] sm:$0x7] %vm223, 0.0
  %237 = vst.msk [vmem:[#allocation2 + $0x70] sm:$0xff] %vm80, 0.0
  %238 = vst.msk [vmem:[#allocation2 + $0x78] sm:$0x7] %vm223, 0.0
  %239 = vst.msk [vmem:[#allocation2 + $0x80] sm:$0xff] %vm80, 0.0
  %240 = vst.msk [vmem:[#allocation2 + $0x88] sm:$0x7] %vm223, 0.0
  %241 = vst.msk [vmem:[#allocation2 + $0x90] sm:$0xff] %vm80, 0.0
  %242 = vst.msk [vmem:[#allocation2 + $0x98] sm:$0x7] %vm223, 0.0
  %243 = vst.msk [vmem:[#allocation2 + $0xa0] sm:$0xff] %vm80, 0.0
  %244 = vst.msk [vmem:[#allocation2 + $0xa8] sm:$0x7] %vm223, 0.0
  %245 = vst.msk [vmem:[#allocation2 + $0xb0] sm:$0xff] %vm80, 0.0
  %246 = vst.msk [vmem:[#allocation2 + $0xb8] sm:$0x7] %vm223, 0.0
  %247 = vst.msk [vmem:[#allocation2 + $0xc0] sm:$0xff] %vm80, 0.0
  %248 = vst.msk [vmem:[#allocation2 + $0xc8] sm:$0x7] %vm223, 0.0
  %249 = vst.msk [vmem:[#allocation2 + $0xd0] sm:$0xff] %vm80, 0.0
  %250 = vst.msk [vmem:[#allocation2 + $0xd8] sm:$0x7] %vm223, 0.0
  %251 = vst.msk [vmem:[#allocation2 + $0xe0] sm:$0xff] %vm80, 0.0
  %252 = vst.msk [vmem:[#allocation2 + $0xe8] sm:$0x7] %vm223, 0.0
  %253 = vst.msk [vmem:[#allocation2 + $0xf0] sm:$0xff] %vm80, 0.0
  %254 = vst.msk [vmem:[#allocation2 + $0xf8] sm:$0x7] %vm223, 0.0
  %255 = vst.msk [vmem:[#allocation2 + $0x100] sm:$0xff] %vm80, 0.0
  %256 = vst.msk [vmem:[#allocation2 + $0x108] sm:$0x7] %vm223, 0.0
  %257 = vst.msk [vmem:[#allocation2 + $0x110] sm:$0xff] %vm80, 0.0
  %258 = vst.msk [vmem:[#allocation2 + $0x118] sm:$0x7] %vm223, 0.0
  %259 = vst.msk [vmem:[#allocation2 + $0x120] sm:$0xff] %vm80, 0.0
  %260 = vst.msk [vmem:[#allocation2 + $0x128] sm:$0x7] %vm223, 0.0
  %261 = vst.msk [vmem:[#allocation2 + $0x130] sm:$0xff] %vm80, 0.0
  %262 = vst.msk [vmem:[#allocation2 + $0x138] sm:$0x7] %vm223, 0.0
  %263 = vst.msk [vmem:[#allocation2 + $0x140] sm:$0xff] %vm80, 0.0
  %264 = vst.msk [vmem:[#allocation2 + $0x148] sm:$0x7] %vm223, 0.0
  %265 = vst.msk [vmem:[#allocation2 + $0x150] sm:$0xff] %vm80, 0.0
  %266 = vst.msk [vmem:[#allocation2 + $0x158] sm:$0x7] %vm223, 0.0
  %v269 = vunpack.c.l.s4 1966171168
  %v270 = vunpack.c.0.s8 %v269
  %v271 = vlaneseq
  %v272 = vshrl.u32 %v271, 7
  %v273 = vsub.s32 %v270, %v272
  %v274 = vrot.slane %v218, %v273
  %v275 = vcombine.high %v274, %v274
  %v277 = vunpack.c.l.s4 1966171168
  %v278 = vunpack.c.0.s8 %v277
  %v279 = vlaneseq
  %v280 = vshrl.u32 %v279, 7
  %v281 = vsub.s32 %v278, %v280
  %v282 = vrot.slane %v274, %v281
  %v284 = vunpack.c.l.s4 1966171168
  %v285 = vunpack.c.0.s8 %v284
  %v286 = vlaneseq
  %v287 = vshrl.u32 %v286, 7
  %v288 = vsub.s32 %v285, %v287
  %v289 = vrot.slane %v275, %v288
  %s292 = scalar_lea.vmem [#allocation2], 32
  %vm293 = vcmask 253952
  %294 = vst.msk [vmem:[%s292 + $0x2] sm:$0x1] %vm293, %v282
  %295 = vst.msk [vmem:[%s292 + $0xb2] sm:$0x1] %vm293, %v289
  %v296 = vlaneseq
  %v297 = vshrl.u32 %v296, 7
  %v298 = vsub.s32 0, %v297
  %v299 = vrot.slane %v282, %v298
  %v300 = vlaneseq
  %v301 = vshrl.u32 %v300, 7
  %v302 = vsub.s32 0, %v301
  %v303 = vrot.slane %v289, %v302
  %304 = vrot.lane.b32.xlu0 %v299, 96
  %v305 = vpop.permute.xlu0 %304
  %306 = vrot.lane.b32.xlu0 %v303, 96
  %v307 = vpop.permute.xlu0 %306
  %310 = vst.msk [vmem:[%s292 + $0x4] sm:$0x1] %vm293, %v305
  %311 = vst.msk [vmem:[%s292 + $0xb4] sm:$0x1] %vm293, %v307
  %312 = vrot.lane.b32.xlu0 %v299, 64
  %v313 = vpop.permute.xlu0 %312
  %314 = vrot.lane.b32.xlu0 %v303, 64
  %v315 = vpop.permute.xlu0 %314
  %318 = vst.msk [vmem:[%s292 + $0x6] sm:$0x1] %vm293, %v313
  %319 = vst.msk [vmem:[%s292 + $0xb6] sm:$0x1] %vm293, %v315
  %320 = vrot.lane.b32.xlu0 %v299, 32
  %v321 = vpop.permute.xlu0 %320
  %322 = vrot.lane.b32.xlu0 %v303, 32
  %v323 = vpop.permute.xlu0 %322
  %326 = vst.msk [vmem:[%s292 + $0x8] sm:$0x1] %vm293, %v321
  %327 = vst.msk [vmem:[%s292 + $0xb8] sm:$0x1] %vm293, %v323
  %v330 = vunpack.c.l.s4 1966171168
  %v331 = vunpack.c.0.s8 %v330
  %v332 = vlaneseq
  %v333 = vshrl.u32 %v332, 7
  %v334 = vsub.s32 %v331, %v333
  %v335 = vrot.slane %v219, %v334
  %v336 = vcombine.high %v335, %v335
  %v338 = vunpack.c.l.s4 1966171168
  %v339 = vunpack.c.0.s8 %v338
  %v340 = vlaneseq
  %v341 = vshrl.u32 %v340, 7
  %v342 = vsub.s32 %v339, %v341
  %v343 = vrot.slane %v335, %v342
  %v345 = vunpack.c.l.s4 1966171168
  %v346 = vunpack.c.0.s8 %v345
  %v347 = vlaneseq
  %v348 = vshrl.u32 %v347, 7
  %v349 = vsub.s32 %v346, %v348
  %v350 = vrot.slane %v336, %v349
  %s353 = scalar_lea.vmem [#allocation2], 64
  %354 = vst.msk [vmem:[%s353 + $0x2] sm:$0x1] %vm293, %v343
  %355 = vst.msk [vmem:[%s353 + $0xb2] sm:$0x1] %vm293, %v350
  %v356 = vlaneseq
  %v357 = vshrl.u32 %v356, 7
  %v358 = vsub.s32 0, %v357
  %v359 = vrot.slane %v343, %v358
  %v360 = vlaneseq
  %v361 = vshrl.u32 %v360, 7
  %v362 = vsub.s32 0, %v361
  %v363 = vrot.slane %v350, %v362
  %364 = vrot.lane.b32.xlu0 %v359, 96
  %v365 = vpop.permute.xlu0 %364
  %366 = vrot.lane.b32.xlu0 %v363, 96
  %v367 = vpop.permute.xlu0 %366
  %370 = vst.msk [vmem:[%s353 + $0x4] sm:$0x1] %vm293, %v365
  %371 = vst.msk [vmem:[%s353 + $0xb4] sm:$0x1] %vm293, %v367
  %372 = vrot.lane.b32.xlu0 %v359, 64
  %v373 = vpop.permute.xlu0 %372
  %374 = vrot.lane.b32.xlu0 %v363, 64
  %v375 = vpop.permute.xlu0 %374
  %378 = vst.msk [vmem:[%s353 + $0x6] sm:$0x1] %vm293, %v373
  %379 = vst.msk [vmem:[%s353 + $0xb6] sm:$0x1] %vm293, %v375
  %380 = vrot.lane.b32.xlu0 %v359, 32
  %v381 = vpop.permute.xlu0 %380
  %382 = vrot.lane.b32.xlu0 %v363, 32
  %v383 = vpop.permute.xlu0 %382
  %386 = vst.msk [vmem:[%s353 + $0x8] sm:$0x1] %vm293, %v381
  %387 = vst.msk [vmem:[%s353 + $0xb8] sm:$0x1] %vm293, %v383
  %v390 = vunpack.c.l.s4 1966171168
  %v391 = vunpack.c.0.s8 %v390
  %v392 = vlaneseq
  %v393 = vshrl.u32 %v392, 7
  %v394 = vsub.s32 %v391, %v393
  %v395 = vrot.slane %v220, %v394
  %v396 = vcombine.high %v395, %v395
  %v398 = vunpack.c.l.s4 1966171168
  %v399 = vunpack.c.0.s8 %v398
  %v400 = vlaneseq
  %v401 = vshrl.u32 %v400, 7
  %v402 = vsub.s32 %v399, %v401
  %v403 = vrot.slane %v395, %v402
  %v405 = vunpack.c.l.s4 1966171168
  %v406 = vunpack.c.0.s8 %v405
  %v407 = vlaneseq
  %v408 = vshrl.u32 %v407, 7
  %v409 = vsub.s32 %v406, %v408
  %v410 = vrot.slane %v396, %v409
  %s413 = scalar_lea.vmem [#allocation2], 96
  %414 = vst.msk [vmem:[%s413 + $0x2] sm:$0x1] %vm293, %v403
  %415 = vst.msk [vmem:[%s413 + $0xb2] sm:$0x1] %vm293, %v410
  %v416 = vlaneseq
  %v417 = vshrl.u32 %v416, 7
  %v418 = vsub.s32 0, %v417
  %v419 = vrot.slane %v403, %v418
  %v420 = vlaneseq
  %v421 = vshrl.u32 %v420, 7
  %v422 = vsub.s32 0, %v421
  %v423 = vrot.slane %v410, %v422
  %424 = vrot.lane.b32.xlu0 %v419, 96
  %v425 = vpop.permute.xlu0 %424
  %426 = vrot.lane.b32.xlu0 %v423, 96
  %v427 = vpop.permute.xlu0 %426
  %430 = vst.msk [vmem:[%s413 + $0x4] sm:$0x1] %vm293, %v425
  %431 = vst.msk [vmem:[%s413 + $0xb4] sm:$0x1] %vm293, %v427
  %432 = vrot.lane.b32.xlu0 %v419, 64
  %v433 = vpop.permute.xlu0 %432
  %434 = vrot.lane.b32.xlu0 %v423, 64
  %v435 = vpop.permute.xlu0 %434
  %438 = vst.msk [vmem:[%s413 + $0x6] sm:$0x1] %vm293, %v433
  %439 = vst.msk [vmem:[%s413 + $0xb6] sm:$0x1] %vm293, %v435
  %440 = vrot.lane.b32.xlu0 %v419, 32
  %v441 = vpop.permute.xlu0 %440
  %442 = vrot.lane.b32.xlu0 %v423, 32
  %v443 = vpop.permute.xlu0 %442
  %446 = vst.msk [vmem:[%s413 + $0x8] sm:$0x1] %vm293, %v441
  %447 = vst.msk [vmem:[%s413 + $0xb8] sm:$0x1] %vm293, %v443
  %v450 = vunpack.c.l.s4 1966171168
  %v451 = vunpack.c.0.s8 %v450
  %v452 = vlaneseq
  %v453 = vshrl.u32 %v452, 7
  %v454 = vsub.s32 %v451, %v453
  %v455 = vrot.slane %v221, %v454
  %v456 = vcombine.high %v455, %v455
  %v458 = vunpack.c.l.s4 1966171168
  %v459 = vunpack.c.0.s8 %v458
  %v460 = vlaneseq
  %v461 = vshrl.u32 %v460, 7
  %v462 = vsub.s32 %v459, %v461
  %v463 = vrot.slane %v455, %v462
  %v465 = vunpack.c.l.s4 1966171168
  %v466 = vunpack.c.0.s8 %v465
  %v467 = vlaneseq
  %v468 = vshrl.u32 %v467, 7
  %v469 = vsub.s32 %v466, %v468
  %v470 = vrot.slane %v456, %v469
  %s473 = scalar_lea.vmem [#allocation2], 128
  %474 = vst.msk [vmem:[%s473 + $0x2] sm:$0x1] %vm293, %v463
  %475 = vst.msk [vmem:[%s473 + $0xb2] sm:$0x1] %vm293, %v470
  %v476 = vlaneseq
  %v477 = vshrl.u32 %v476, 7
  %v478 = vsub.s32 0, %v477
  %v479 = vrot.slane %v463, %v478
  %v480 = vlaneseq
  %v481 = vshrl.u32 %v480, 7
  %v482 = vsub.s32 0, %v481
  %v483 = vrot.slane %v470, %v482
  %484 = vrot.lane.b32.xlu0 %v479, 96
  %v485 = vpop.permute.xlu0 %484
  %486 = vrot.lane.b32.xlu0 %v483, 96
  %v487 = vpop.permute.xlu0 %486
  %490 = vst.msk [vmem:[%s473 + $0x4] sm:$0x1] %vm293, %v485
  %491 = vst.msk [vmem:[%s473 + $0xb4] sm:$0x1] %vm293, %v487
  %492 = vrot.lane.b32.xlu0 %v479, 64
  %v493 = vpop.permute.xlu0 %492
  %494 = vrot.lane.b32.xlu0 %v483, 64
  %v495 = vpop.permute.xlu0 %494
  %498 = vst.msk [vmem:[%s473 + $0x6] sm:$0x1] %vm293, %v493
  %499 = vst.msk [vmem:[%s473 + $0xb6] sm:$0x1] %vm293, %v495
  %500 = vrot.lane.b32.xlu0 %v479, 32
  %v501 = vpop.permute.xlu0 %500
  %502 = vrot.lane.b32.xlu0 %v483, 32
  %v503 = vpop.permute.xlu0 %502
  %506 = vst.msk [vmem:[%s473 + $0x8] sm:$0x1] %vm293, %v501
  %507 = vst.msk [vmem:[%s473 + $0xb8] sm:$0x1] %vm293, %v503
  %v508 = vld [vmem:[#allocation2] sm:$0xff]
  %s509 = scalar_lea.vmem [#allocation2], 16
  %v510 = vld [vmem:[%s509] sm:$0xff]
  %v511 = vld [vmem:[%s292] sm:$0xff]
  %s512 = scalar_lea.vmem [#allocation2], 48
  %v513 = vld [vmem:[%s512] sm:$0xff]
  %v514 = vld [vmem:[%s353] sm:$0xff]
  %s515 = scalar_lea.vmem [#allocation2], 80
  %v516 = vld [vmem:[%s515] sm:$0xff]
  %v517 = vld [vmem:[%s413] sm:$0xff]
  %s518 = scalar_lea.vmem [#allocation2], 112
  %v519 = vld [vmem:[%s518] sm:$0xff]
  %s520 = scalar_lea.vmem [#allocation2], 176
  %v521 = vld [vmem:[%s520] sm:$0xff]
  %s522 = scalar_lea.vmem [#allocation2], 192
  %v523 = vld [vmem:[%s522] sm:$0xff]
  %s524 = scalar_lea.vmem [#allocation2], 208
  %v525 = vld [vmem:[%s524] sm:$0xff]
  %s526 = scalar_lea.vmem [#allocation2], 224
  %v527 = vld [vmem:[%s526] sm:$0xff]
  %s528 = scalar_lea.vmem [#allocation2], 240
  %v529 = vld [vmem:[%s528] sm:$0xff]
  %s530 = scalar_lea.vmem [#allocation2], 256
  %v531 = vld [vmem:[%s530] sm:$0xff]
  %s532 = scalar_lea.vmem [#allocation2], 272
  %v533 = vld [vmem:[%s532] sm:$0xff]
  %s534 = scalar_lea.vmem [#allocation2], 288
  %v535 = vld [vmem:[%s534] sm:$0xff]
  %v536 = vpack.c.bf16 %v510, %v508
  %v537 = vpack.c.bf16 %v513, %v511
  %v538 = vpack.c.bf16 %v516, %v514
  %v539 = vpack.c.bf16 %v519, %v517
  %v540 = vpack.c.bf16 %v523, %v521
  %v541 = vpack.c.bf16 %v527, %v525
  %v542 = vpack.c.bf16 %v531, %v529
  %v543 = vpack.c.bf16 %v535, %v533
  %v544 = vld [vmem:[%s4] sm:$0xf]
  %v545 = vld [vmem:[%s4 + $0x4] sm:$0xf]
  %v546 = vld [vmem:[%s4 + $0x8] sm:$0xf]
  %v547 = vld [vmem:[%s4 + $0xc] sm:$0xf]
  %v548 = vld [vmem:[#allocation2 + $0x1] sm:$0xff]
  %v549 = vld [vmem:[%s509 + $0x1] sm:$0xff]
  %v550 = vld [vmem:[%s292 + $0x1] sm:$0xff]
  %v551 = vld [vmem:[%s512 + $0x1] sm:$0xff]
  %v552 = vld [vmem:[%s353 + $0x1] sm:$0xff]
  %v553 = vld [vmem:[%s515 + $0x1] sm:$0xff]
  %v554 = vld [vmem:[%s413 + $0x1] sm:$0xff]
  %v555 = vld [vmem:[%s518 + $0x1] sm:$0xff]
  %v556 = vld [vmem:[%s520 + $0x1] sm:$0xff]
  %v557 = vld [vmem:[%s522 + $0x1] sm:$0xff]
  %v558 = vld [vmem:[%s524 + $0x1] sm:$0xff]
  %v559 = vld [vmem:[%s526 + $0x1] sm:$0xff]
  %v560 = vld [vmem:[%s528 + $0x1] sm:$0xff]
  %v561 = vld [vmem:[%s530 + $0x1] sm:$0xff]
  %v562 = vld [vmem:[%s532 + $0x1] sm:$0xff]
  %v563 = vld [vmem:[%s534 + $0x1] sm:$0xff]
  %v564 = vpack.c.bf16 %v549, %v548
  %v565 = vpack.c.bf16 %v551, %v550
  %v566 = vpack.c.bf16 %v553, %v552
  %v567 = vpack.c.bf16 %v555, %v554
  %v568 = vpack.c.bf16 %v557, %v556
  %v569 = vpack.c.bf16 %v559, %v558
  %v570 = vpack.c.bf16 %v561, %v560
  %v571 = vpack.c.bf16 %v563, %v562
  %s572 = scalar_lea.vmem %s4, 16
  %v573 = vld [vmem:[%s572] sm:$0xf]
  %v574 = vld [vmem:[%s572 + $0x4] sm:$0xf]
  %v575 = vld [vmem:[%s572 + $0x8] sm:$0xf]
  %v576 = vld [vmem:[%s572 + $0xc] sm:$0xf]
  %v581 = vunpack.c.l.b16 %v573
  %v582 = vunpack.c.l.b16 %v574
  %v583 = vunpack.c.l.b16 %v575
  %v584 = vunpack.c.l.b16 %v576
  %v585 = vpack.c.b16 %v582, %v581
  %v586 = vpack.c.b16 %v584, %v583
  %v590 = vsel %vm80, %v564, 0
  %v593 = vsel %vm80, %v565, 0
  %v596 = vsel %vm80, %v566, 0
  %v599 = vsel %vm80, %v567, 0
  %v602 = vsel %vm80, %v568, 0
  %v605 = vsel %vm80, %v569, 0
  %v608 = vsel %vm80, %v570, 0
  %v611 = vsel %vm80, %v571, 0
  %613 = vmatprep.subr.bf16.mxu0 0
  %614 = vmatpush1.bf16.msra.mxu0 %v585
  %615 = vmatprep.subr.bf16.mxu0 0
  %616 = vmatpush1.bf16.msra.mxu0 %v586
  %617 = vmatprep.subr.bf16.mxu0 0
  %618 = vmatpush1.bf16.msra.mxu0 0
  %619 = vmatprep.subr.bf16.mxu0 0
  %620 = vmatpush1.bf16.msra.mxu0 0
  %621 = vmatprep.subr.bf16.mxu0 0
  %622 = vmatpush1.bf16.msra.mxu0 0
  %623 = vmatprep.subr.bf16.mxu0 0
  %624 = vmatpush1.bf16.msra.mxu0 0
  %625 = vmatprep.subr.bf16.mxu0 0
  %626 = vmatpush1.bf16.msra.mxu0 0
  %627 = vmatprep.subr.bf16.mxu0 0
  %628 = vmatpush1.bf16.msra.mxu0 0
  %629 = vmatprep.subr.bf16.mxu0 0
  %630 = vmatpush1.bf16.msra.mxu0 0
  %631 = vmatprep.subr.bf16.mxu0 0
  %632 = vmatpush1.bf16.msra.mxu0 0
  %633 = vmatprep.subr.bf16.mxu0 0
  %634 = vmatpush1.bf16.msra.mxu0 0
  %635 = vmatprep.subr.bf16.mxu0 0
  %636 = vmatpush1.bf16.msra.mxu0 0
  %637 = vmatprep.subr.bf16.mxu0 0
  %638 = vmatpush1.bf16.msra.mxu0 0
  %639 = vmatprep.subr.bf16.mxu0 0
  %640 = vmatpush1.bf16.msra.mxu0 0
  %641 = vmatprep.subr.bf16.mxu0 0
  %642 = vmatpush1.bf16.msra.mxu0 0
  %643 = vmatprep.subr.bf16.mxu0 0
  %644 = vmatpush1.bf16.msra.mxu0 0
  %645 = vmatprep.mubr.bf16.mxu0 0
  %646 = vmatmul.mubr.bf16.gmra.mrb[0].mxu0 %v590
  %v647 = vpop.f32.mrb[0].mxu0
  %v648 = vadd.f32 0.0, %v647
  %v649 = vpop.f32.mrb[0].mxu0
  %v650 = vpop.f32.mrb[0].mxu0
  %v651 = vadd.f32 0.0, %v650
  %v652 = vpop.f32.mrb[0].mxu0
  %653 = vmatprep.mubr.bf16.mxu0 0
  %654 = vmatmul.mubr.bf16.gmra.mrb[0].mxu0 %v593
  %v655 = vpop.f32.mrb[0].mxu0
  %v656 = vadd.f32 0.0, %v655
  %v657 = vpop.f32.mrb[0].mxu0
  %v658 = vpop.f32.mrb[0].mxu0
  %v659 = vadd.f32 0.0, %v658
  %v660 = vpop.f32.mrb[0].mxu0
  %661 = vmatprep.mubr.bf16.mxu0 0
  %662 = vmatmul.mubr.bf16.gmra.mrb[0].mxu0 %v596
  %v663 = vpop.f32.mrb[0].mxu0
  %v664 = vadd.f32 0.0, %v663
  %v665 = vpop.f32.mrb[0].mxu0
  %v666 = vpop.f32.mrb[0].mxu0
  %v667 = vadd.f32 0.0, %v666
  %v668 = vpop.f32.mrb[0].mxu0
  %669 = vmatprep.mubr.bf16.mxu0 0
  %670 = vmatmul.mubr.bf16.gmra.mrb[0].mxu0 %v599
  %v671 = vpop.f32.mrb[0].mxu0
  %v672 = vadd.f32 0.0, %v671
  %v673 = vpop.f32.mrb[0].mxu0
  %v674 = vpop.f32.mrb[0].mxu0
  %v675 = vadd.f32 0.0, %v674
  %v676 = vpop.f32.mrb[0].mxu0
  %677 = vmatprep.mubr.bf16.mxu0 0
  %678 = vmatmul.mubr.bf16.gmra.mrb[0].mxu0 %v602
  %v679 = vpop.f32.mrb[0].mxu0
  %v680 = vadd.f32 0.0, %v679
  %v681 = vpop.f32.mrb[0].mxu0
  %v682 = vpop.f32.mrb[0].mxu0
  %v683 = vadd.f32 0.0, %v682
  %v684 = vpop.f32.mrb[0].mxu0
  %685 = vmatprep.mubr.bf16.mxu0 0
  %686 = vmatmul.mubr.bf16.gmra.mrb[0].mxu0 %v605
  %v687 = vpop.f32.mrb[0].mxu0
  %v688 = vadd.f32 0.0, %v687
  %v689 = vpop.f32.mrb[0].mxu0
  %v690 = vpop.f32.mrb[0].mxu0
  %v691 = vadd.f32 0.0, %v690
  %v692 = vpop.f32.mrb[0].mxu0
  %693 = vmatprep.mubr.bf16.mxu0 0
  %694 = vmatmul.mubr.bf16.gmra.mrb[0].mxu0 %v608
  %v695 = vpop.f32.mrb[0].mxu0
  %v696 = vadd.f32 0.0, %v695
  %v697 = vpop.f32.mrb[0].mxu0
  %v698 = vpop.f32.mrb[0].mxu0
  %v699 = vadd.f32 0.0, %v698
  %v700 = vpop.f32.mrb[0].mxu0
  %701 = vmatprep.mubr.bf16.mxu0 0
  %702 = vmatmul.mubr.bf16.gmra.mrb[0].mxu0 %v611
  %v703 = vpop.f32.mrb[0].mxu0
  %v704 = vadd.f32 0.0, %v703
  %v705 = vpop.f32.mrb[0].mxu0
  %v706 = vpop.f32.mrb[0].mxu0
  %v707 = vadd.f32 0.0, %v706
  %v708 = vpop.f32.mrb[0].mxu0
  %709 = vdwg.mxu0
  %v714 = vunpack.c.l.b16 %v544
  %v715 = vunpack.c.l.b16 %v545
  %v716 = vunpack.c.l.b16 %v546
  %v717 = vunpack.c.l.b16 %v547
  %v718 = vpack.c.b16 %v715, %v714
  %v719 = vpack.c.b16 %v717, %v716
  %v723 = vsel %vm80, %v536, 0
  %v726 = vsel %vm80, %v537, 0
  %v729 = vsel %vm80, %v538, 0
  %v732 = vsel %vm80, %v539, 0
  %v735 = vsel %vm80, %v540, 0
  %v738 = vsel %vm80, %v541, 0
  %v741 = vsel %vm80, %v542, 0
  %v744 = vsel %vm80, %v543, 0
  %746 = vmatprep.subr.bf16.mxu0 0
  %747 = vmatpush1.bf16.msra.mxu0 %v718
  %748 = vmatprep.subr.bf16.mxu0 0
  %749 = vmatpush1.bf16.msra.mxu0 %v719
  %750 = vmatprep.subr.bf16.mxu0 0
  %751 = vmatpush1.bf16.msra.mxu0 0
  %752 = vmatprep.subr.bf16.mxu0 0
  %753 = vmatpush1.bf16.msra.mxu0 0
  %754 = vmatprep.subr.bf16.mxu0 0
  %755 = vmatpush1.bf16.msra.mxu0 0
  %756 = vmatprep.subr.bf16.mxu0 0
  %757 = vmatpush1.bf16.msra.mxu0 0
  %758 = vmatprep.subr.bf16.mxu0 0
  %759 = vmatpush1.bf16.msra.mxu0 0
  %760 = vmatprep.subr.bf16.mxu0 0
  %761 = vmatpush1.bf16.msra.mxu0 0
  %762 = vmatprep.subr.bf16.mxu0 0
  %763 = vmatpush1.bf16.msra.mxu0 0
  %764 = vmatprep.subr.bf16.mxu0 0
  %765 = vmatpush1.bf16.msra.mxu0 0
  %766 = vmatprep.subr.bf16.mxu0 0
  %767 = vmatpush1.bf16.msra.mxu0 0
  %768 = vmatprep.subr.bf16.mxu0 0
  %769 = vmatpush1.bf16.msra.mxu0 0
  %770 = vmatprep.subr.bf16.mxu0 0
  %771 = vmatpush1.bf16.msra.mxu0 0
  %772 = vmatprep.subr.bf16.mxu0 0
  %773 = vmatpush1.bf16.msra.mxu0 0
  %774 = vmatprep.subr.bf16.mxu0 0
  %775 = vmatpush1.bf16.msra.mxu0 0
  %776 = vmatprep.subr.bf16.mxu0 0
  %777 = vmatpush1.bf16.msra.mxu0 0
  %778 = vmatprep.mubr.bf16.mxu0 0
  %779 = vmatmul.mubr.bf16.gmra.mrb[0].mxu0 %v723
  %v780 = vpop.f32.mrb[0].mxu0
  %v781 = vadd.f32 %v648, %v780
  %v782 = vpop.f32.mrb[0].mxu0
  %v783 = vpop.f32.mrb[0].mxu0
  %v784 = vadd.f32 %v651, %v783
  %v785 = vpop.f32.mrb[0].mxu0
  %786 = vmatprep.mubr.bf16.mxu0 0
  %787 = vmatmul.mubr.bf16.gmra.mrb[0].mxu0 %v726
  %v788 = vpop.f32.mrb[0].mxu0
  %v789 = vadd.f32 %v656, %v788
  %v790 = vpop.f32.mrb[0].mxu0
  %v791 = vpop.f32.mrb[0].mxu0
  %v792 = vadd.f32 %v659, %v791
  %v793 = vpop.f32.mrb[0].mxu0
  %794 = vmatprep.mubr.bf16.mxu0 0
  %795 = vmatmul.mubr.bf16.gmra.mrb[0].mxu0 %v729
  %v796 = vpop.f32.mrb[0].mxu0
  %v797 = vadd.f32 %v664, %v796
  %v798 = vpop.f32.mrb[0].mxu0
  %v799 = vpop.f32.mrb[0].mxu0
  %v800 = vadd.f32 %v667, %v799
  %v801 = vpop.f32.mrb[0].mxu0
  %802 = vmatprep.mubr.bf16.mxu0 0
  %803 = vmatmul.mubr.bf16.gmra.mrb[0].mxu0 %v732
  %v804 = vpop.f32.mrb[0].mxu0
  %v805 = vadd.f32 %v672, %v804
  %v806 = vpop.f32.mrb[0].mxu0
  %v807 = vpop.f32.mrb[0].mxu0
  %v808 = vadd.f32 %v675, %v807
  %v809 = vpop.f32.mrb[0].mxu0
  %810 = vmatprep.mubr.bf16.mxu0 0
  %811 = vmatmul.mubr.bf16.gmra.mrb[0].mxu0 %v735
  %v812 = vpop.f32.mrb[0].mxu0
  %v813 = vadd.f32 %v680, %v812
  %v814 = vpop.f32.mrb[0].mxu0
  %v815 = vpop.f32.mrb[0].mxu0
  %v816 = vadd.f32 %v683, %v815
  %v817 = vpop.f32.mrb[0].mxu0
  %818 = vmatprep.mubr.bf16.mxu0 0
  %819 = vmatmul.mubr.bf16.gmra.mrb[0].mxu0 %v738
  %v820 = vpop.f32.mrb[0].mxu0
  %v821 = vadd.f32 %v688, %v820
  %v822 = vpop.f32.mrb[0].mxu0
  %v823 = vpop.f32.mrb[0].mxu0
  %v824 = vadd.f32 %v691, %v823
  %v825 = vpop.f32.mrb[0].mxu0
  %826 = vmatprep.mubr.bf16.mxu0 0
  %827 = vmatmul.mubr.bf16.gmra.mrb[0].mxu0 %v741
  %v828 = vpop.f32.mrb[0].mxu0
  %v829 = vadd.f32 %v696, %v828
  %v830 = vpop.f32.mrb[0].mxu0
  %v831 = vpop.f32.mrb[0].mxu0
  %v832 = vadd.f32 %v699, %v831
  %v833 = vpop.f32.mrb[0].mxu0
  %834 = vmatprep.mubr.bf16.mxu0 0
  %835 = vmatmul.mubr.bf16.gmra.mrb[0].mxu0 %v744
  %v836 = vpop.f32.mrb[0].mxu0
  %v837 = vadd.f32 %v704, %v836
  %v838 = vpop.f32.mrb[0].mxu0
  %v839 = vpop.f32.mrb[0].mxu0
  %v840 = vadd.f32 %v707, %v839
  %v841 = vpop.f32.mrb[0].mxu0
  %842 = vdwg.mxu0
  %v843 = vld [vmem:[#allocation2 + $0x2] sm:$0xff]
  %v844 = vld [vmem:[%s509 + $0x2] sm:$0xff]
  %v845 = vld [vmem:[%s292 + $0x2] sm:$0xff]
  %v846 = vld [vmem:[%s512 + $0x2] sm:$0xff]
  %v847 = vld [vmem:[%s353 + $0x2] sm:$0xff]
  %v848 = vld [vmem:[%s515 + $0x2] sm:$0xff]
  %v849 = vld [vmem:[%s413 + $0x2] sm:$0xff]
  %v850 = vld [vmem:[%s518 + $0x2] sm:$0xff]
  %v851 = vld [vmem:[%s520 + $0x2] sm:$0xff]
  %v852 = vld [vmem:[%s522 + $0x2] sm:$0xff]
  %v853 = vld [vmem:[%s524 + $0x2] sm:$0xff]
  %v854 = vld [vmem:[%s526 + $0x2] sm:$0xff]
  %v855 = vld [vmem:[%s528 + $0x2] sm:$0xff]
  %v856 = vld [vmem:[%s530 + $0x2] sm:$0xff]
  %v857 = vld [vmem:[%s532 + $0x2] sm:$0xff]
  %v858 = vld [vmem:[%s534 + $0x2] sm:$0xff]
  %v859 = vpack.c.bf16 %v844, %v843
  %v860 = vpack.c.bf16 %v846, %v845
  %v861 = vpack.c.bf16 %v848, %v847
  %v862 = vpack.c.bf16 %v850, %v849
  %v863 = vpack.c.bf16 %v852, %v851
  %v864 = vpack.c.bf16 %v854, %v853
  %v865 = vpack.c.bf16 %v856, %v855
  %v866 = vpack.c.bf16 %v858, %v857
  %s867 = scalar_lea.vmem %s4, 32
  %v868 = vld [vmem:[%s867] sm:$0xf]
  %v869 = vld [vmem:[%s867 + $0x4] sm:$0xf]
  %v870 = vld [vmem:[%s867 + $0x8] sm:$0xf]
  %v871 = vld [vmem:[%s867 + $0xc] sm:$0xf]
  %v876 = vunpack.c.l.b16 %v868
  %v877 = vunpack.c.l.b16 %v869
  %v878 = vunpack.c.l.b16 %v870
  %v879 = vunpack.c.l.b16 %v871
  %v880 = vpack.c.b16 %v877, %v876
  %v881 = vpack.c.b16 %v879, %v878
  %v885 = vsel %vm80, %v859, 0
  %v888 = vsel %vm80, %v860, 0
  %v891 = vsel %vm80, %v861, 0
  %v894 = vsel %vm80, %v862, 0
  %v897 = vsel %vm80, %v863, 0
  %v900 = vsel %vm80, %v864, 0
  %v903 = vsel %vm80, %v865, 0
  %v906 = vsel %vm80, %v866, 0
  %908 = vmatprep.subr.bf16.mxu0 0
  %909 = vmatpush1.bf16.msra.mxu0 %v880
  %910 = vmatprep.subr.bf16.mxu0 0
  %911 = vmatpush1.bf16.msra.mxu0 %v881
  %912 = vmatprep.subr.bf16.mxu0 0
  %913 = vmatpush1.bf16.msra.mxu0 0
  %914 = vmatprep.subr.bf16.mxu0 0
  %915 = vmatpush1.bf16.msra.mxu0 0
  %916 = vmatprep.subr.bf16.mxu0 0
  %917 = vmatpush1.bf16.msra.mxu0 0
  %918 = vmatprep.subr.bf16.mxu0 0
  %919 = vmatpush1.bf16.msra.mxu0 0
  %920 = vmatprep.subr.bf16.mxu0 0
  %921 = vmatpush1.bf16.msra.mxu0 0
  %922 = vmatprep.subr.bf16.mxu0 0
  %923 = vmatpush1.bf16.msra.mxu0 0
  %924 = vmatprep.subr.bf16.mxu0 0
  %925 = vmatpush1.bf16.msra.mxu0 0
  %926 = vmatprep.subr.bf16.mxu0 0
  %927 = vmatpush1.bf16.msra.mxu0 0
  %928 = vmatprep.subr.bf16.mxu0 0
  %929 = vmatpush1.bf16.msra.mxu0 0
  %930 = vmatprep.subr.bf16.mxu0 0
  %931 = vmatpush1.bf16.msra.mxu0 0
  %932 = vmatprep.subr.bf16.mxu0 0
  %933 = vmatpush1.bf16.msra.mxu0 0
  %934 = vmatprep.subr.bf16.mxu0 0
  %935 = vmatpush1.bf16.msra.mxu0 0
  %936 = vmatprep.subr.bf16.mxu0 0
  %937 = vmatpush1.bf16.msra.mxu0 0
  %938 = vmatprep.subr.bf16.mxu0 0
  %939 = vmatpush1.bf16.msra.mxu0 0
  %940 = vmatprep.mubr.bf16.mxu0 0
  %941 = vmatmul.mubr.bf16.gmra.mrb[0].mxu0 %v885
  %v942 = vpop.f32.mrb[0].mxu0
  %v943 = vadd.f32 0.0, %v942
  %v944 = vpop.f32.mrb[0].mxu0
  %v945 = vpop.f32.mrb[0].mxu0
  %v946 = vadd.f32 0.0, %v945
  %v947 = vpop.f32.mrb[0].mxu0
  %948 = vmatprep.mubr.bf16.mxu0 0
  %949 = vmatmul.mubr.bf16.gmra.mrb[0].mxu0 %v888
  %v950 = vpop.f32.mrb[0].mxu0
  %v951 = vadd.f32 0.0, %v950
  %v952 = vpop.f32.mrb[0].mxu0
  %v953 = vpop.f32.mrb[0].mxu0
  %v954 = vadd.f32 0.0, %v953
  %v955 = vpop.f32.mrb[0].mxu0
  %956 = vmatprep.mubr.bf16.mxu0 0
  %957 = vmatmul.mubr.bf16.gmra.mrb[0].mxu0 %v891
  %v958 = vpop.f32.mrb[0].mxu0
  %v959 = vadd.f32 0.0, %v958
  %v960 = vpop.f32.mrb[0].mxu0
  %v961 = vpop.f32.mrb[0].mxu0
  %v962 = vadd.f32 0.0, %v961
  %v963 = vpop.f32.mrb[0].mxu0
  %964 = vmatprep.mubr.bf16.mxu0 0
  %965 = vmatmul.mubr.bf16.gmra.mrb[0].mxu0 %v894
  %v966 = vpop.f32.mrb[0].mxu0
  %v967 = vadd.f32 0.0, %v966
  %v968 = vpop.f32.mrb[0].mxu0
  %v969 = vpop.f32.mrb[0].mxu0
  %v970 = vadd.f32 0.0, %v969
  %v971 = vpop.f32.mrb[0].mxu0
  %972 = vmatprep.mubr.bf16.mxu0 0
  %973 = vmatmul.mubr.bf16.gmra.mrb[0].mxu0 %v897
  %v974 = vpop.f32.mrb[0].mxu0
  %v975 = vadd.f32 0.0, %v974
  %v976 = vpop.f32.mrb[0].mxu0
  %v977 = vpop.f32.mrb[0].mxu0
  %v978 = vadd.f32 0.0, %v977
  %v979 = vpop.f32.mrb[0].mxu0
  %980 = vmatprep.mubr.bf16.mxu0 0
  %981 = vmatmul.mubr.bf16.gmra.mrb[0].mxu0 %v900
  %v982 = vpop.f32.mrb[0].mxu0
  %v983 = vadd.f32 0.0, %v982
  %v984 = vpop.f32.mrb[0].mxu0
  %v985 = vpop.f32.mrb[0].mxu0
  %v986 = vadd.f32 0.0, %v985
  %v987 = vpop.f32.mrb[0].mxu0
  %988 = vmatprep.mubr.bf16.mxu0 0
  %989 = vmatmul.mubr.bf16.gmra.mrb[0].mxu0 %v903
  %v990 = vpop.f32.mrb[0].mxu0
  %v991 = vadd.f32 0.0, %v990
  %v992 = vpop.f32.mrb[0].mxu0
  %v993 = vpop.f32.mrb[0].mxu0
  %v994 = vadd.f32 0.0, %v993
  %v995 = vpop.f32.mrb[0].mxu0
  %996 = vmatprep.mubr.bf16.mxu0 0
  %997 = vmatmul.mubr.bf16.gmra.mrb[0].mxu0 %v906
  %v998 = vpop.f32.mrb[0].mxu0
  %v999 = vadd.f32 0.0, %v998
  %v1000 = vpop.f32.mrb[0].mxu0
  %v1001 = vpop.f32.mrb[0].mxu0
  %v1002 = vadd.f32 0.0, %v1001
  %v1003 = vpop.f32.mrb[0].mxu0
  %1004 = vdwg.mxu0
  %v1005 = vadd.f32 %v781, %v943
  %v1006 = vadd.f32 %v784, %v946
  %v1007 = vadd.f32 %v789, %v951
  %v1008 = vadd.f32 %v792, %v954
  %v1009 = vadd.f32 %v797, %v959
  %v1010 = vadd.f32 %v800, %v962
  %v1011 = vadd.f32 %v805, %v967
  %v1012 = vadd.f32 %v808, %v970
  %v1013 = vadd.f32 %v813, %v975
  %v1014 = vadd.f32 %v816, %v978
  %v1015 = vadd.f32 %v821, %v983
  %v1016 = vadd.f32 %v824, %v986
  %v1017 = vadd.f32 %v829, %v991
  %v1018 = vadd.f32 %v832, %v994
  %v1019 = vadd.f32 %v837, %v999
  %v1020 = vadd.f32 %v840, %v1002
  %v1021 = vld [vmem:[#allocation2 + $0x3] sm:$0xff]
  %v1022 = vld [vmem:[%s509 + $0x3] sm:$0xff]
  %v1023 = vld [vmem:[%s292 + $0x3] sm:$0xff]
  %v1024 = vld [vmem:[%s512 + $0x3] sm:$0xff]
  %v1025 = vld [vmem:[%s353 + $0x3] sm:$0xff]
  %v1026 = vld [vmem:[%s515 + $0x3] sm:$0xff]
  %v1027 = vld [vmem:[%s413 + $0x3] sm:$0xff]
  %v1028 = vld [vmem:[%s518 + $0x3] sm:$0xff]
  %v1029 = vld [vmem:[%s520 + $0x3] sm:$0xff]
  %v1030 = vld [vmem:[%s522 + $0x3] sm:$0xff]
  %v1031 = vld [vmem:[%s524 + $0x3] sm:$0xff]
  %v1032 = vld [vmem:[%s526 + $0x3] sm:$0xff]
  %v1033 = vld [vmem:[%s528 + $0x3] sm:$0xff]
  %v1034 = vld [vmem:[%s530 + $0x3] sm:$0xff]
  %v1035 = vld [vmem:[%s532 + $0x3] sm:$0xff]
  %v1036 = vld [vmem:[%s534 + $0x3] sm:$0xff]
  %v1037 = vpack.c.bf16 %v1022, %v1021
  %v1038 = vpack.c.bf16 %v1024, %v1023
  %v1039 = vpack.c.bf16 %v1026, %v1025
  %v1040 = vpack.c.bf16 %v1028, %v1027
  %v1041 = vpack.c.bf16 %v1030, %v1029
  %v1042 = vpack.c.bf16 %v1032, %v1031
  %v1043 = vpack.c.bf16 %v1034, %v1033
  %v1044 = vpack.c.bf16 %v1036, %v1035
  %s1045 = scalar_lea.vmem %s4, 48
  %v1046 = vld [vmem:[%s1045] sm:$0xf]
  %v1047 = vld [vmem:[%s1045 + $0x4] sm:$0xf]
  %v1048 = vld [vmem:[%s1045 + $0x8] sm:$0xf]
  %v1049 = vld [vmem:[%s1045 + $0xc] sm:$0xf]
  %v1054 = vunpack.c.l.b16 %v1046
  %v1055 = vunpack.c.l.b16 %v1047
  %v1056 = vunpack.c.l.b16 %v1048
  %v1057 = vunpack.c.l.b16 %v1049
  %v1058 = vpack.c.b16 %v1055, %v1054
  %v1059 = vpack.c.b16 %v1057, %v1056
  %v1063 = vsel %vm80, %v1037, 0
  %v1066 = vsel %vm80, %v1038, 0
  %v1069 = vsel %vm80, %v1039, 0
  %v1072 = vsel %vm80, %v1040, 0
  %v1075 = vsel %vm80, %v1041, 0
  %v1078 = vsel %vm80, %v1042, 0
  %v1081 = vsel %vm80, %v1043, 0
  %v1084 = vsel %vm80, %v1044, 0
  %1086 = vmatprep.subr.bf16.mxu0 0
  %1087 = vmatpush1.bf16.msra.mxu0 %v1058
  %1088 = vmatprep.subr.bf16.mxu0 0
  %1089 = vmatpush1.bf16.msra.mxu0 %v1059
  %1090 = vmatprep.subr.bf16.mxu0 0
  %1091 = vmatpush1.bf16.msra.mxu0 0
  %1092 = vmatprep.subr.bf16.mxu0 0
  %1093 = vmatpush1.bf16.msra.mxu0 0
  %1094 = vmatprep.subr.bf16.mxu0 0
  %1095 = vmatpush1.bf16.msra.mxu0 0
  %1096 = vmatprep.subr.bf16.mxu0 0
  %1097 = vmatpush1.bf16.msra.mxu0 0
  %1098 = vmatprep.subr.bf16.mxu0 0
  %1099 = vmatpush1.bf16.msra.mxu0 0
  %1100 = vmatprep.subr.bf16.mxu0 0
  %1101 = vmatpush1.bf16.msra.mxu0 0
  %1102 = vmatprep.subr.bf16.mxu0 0
  %1103 = vmatpush1.bf16.msra.mxu0 0
  %1104 = vmatprep.subr.bf16.mxu0 0
  %1105 = vmatpush1.bf16.msra.mxu0 0
  %1106 = vmatprep.subr.bf16.mxu0 0
  %1107 = vmatpush1.bf16.msra.mxu0 0
  %1108 = vmatprep.subr.bf16.mxu0 0
  %1109 = vmatpush1.bf16.msra.mxu0 0
  %1110 = vmatprep.subr.bf16.mxu0 0
  %1111 = vmatpush1.bf16.msra.mxu0 0
  %1112 = vmatprep.subr.bf16.mxu0 0
  %1113 = vmatpush1.bf16.msra.mxu0 0
  %1114 = vmatprep.subr.bf16.mxu0 0
  %1115 = vmatpush1.bf16.msra.mxu0 0
  %1116 = vmatprep.subr.bf16.mxu0 0
  %1117 = vmatpush1.bf16.msra.mxu0 0
  %1118 = vmatprep.mubr.bf16.mxu0 0
  %1119 = vmatmul.mubr.bf16.gmra.mrb[0].mxu0 %v1063
  %v1120 = vpop.f32.mrb[0].mxu0
  %v1121 = vadd.f32 0.0, %v1120
  %v1122 = vpop.f32.mrb[0].mxu0
  %v1123 = vpop.f32.mrb[0].mxu0
  %v1124 = vadd.f32 0.0, %v1123
  %v1125 = vpop.f32.mrb[0].mxu0
  %1126 = vmatprep.mubr.bf16.mxu0 0
  %1127 = vmatmul.mubr.bf16.gmra.mrb[0].mxu0 %v1066
  %v1128 = vpop.f32.mrb[0].mxu0
  %v1129 = vadd.f32 0.0, %v1128
  %v1130 = vpop.f32.mrb[0].mxu0
  %v1131 = vpop.f32.mrb[0].mxu0
  %v1132 = vadd.f32 0.0, %v1131
  %v1133 = vpop.f32.mrb[0].mxu0
  %1134 = vmatprep.mubr.bf16.mxu0 0
  %1135 = vmatmul.mubr.bf16.gmra.mrb[0].mxu0 %v1069
  %v1136 = vpop.f32.mrb[0].mxu0
  %v1137 = vadd.f32 0.0, %v1136
  %v1138 = vpop.f32.mrb[0].mxu0
  %v1139 = vpop.f32.mrb[0].mxu0
  %v1140 = vadd.f32 0.0, %v1139
  %v1141 = vpop.f32.mrb[0].mxu0
  %1142 = vmatprep.mubr.bf16.mxu0 0
  %1143 = vmatmul.mubr.bf16.gmra.mrb[0].mxu0 %v1072
  %v1144 = vpop.f32.mrb[0].mxu0
  %v1145 = vadd.f32 0.0, %v1144
  %v1146 = vpop.f32.mrb[0].mxu0
  %v1147 = vpop.f32.mrb[0].mxu0
  %v1148 = vadd.f32 0.0, %v1147
  %v1149 = vpop.f32.mrb[0].mxu0
  %1150 = vmatprep.mubr.bf16.mxu0 0
  %1151 = vmatmul.mubr.bf16.gmra.mrb[0].mxu0 %v1075
  %v1152 = vpop.f32.mrb[0].mxu0
  %v1153 = vadd.f32 0.0, %v1152
  %v1154 = vpop.f32.mrb[0].mxu0
  %v1155 = vpop.f32.mrb[0].mxu0
  %v1156 = vadd.f32 0.0, %v1155
  %v1157 = vpop.f32.mrb[0].mxu0
  %1158 = vmatprep.mubr.bf16.mxu0 0
  %1159 = vmatmul.mubr.bf16.gmra.mrb[0].mxu0 %v1078
  %v1160 = vpop.f32.mrb[0].mxu0
  %v1161 = vadd.f32 0.0, %v1160
  %v1162 = vpop.f32.mrb[0].mxu0
  %v1163 = vpop.f32.mrb[0].mxu0
  %v1164 = vadd.f32 0.0, %v1163
  %v1165 = vpop.f32.mrb[0].mxu0
  %1166 = vmatprep.mubr.bf16.mxu0 0
  %1167 = vmatmul.mubr.bf16.gmra.mrb[0].mxu0 %v1081
  %v1168 = vpop.f32.mrb[0].mxu0
  %v1169 = vadd.f32 0.0, %v1168
  %v1170 = vpop.f32.mrb[0].mxu0
  %v1171 = vpop.f32.mrb[0].mxu0
  %v1172 = vadd.f32 0.0, %v1171
  %v1173 = vpop.f32.mrb[0].mxu0
  %1174 = vmatprep.mubr.bf16.mxu0 0
  %1175 = vmatmul.mubr.bf16.gmra.mrb[0].mxu0 %v1084
  %v1176 = vpop.f32.mrb[0].mxu0
  %v1177 = vadd.f32 0.0, %v1176
  %v1178 = vpop.f32.mrb[0].mxu0
  %v1179 = vpop.f32.mrb[0].mxu0
  %v1180 = vadd.f32 0.0, %v1179
  %v1181 = vpop.f32.mrb[0].mxu0
  %1182 = vdwg.mxu0
  %v1183 = vadd.f32 %v1005, %v1121
  %v1184 = vadd.f32 %v1006, %v1124
  %v1185 = vadd.f32 %v1007, %v1129
  %v1186 = vadd.f32 %v1008, %v1132
  %v1187 = vadd.f32 %v1009, %v1137
  %v1188 = vadd.f32 %v1010, %v1140
  %v1189 = vadd.f32 %v1011, %v1145
  %v1190 = vadd.f32 %v1012, %v1148
  %v1191 = vadd.f32 %v1013, %v1153
  %v1192 = vadd.f32 %v1014, %v1156
  %v1193 = vadd.f32 %v1015, %v1161
  %v1194 = vadd.f32 %v1016, %v1164
  %v1195 = vadd.f32 %v1017, %v1169
  %v1196 = vadd.f32 %v1018, %v1172
  %v1197 = vadd.f32 %v1019, %v1177
  %v1198 = vadd.f32 %v1020, %v1180
  %v1199 = vld [vmem:[%s473] sm:$0xff]
  %s1200 = scalar_lea.vmem [#allocation2], 304
  %v1201 = vld [vmem:[%s1200] sm:$0xff]
  %v1202 = vpack.c.bf16 %v511, %v510
  %v1203 = vpack.c.bf16 %v514, %v513
  %v1204 = vpack.c.bf16 %v517, %v516
  %v1205 = vpack.c.bf16 %v1199, %v519
  %v1206 = vpack.c.bf16 %v525, %v523
  %v1207 = vpack.c.bf16 %v529, %v527
  %v1208 = vpack.c.bf16 %v533, %v531
  %v1209 = vpack.c.bf16 %v1201, %v535
  %s1210 = scalar_lea.vmem %s4, 64
  %v1211 = vld [vmem:[%s1210] sm:$0xf]
  %v1212 = vld [vmem:[%s1210 + $0x4] sm:$0xf]
  %v1213 = vld [vmem:[%s1210 + $0x8] sm:$0xf]
  %v1214 = vld [vmem:[%s1210 + $0xc] sm:$0xf]
  %v1219 = vunpack.c.l.b16 %v1211
  %v1220 = vunpack.c.l.b16 %v1212
  %v1221 = vunpack.c.l.b16 %v1213
  %v1222 = vunpack.c.l.b16 %v1214
  %v1223 = vpack.c.b16 %v1220, %v1219
  %v1224 = vpack.c.b16 %v1222, %v1221
  %v1228 = vsel %vm80, %v1202, 0
  %v1231 = vsel %vm80, %v1203, 0
  %v1234 = vsel %vm80, %v1204, 0
  %v1237 = vsel %vm80, %v1205, 0
  %v1240 = vsel %vm80, %v1206, 0
  %v1243 = vsel %vm80, %v1207, 0
  %v1246 = vsel %vm80, %v1208, 0
  %v1249 = vsel %vm80, %v1209, 0
  %1251 = vmatprep.subr.bf16.mxu0 0
  %1252 = vmatpush1.bf16.msra.mxu0 %v1223
  %1253 = vmatprep.subr.bf16.mxu0 0
  %1254 = vmatpush1.bf16.msra.mxu0 %v1224
  %1255 = vmatprep.subr.bf16.mxu0 0
  %1256 = vmatpush1.bf16.msra.mxu0 0
  %1257 = vmatprep.subr.bf16.mxu0 0
  %1258 = vmatpush1.bf16.msra.mxu0 0
  %1259 = vmatprep.subr.bf16.mxu0 0
  %1260 = vmatpush1.bf16.msra.mxu0 0
  %1261 = vmatprep.subr.bf16.mxu0 0
  %1262 = vmatpush1.bf16.msra.mxu0 0
  %1263 = vmatprep.subr.bf16.mxu0 0
  %1264 = vmatpush1.bf16.msra.mxu0 0
  %1265 = vmatprep.subr.bf16.mxu0 0
  %1266 = vmatpush1.bf16.msra.mxu0 0
  %1267 = vmatprep.subr.bf16.mxu0 0
  %1268 = vmatpush1.bf16.msra.mxu0 0
  %1269 = vmatprep.subr.bf16.mxu0 0
  %1270 = vmatpush1.bf16.msra.mxu0 0
  %1271 = vmatprep.subr.bf16.mxu0 0
  %1272 = vmatpush1.bf16.msra.mxu0 0
  %1273 = vmatprep.subr.bf16.mxu0 0
  %1274 = vmatpush1.bf16.msra.mxu0 0
  %1275 = vmatprep.subr.bf16.mxu0 0
  %1276 = vmatpush1.bf16.msra.mxu0 0
  %1277 = vmatprep.subr.bf16.mxu0 0
  %1278 = vmatpush1.bf16.msra.mxu0 0
  %1279 = vmatprep.subr.bf16.mxu0 0
  %1280 = vmatpush1.bf16.msra.mxu0 0
  %1281 = vmatprep.subr.bf16.mxu0 0
  %1282 = vmatpush1.bf16.msra.mxu0 0
  %1283 = vmatprep.mubr.bf16.mxu0 0
  %1284 = vmatmul.mubr.bf16.gmra.mrb[0].mxu0 %v1228
  %v1285 = vpop.f32.mrb[0].mxu0
  %v1286 = vadd.f32 0.0, %v1285
  %v1287 = vpop.f32.mrb[0].mxu0
  %v1288 = vpop.f32.mrb[0].mxu0
  %v1289 = vadd.f32 0.0, %v1288
  %v1290 = vpop.f32.mrb[0].mxu0
  %1291 = vmatprep.mubr.bf16.mxu0 0
  %1292 = vmatmul.mubr.bf16.gmra.mrb[0].mxu0 %v1231
  %v1293 = vpop.f32.mrb[0].mxu0
  %v1294 = vadd.f32 0.0, %v1293
  %v1295 = vpop.f32.mrb[0].mxu0
  %v1296 = vpop.f32.mrb[0].mxu0
  %v1297 = vadd.f32 0.0, %v1296
  %v1298 = vpop.f32.mrb[0].mxu0
  %1299 = vmatprep.mubr.bf16.mxu0 0
  %1300 = vmatmul.mubr.bf16.gmra.mrb[0].mxu0 %v1234
  %v1301 = vpop.f32.mrb[0].mxu0
  %v1302 = vadd.f32 0.0, %v1301
  %v1303 = vpop.f32.mrb[0].mxu0
  %v1304 = vpop.f32.mrb[0].mxu0
  %v1305 = vadd.f32 0.0, %v1304
  %v1306 = vpop.f32.mrb[0].mxu0
  %1307 = vmatprep.mubr.bf16.mxu0 0
  %1308 = vmatmul.mubr.bf16.gmra.mrb[0].mxu0 %v1237
  %v1309 = vpop.f32.mrb[0].mxu0
  %v1310 = vadd.f32 0.0, %v1309
  %v1311 = vpop.f32.mrb[0].mxu0
  %v1312 = vpop.f32.mrb[0].mxu0
  %v1313 = vadd.f32 0.0, %v1312
  %v1314 = vpop.f32.mrb[0].mxu0
  %1315 = vmatprep.mubr.bf16.mxu0 0
  %1316 = vmatmul.mubr.bf16.gmra.mrb[0].mxu0 %v1240
  %v1317 = vpop.f32.mrb[0].mxu0
  %v1318 = vadd.f32 0.0, %v1317
  %v1319 = vpop.f32.mrb[0].mxu0
  %v1320 = vpop.f32.mrb[0].mxu0
  %v1321 = vadd.f32 0.0, %v1320
  %v1322 = vpop.f32.mrb[0].mxu0
  %1323 = vmatprep.mubr.bf16.mxu0 0
  %1324 = vmatmul.mubr.bf16.gmra.mrb[0].mxu0 %v1243
  %v1325 = vpop.f32.mrb[0].mxu0
  %v1326 = vadd.f32 0.0, %v1325
  %v1327 = vpop.f32.mrb[0].mxu0
  %v1328 = vpop.f32.mrb[0].mxu0
  %v1329 = vadd.f32 0.0, %v1328
  %v1330 = vpop.f32.mrb[0].mxu0
  %1331 = vmatprep.mubr.bf16.mxu0 0
  %1332 = vmatmul.mubr.bf16.gmra.mrb[0].mxu0 %v1246
  %v1333 = vpop.f32.mrb[0].mxu0
  %v1334 = vadd.f32 0.0, %v1333
  %v1335 = vpop.f32.mrb[0].mxu0
  %v1336 = vpop.f32.mrb[0].mxu0
  %v1337 = vadd.f32 0.0, %v1336
  %v1338 = vpop.f32.mrb[0].mxu0
  %1339 = vmatprep.mubr.bf16.mxu0 0
  %1340 = vmatmul.mubr.bf16.gmra.mrb[0].mxu0 %v1249
  %v1341 = vpop.f32.mrb[0].mxu0
  %v1342 = vadd.f32 0.0, %v1341
  %v1343 = vpop.f32.mrb[0].mxu0
  %v1344 = vpop.f32.mrb[0].mxu0
  %v1345 = vadd.f32 0.0, %v1344
  %v1346 = vpop.f32.mrb[0].mxu0
  %1347 = vdwg.mxu0
  %v1348 = vadd.f32 %v1183, %v1286
  %v1349 = vadd.f32 %v1184, %v1289
  %v1350 = vadd.f32 %v1185, %v1294
  %v1351 = vadd.f32 %v1186, %v1297
  %v1352 = vadd.f32 %v1187, %v1302
  %v1353 = vadd.f32 %v1188, %v1305
  %v1354 = vadd.f32 %v1189, %v1310
  %v1355 = vadd.f32 %v1190, %v1313
  %v1356 = vadd.f32 %v1191, %v1318
  %v1357 = vadd.f32 %v1192, %v1321
  %v1358 = vadd.f32 %v1193, %v1326
  %v1359 = vadd.f32 %v1194, %v1329
  %v1360 = vadd.f32 %v1195, %v1334
  %v1361 = vadd.f32 %v1196, %v1337
  %v1362 = vadd.f32 %v1197, %v1342
  %v1363 = vadd.f32 %v1198, %v1345
  %v1364 = vld [vmem:[%s473 + $0x1] sm:$0xff]
  %v1365 = vld [vmem:[%s1200 + $0x1] sm:$0xff]
  %v1366 = vpack.c.bf16 %v550, %v549
  %v1367 = vpack.c.bf16 %v552, %v551
  %v1368 = vpack.c.bf16 %v554, %v553
  %v1369 = vpack.c.bf16 %v1364, %v555
  %v1370 = vpack.c.bf16 %v558, %v557
  %v1371 = vpack.c.bf16 %v560, %v559
  %v1372 = vpack.c.bf16 %v562, %v561
  %v1373 = vpack.c.bf16 %v1365, %v563
  %s1374 = scalar_lea.vmem %s4, 80
  %v1375 = vld [vmem:[%s1374] sm:$0xf]
  %v1376 = vld [vmem:[%s1374 + $0x4] sm:$0xf]
  %v1377 = vld [vmem:[%s1374 + $0x8] sm:$0xf]
  %v1378 = vld [vmem:[%s1374 + $0xc] sm:$0xf]
  %v1383 = vunpack.c.l.b16 %v1375
  %v1384 = vunpack.c.l.b16 %v1376
  %v1385 = vunpack.c.l.b16 %v1377
  %v1386 = vunpack.c.l.b16 %v1378
  %v1387 = vpack.c.b16 %v1384, %v1383
  %v1388 = vpack.c.b16 %v1386, %v1385
  %v1392 = vsel %vm80, %v1366, 0
  %v1395 = vsel %vm80, %v1367, 0
  %v1398 = vsel %vm80, %v1368, 0
  %v1401 = vsel %vm80, %v1369, 0
  %v1404 = vsel %vm80, %v1370, 0
  %v1407 = vsel %vm80, %v1371, 0
  %v1410 = vsel %vm80, %v1372, 0
  %v1413 = vsel %vm80, %v1373, 0
  %1415 = vmatprep.subr.bf16.mxu0 0
  %1416 = vmatpush1.bf16.msra.mxu0 %v1387
  %1417 = vmatprep.subr.bf16.mxu0 0
  %1418 = vmatpush1.bf16.msra.mxu0 %v1388
  %1419 = vmatprep.subr.bf16.mxu0 0
  %1420 = vmatpush1.bf16.msra.mxu0 0
  %1421 = vmatprep.subr.bf16.mxu0 0
  %1422 = vmatpush1.bf16.msra.mxu0 0
  %1423 = vmatprep.subr.bf16.mxu0 0
  %1424 = vmatpush1.bf16.msra.mxu0 0
  %1425 = vmatprep.subr.bf16.mxu0 0
  %1426 = vmatpush1.bf16.msra.mxu0 0
  %1427 = vmatprep.subr.bf16.mxu0 0
  %1428 = vmatpush1.bf16.msra.mxu0 0
  %1429 = vmatprep.subr.bf16.mxu0 0
  %1430 = vmatpush1.bf16.msra.mxu0 0
  %1431 = vmatprep.subr.bf16.mxu0 0
  %1432 = vmatpush1.bf16.msra.mxu0 0
  %1433 = vmatprep.subr.bf16.mxu0 0
  %1434 = vmatpush1.bf16.msra.mxu0 0
  %1435 = vmatprep.subr.bf16.mxu0 0
  %1436 = vmatpush1.bf16.msra.mxu0 0
  %1437 = vmatprep.subr.bf16.mxu0 0
  %1438 = vmatpush1.bf16.msra.mxu0 0
  %1439 = vmatprep.subr.bf16.mxu0 0
  %1440 = vmatpush1.bf16.msra.mxu0 0
  %1441 = vmatprep.subr.bf16.mxu0 0
  %1442 = vmatpush1.bf16.msra.mxu0 0
  %1443 = vmatprep.subr.bf16.mxu0 0
  %1444 = vmatpush1.bf16.msra.mxu0 0
  %1445 = vmatprep.subr.bf16.mxu0 0
  %1446 = vmatpush1.bf16.msra.mxu0 0
  %1447 = vmatprep.mubr.bf16.mxu0 0
  %1448 = vmatmul.mubr.bf16.gmra.mrb[0].mxu0 %v1392
  %v1449 = vpop.f32.mrb[0].mxu0
  %v1450 = vadd.f32 0.0, %v1449
  %v1451 = vpop.f32.mrb[0].mxu0
  %v1452 = vpop.f32.mrb[0].mxu0
  %v1453 = vadd.f32 0.0, %v1452
  %v1454 = vpop.f32.mrb[0].mxu0
  %1455 = vmatprep.mubr.bf16.mxu0 0
  %1456 = vmatmul.mubr.bf16.gmra.mrb[0].mxu0 %v1395
  %v1457 = vpop.f32.mrb[0].mxu0
  %v1458 = vadd.f32 0.0, %v1457
  %v1459 = vpop.f32.mrb[0].mxu0
  %v1460 = vpop.f32.mrb[0].mxu0
  %v1461 = vadd.f32 0.0, %v1460
  %v1462 = vpop.f32.mrb[0].mxu0
  %1463 = vmatprep.mubr.bf16.mxu0 0
  %1464 = vmatmul.mubr.bf16.gmra.mrb[0].mxu0 %v1398
  %v1465 = vpop.f32.mrb[0].mxu0
  %v1466 = vadd.f32 0.0, %v1465
  %v1467 = vpop.f32.mrb[0].mxu0
  %v1468 = vpop.f32.mrb[0].mxu0
  %v1469 = vadd.f32 0.0, %v1468
  %v1470 = vpop.f32.mrb[0].mxu0
  %1471 = vmatprep.mubr.bf16.mxu0 0
  %1472 = vmatmul.mubr.bf16.gmra.mrb[0].mxu0 %v1401
  %v1473 = vpop.f32.mrb[0].mxu0
  %v1474 = vadd.f32 0.0, %v1473
  %v1475 = vpop.f32.mrb[0].mxu0
  %v1476 = vpop.f32.mrb[0].mxu0
  %v1477 = vadd.f32 0.0, %v1476
  %v1478 = vpop.f32.mrb[0].mxu0
  %1479 = vmatprep.mubr.bf16.mxu0 0
  %1480 = vmatmul.mubr.bf16.gmra.mrb[0].mxu0 %v1404
  %v1481 = vpop.f32.mrb[0].mxu0
  %v1482 = vadd.f32 0.0, %v1481
  %v1483 = vpop.f32.mrb[0].mxu0
  %v1484 = vpop.f32.mrb[0].mxu0
  %v1485 = vadd.f32 0.0, %v1484
  %v1486 = vpop.f32.mrb[0].mxu0
  %1487 = vmatprep.mubr.bf16.mxu0 0
  %1488 = vmatmul.mubr.bf16.gmra.mrb[0].mxu0 %v1407
  %v1489 = vpop.f32.mrb[0].mxu0
  %v1490 = vadd.f32 0.0, %v1489
  %v1491 = vpop.f32.mrb[0].mxu0
  %v1492 = vpop.f32.mrb[0].mxu0
  %v1493 = vadd.f32 0.0, %v1492
  %v1494 = vpop.f32.mrb[0].mxu0
  %1495 = vmatprep.mubr.bf16.mxu0 0
  %1496 = vmatmul.mubr.bf16.gmra.mrb[0].mxu0 %v1410
  %v1497 = vpop.f32.mrb[0].mxu0
  %v1498 = vadd.f32 0.0, %v1497
  %v1499 = vpop.f32.mrb[0].mxu0
  %v1500 = vpop.f32.mrb[0].mxu0
  %v1501 = vadd.f32 0.0, %v1500
  %v1502 = vpop.f32.mrb[0].mxu0
  %1503 = vmatprep.mubr.bf16.mxu0 0
  %1504 = vmatmul.mubr.bf16.gmra.mrb[0].mxu0 %v1413
  %v1505 = vpop.f32.mrb[0].mxu0
  %v1506 = vadd.f32 0.0, %v1505
  %v1507 = vpop.f32.mrb[0].mxu0
  %v1508 = vpop.f32.mrb[0].mxu0
  %v1509 = vadd.f32 0.0, %v1508
  %v1510 = vpop.f32.mrb[0].mxu0
  %1511 = vdwg.mxu0
  %v1512 = vadd.f32 %v1348, %v1450
  %v1513 = vadd.f32 %v1349, %v1453
  %v1514 = vadd.f32 %v1350, %v1458
  %v1515 = vadd.f32 %v1351, %v1461
  %v1516 = vadd.f32 %v1352, %v1466
  %v1517 = vadd.f32 %v1353, %v1469
  %v1518 = vadd.f32 %v1354, %v1474
  %v1519 = vadd.f32 %v1355, %v1477
  %v1520 = vadd.f32 %v1356, %v1482
  %v1521 = vadd.f32 %v1357, %v1485
  %v1522 = vadd.f32 %v1358, %v1490
  %v1523 = vadd.f32 %v1359, %v1493
  %v1524 = vadd.f32 %v1360, %v1498
  %v1525 = vadd.f32 %v1361, %v1501
  %v1526 = vadd.f32 %v1362, %v1506
  %v1527 = vadd.f32 %v1363, %v1509
  %v1528 = vld [vmem:[%s473 + $0x2] sm:$0xff]
  %v1529 = vld [vmem:[%s1200 + $0x2] sm:$0xff]
  %v1530 = vpack.c.bf16 %v845, %v844
  %v1531 = vpack.c.bf16 %v847, %v846
  %v1532 = vpack.c.bf16 %v849, %v848
  %v1533 = vpack.c.bf16 %v1528, %v850
  %v1534 = vpack.c.bf16 %v853, %v852
  %v1535 = vpack.c.bf16 %v855, %v854
  %v1536 = vpack.c.bf16 %v857, %v856
  %v1537 = vpack.c.bf16 %v1529, %v858
  %s1538 = scalar_lea.vmem %s4, 96
  %v1539 = vld [vmem:[%s1538] sm:$0xf]
  %v1540 = vld [vmem:[%s1538 + $0x4] sm:$0xf]
  %v1541 = vld [vmem:[%s1538 + $0x8] sm:$0xf]
  %v1542 = vld [vmem:[%s1538 + $0xc] sm:$0xf]
  %v1547 = vunpack.c.l.b16 %v1539
  %v1548 = vunpack.c.l.b16 %v1540
  %v1549 = vunpack.c.l.b16 %v1541
  %v1550 = vunpack.c.l.b16 %v1542
  %v1551 = vpack.c.b16 %v1548, %v1547
  %v1552 = vpack.c.b16 %v1550, %v1549
  %v1556 = vsel %vm80, %v1530, 0
  %v1559 = vsel %vm80, %v1531, 0
  %v1562 = vsel %vm80, %v1532, 0
  %v1565 = vsel %vm80, %v1533, 0
  %v1568 = vsel %vm80, %v1534, 0
  %v1571 = vsel %vm80, %v1535, 0
  %v1574 = vsel %vm80, %v1536, 0
  %v1577 = vsel %vm80, %v1537, 0
  %1579 = vmatprep.subr.bf16.mxu0 0
  %1580 = vmatpush1.bf16.msra.mxu0 %v1551
  %1581 = vmatprep.subr.bf16.mxu0 0
  %1582 = vmatpush1.bf16.msra.mxu0 %v1552
  %1583 = vmatprep.subr.bf16.mxu0 0
  %1584 = vmatpush1.bf16.msra.mxu0 0
  %1585 = vmatprep.subr.bf16.mxu0 0
  %1586 = vmatpush1.bf16.msra.mxu0 0
  %1587 = vmatprep.subr.bf16.mxu0 0
  %1588 = vmatpush1.bf16.msra.mxu0 0
  %1589 = vmatprep.subr.bf16.mxu0 0
  %1590 = vmatpush1.bf16.msra.mxu0 0
  %1591 = vmatprep.subr.bf16.mxu0 0
  %1592 = vmatpush1.bf16.msra.mxu0 0
  %1593 = vmatprep.subr.bf16.mxu0 0
  %1594 = vmatpush1.bf16.msra.mxu0 0
  %1595 = vmatprep.subr.bf16.mxu0 0
  %1596 = vmatpush1.bf16.msra.mxu0 0
  %1597 = vmatprep.subr.bf16.mxu0 0
  %1598 = vmatpush1.bf16.msra.mxu0 0
  %1599 = vmatprep.subr.bf16.mxu0 0
  %1600 = vmatpush1.bf16.msra.mxu0 0
  %1601 = vmatprep.subr.bf16.mxu0 0
  %1602 = vmatpush1.bf16.msra.mxu0 0
  %1603 = vmatprep.subr.bf16.mxu0 0
  %1604 = vmatpush1.bf16.msra.mxu0 0
  %1605 = vmatprep.subr.bf16.mxu0 0
  %1606 = vmatpush1.bf16.msra.mxu0 0
  %1607 = vmatprep.subr.bf16.mxu0 0
  %1608 = vmatpush1.bf16.msra.mxu0 0
  %1609 = vmatprep.subr.bf16.mxu0 0
  %1610 = vmatpush1.bf16.msra.mxu0 0
  %1611 = vmatprep.mubr.bf16.mxu0 0
  %1612 = vmatmul.mubr.bf16.gmra.mrb[0].mxu0 %v1556
  %v1613 = vpop.f32.mrb[0].mxu0
  %v1614 = vadd.f32 0.0, %v1613
  %v1615 = vpop.f32.mrb[0].mxu0
  %v1616 = vpop.f32.mrb[0].mxu0
  %v1617 = vadd.f32 0.0, %v1616
  %v1618 = vpop.f32.mrb[0].mxu0
  %1619 = vmatprep.mubr.bf16.mxu0 0
  %1620 = vmatmul.mubr.bf16.gmra.mrb[0].mxu0 %v1559
  %v1621 = vpop.f32.mrb[0].mxu0
  %v1622 = vadd.f32 0.0, %v1621
  %v1623 = vpop.f32.mrb[0].mxu0
  %v1624 = vpop.f32.mrb[0].mxu0
  %v1625 = vadd.f32 0.0, %v1624
  %v1626 = vpop.f32.mrb[0].mxu0
  %1627 = vmatprep.mubr.bf16.mxu0 0
  %1628 = vmatmul.mubr.bf16.gmra.mrb[0].mxu0 %v1562
  %v1629 = vpop.f32.mrb[0].mxu0
  %v1630 = vadd.f32 0.0, %v1629
  %v1631 = vpop.f32.mrb[0].mxu0
  %v1632 = vpop.f32.mrb[0].mxu0
  %v1633 = vadd.f32 0.0, %v1632
  %v1634 = vpop.f32.mrb[0].mxu0
  %1635 = vmatprep.mubr.bf16.mxu0 0
  %1636 = vmatmul.mubr.bf16.gmra.mrb[0].mxu0 %v1565
  %v1637 = vpop.f32.mrb[0].mxu0
  %v1638 = vadd.f32 0.0, %v1637
  %v1639 = vpop.f32.mrb[0].mxu0
  %v1640 = vpop.f32.mrb[0].mxu0
  %v1641 = vadd.f32 0.0, %v1640
  %v1642 = vpop.f32.mrb[0].mxu0
  %1643 = vmatprep.mubr.bf16.mxu0 0
  %1644 = vmatmul.mubr.bf16.gmra.mrb[0].mxu0 %v1568
  %v1645 = vpop.f32.mrb[0].mxu0
  %v1646 = vadd.f32 0.0, %v1645
  %v1647 = vpop.f32.mrb[0].mxu0
  %v1648 = vpop.f32.mrb[0].mxu0
  %v1649 = vadd.f32 0.0, %v1648
  %v1650 = vpop.f32.mrb[0].mxu0
  %1651 = vmatprep.mubr.bf16.mxu0 0
  %1652 = vmatmul.mubr.bf16.gmra.mrb[0].mxu0 %v1571
  %v1653 = vpop.f32.mrb[0].mxu0
  %v1654 = vadd.f32 0.0, %v1653
  %v1655 = vpop.f32.mrb[0].mxu0
  %v1656 = vpop.f32.mrb[0].mxu0
  %v1657 = vadd.f32 0.0, %v1656
  %v1658 = vpop.f32.mrb[0].mxu0
  %1659 = vmatprep.mubr.bf16.mxu0 0
  %1660 = vmatmul.mubr.bf16.gmra.mrb[0].mxu0 %v1574
  %v1661 = vpop.f32.mrb[0].mxu0
  %v1662 = vadd.f32 0.0, %v1661
  %v1663 = vpop.f32.mrb[0].mxu0
  %v1664 = vpop.f32.mrb[0].mxu0
  %v1665 = vadd.f32 0.0, %v1664
  %v1666 = vpop.f32.mrb[0].mxu0
  %1667 = vmatprep.mubr.bf16.mxu0 0
  %1668 = vmatmul.mubr.bf16.gmra.mrb[0].mxu0 %v1577
  %v1669 = vpop.f32.mrb[0].mxu0
  %v1670 = vadd.f32 0.0, %v1669
  %v1671 = vpop.f32.mrb[0].mxu0
  %v1672 = vpop.f32.mrb[0].mxu0
  %v1673 = vadd.f32 0.0, %v1672
  %v1674 = vpop.f32.mrb[0].mxu0
  %1675 = vdwg.mxu0
  %v1676 = vadd.f32 %v1512, %v1614
  %v1677 = vadd.f32 %v1513, %v1617
  %v1678 = vadd.f32 %v1514, %v1622
  %v1679 = vadd.f32 %v1515, %v1625
  %v1680 = vadd.f32 %v1516, %v1630
  %v1681 = vadd.f32 %v1517, %v1633
  %v1682 = vadd.f32 %v1518, %v1638
  %v1683 = vadd.f32 %v1519, %v1641
  %v1684 = vadd.f32 %v1520, %v1646
  %v1685 = vadd.f32 %v1521, %v1649
  %v1686 = vadd.f32 %v1522, %v1654
  %v1687 = vadd.f32 %v1523, %v1657
  %v1688 = vadd.f32 %v1524, %v1662
  %v1689 = vadd.f32 %v1525, %v1665
  %v1690 = vadd.f32 %v1526, %v1670
  %v1691 = vadd.f32 %v1527, %v1673
  %v1692 = vld [vmem:[%s473 + $0x3] sm:$0xff]
  %v1693 = vld [vmem:[%s1200 + $0x3] sm:$0xff]
  %v1694 = vpack.c.bf16 %v1023, %v1022
  %v1695 = vpack.c.bf16 %v1025, %v1024
  %v1696 = vpack.c.bf16 %v1027, %v1026
  %v1697 = vpack.c.bf16 %v1692, %v1028
  %v1698 = vpack.c.bf16 %v1031, %v1030
  %v1699 = vpack.c.bf16 %v1033, %v1032
  %v1700 = vpack.c.bf16 %v1035, %v1034
  %v1701 = vpack.c.bf16 %v1693, %v1036
  %s1702 = scalar_lea.vmem %s4, 112
  %v1703 = vld [vmem:[%s1702] sm:$0xf]
  %v1704 = vld [vmem:[%s1702 + $0x4] sm:$0xf]
  %v1705 = vld [vmem:[%s1702 + $0x8] sm:$0xf]
  %v1706 = vld [vmem:[%s1702 + $0xc] sm:$0xf]
  %v1711 = vunpack.c.l.b16 %v1703
  %v1712 = vunpack.c.l.b16 %v1704
  %v1713 = vunpack.c.l.b16 %v1705
  %v1714 = vunpack.c.l.b16 %v1706
  %v1715 = vpack.c.b16 %v1712, %v1711
  %v1716 = vpack.c.b16 %v1714, %v1713
  %v1720 = vsel %vm80, %v1694, 0
  %v1723 = vsel %vm80, %v1695, 0
  %v1726 = vsel %vm80, %v1696, 0
  %v1729 = vsel %vm80, %v1697, 0
  %v1732 = vsel %vm80, %v1698, 0
  %v1735 = vsel %vm80, %v1699, 0
  %v1738 = vsel %vm80, %v1700, 0
  %v1741 = vsel %vm80, %v1701, 0
  %1743 = vmatprep.subr.bf16.mxu0 0
  %1744 = vmatpush1.bf16.msra.mxu0 %v1715
  %1745 = vmatprep.subr.bf16.mxu0 0
  %1746 = vmatpush1.bf16.msra.mxu0 %v1716
  %1747 = vmatprep.subr.bf16.mxu0 0
  %1748 = vmatpush1.bf16.msra.mxu0 0
  %1749 = vmatprep.subr.bf16.mxu0 0
  %1750 = vmatpush1.bf16.msra.mxu0 0
  %1751 = vmatprep.subr.bf16.mxu0 0
  %1752 = vmatpush1.bf16.msra.mxu0 0
  %1753 = vmatprep.subr.bf16.mxu0 0
  %1754 = vmatpush1.bf16.msra.mxu0 0
  %1755 = vmatprep.subr.bf16.mxu0 0
  %1756 = vmatpush1.bf16.msra.mxu0 0
  %1757 = vmatprep.subr.bf16.mxu0 0
  %1758 = vmatpush1.bf16.msra.mxu0 0
  %1759 = vmatprep.subr.bf16.mxu0 0
  %1760 = vmatpush1.bf16.msra.mxu0 0
  %1761 = vmatprep.subr.bf16.mxu0 0
  %1762 = vmatpush1.bf16.msra.mxu0 0
  %1763 = vmatprep.subr.bf16.mxu0 0
  %1764 = vmatpush1.bf16.msra.mxu0 0
  %1765 = vmatprep.subr.bf16.mxu0 0
  %1766 = vmatpush1.bf16.msra.mxu0 0
  %1767 = vmatprep.subr.bf16.mxu0 0
  %1768 = vmatpush1.bf16.msra.mxu0 0
  %1769 = vmatprep.subr.bf16.mxu0 0
  %1770 = vmatpush1.bf16.msra.mxu0 0
  %1771 = vmatprep.subr.bf16.mxu0 0
  %1772 = vmatpush1.bf16.msra.mxu0 0
  %1773 = vmatprep.subr.bf16.mxu0 0
  %1774 = vmatpush1.bf16.msra.mxu0 0
  %1775 = vmatprep.mubr.bf16.mxu0 0
  %1776 = vmatmul.mubr.bf16.gmra.mrb[0].mxu0 %v1720
  %v1777 = vpop.f32.mrb[0].mxu0
  %v1778 = vadd.f32 0.0, %v1777
  %v1779 = vpop.f32.mrb[0].mxu0
  %v1780 = vpop.f32.mrb[0].mxu0
  %v1781 = vadd.f32 0.0, %v1780
  %v1782 = vpop.f32.mrb[0].mxu0
  %1783 = vmatprep.mubr.bf16.mxu0 0
  %1784 = vmatmul.mubr.bf16.gmra.mrb[0].mxu0 %v1723
  %v1785 = vpop.f32.mrb[0].mxu0
  %v1786 = vadd.f32 0.0, %v1785
  %v1787 = vpop.f32.mrb[0].mxu0
  %v1788 = vpop.f32.mrb[0].mxu0
  %v1789 = vadd.f32 0.0, %v1788
  %v1790 = vpop.f32.mrb[0].mxu0
  %1791 = vmatprep.mubr.bf16.mxu0 0
  %1792 = vmatmul.mubr.bf16.gmra.mrb[0].mxu0 %v1726
  %v1793 = vpop.f32.mrb[0].mxu0
  %v1794 = vadd.f32 0.0, %v1793
  %v1795 = vpop.f32.mrb[0].mxu0
  %v1796 = vpop.f32.mrb[0].mxu0
  %v1797 = vadd.f32 0.0, %v1796
  %v1798 = vpop.f32.mrb[0].mxu0
  %1799 = vmatprep.mubr.bf16.mxu0 0
  %1800 = vmatmul.mubr.bf16.gmra.mrb[0].mxu0 %v1729
  %v1801 = vpop.f32.mrb[0].mxu0
  %v1802 = vadd.f32 0.0, %v1801
  %v1803 = vpop.f32.mrb[0].mxu0
  %v1804 = vpop.f32.mrb[0].mxu0
  %v1805 = vadd.f32 0.0, %v1804
  %v1806 = vpop.f32.mrb[0].mxu0
  %1807 = vmatprep.mubr.bf16.mxu0 0
  %1808 = vmatmul.mubr.bf16.gmra.mrb[0].mxu0 %v1732
  %v1809 = vpop.f32.mrb[0].mxu0
  %v1810 = vadd.f32 0.0, %v1809
  %v1811 = vpop.f32.mrb[0].mxu0
  %v1812 = vpop.f32.mrb[0].mxu0
  %v1813 = vadd.f32 0.0, %v1812
  %v1814 = vpop.f32.mrb[0].mxu0
  %1815 = vmatprep.mubr.bf16.mxu0 0
  %1816 = vmatmul.mubr.bf16.gmra.mrb[0].mxu0 %v1735
  %v1817 = vpop.f32.mrb[0].mxu0
  %v1818 = vadd.f32 0.0, %v1817
  %v1819 = vpop.f32.mrb[0].mxu0
  %v1820 = vpop.f32.mrb[0].mxu0
  %v1821 = vadd.f32 0.0, %v1820
  %v1822 = vpop.f32.mrb[0].mxu0
  %1823 = vmatprep.mubr.bf16.mxu0 0
  %1824 = vmatmul.mubr.bf16.gmra.mrb[0].mxu0 %v1738
  %v1825 = vpop.f32.mrb[0].mxu0
  %v1826 = vadd.f32 0.0, %v1825
  %v1827 = vpop.f32.mrb[0].mxu0
  %v1828 = vpop.f32.mrb[0].mxu0
  %v1829 = vadd.f32 0.0, %v1828
  %v1830 = vpop.f32.mrb[0].mxu0
  %1831 = vmatprep.mubr.bf16.mxu0 0
  %1832 = vmatmul.mubr.bf16.gmra.mrb[0].mxu0 %v1741
  %v1833 = vpop.f32.mrb[0].mxu0
  %v1834 = vadd.f32 0.0, %v1833
  %v1835 = vpop.f32.mrb[0].mxu0
  %v1836 = vpop.f32.mrb[0].mxu0
  %v1837 = vadd.f32 0.0, %v1836
  %v1838 = vpop.f32.mrb[0].mxu0
  %1839 = vdwg.mxu0
  %v1840 = vadd.f32 %v1676, %v1778
  %v1841 = vadd.f32 %v1677, %v1781
  %v1842 = vadd.f32 %v1678, %v1786
  %v1843 = vadd.f32 %v1679, %v1789
  %v1844 = vadd.f32 %v1680, %v1794
  %v1845 = vadd.f32 %v1681, %v1797
  %v1846 = vadd.f32 %v1682, %v1802
  %v1847 = vadd.f32 %v1683, %v1805
  %v1848 = vadd.f32 %v1684, %v1810
  %v1849 = vadd.f32 %v1685, %v1813
  %v1850 = vadd.f32 %v1686, %v1818
  %v1851 = vadd.f32 %v1687, %v1821
  %v1852 = vadd.f32 %v1688, %v1826
  %v1853 = vadd.f32 %v1689, %v1829
  %v1854 = vadd.f32 %v1690, %v1834
  %v1855 = vadd.f32 %v1691, %v1837
  %s1856 = scalar_lea.vmem [#allocation2], 144
  %v1857 = vld [vmem:[%s1856] sm:$0xff]
  %s1858 = scalar_lea.vmem [#allocation2], 320
  %v1859 = vld [vmem:[%s1858] sm:$0xff]
  %v1860 = vpack.c.bf16 %v1857, %v1199
  %v1861 = vpack.c.bf16 %v1859, %v1201
  %s1862 = scalar_lea.vmem %s4, 128
  %v1863 = vld [vmem:[%s1862] sm:$0xf]
  %v1864 = vld [vmem:[%s1862 + $0x4] sm:$0xf]
  %v1865 = vld [vmem:[%s1862 + $0x8] sm:$0xf]
  %v1866 = vld [vmem:[%s1862 + $0xc] sm:$0xf]
  %v1871 = vunpack.c.l.b16 %v1863
  %v1872 = vunpack.c.l.b16 %v1864
  %v1873 = vunpack.c.l.b16 %v1865
  %v1874 = vunpack.c.l.b16 %v1866
  %v1875 = vpack.c.b16 %v1872, %v1871
  %v1876 = vpack.c.b16 %v1874, %v1873
  %v1880 = vsel %vm80, %v1860, 0
  %v1883 = vsel %vm80, %v1861, 0
  %1885 = vmatprep.subr.bf16.mxu0 0
  %1886 = vmatpush1.bf16.msra.mxu0 %v1875
  %1887 = vmatprep.subr.bf16.mxu0 0
  %1888 = vmatpush1.bf16.msra.mxu0 %v1876
  %1889 = vmatprep.subr.bf16.mxu0 0
  %1890 = vmatpush1.bf16.msra.mxu0 0
  %1891 = vmatprep.subr.bf16.mxu0 0
  %1892 = vmatpush1.bf16.msra.mxu0 0
  %1893 = vmatprep.subr.bf16.mxu0 0
  %1894 = vmatpush1.bf16.msra.mxu0 0
  %1895 = vmatprep.subr.bf16.mxu0 0
  %1896 = vmatpush1.bf16.msra.mxu0 0
  %1897 = vmatprep.subr.bf16.mxu0 0
  %1898 = vmatpush1.bf16.msra.mxu0 0
  %1899 = vmatprep.subr.bf16.mxu0 0
  %1900 = vmatpush1.bf16.msra.mxu0 0
  %1901 = vmatprep.subr.bf16.mxu0 0
  %1902 = vmatpush1.bf16.msra.mxu0 0
  %1903 = vmatprep.subr.bf16.mxu0 0
  %1904 = vmatpush1.bf16.msra.mxu0 0
  %1905 = vmatprep.subr.bf16.mxu0 0
  %1906 = vmatpush1.bf16.msra.mxu0 0
  %1907 = vmatprep.subr.bf16.mxu0 0
  %1908 = vmatpush1.bf16.msra.mxu0 0
  %1909 = vmatprep.subr.bf16.mxu0 0
  %1910 = vmatpush1.bf16.msra.mxu0 0
  %1911 = vmatprep.subr.bf16.mxu0 0
  %1912 = vmatpush1.bf16.msra.mxu0 0
  %1913 = vmatprep.subr.bf16.mxu0 0
  %1914 = vmatpush1.bf16.msra.mxu0 0
  %1915 = vmatprep.subr.bf16.mxu0 0
  %1916 = vmatpush1.bf16.msra.mxu0 0
  %1917 = vmatprep.mubr.bf16.mxu0 0
  %1918 = vmatmul.mubr.bf16.gmra.mrb[0].mxu0 %v726
  %v1919 = vpop.f32.mrb[0].mxu0
  %v1920 = vadd.f32 0.0, %v1919
  %v1921 = vpop.f32.mrb[0].mxu0
  %v1922 = vpop.f32.mrb[0].mxu0
  %v1923 = vadd.f32 0.0, %v1922
  %v1924 = vpop.f32.mrb[0].mxu0
  %1925 = vmatprep.mubr.bf16.mxu0 0
  %1926 = vmatmul.mubr.bf16.gmra.mrb[0].mxu0 %v729
  %v1927 = vpop.f32.mrb[0].mxu0
  %v1928 = vadd.f32 0.0, %v1927
  %v1929 = vpop.f32.mrb[0].mxu0
  %v1930 = vpop.f32.mrb[0].mxu0
  %v1931 = vadd.f32 0.0, %v1930
  %v1932 = vpop.f32.mrb[0].mxu0
  %1933 = vmatprep.mubr.bf16.mxu0 0
  %1934 = vmatmul.mubr.bf16.gmra.mrb[0].mxu0 %v732
  %v1935 = vpop.f32.mrb[0].mxu0
  %v1936 = vadd.f32 0.0, %v1935
  %v1937 = vpop.f32.mrb[0].mxu0
  %v1938 = vpop.f32.mrb[0].mxu0
  %v1939 = vadd.f32 0.0, %v1938
  %v1940 = vpop.f32.mrb[0].mxu0
  %1941 = vmatprep.mubr.bf16.mxu0 0
  %1942 = vmatmul.mubr.bf16.gmra.mrb[0].mxu0 %v1880
  %v1943 = vpop.f32.mrb[0].mxu0
  %v1944 = vadd.f32 0.0, %v1943
  %v1945 = vpop.f32.mrb[0].mxu0
  %v1946 = vpop.f32.mrb[0].mxu0
  %v1947 = vadd.f32 0.0, %v1946
  %v1948 = vpop.f32.mrb[0].mxu0
  %1949 = vmatprep.mubr.bf16.mxu0 0
  %1950 = vmatmul.mubr.bf16.gmra.mrb[0].mxu0 %v738
  %v1951 = vpop.f32.mrb[0].mxu0
  %v1952 = vadd.f32 0.0, %v1951
  %v1953 = vpop.f32.mrb[0].mxu0
  %v1954 = vpop.f32.mrb[0].mxu0
  %v1955 = vadd.f32 0.0, %v1954
  %v1956 = vpop.f32.mrb[0].mxu0
  %1957 = vmatprep.mubr.bf16.mxu0 0
  %1958 = vmatmul.mubr.bf16.gmra.mrb[0].mxu0 %v741
  %v1959 = vpop.f32.mrb[0].mxu0
  %v1960 = vadd.f32 0.0, %v1959
  %v1961 = vpop.f32.mrb[0].mxu0
  %v1962 = vpop.f32.mrb[0].mxu0
  %v1963 = vadd.f32 0.0, %v1962
  %v1964 = vpop.f32.mrb[0].mxu0
  %1965 = vmatprep.mubr.bf16.mxu0 0
  %1966 = vmatmul.mubr.bf16.gmra.mrb[0].mxu0 %v744
  %v1967 = vpop.f32.mrb[0].mxu0
  %v1968 = vadd.f32 0.0, %v1967
  %v1969 = vpop.f32.mrb[0].mxu0
  %v1970 = vpop.f32.mrb[0].mxu0
  %v1971 = vadd.f32 0.0, %v1970
  %v1972 = vpop.f32.mrb[0].mxu0
  %1973 = vmatprep.mubr.bf16.mxu0 0
  %1974 = vmatmul.mubr.bf16.gmra.mrb[0].mxu0 %v1883
  %v1975 = vpop.f32.mrb[0].mxu0
  %v1976 = vadd.f32 0.0, %v1975
  %v1977 = vpop.f32.mrb[0].mxu0
  %v1978 = vpop.f32.mrb[0].mxu0
  %v1979 = vadd.f32 0.0, %v1978
  %v1980 = vpop.f32.mrb[0].mxu0
  %1981 = vdwg.mxu0
  %v1982 = vadd.f32 %v1840, %v1920
  %v1983 = vadd.f32 %v1841, %v1923
  %v1984 = vadd.f32 %v1842, %v1928
  %v1985 = vadd.f32 %v1843, %v1931
  %v1986 = vadd.f32 %v1844, %v1936
  %v1987 = vadd.f32 %v1845, %v1939
  %v1988 = vadd.f32 %v1846, %v1944
  %v1989 = vadd.f32 %v1847, %v1947
  %v1990 = vadd.f32 %v1848, %v1952
  %v1991 = vadd.f32 %v1849, %v1955
  %v1992 = vadd.f32 %v1850, %v1960
  %v1993 = vadd.f32 %v1851, %v1963
  %v1994 = vadd.f32 %v1852, %v1968
  %v1995 = vadd.f32 %v1853, %v1971
  %v1996 = vadd.f32 %v1854, %v1976
  %v1997 = vadd.f32 %v1855, %v1979
  %v1998 = vld [vmem:[%s1856 + $0x1] sm:$0xff]
  %v1999 = vld [vmem:[%s1858 + $0x1] sm:$0xff]
  %v2000 = vpack.c.bf16 %v1998, %v1364
  %v2001 = vpack.c.bf16 %v1999, %v1365
  %s2002 = scalar_lea.vmem %s4, 144
  %v2003 = vld [vmem:[%s2002] sm:$0xf]
  %v2004 = vld [vmem:[%s2002 + $0x4] sm:$0xf]
  %v2005 = vld [vmem:[%s2002 + $0x8] sm:$0xf]
  %v2006 = vld [vmem:[%s2002 + $0xc] sm:$0xf]
  %v2011 = vunpack.c.l.b16 %v2003
  %v2012 = vunpack.c.l.b16 %v2004
  %v2013 = vunpack.c.l.b16 %v2005
  %v2014 = vunpack.c.l.b16 %v2006
  %v2015 = vpack.c.b16 %v2012, %v2011
  %v2016 = vpack.c.b16 %v2014, %v2013
  %v2020 = vsel %vm80, %v2000, 0
  %v2023 = vsel %vm80, %v2001, 0
  %2025 = vmatprep.subr.bf16.mxu0 0
  %2026 = vmatpush1.bf16.msra.mxu0 %v2015
  %2027 = vmatprep.subr.bf16.mxu0 0
  %2028 = vmatpush1.bf16.msra.mxu0 %v2016
  %2029 = vmatprep.subr.bf16.mxu0 0
  %2030 = vmatpush1.bf16.msra.mxu0 0
  %2031 = vmatprep.subr.bf16.mxu0 0
  %2032 = vmatpush1.bf16.msra.mxu0 0
  %2033 = vmatprep.subr.bf16.mxu0 0
  %2034 = vmatpush1.bf16.msra.mxu0 0
  %2035 = vmatprep.subr.bf16.mxu0 0
  %2036 = vmatpush1.bf16.msra.mxu0 0
  %2037 = vmatprep.subr.bf16.mxu0 0
  %2038 = vmatpush1.bf16.msra.mxu0 0
  %2039 = vmatprep.subr.bf16.mxu0 0
  %2040 = vmatpush1.bf16.msra.mxu0 0
  %2041 = vmatprep.subr.bf16.mxu0 0
  %2042 = vmatpush1.bf16.msra.mxu0 0
  %2043 = vmatprep.subr.bf16.mxu0 0
  %2044 = vmatpush1.bf16.msra.mxu0 0
  %2045 = vmatprep.subr.bf16.mxu0 0
  %2046 = vmatpush1.bf16.msra.mxu0 0
  %2047 = vmatprep.subr.bf16.mxu0 0
  %2048 = vmatpush1.bf16.msra.mxu0 0
  %2049 = vmatprep.subr.bf16.mxu0 0
  %2050 = vmatpush1.bf16.msra.mxu0 0
  %2051 = vmatprep.subr.bf16.mxu0 0
  %2052 = vmatpush1.bf16.msra.mxu0 0
  %2053 = vmatprep.subr.bf16.mxu0 0
  %2054 = vmatpush1.bf16.msra.mxu0 0
  %2055 = vmatprep.subr.bf16.mxu0 0
  %2056 = vmatpush1.bf16.msra.mxu0 0
  %2057 = vmatprep.mubr.bf16.mxu0 0
  %2058 = vmatmul.mubr.bf16.gmra.mrb[0].mxu0 %v593
  %v2059 = vpop.f32.mrb[0].mxu0
  %v2060 = vadd.f32 0.0, %v2059
  %v2061 = vpop.f32.mrb[0].mxu0
  %v2062 = vpop.f32.mrb[0].mxu0
  %v2063 = vadd.f32 0.0, %v2062
  %v2064 = vpop.f32.mrb[0].mxu0
  %2065 = vmatprep.mubr.bf16.mxu0 0
  %2066 = vmatmul.mubr.bf16.gmra.mrb[0].mxu0 %v596
  %v2067 = vpop.f32.mrb[0].mxu0
  %v2068 = vadd.f32 0.0, %v2067
  %v2069 = vpop.f32.mrb[0].mxu0
  %v2070 = vpop.f32.mrb[0].mxu0
  %v2071 = vadd.f32 0.0, %v2070
  %v2072 = vpop.f32.mrb[0].mxu0
  %2073 = vmatprep.mubr.bf16.mxu0 0
  %2074 = vmatmul.mubr.bf16.gmra.mrb[0].mxu0 %v599
  %v2075 = vpop.f32.mrb[0].mxu0
  %v2076 = vadd.f32 0.0, %v2075
  %v2077 = vpop.f32.mrb[0].mxu0
  %v2078 = vpop.f32.mrb[0].mxu0
  %v2079 = vadd.f32 0.0, %v2078
  %v2080 = vpop.f32.mrb[0].mxu0
  %2081 = vmatprep.mubr.bf16.mxu0 0
  %2082 = vmatmul.mubr.bf16.gmra.mrb[0].mxu0 %v2020
  %v2083 = vpop.f32.mrb[0].mxu0
  %v2084 = vadd.f32 0.0, %v2083
  %v2085 = vpop.f32.mrb[0].mxu0
  %v2086 = vpop.f32.mrb[0].mxu0
  %v2087 = vadd.f32 0.0, %v2086
  %v2088 = vpop.f32.mrb[0].mxu0
  %2089 = vmatprep.mubr.bf16.mxu0 0
  %2090 = vmatmul.mubr.bf16.gmra.mrb[0].mxu0 %v605
  %v2091 = vpop.f32.mrb[0].mxu0
  %v2092 = vadd.f32 0.0, %v2091
  %v2093 = vpop.f32.mrb[0].mxu0
  %v2094 = vpop.f32.mrb[0].mxu0
  %v2095 = vadd.f32 0.0, %v2094
  %v2096 = vpop.f32.mrb[0].mxu0
  %2097 = vmatprep.mubr.bf16.mxu0 0
  %2098 = vmatmul.mubr.bf16.gmra.mrb[0].mxu0 %v608
  %v2099 = vpop.f32.mrb[0].mxu0
  %v2100 = vadd.f32 0.0, %v2099
  %v2101 = vpop.f32.mrb[0].mxu0
  %v2102 = vpop.f32.mrb[0].mxu0
  %v2103 = vadd.f32 0.0, %v2102
  %v2104 = vpop.f32.mrb[0].mxu0
  %2105 = vmatprep.mubr.bf16.mxu0 0
  %2106 = vmatmul.mubr.bf16.gmra.mrb[0].mxu0 %v611
  %v2107 = vpop.f32.mrb[0].mxu0
  %v2108 = vadd.f32 0.0, %v2107
  %v2109 = vpop.f32.mrb[0].mxu0
  %v2110 = vpop.f32.mrb[0].mxu0
  %v2111 = vadd.f32 0.0, %v2110
  %v2112 = vpop.f32.mrb[0].mxu0
  %2113 = vmatprep.mubr.bf16.mxu0 0
  %2114 = vmatmul.mubr.bf16.gmra.mrb[0].mxu0 %v2023
  %v2115 = vpop.f32.mrb[0].mxu0
  %v2116 = vadd.f32 0.0, %v2115
  %v2117 = vpop.f32.mrb[0].mxu0
  %v2118 = vpop.f32.mrb[0].mxu0
  %v2119 = vadd.f32 0.0, %v2118
  %v2120 = vpop.f32.mrb[0].mxu0
  %2121 = vdwg.mxu0
  %v2122 = vadd.f32 %v1982, %v2060
  %v2123 = vadd.f32 %v1983, %v2063
  %v2124 = vadd.f32 %v1984, %v2068
  %v2125 = vadd.f32 %v1985, %v2071
  %v2126 = vadd.f32 %v1986, %v2076
  %v2127 = vadd.f32 %v1987, %v2079
  %v2128 = vadd.f32 %v1988, %v2084
  %v2129 = vadd.f32 %v1989, %v2087
  %v2130 = vadd.f32 %v1990, %v2092
  %v2131 = vadd.f32 %v1991, %v2095
  %v2132 = vadd.f32 %v1992, %v2100
  %v2133 = vadd.f32 %v1993, %v2103
  %v2134 = vadd.f32 %v1994, %v2108
  %v2135 = vadd.f32 %v1995, %v2111
  %v2136 = vadd.f32 %v1996, %v2116
  %v2137 = vadd.f32 %v1997, %v2119
  %v2138 = vld [vmem:[%s1856 + $0x2] sm:$0xff]
  %v2139 = vld [vmem:[%s1858 + $0x2] sm:$0xff]
  %v2140 = vpack.c.bf16 %v2138, %v1528
  %v2141 = vpack.c.bf16 %v2139, %v1529
  %s2142 = scalar_lea.vmem %s4, 160
  %v2143 = vld [vmem:[%s2142] sm:$0xf]
  %v2144 = vld [vmem:[%s2142 + $0x4] sm:$0xf]
  %v2145 = vld [vmem:[%s2142 + $0x8] sm:$0xf]
  %v2146 = vld [vmem:[%s2142 + $0xc] sm:$0xf]
  %v2151 = vunpack.c.l.b16 %v2143
  %v2152 = vunpack.c.l.b16 %v2144
  %v2153 = vunpack.c.l.b16 %v2145
  %v2154 = vunpack.c.l.b16 %v2146
  %v2155 = vpack.c.b16 %v2152, %v2151
  %v2156 = vpack.c.b16 %v2154, %v2153
  %v2160 = vsel %vm80, %v2140, 0
  %v2163 = vsel %vm80, %v2141, 0
  %2165 = vmatprep.subr.bf16.mxu0 0
  %2166 = vmatpush1.bf16.msra.mxu0 %v2155
  %2167 = vmatprep.subr.bf16.mxu0 0
  %2168 = vmatpush1.bf16.msra.mxu0 %v2156
  %2169 = vmatprep.subr.bf16.mxu0 0
  %2170 = vmatpush1.bf16.msra.mxu0 0
  %2171 = vmatprep.subr.bf16.mxu0 0
  %2172 = vmatpush1.bf16.msra.mxu0 0
  %2173 = vmatprep.subr.bf16.mxu0 0
  %2174 = vmatpush1.bf16.msra.mxu0 0
  %2175 = vmatprep.subr.bf16.mxu0 0
  %2176 = vmatpush1.bf16.msra.mxu0 0
  %2177 = vmatprep.subr.bf16.mxu0 0
  %2178 = vmatpush1.bf16.msra.mxu0 0
  %2179 = vmatprep.subr.bf16.mxu0 0
  %2180 = vmatpush1.bf16.msra.mxu0 0
  %2181 = vmatprep.subr.bf16.mxu0 0
  %2182 = vmatpush1.bf16.msra.mxu0 0
  %2183 = vmatprep.subr.bf16.mxu0 0
  %2184 = vmatpush1.bf16.msra.mxu0 0
  %2185 = vmatprep.subr.bf16.mxu0 0
  %2186 = vmatpush1.bf16.msra.mxu0 0
  %2187 = vmatprep.subr.bf16.mxu0 0
  %2188 = vmatpush1.bf16.msra.mxu0 0
  %2189 = vmatprep.subr.bf16.mxu0 0
  %2190 = vmatpush1.bf16.msra.mxu0 0
  %2191 = vmatprep.subr.bf16.mxu0 0
  %2192 = vmatpush1.bf16.msra.mxu0 0
  %2193 = vmatprep.subr.bf16.mxu0 0
  %2194 = vmatpush1.bf16.msra.mxu0 0
  %2195 = vmatprep.subr.bf16.mxu0 0
  %2196 = vmatpush1.bf16.msra.mxu0 0
  %2197 = vmatprep.mubr.bf16.mxu0 0
  %2198 = vmatmul.mubr.bf16.gmra.mrb[0].mxu0 %v888
  %v2199 = vpop.f32.mrb[0].mxu0
  %v2200 = vadd.f32 0.0, %v2199
  %v2201 = vpop.f32.mrb[0].mxu0
  %v2202 = vpop.f32.mrb[0].mxu0
  %v2203 = vadd.f32 0.0, %v2202
  %v2204 = vpop.f32.mrb[0].mxu0
  %2205 = vmatprep.mubr.bf16.mxu0 0
  %2206 = vmatmul.mubr.bf16.gmra.mrb[0].mxu0 %v891
  %v2207 = vpop.f32.mrb[0].mxu0
  %v2208 = vadd.f32 0.0, %v2207
  %v2209 = vpop.f32.mrb[0].mxu0
  %v2210 = vpop.f32.mrb[0].mxu0
  %v2211 = vadd.f32 0.0, %v2210
  %v2212 = vpop.f32.mrb[0].mxu0
  %2213 = vmatprep.mubr.bf16.mxu0 0
  %2214 = vmatmul.mubr.bf16.gmra.mrb[0].mxu0 %v894
  %v2215 = vpop.f32.mrb[0].mxu0
  %v2216 = vadd.f32 0.0, %v2215
  %v2217 = vpop.f32.mrb[0].mxu0
  %v2218 = vpop.f32.mrb[0].mxu0
  %v2219 = vadd.f32 0.0, %v2218
  %v2220 = vpop.f32.mrb[0].mxu0
  %2221 = vmatprep.mubr.bf16.mxu0 0
  %2222 = vmatmul.mubr.bf16.gmra.mrb[0].mxu0 %v2160
  %v2223 = vpop.f32.mrb[0].mxu0
  %v2224 = vadd.f32 0.0, %v2223
  %v2225 = vpop.f32.mrb[0].mxu0
  %v2226 = vpop.f32.mrb[0].mxu0
  %v2227 = vadd.f32 0.0, %v2226
  %v2228 = vpop.f32.mrb[0].mxu0
  %2229 = vmatprep.mubr.bf16.mxu0 0
  %2230 = vmatmul.mubr.bf16.gmra.mrb[0].mxu0 %v900
  %v2231 = vpop.f32.mrb[0].mxu0
  %v2232 = vadd.f32 0.0, %v2231
  %v2233 = vpop.f32.mrb[0].mxu0
  %v2234 = vpop.f32.mrb[0].mxu0
  %v2235 = vadd.f32 0.0, %v2234
  %v2236 = vpop.f32.mrb[0].mxu0
  %2237 = vmatprep.mubr.bf16.mxu0 0
  %2238 = vmatmul.mubr.bf16.gmra.mrb[0].mxu0 %v903
  %v2239 = vpop.f32.mrb[0].mxu0
  %v2240 = vadd.f32 0.0, %v2239
  %v2241 = vpop.f32.mrb[0].mxu0
  %v2242 = vpop.f32.mrb[0].mxu0
  %v2243 = vadd.f32 0.0, %v2242
  %v2244 = vpop.f32.mrb[0].mxu0
  %2245 = vmatprep.mubr.bf16.mxu0 0
  %2246 = vmatmul.mubr.bf16.gmra.mrb[0].mxu0 %v906
  %v2247 = vpop.f32.mrb[0].mxu0
  %v2248 = vadd.f32 0.0, %v2247
  %v2249 = vpop.f32.mrb[0].mxu0
  %v2250 = vpop.f32.mrb[0].mxu0
  %v2251 = vadd.f32 0.0, %v2250
  %v2252 = vpop.f32.mrb[0].mxu0
  %2253 = vmatprep.mubr.bf16.mxu0 0
  %2254 = vmatmul.mubr.bf16.gmra.mrb[0].mxu0 %v2163
  %v2255 = vpop.f32.mrb[0].mxu0
  %v2256 = vadd.f32 0.0, %v2255
  %v2257 = vpop.f32.mrb[0].mxu0
  %v2258 = vpop.f32.mrb[0].mxu0
  %v2259 = vadd.f32 0.0, %v2258
  %v2260 = vpop.f32.mrb[0].mxu0
  %2261 = vdwg.mxu0
  %v2262 = vadd.f32 %v2122, %v2200
  %v2263 = vadd.f32 %v2123, %v2203
  %v2264 = vadd.f32 %v2124, %v2208
  %v2265 = vadd.f32 %v2125, %v2211
  %v2266 = vadd.f32 %v2126, %v2216
  %v2267 = vadd.f32 %v2127, %v2219
  %v2268 = vadd.f32 %v2128, %v2224
  %v2269 = vadd.f32 %v2129, %v2227
  %v2270 = vadd.f32 %v2130, %v2232
  %v2271 = vadd.f32 %v2131, %v2235
  %v2272 = vadd.f32 %v2132, %v2240
  %v2273 = vadd.f32 %v2133, %v2243
  %v2274 = vadd.f32 %v2134, %v2248
  %v2275 = vadd.f32 %v2135, %v2251
  %v2276 = vadd.f32 %v2136, %v2256
  %v2277 = vadd.f32 %v2137, %v2259
  %v2278 = vld [vmem:[%s1856 + $0x3] sm:$0xff]
  %v2279 = vld [vmem:[%s1858 + $0x3] sm:$0xff]
  %v2280 = vpack.c.bf16 %v2278, %v1692
  %v2281 = vpack.c.bf16 %v2279, %v1693
  %s2282 = scalar_lea.vmem %s4, 176
  %v2283 = vld [vmem:[%s2282] sm:$0xf]
  %v2284 = vld [vmem:[%s2282 + $0x4] sm:$0xf]
  %v2285 = vld [vmem:[%s2282 + $0x8] sm:$0xf]
  %v2286 = vld [vmem:[%s2282 + $0xc] sm:$0xf]
  %v2291 = vunpack.c.l.b16 %v2283
  %v2292 = vunpack.c.l.b16 %v2284
  %v2293 = vunpack.c.l.b16 %v2285
  %v2294 = vunpack.c.l.b16 %v2286
  %v2295 = vpack.c.b16 %v2292, %v2291
  %v2296 = vpack.c.b16 %v2294, %v2293
  %v2300 = vsel %vm80, %v2280, 0
  %v2303 = vsel %vm80, %v2281, 0
  %2305 = vmatprep.subr.bf16.mxu0 0
  %2306 = vmatpush1.bf16.msra.mxu0 %v2295
  %2307 = vmatprep.subr.bf16.mxu0 0
  %2308 = vmatpush1.bf16.msra.mxu0 %v2296
  %2309 = vmatprep.subr.bf16.mxu0 0
  %2310 = vmatpush1.bf16.msra.mxu0 0
  %2311 = vmatprep.subr.bf16.mxu0 0
  %2312 = vmatpush1.bf16.msra.mxu0 0
  %2313 = vmatprep.subr.bf16.mxu0 0
  %2314 = vmatpush1.bf16.msra.mxu0 0
  %2315 = vmatprep.subr.bf16.mxu0 0
  %2316 = vmatpush1.bf16.msra.mxu0 0
  %2317 = vmatprep.subr.bf16.mxu0 0
  %2318 = vmatpush1.bf16.msra.mxu0 0
  %2319 = vmatprep.subr.bf16.mxu0 0
  %2320 = vmatpush1.bf16.msra.mxu0 0
  %2321 = vmatprep.subr.bf16.mxu0 0
  %2322 = vmatpush1.bf16.msra.mxu0 0
  %2323 = vmatprep.subr.bf16.mxu0 0
  %2324 = vmatpush1.bf16.msra.mxu0 0
  %2325 = vmatprep.subr.bf16.mxu0 0
  %2326 = vmatpush1.bf16.msra.mxu0 0
  %2327 = vmatprep.subr.bf16.mxu0 0
  %2328 = vmatpush1.bf16.msra.mxu0 0
  %2329 = vmatprep.subr.bf16.mxu0 0
  %2330 = vmatpush1.bf16.msra.mxu0 0
  %2331 = vmatprep.subr.bf16.mxu0 0
  %2332 = vmatpush1.bf16.msra.mxu0 0
  %2333 = vmatprep.subr.bf16.mxu0 0
  %2334 = vmatpush1.bf16.msra.mxu0 0
  %2335 = vmatprep.subr.bf16.mxu0 0
  %2336 = vmatpush1.bf16.msra.mxu0 0
  %2337 = vmatprep.mubr.bf16.mxu0 0
  %2338 = vmatmul.mubr.bf16.gmra.mrb[0].mxu0 %v1066
  %v2339 = vpop.f32.mrb[0].mxu0
  %v2340 = vadd.f32 0.0, %v2339
  %v2341 = vpop.f32.mrb[0].mxu0
  %v2342 = vpop.f32.mrb[0].mxu0
  %v2343 = vadd.f32 0.0, %v2342
  %v2344 = vpop.f32.mrb[0].mxu0
  %2345 = vmatprep.mubr.bf16.mxu0 0
  %2346 = vmatmul.mubr.bf16.gmra.mrb[0].mxu0 %v1069
  %v2347 = vpop.f32.mrb[0].mxu0
  %v2348 = vadd.f32 0.0, %v2347
  %v2349 = vpop.f32.mrb[0].mxu0
  %v2350 = vpop.f32.mrb[0].mxu0
  %v2351 = vadd.f32 0.0, %v2350
  %v2352 = vpop.f32.mrb[0].mxu0
  %2353 = vmatprep.mubr.bf16.mxu0 0
  %2354 = vmatmul.mubr.bf16.gmra.mrb[0].mxu0 %v1072
  %v2355 = vpop.f32.mrb[0].mxu0
  %v2356 = vadd.f32 0.0, %v2355
  %v2357 = vpop.f32.mrb[0].mxu0
  %v2358 = vpop.f32.mrb[0].mxu0
  %v2359 = vadd.f32 0.0, %v2358
  %v2360 = vpop.f32.mrb[0].mxu0
  %2361 = vmatprep.mubr.bf16.mxu0 0
  %2362 = vmatmul.mubr.bf16.gmra.mrb[0].mxu0 %v2300
  %v2363 = vpop.f32.mrb[0].mxu0
  %v2364 = vadd.f32 0.0, %v2363
  %v2365 = vpop.f32.mrb[0].mxu0
  %v2366 = vpop.f32.mrb[0].mxu0
  %v2367 = vadd.f32 0.0, %v2366
  %v2368 = vpop.f32.mrb[0].mxu0
  %2369 = vmatprep.mubr.bf16.mxu0 0
  %2370 = vmatmul.mubr.bf16.gmra.mrb[0].mxu0 %v1078
  %v2371 = vpop.f32.mrb[0].mxu0
  %v2372 = vadd.f32 0.0, %v2371
  %v2373 = vpop.f32.mrb[0].mxu0
  %v2374 = vpop.f32.mrb[0].mxu0
  %v2375 = vadd.f32 0.0, %v2374
  %v2376 = vpop.f32.mrb[0].mxu0
  %2377 = vmatprep.mubr.bf16.mxu0 0
  %2378 = vmatmul.mubr.bf16.gmra.mrb[0].mxu0 %v1081
  %v2379 = vpop.f32.mrb[0].mxu0
  %v2380 = vadd.f32 0.0, %v2379
  %v2381 = vpop.f32.mrb[0].mxu0
  %v2382 = vpop.f32.mrb[0].mxu0
  %v2383 = vadd.f32 0.0, %v2382
  %v2384 = vpop.f32.mrb[0].mxu0
  %2385 = vmatprep.mubr.bf16.mxu0 0
  %2386 = vmatmul.mubr.bf16.gmra.mrb[0].mxu0 %v1084
  %v2387 = vpop.f32.mrb[0].mxu0
  %v2388 = vadd.f32 0.0, %v2387
  %v2389 = vpop.f32.mrb[0].mxu0
  %v2390 = vpop.f32.mrb[0].mxu0
  %v2391 = vadd.f32 0.0, %v2390
  %v2392 = vpop.f32.mrb[0].mxu0
  %2393 = vmatprep.mubr.bf16.mxu0 0
  %2394 = vmatmul.mubr.bf16.gmra.mrb[0].mxu0 %v2303
  %v2395 = vpop.f32.mrb[0].mxu0
  %v2396 = vadd.f32 0.0, %v2395
  %v2397 = vpop.f32.mrb[0].mxu0
  %v2398 = vpop.f32.mrb[0].mxu0
  %v2399 = vadd.f32 0.0, %v2398
  %v2400 = vpop.f32.mrb[0].mxu0
  %2401 = vdwg.mxu0
  %v2402 = vadd.f32 %v2262, %v2340
  %v2403 = vadd.f32 %v2263, %v2343
  %v2404 = vadd.f32 %v2264, %v2348
  %v2405 = vadd.f32 %v2265, %v2351
  %v2406 = vadd.f32 %v2266, %v2356
  %v2407 = vadd.f32 %v2267, %v2359
  %v2408 = vadd.f32 %v2268, %v2364
  %v2409 = vadd.f32 %v2269, %v2367
  %v2410 = vadd.f32 %v2270, %v2372
  %v2411 = vadd.f32 %v2271, %v2375
  %v2412 = vadd.f32 %v2272, %v2380
  %v2413 = vadd.f32 %v2273, %v2383
  %v2414 = vadd.f32 %v2274, %v2388
  %v2415 = vadd.f32 %v2275, %v2391
  %v2416 = vadd.f32 %v2276, %v2396
  %v2417 = vadd.f32 %v2277, %v2399
  %s2418 = scalar_lea.vmem [#allocation2], 160
  %v2419 = vld [vmem:[%s2418] sm:$0xff]
  %s2420 = scalar_lea.vmem [#allocation2], 336
  %v2421 = vld [vmem:[%s2420] sm:$0xff]
  %v2422 = vpack.c.bf16 %v2419, %v1857
  %v2423 = vpack.c.bf16 %v2421, %v1859
  %s2424 = scalar_lea.vmem %s4, 192
  %v2425 = vld [vmem:[%s2424] sm:$0xf]
  %v2426 = vld [vmem:[%s2424 + $0x4] sm:$0xf]
  %v2427 = vld [vmem:[%s2424 + $0x8] sm:$0xf]
  %v2428 = vld [vmem:[%s2424 + $0xc] sm:$0xf]
  %v2433 = vunpack.c.l.b16 %v2425
  %v2434 = vunpack.c.l.b16 %v2426
  %v2435 = vunpack.c.l.b16 %v2427
  %v2436 = vunpack.c.l.b16 %v2428
  %v2437 = vpack.c.b16 %v2434, %v2433
  %v2438 = vpack.c.b16 %v2436, %v2435
  %v2442 = vsel %vm80, %v2422, 0
  %v2445 = vsel %vm80, %v2423, 0
  %2447 = vmatprep.subr.bf16.mxu0 0
  %2448 = vmatpush1.bf16.msra.mxu0 %v2437
  %2449 = vmatprep.subr.bf16.mxu0 0
  %2450 = vmatpush1.bf16.msra.mxu0 %v2438
  %2451 = vmatprep.subr.bf16.mxu0 0
  %2452 = vmatpush1.bf16.msra.mxu0 0
  %2453 = vmatprep.subr.bf16.mxu0 0
  %2454 = vmatpush1.bf16.msra.mxu0 0
  %2455 = vmatprep.subr.bf16.mxu0 0
  %2456 = vmatpush1.bf16.msra.mxu0 0
  %2457 = vmatprep.subr.bf16.mxu0 0
  %2458 = vmatpush1.bf16.msra.mxu0 0
  %2459 = vmatprep.subr.bf16.mxu0 0
  %2460 = vmatpush1.bf16.msra.mxu0 0
  %2461 = vmatprep.subr.bf16.mxu0 0
  %2462 = vmatpush1.bf16.msra.mxu0 0
  %2463 = vmatprep.subr.bf16.mxu0 0
  %2464 = vmatpush1.bf16.msra.mxu0 0
  %2465 = vmatprep.subr.bf16.mxu0 0
  %2466 = vmatpush1.bf16.msra.mxu0 0
  %2467 = vmatprep.subr.bf16.mxu0 0
  %2468 = vmatpush1.bf16.msra.mxu0 0
  %2469 = vmatprep.subr.bf16.mxu0 0
  %2470 = vmatpush1.bf16.msra.mxu0 0
  %2471 = vmatprep.subr.bf16.mxu0 0
  %2472 = vmatpush1.bf16.msra.mxu0 0
  %2473 = vmatprep.subr.bf16.mxu0 0
  %2474 = vmatpush1.bf16.msra.mxu0 0
  %2475 = vmatprep.subr.bf16.mxu0 0
  %2476 = vmatpush1.bf16.msra.mxu0 0
  %2477 = vmatprep.subr.bf16.mxu0 0
  %2478 = vmatpush1.bf16.msra.mxu0 0
  %2479 = vmatprep.mubr.bf16.mxu0 0
  %2480 = vmatmul.mubr.bf16.gmra.mrb[0].mxu0 %v1231
  %v2481 = vpop.f32.mrb[0].mxu0
  %v2482 = vadd.f32 0.0, %v2481
  %v2483 = vpop.f32.mrb[0].mxu0
  %v2484 = vpop.f32.mrb[0].mxu0
  %v2485 = vadd.f32 0.0, %v2484
  %v2486 = vpop.f32.mrb[0].mxu0
  %2487 = vmatprep.mubr.bf16.mxu0 0
  %2488 = vmatmul.mubr.bf16.gmra.mrb[0].mxu0 %v1234
  %v2489 = vpop.f32.mrb[0].mxu0
  %v2490 = vadd.f32 0.0, %v2489
  %v2491 = vpop.f32.mrb[0].mxu0
  %v2492 = vpop.f32.mrb[0].mxu0
  %v2493 = vadd.f32 0.0, %v2492
  %v2494 = vpop.f32.mrb[0].mxu0
  %2495 = vmatprep.mubr.bf16.mxu0 0
  %2496 = vmatmul.mubr.bf16.gmra.mrb[0].mxu0 %v1237
  %v2497 = vpop.f32.mrb[0].mxu0
  %v2498 = vadd.f32 0.0, %v2497
  %v2499 = vpop.f32.mrb[0].mxu0
  %v2500 = vpop.f32.mrb[0].mxu0
  %v2501 = vadd.f32 0.0, %v2500
  %v2502 = vpop.f32.mrb[0].mxu0
  %2503 = vmatprep.mubr.bf16.mxu0 0
  %2504 = vmatmul.mubr.bf16.gmra.mrb[0].mxu0 %v2442
  %v2505 = vpop.f32.mrb[0].mxu0
  %v2506 = vadd.f32 0.0, %v2505
  %v2507 = vpop.f32.mrb[0].mxu0
  %v2508 = vpop.f32.mrb[0].mxu0
  %v2509 = vadd.f32 0.0, %v2508
  %v2510 = vpop.f32.mrb[0].mxu0
  %2511 = vmatprep.mubr.bf16.mxu0 0
  %2512 = vmatmul.mubr.bf16.gmra.mrb[0].mxu0 %v1243
  %v2513 = vpop.f32.mrb[0].mxu0
  %v2514 = vadd.f32 0.0, %v2513
  %v2515 = vpop.f32.mrb[0].mxu0
  %v2516 = vpop.f32.mrb[0].mxu0
  %v2517 = vadd.f32 0.0, %v2516
  %v2518 = vpop.f32.mrb[0].mxu0
  %2519 = vmatprep.mubr.bf16.mxu0 0
  %2520 = vmatmul.mubr.bf16.gmra.mrb[0].mxu0 %v1246
  %v2521 = vpop.f32.mrb[0].mxu0
  %v2522 = vadd.f32 0.0, %v2521
  %v2523 = vpop.f32.mrb[0].mxu0
  %v2524 = vpop.f32.mrb[0].mxu0
  %v2525 = vadd.f32 0.0, %v2524
  %v2526 = vpop.f32.mrb[0].mxu0
  %2527 = vmatprep.mubr.bf16.mxu0 0
  %2528 = vmatmul.mubr.bf16.gmra.mrb[0].mxu0 %v1249
  %v2529 = vpop.f32.mrb[0].mxu0
  %v2530 = vadd.f32 0.0, %v2529
  %v2531 = vpop.f32.mrb[0].mxu0
  %v2532 = vpop.f32.mrb[0].mxu0
  %v2533 = vadd.f32 0.0, %v2532
  %v2534 = vpop.f32.mrb[0].mxu0
  %2535 = vmatprep.mubr.bf16.mxu0 0
  %2536 = vmatmul.mubr.bf16.gmra.mrb[0].mxu0 %v2445
  %v2537 = vpop.f32.mrb[0].mxu0
  %v2538 = vadd.f32 0.0, %v2537
  %v2539 = vpop.f32.mrb[0].mxu0
  %v2540 = vpop.f32.mrb[0].mxu0
  %v2541 = vadd.f32 0.0, %v2540
  %v2542 = vpop.f32.mrb[0].mxu0
  %2543 = vdwg.mxu0
  %v2544 = vadd.f32 %v2402, %v2482
  %v2545 = vadd.f32 %v2403, %v2485
  %v2546 = vadd.f32 %v2404, %v2490
  %v2547 = vadd.f32 %v2405, %v2493
  %v2548 = vadd.f32 %v2406, %v2498
  %v2549 = vadd.f32 %v2407, %v2501
  %v2550 = vadd.f32 %v2408, %v2506
  %v2551 = vadd.f32 %v2409, %v2509
  %v2552 = vadd.f32 %v2410, %v2514
  %v2553 = vadd.f32 %v2411, %v2517
  %v2554 = vadd.f32 %v2412, %v2522
  %v2555 = vadd.f32 %v2413, %v2525
  %v2556 = vadd.f32 %v2414, %v2530
  %v2557 = vadd.f32 %v2415, %v2533
  %v2558 = vadd.f32 %v2416, %v2538
  %v2559 = vadd.f32 %v2417, %v2541
  %v2560 = vld [vmem:[%s2418 + $0x1] sm:$0xff]
  %v2561 = vld [vmem:[%s2420 + $0x1] sm:$0xff]
  %v2562 = vpack.c.bf16 %v2560, %v1998
  %v2563 = vpack.c.bf16 %v2561, %v1999
  %s2564 = scalar_lea.vmem %s4, 208
  %v2565 = vld [vmem:[%s2564] sm:$0xf]
  %v2566 = vld [vmem:[%s2564 + $0x4] sm:$0xf]
  %v2567 = vld [vmem:[%s2564 + $0x8] sm:$0xf]
  %v2568 = vld [vmem:[%s2564 + $0xc] sm:$0xf]
  %v2573 = vunpack.c.l.b16 %v2565
  %v2574 = vunpack.c.l.b16 %v2566
  %v2575 = vunpack.c.l.b16 %v2567
  %v2576 = vunpack.c.l.b16 %v2568
  %v2577 = vpack.c.b16 %v2574, %v2573
  %v2578 = vpack.c.b16 %v2576, %v2575
  %v2582 = vsel %vm80, %v2562, 0
  %v2585 = vsel %vm80, %v2563, 0
  %2587 = vmatprep.subr.bf16.mxu0 0
  %2588 = vmatpush1.bf16.msra.mxu0 %v2577
  %2589 = vmatprep.subr.bf16.mxu0 0
  %2590 = vmatpush1.bf16.msra.mxu0 %v2578
  %2591 = vmatprep.subr.bf16.mxu0 0
  %2592 = vmatpush1.bf16.msra.mxu0 0
  %2593 = vmatprep.subr.bf16.mxu0 0
  %2594 = vmatpush1.bf16.msra.mxu0 0
  %2595 = vmatprep.subr.bf16.mxu0 0
  %2596 = vmatpush1.bf16.msra.mxu0 0
  %2597 = vmatprep.subr.bf16.mxu0 0
  %2598 = vmatpush1.bf16.msra.mxu0 0
  %2599 = vmatprep.subr.bf16.mxu0 0
  %2600 = vmatpush1.bf16.msra.mxu0 0
  %2601 = vmatprep.subr.bf16.mxu0 0
  %2602 = vmatpush1.bf16.msra.mxu0 0
  %2603 = vmatprep.subr.bf16.mxu0 0
  %2604 = vmatpush1.bf16.msra.mxu0 0
  %2605 = vmatprep.subr.bf16.mxu0 0
  %2606 = vmatpush1.bf16.msra.mxu0 0
  %2607 = vmatprep.subr.bf16.mxu0 0
  %2608 = vmatpush1.bf16.msra.mxu0 0
  %2609 = vmatprep.subr.bf16.mxu0 0
  %2610 = vmatpush1.bf16.msra.mxu0 0
  %2611 = vmatprep.subr.bf16.mxu0 0
  %2612 = vmatpush1.bf16.msra.mxu0 0
  %2613 = vmatprep.subr.bf16.mxu0 0
  %2614 = vmatpush1.bf16.msra.mxu0 0
  %2615 = vmatprep.subr.bf16.mxu0 0
  %2616 = vmatpush1.bf16.msra.mxu0 0
  %2617 = vmatprep.subr.bf16.mxu0 0
  %2618 = vmatpush1.bf16.msra.mxu0 0
  %2619 = vmatprep.mubr.bf16.mxu0 0
  %2620 = vmatmul.mubr.bf16.gmra.mrb[0].mxu0 %v1395
  %v2621 = vpop.f32.mrb[0].mxu0
  %v2622 = vadd.f32 0.0, %v2621
  %v2623 = vpop.f32.mrb[0].mxu0
  %v2624 = vpop.f32.mrb[0].mxu0
  %v2625 = vadd.f32 0.0, %v2624
  %v2626 = vpop.f32.mrb[0].mxu0
  %2627 = vmatprep.mubr.bf16.mxu0 0
  %2628 = vmatmul.mubr.bf16.gmra.mrb[0].mxu0 %v1398
  %v2629 = vpop.f32.mrb[0].mxu0
  %v2630 = vadd.f32 0.0, %v2629
  %v2631 = vpop.f32.mrb[0].mxu0
  %v2632 = vpop.f32.mrb[0].mxu0
  %v2633 = vadd.f32 0.0, %v2632
  %v2634 = vpop.f32.mrb[0].mxu0
  %2635 = vmatprep.mubr.bf16.mxu0 0
  %2636 = vmatmul.mubr.bf16.gmra.mrb[0].mxu0 %v1401
  %v2637 = vpop.f32.mrb[0].mxu0
  %v2638 = vadd.f32 0.0, %v2637
  %v2639 = vpop.f32.mrb[0].mxu0
  %v2640 = vpop.f32.mrb[0].mxu0
  %v2641 = vadd.f32 0.0, %v2640
  %v2642 = vpop.f32.mrb[0].mxu0
  %2643 = vmatprep.mubr.bf16.mxu0 0
  %2644 = vmatmul.mubr.bf16.gmra.mrb[0].mxu0 %v2582
  %v2645 = vpop.f32.mrb[0].mxu0
  %v2646 = vadd.f32 0.0, %v2645
  %v2647 = vpop.f32.mrb[0].mxu0
  %v2648 = vpop.f32.mrb[0].mxu0
  %v2649 = vadd.f32 0.0, %v2648
  %v2650 = vpop.f32.mrb[0].mxu0
  %2651 = vmatprep.mubr.bf16.mxu0 0
  %2652 = vmatmul.mubr.bf16.gmra.mrb[0].mxu0 %v1407
  %v2653 = vpop.f32.mrb[0].mxu0
  %v2654 = vadd.f32 0.0, %v2653
  %v2655 = vpop.f32.mrb[0].mxu0
  %v2656 = vpop.f32.mrb[0].mxu0
  %v2657 = vadd.f32 0.0, %v2656
  %v2658 = vpop.f32.mrb[0].mxu0
  %2659 = vmatprep.mubr.bf16.mxu0 0
  %2660 = vmatmul.mubr.bf16.gmra.mrb[0].mxu0 %v1410
  %v2661 = vpop.f32.mrb[0].mxu0
  %v2662 = vadd.f32 0.0, %v2661
  %v2663 = vpop.f32.mrb[0].mxu0
  %v2664 = vpop.f32.mrb[0].mxu0
  %v2665 = vadd.f32 0.0, %v2664
  %v2666 = vpop.f32.mrb[0].mxu0
  %2667 = vmatprep.mubr.bf16.mxu0 0
  %2668 = vmatmul.mubr.bf16.gmra.mrb[0].mxu0 %v1413
  %v2669 = vpop.f32.mrb[0].mxu0
  %v2670 = vadd.f32 0.0, %v2669
  %v2671 = vpop.f32.mrb[0].mxu0
  %v2672 = vpop.f32.mrb[0].mxu0
  %v2673 = vadd.f32 0.0, %v2672
  %v2674 = vpop.f32.mrb[0].mxu0
  %2675 = vmatprep.mubr.bf16.mxu0 0
  %2676 = vmatmul.mubr.bf16.gmra.mrb[0].mxu0 %v2585
  %v2677 = vpop.f32.mrb[0].mxu0
  %v2678 = vadd.f32 0.0, %v2677
  %v2679 = vpop.f32.mrb[0].mxu0
  %v2680 = vpop.f32.mrb[0].mxu0
  %v2681 = vadd.f32 0.0, %v2680
  %v2682 = vpop.f32.mrb[0].mxu0
  %2683 = vdwg.mxu0
  %v2684 = vadd.f32 %v2544, %v2622
  %v2685 = vadd.f32 %v2545, %v2625
  %v2686 = vadd.f32 %v2546, %v2630
  %v2687 = vadd.f32 %v2547, %v2633
  %v2688 = vadd.f32 %v2548, %v2638
  %v2689 = vadd.f32 %v2549, %v2641
  %v2690 = vadd.f32 %v2550, %v2646
  %v2691 = vadd.f32 %v2551, %v2649
  %v2692 = vadd.f32 %v2552, %v2654
  %v2693 = vadd.f32 %v2553, %v2657
  %v2694 = vadd.f32 %v2554, %v2662
  %v2695 = vadd.f32 %v2555, %v2665
  %v2696 = vadd.f32 %v2556, %v2670
  %v2697 = vadd.f32 %v2557, %v2673
  %v2698 = vadd.f32 %v2558, %v2678
  %v2699 = vadd.f32 %v2559, %v2681
  %v2700 = vld [vmem:[%s2418 + $0x2] sm:$0xff]
  %v2701 = vld [vmem:[%s2420 + $0x2] sm:$0xff]
  %v2702 = vpack.c.bf16 %v2700, %v2138
  %v2703 = vpack.c.bf16 %v2701, %v2139
  %s2704 = scalar_lea.vmem %s4, 224
  %v2705 = vld [vmem:[%s2704] sm:$0xf]
  %v2706 = vld [vmem:[%s2704 + $0x4] sm:$0xf]
  %v2707 = vld [vmem:[%s2704 + $0x8] sm:$0xf]
  %v2708 = vld [vmem:[%s2704 + $0xc] sm:$0xf]
  %v2713 = vunpack.c.l.b16 %v2705
  %v2714 = vunpack.c.l.b16 %v2706
  %v2715 = vunpack.c.l.b16 %v2707
  %v2716 = vunpack.c.l.b16 %v2708
  %v2717 = vpack.c.b16 %v2714, %v2713
  %v2718 = vpack.c.b16 %v2716, %v2715
  %v2722 = vsel %vm80, %v2702, 0
  %v2725 = vsel %vm80, %v2703, 0
  %2727 = vmatprep.subr.bf16.mxu0 0
  %2728 = vmatpush1.bf16.msra.mxu0 %v2717
  %2729 = vmatprep.subr.bf16.mxu0 0
  %2730 = vmatpush1.bf16.msra.mxu0 %v2718
  %2731 = vmatprep.subr.bf16.mxu0 0
  %2732 = vmatpush1.bf16.msra.mxu0 0
  %2733 = vmatprep.subr.bf16.mxu0 0
  %2734 = vmatpush1.bf16.msra.mxu0 0
  %2735 = vmatprep.subr.bf16.mxu0 0
  %2736 = vmatpush1.bf16.msra.mxu0 0
  %2737 = vmatprep.subr.bf16.mxu0 0
  %2738 = vmatpush1.bf16.msra.mxu0 0
  %2739 = vmatprep.subr.bf16.mxu0 0
  %2740 = vmatpush1.bf16.msra.mxu0 0
  %2741 = vmatprep.subr.bf16.mxu0 0
  %2742 = vmatpush1.bf16.msra.mxu0 0
  %2743 = vmatprep.subr.bf16.mxu0 0
  %2744 = vmatpush1.bf16.msra.mxu0 0
  %2745 = vmatprep.subr.bf16.mxu0 0
  %2746 = vmatpush1.bf16.msra.mxu0 0
  %2747 = vmatprep.subr.bf16.mxu0 0
  %2748 = vmatpush1.bf16.msra.mxu0 0
  %2749 = vmatprep.subr.bf16.mxu0 0
  %2750 = vmatpush1.bf16.msra.mxu0 0
  %2751 = vmatprep.subr.bf16.mxu0 0
  %2752 = vmatpush1.bf16.msra.mxu0 0
  %2753 = vmatprep.subr.bf16.mxu0 0
  %2754 = vmatpush1.bf16.msra.mxu0 0
  %2755 = vmatprep.subr.bf16.mxu0 0
  %2756 = vmatpush1.bf16.msra.mxu0 0
  %2757 = vmatprep.subr.bf16.mxu0 0
  %2758 = vmatpush1.bf16.msra.mxu0 0
  %2759 = vmatprep.mubr.bf16.mxu0 0
  %2760 = vmatmul.mubr.bf16.gmra.mrb[0].mxu0 %v1559
  %v2761 = vpop.f32.mrb[0].mxu0
  %v2762 = vadd.f32 0.0, %v2761
  %v2763 = vpop.f32.mrb[0].mxu0
  %v2764 = vpop.f32.mrb[0].mxu0
  %v2765 = vadd.f32 0.0, %v2764
  %v2766 = vpop.f32.mrb[0].mxu0
  %2767 = vmatprep.mubr.bf16.mxu0 0
  %2768 = vmatmul.mubr.bf16.gmra.mrb[0].mxu0 %v1562
  %v2769 = vpop.f32.mrb[0].mxu0
  %v2770 = vadd.f32 0.0, %v2769
  %v2771 = vpop.f32.mrb[0].mxu0
  %v2772 = vpop.f32.mrb[0].mxu0
  %v2773 = vadd.f32 0.0, %v2772
  %v2774 = vpop.f32.mrb[0].mxu0
  %2775 = vmatprep.mubr.bf16.mxu0 0
  %2776 = vmatmul.mubr.bf16.gmra.mrb[0].mxu0 %v1565
  %v2777 = vpop.f32.mrb[0].mxu0
  %v2778 = vadd.f32 0.0, %v2777
  %v2779 = vpop.f32.mrb[0].mxu0
  %v2780 = vpop.f32.mrb[0].mxu0
  %v2781 = vadd.f32 0.0, %v2780
  %v2782 = vpop.f32.mrb[0].mxu0
  %2783 = vmatprep.mubr.bf16.mxu0 0
  %2784 = vmatmul.mubr.bf16.gmra.mrb[0].mxu0 %v2722
  %v2785 = vpop.f32.mrb[0].mxu0
  %v2786 = vadd.f32 0.0, %v2785
  %v2787 = vpop.f32.mrb[0].mxu0
  %v2788 = vpop.f32.mrb[0].mxu0
  %v2789 = vadd.f32 0.0, %v2788
  %v2790 = vpop.f32.mrb[0].mxu0
  %2791 = vmatprep.mubr.bf16.mxu0 0
  %2792 = vmatmul.mubr.bf16.gmra.mrb[0].mxu0 %v1571
  %v2793 = vpop.f32.mrb[0].mxu0
  %v2794 = vadd.f32 0.0, %v2793
  %v2795 = vpop.f32.mrb[0].mxu0
  %v2796 = vpop.f32.mrb[0].mxu0
  %v2797 = vadd.f32 0.0, %v2796
  %v2798 = vpop.f32.mrb[0].mxu0
  %2799 = vmatprep.mubr.bf16.mxu0 0
  %2800 = vmatmul.mubr.bf16.gmra.mrb[0].mxu0 %v1574
  %v2801 = vpop.f32.mrb[0].mxu0
  %v2802 = vadd.f32 0.0, %v2801
  %v2803 = vpop.f32.mrb[0].mxu0
  %v2804 = vpop.f32.mrb[0].mxu0
  %v2805 = vadd.f32 0.0, %v2804
  %v2806 = vpop.f32.mrb[0].mxu0
  %2807 = vmatprep.mubr.bf16.mxu0 0
  %2808 = vmatmul.mubr.bf16.gmra.mrb[0].mxu0 %v1577
  %v2809 = vpop.f32.mrb[0].mxu0
  %v2810 = vadd.f32 0.0, %v2809
  %v2811 = vpop.f32.mrb[0].mxu0
  %v2812 = vpop.f32.mrb[0].mxu0
  %v2813 = vadd.f32 0.0, %v2812
  %v2814 = vpop.f32.mrb[0].mxu0
  %2815 = vmatprep.mubr.bf16.mxu0 0
  %2816 = vmatmul.mubr.bf16.gmra.mrb[0].mxu0 %v2725
  %v2817 = vpop.f32.mrb[0].mxu0
  %v2818 = vadd.f32 0.0, %v2817
  %v2819 = vpop.f32.mrb[0].mxu0
  %v2820 = vpop.f32.mrb[0].mxu0
  %v2821 = vadd.f32 0.0, %v2820
  %v2822 = vpop.f32.mrb[0].mxu0
  %2823 = vdwg.mxu0
  %v2824 = vadd.f32 %v2684, %v2762
  %v2825 = vadd.f32 %v2685, %v2765
  %v2826 = vadd.f32 %v2686, %v2770
  %v2827 = vadd.f32 %v2687, %v2773
  %v2828 = vadd.f32 %v2688, %v2778
  %v2829 = vadd.f32 %v2689, %v2781
  %v2830 = vadd.f32 %v2690, %v2786
  %v2831 = vadd.f32 %v2691, %v2789
  %v2832 = vadd.f32 %v2692, %v2794
  %v2833 = vadd.f32 %v2693, %v2797
  %v2834 = vadd.f32 %v2694, %v2802
  %v2835 = vadd.f32 %v2695, %v2805
  %v2836 = vadd.f32 %v2696, %v2810
  %v2837 = vadd.f32 %v2697, %v2813
  %v2838 = vadd.f32 %v2698, %v2818
  %v2839 = vadd.f32 %v2699, %v2821
  %v2840 = vld [vmem:[%s2418 + $0x3] sm:$0xff]
  %v2841 = vld [vmem:[%s2420 + $0x3] sm:$0xff]
  %v2842 = vpack.c.bf16 %v2840, %v2278
  %v2843 = vpack.c.bf16 %v2841, %v2279
  %s2844 = scalar_lea.vmem %s4, 240
  %v2845 = vld [vmem:[%s2844] sm:$0xf]
  %v2846 = vld [vmem:[%s2844 + $0x4] sm:$0xf]
  %v2847 = vld [vmem:[%s2844 + $0x8] sm:$0xf]
  %v2848 = vld [vmem:[%s2844 + $0xc] sm:$0xf]
  %v2853 = vunpack.c.l.b16 %v2845
  %v2854 = vunpack.c.l.b16 %v2846
  %v2855 = vunpack.c.l.b16 %v2847
  %v2856 = vunpack.c.l.b16 %v2848
  %v2857 = vpack.c.b16 %v2854, %v2853
  %v2858 = vpack.c.b16 %v2856, %v2855
  %v2862 = vsel %vm80, %v2842, 0
  %v2865 = vsel %vm80, %v2843, 0
  %2867 = vmatprep.subr.bf16.mxu0 0
  %2868 = vmatpush1.bf16.msra.mxu0 %v2857
  %2869 = vmatprep.subr.bf16.mxu0 0
  %2870 = vmatpush1.bf16.msra.mxu0 %v2858
  %2871 = vmatprep.subr.bf16.mxu0 0
  %2872 = vmatpush1.bf16.msra.mxu0 0
  %2873 = vmatprep.subr.bf16.mxu0 0
  %2874 = vmatpush1.bf16.msra.mxu0 0
  %2875 = vmatprep.subr.bf16.mxu0 0
  %2876 = vmatpush1.bf16.msra.mxu0 0
  %2877 = vmatprep.subr.bf16.mxu0 0
  %2878 = vmatpush1.bf16.msra.mxu0 0
  %2879 = vmatprep.subr.bf16.mxu0 0
  %2880 = vmatpush1.bf16.msra.mxu0 0
  %2881 = vmatprep.subr.bf16.mxu0 0
  %2882 = vmatpush1.bf16.msra.mxu0 0
  %2883 = vmatprep.subr.bf16.mxu0 0
  %2884 = vmatpush1.bf16.msra.mxu0 0
  %2885 = vmatprep.subr.bf16.mxu0 0
  %2886 = vmatpush1.bf16.msra.mxu0 0
  %2887 = vmatprep.subr.bf16.mxu0 0
  %2888 = vmatpush1.bf16.msra.mxu0 0
  %2889 = vmatprep.subr.bf16.mxu0 0
  %2890 = vmatpush1.bf16.msra.mxu0 0
  %2891 = vmatprep.subr.bf16.mxu0 0
  %2892 = vmatpush1.bf16.msra.mxu0 0
  %2893 = vmatprep.subr.bf16.mxu0 0
  %2894 = vmatpush1.bf16.msra.mxu0 0
  %2895 = vmatprep.subr.bf16.mxu0 0
  %2896 = vmatpush1.bf16.msra.mxu0 0
  %2897 = vmatprep.subr.bf16.mxu0 0
  %2898 = vmatpush1.bf16.msra.mxu0 0
  %2899 = vmatprep.mubr.bf16.mxu0 0
  %2900 = vmatmul.mubr.bf16.gmra.mrb[0].mxu0 %v1723
  %v2901 = vpop.f32.mrb[0].mxu0
  %v2902 = vadd.f32 0.0, %v2901
  %v2903 = vpop.f32.mrb[0].mxu0
  %v2904 = vpop.f32.mrb[0].mxu0
  %v2905 = vadd.f32 0.0, %v2904
  %v2906 = vpop.f32.mrb[0].mxu0
  %2907 = vmatprep.mubr.bf16.mxu0 0
  %2908 = vmatmul.mubr.bf16.gmra.mrb[0].mxu0 %v1726
  %v2909 = vpop.f32.mrb[0].mxu0
  %v2910 = vadd.f32 0.0, %v2909
  %v2911 = vpop.f32.mrb[0].mxu0
  %v2912 = vpop.f32.mrb[0].mxu0
  %v2913 = vadd.f32 0.0, %v2912
  %v2914 = vpop.f32.mrb[0].mxu0
  %2915 = vmatprep.mubr.bf16.mxu0 0
  %2916 = vmatmul.mubr.bf16.gmra.mrb[0].mxu0 %v1729
  %v2917 = vpop.f32.mrb[0].mxu0
  %v2918 = vadd.f32 0.0, %v2917
  %v2919 = vpop.f32.mrb[0].mxu0
  %v2920 = vpop.f32.mrb[0].mxu0
  %v2921 = vadd.f32 0.0, %v2920
  %v2922 = vpop.f32.mrb[0].mxu0
  %2923 = vmatprep.mubr.bf16.mxu0 0
  %2924 = vmatmul.mubr.bf16.gmra.mrb[0].mxu0 %v2862
  %v2925 = vpop.f32.mrb[0].mxu0
  %v2926 = vadd.f32 0.0, %v2925
  %v2927 = vpop.f32.mrb[0].mxu0
  %v2928 = vpop.f32.mrb[0].mxu0
  %v2929 = vadd.f32 0.0, %v2928
  %v2930 = vpop.f32.mrb[0].mxu0
  %2931 = vmatprep.mubr.bf16.mxu0 0
  %2932 = vmatmul.mubr.bf16.gmra.mrb[0].mxu0 %v1735
  %v2933 = vpop.f32.mrb[0].mxu0
  %v2934 = vadd.f32 0.0, %v2933
  %v2935 = vpop.f32.mrb[0].mxu0
  %v2936 = vpop.f32.mrb[0].mxu0
  %v2937 = vadd.f32 0.0, %v2936
  %v2938 = vpop.f32.mrb[0].mxu0
  %2939 = vmatprep.mubr.bf16.mxu0 0
  %2940 = vmatmul.mubr.bf16.gmra.mrb[0].mxu0 %v1738
  %v2941 = vpop.f32.mrb[0].mxu0
  %v2942 = vadd.f32 0.0, %v2941
  %v2943 = vpop.f32.mrb[0].mxu0
  %v2944 = vpop.f32.mrb[0].mxu0
  %v2945 = vadd.f32 0.0, %v2944
  %v2946 = vpop.f32.mrb[0].mxu0
  %2947 = vmatprep.mubr.bf16.mxu0 0
  %2948 = vmatmul.mubr.bf16.gmra.mrb[0].mxu0 %v1741
  %v2949 = vpop.f32.mrb[0].mxu0
  %v2950 = vadd.f32 0.0, %v2949
  %v2951 = vpop.f32.mrb[0].mxu0
  %v2952 = vpop.f32.mrb[0].mxu0
  %v2953 = vadd.f32 0.0, %v2952
  %v2954 = vpop.f32.mrb[0].mxu0
  %2955 = vmatprep.mubr.bf16.mxu0 0
  %2956 = vmatmul.mubr.bf16.gmra.mrb[0].mxu0 %v2865
  %v2957 = vpop.f32.mrb[0].mxu0
  %v2958 = vadd.f32 0.0, %v2957
  %v2959 = vpop.f32.mrb[0].mxu0
  %v2960 = vpop.f32.mrb[0].mxu0
  %v2961 = vadd.f32 0.0, %v2960
  %v2962 = vpop.f32.mrb[0].mxu0
  %2963 = vdwg.mxu0
  %v2964 = vadd.f32 %v2824, %v2902
  %v2965 = vadd.f32 %v2825, %v2905
  %v2966 = vadd.f32 %v2826, %v2910
  %v2967 = vadd.f32 %v2827, %v2913
  %v2968 = vadd.f32 %v2828, %v2918
  %v2969 = vadd.f32 %v2829, %v2921
  %v2970 = vadd.f32 %v2830, %v2926
  %v2971 = vadd.f32 %v2831, %v2929
  %v2972 = vadd.f32 %v2832, %v2934
  %v2973 = vadd.f32 %v2833, %v2937
  %v2974 = vadd.f32 %v2834, %v2942
  %v2975 = vadd.f32 %v2835, %v2945
  %v2976 = vadd.f32 %v2836, %v2950
  %v2977 = vadd.f32 %v2837, %v2953
  %v2978 = vadd.f32 %v2838, %v2958
  %v2979 = vadd.f32 %v2839, %v2961
  %v2980 = vld [vmem:[%s5] sm:$0x1]
  %v2982 = vlaneseq
  %v2983 = vshrl.u32 %v2982, 7
  %v2984 = vsub.s32 0, %v2983
  %v2985 = vrot.slane %v2980, %v2984
  %v2987 = vmul.f32 %v2964, %v2985
  %v2988 = vmul.f32 %v2965, %v2985
  %v2989 = vmul.f32 %v2966, %v2985
  %v2990 = vmul.f32 %v2967, %v2985
  %v2991 = vmul.f32 %v2968, %v2985
  %v2992 = vmul.f32 %v2969, %v2985
  %v2993 = vmul.f32 %v2970, %v2985
  %v2994 = vmul.f32 %v2971, %v2985
  %v2995 = vmul.f32 %v2972, %v2985
  %v2996 = vmul.f32 %v2973, %v2985
  %v2997 = vmul.f32 %v2974, %v2985
  %v2998 = vmul.f32 %v2975, %v2985
  %v2999 = vmul.f32 %v2976, %v2985
  %v3000 = vmul.f32 %v2977, %v2985
  %v3001 = vmul.f32 %v2978, %v2985
  %v3002 = vmul.f32 %v2979, %v2985
  %v3003 = vld [vmem:[%s6] sm:$0x1]
  %v3005 = vlaneseq
  %v3006 = vshrl.u32 %v3005, 7
  %v3007 = vsub.s32 0, %v3006
  %v3008 = vrot.slane %v3003, %v3007
  %v3010 = vadd.f32 %v2987, %v3008
  %v3011 = vadd.f32 %v2988, %v3008
  %v3012 = vadd.f32 %v2989, %v3008
  %v3013 = vadd.f32 %v2990, %v3008
  %v3014 = vadd.f32 %v2991, %v3008
  %v3015 = vadd.f32 %v2992, %v3008
  %v3016 = vadd.f32 %v2993, %v3008
  %v3017 = vadd.f32 %v2994, %v3008
  %v3018 = vadd.f32 %v2995, %v3008
  %v3019 = vadd.f32 %v2996, %v3008
  %v3020 = vadd.f32 %v2997, %v3008
  %v3021 = vadd.f32 %v2998, %v3008
  %v3022 = vadd.f32 %v2999, %v3008
  %v3023 = vadd.f32 %v3000, %v3008
  %v3024 = vadd.f32 %v3001, %v3008
  %v3025 = vadd.f32 %v3002, %v3008
  %v3026 = vmax.f32 %v3010, 0.0
  %v3027 = vmax.f32 %v3011, 0.0
  %v3028 = vmax.f32 %v3012, 0.0
  %v3029 = vmax.f32 %v3013, 0.0
  %v3030 = vmax.f32 %v3014, 0.0
  %v3031 = vmax.f32 %v3015, 0.0
  %v3032 = vmax.f32 %v3016, 0.0
  %v3033 = vmax.f32 %v3017, 0.0
  %v3034 = vmax.f32 %v3018, 0.0
  %v3035 = vmax.f32 %v3019, 0.0
  %v3036 = vmax.f32 %v3020, 0.0
  %v3037 = vmax.f32 %v3021, 0.0
  %v3038 = vmax.f32 %v3022, 0.0
  %v3039 = vmax.f32 %v3023, 0.0
  %v3040 = vmax.f32 %v3024, 0.0
  %v3041 = vmax.f32 %v3025, 0.0
  %vm3042 = vcmask 130048
  %3043 = vst.msk [vmem:[#allocation3] sm:$0xff] %vm3042, 0.0
  %vm3044 = vcmask 123904
  %3045 = vst.msk [vmem:[#allocation3 + $0x8] sm:$0x3] %vm3044, 0.0
  %3046 = vst.msk [vmem:[#allocation3 + $0x10] sm:$0xff] %vm3042, 0.0
  %3047 = vst.msk [vmem:[#allocation3 + $0x18] sm:$0x3] %vm3044, 0.0
  %3048 = vst.msk [vmem:[#allocation3 + $0x20] sm:$0xff] %vm3042, 0.0
  %3049 = vst.msk [vmem:[#allocation3 + $0x28] sm:$0x3] %vm3044, 0.0
  %3050 = vst.msk [vmem:[#allocation3 + $0x30] sm:$0xff] %vm3042, 0.0
  %3051 = vst.msk [vmem:[#allocation3 + $0x38] sm:$0x3] %vm3044, 0.0
  %3052 = vst.msk [vmem:[#allocation3 + $0x40] sm:$0xff] %vm3042, 0.0
  %3053 = vst.msk [vmem:[#allocation3 + $0x48] sm:$0x3] %vm3044, 0.0
  %3054 = vst.msk [vmem:[#allocation3 + $0x50] sm:$0xff] %vm3042, 0.0
  %3055 = vst.msk [vmem:[#allocation3 + $0x58] sm:$0x3] %vm3044, 0.0
  %3056 = vst.msk [vmem:[#allocation3 + $0x60] sm:$0xff] %vm3042, 0.0
  %3057 = vst.msk [vmem:[#allocation3 + $0x68] sm:$0x3] %vm3044, 0.0
  %3058 = vst.msk [vmem:[#allocation3 + $0x70] sm:$0xff] %vm3042, 0.0
  %3059 = vst.msk [vmem:[#allocation3 + $0x78] sm:$0x3] %vm3044, 0.0
  %3060 = vst.msk [vmem:[#allocation3 + $0x80] sm:$0xff] %vm3042, 0.0
  %3061 = vst.msk [vmem:[#allocation3 + $0x88] sm:$0x3] %vm3044, 0.0
  %3062 = vst.msk [vmem:[#allocation3 + $0x90] sm:$0xff] %vm3042, 0.0
  %3063 = vst.msk [vmem:[#allocation3 + $0x98] sm:$0x3] %vm3044, 0.0
  %3064 = vst.msk [vmem:[#allocation3 + $0xa0] sm:$0xff] %vm3042, 0.0
  %3065 = vst.msk [vmem:[#allocation3 + $0xa8] sm:$0x3] %vm3044, 0.0
  %3066 = vst.msk [vmem:[#allocation3 + $0xb0] sm:$0xff] %vm3042, 0.0
  %3067 = vst.msk [vmem:[#allocation3 + $0xb8] sm:$0x3] %vm3044, 0.0
  %3068 = vst.msk [vmem:[#allocation3 + $0xc0] sm:$0xff] %vm3042, 0.0
  %3069 = vst.msk [vmem:[#allocation3 + $0xc8] sm:$0x3] %vm3044, 0.0
  %3070 = vst.msk [vmem:[#allocation3 + $0xd0] sm:$0xff] %vm3042, 0.0
  %3071 = vst.msk [vmem:[#allocation3 + $0xd8] sm:$0x3] %vm3044, 0.0
  %3072 = vst.msk [vmem:[#allocation3 + $0xe0] sm:$0xff] %vm3042, 0.0
  %3073 = vst.msk [vmem:[#allocation3 + $0xe8] sm:$0x3] %vm3044, 0.0
  %3074 = vst.msk [vmem:[#allocation3 + $0xf0] sm:$0xff] %vm3042, 0.0
  %3075 = vst.msk [vmem:[#allocation3 + $0xf8] sm:$0x3] %vm3044, 0.0
  %3076 = vst.msk [vmem:[#allocation3 + $0x100] sm:$0xff] %vm3042, 0.0
  %3077 = vst.msk [vmem:[#allocation3 + $0x108] sm:$0x3] %vm3044, 0.0
  %3078 = vst.msk [vmem:[#allocation3 + $0x110] sm:$0xff] %vm3042, 0.0
  %3079 = vst.msk [vmem:[#allocation3 + $0x118] sm:$0x3] %vm3044, 0.0
  %3080 = vst.msk [vmem:[#allocation3 + $0x120] sm:$0xff] %vm3042, 0.0
  %3081 = vst.msk [vmem:[#allocation3 + $0x128] sm:$0x3] %vm3044, 0.0
  %3082 = vst.msk [vmem:[#allocation3 + $0x130] sm:$0xff] %vm3042, 0.0
  %3083 = vst.msk [vmem:[#allocation3 + $0x138] sm:$0x3] %vm3044, 0.0
  %s3084 = scalar_lea.vmem [#allocation3], 16
  %3085 = vst.msk [vmem:[%s3084 + $0x1] sm:$0xff] %vm3042, %v3026
  %s3086 = scalar_lea.vmem [#allocation3], 32
  %3087 = vst.msk [vmem:[%s3086 + $0x1] sm:$0xff] %vm3042, %v3027
  %s3088 = scalar_lea.vmem [#allocation3], 48
  %3089 = vst.msk [vmem:[%s3088 + $0x1] sm:$0xff] %vm3042, %v3028
  %s3090 = scalar_lea.vmem [#allocation3], 64
  %3091 = vst.msk [vmem:[%s3090 + $0x1] sm:$0xff] %vm3042, %v3029
  %s3092 = scalar_lea.vmem [#allocation3], 80
  %3093 = vst.msk [vmem:[%s3092 + $0x1] sm:$0xff] %vm3042, %v3030
  %s3094 = scalar_lea.vmem [#allocation3], 96
  %3095 = vst.msk [vmem:[%s3094 + $0x1] sm:$0xff] %vm3042, %v3031
  %s3096 = scalar_lea.vmem [#allocation3], 112
  %3097 = vst.msk [vmem:[%s3096 + $0x1] sm:$0xff] %vm3042, %v3032
  %s3098 = scalar_lea.vmem [#allocation3], 128
  %3099 = vst.msk [vmem:[%s3098 + $0x1] sm:$0xff] %vm3042, %v3033
  %s3100 = scalar_lea.vmem [#allocation3], 176
  %3101 = vst.msk [vmem:[%s3100 + $0x1] sm:$0xff] %vm3042, %v3034
  %s3102 = scalar_lea.vmem [#allocation3], 192
  %3103 = vst.msk [vmem:[%s3102 + $0x1] sm:$0xff] %vm3042, %v3035
  %s3104 = scalar_lea.vmem [#allocation3], 208
  %3105 = vst.msk [vmem:[%s3104 + $0x1] sm:$0xff] %vm3042, %v3036
  %s3106 = scalar_lea.vmem [#allocation3], 224
  %3107 = vst.msk [vmem:[%s3106 + $0x1] sm:$0xff] %vm3042, %v3037
  %s3108 = scalar_lea.vmem [#allocation3], 240
  %3109 = vst.msk [vmem:[%s3108 + $0x1] sm:$0xff] %vm3042, %v3038
  %s3110 = scalar_lea.vmem [#allocation3], 256
  %3111 = vst.msk [vmem:[%s3110 + $0x1] sm:$0xff] %vm3042, %v3039
  %s3112 = scalar_lea.vmem [#allocation3], 272
  %3113 = vst.msk [vmem:[%s3112 + $0x1] sm:$0xff] %vm3042, %v3040
  %s3114 = scalar_lea.vmem [#allocation3], 288
  %3115 = vst.msk [vmem:[%s3114 + $0x1] sm:$0xff] %vm3042, %v3041
  %v3116 = vld [vmem:[#allocation3] sm:$0xff]
  %v3117 = vld [vmem:[%s3084] sm:$0xff]
  %v3118 = vld [vmem:[%s3086] sm:$0xff]
  %v3119 = vld [vmem:[%s3088] sm:$0xff]
  %v3120 = vld [vmem:[%s3090] sm:$0xff]
  %v3121 = vld [vmem:[%s3092] sm:$0xff]
  %v3122 = vld [vmem:[%s3094] sm:$0xff]
  %v3123 = vld [vmem:[%s3096] sm:$0xff]
  %s3124 = scalar_lea.vmem [#allocation3], 160
  %v3125 = vld [vmem:[%s3124] sm:$0xff]
  %v3126 = vld [vmem:[%s3100] sm:$0xff]
  %v3127 = vld [vmem:[%s3102] sm:$0xff]
  %v3128 = vld [vmem:[%s3104] sm:$0xff]
  %v3129 = vld [vmem:[%s3106] sm:$0xff]
  %v3130 = vld [vmem:[%s3108] sm:$0xff]
  %v3131 = vld [vmem:[%s3110] sm:$0xff]
  %v3132 = vld [vmem:[%s3112] sm:$0xff]
  %v3133 = vpack.c.bf16 %v3117, %v3116
  %v3134 = vpack.c.bf16 %v3119, %v3118
  %v3135 = vpack.c.bf16 %v3121, %v3120
  %v3136 = vpack.c.bf16 %v3123, %v3122
  %v3137 = vpack.c.bf16 %v3126, %v3125
  %v3138 = vpack.c.bf16 %v3128, %v3127
  %v3139 = vpack.c.bf16 %v3130, %v3129
  %v3140 = vpack.c.bf16 %v3132, %v3131
  %s3141 = scalar_lea.vmem %s7, 120
  %v3142 = vld [vmem:[%s3141] sm:$0xf]
  %v3143 = vld [vmem:[%s3141 + $0x4] sm:$0xf]
  %v3144 = vld [vmem:[#allocation3 + $0x1] sm:$0xff]
  %v3145 = vld [vmem:[%s3084 + $0x1] sm:$0xff]
  %v3146 = vld [vmem:[%s3086 + $0x1] sm:$0xff]
  %v3147 = vld [vmem:[%s3088 + $0x1] sm:$0xff]
  %v3148 = vld [vmem:[%s3090 + $0x1] sm:$0xff]
  %v3149 = vld [vmem:[%s3092 + $0x1] sm:$0xff]
  %v3150 = vld [vmem:[%s3094 + $0x1] sm:$0xff]
  %v3151 = vld [vmem:[%s3096 + $0x1] sm:$0xff]
  %v3152 = vld [vmem:[%s3124 + $0x1] sm:$0xff]
  %v3153 = vld [vmem:[%s3100 + $0x1] sm:$0xff]
  %v3154 = vld [vmem:[%s3102 + $0x1] sm:$0xff]
  %v3155 = vld [vmem:[%s3104 + $0x1] sm:$0xff]
  %v3156 = vld [vmem:[%s3106 + $0x1] sm:$0xff]
  %v3157 = vld [vmem:[%s3108 + $0x1] sm:$0xff]
  %v3158 = vld [vmem:[%s3110 + $0x1] sm:$0xff]
  %v3159 = vld [vmem:[%s3112 + $0x1] sm:$0xff]
  %v3160 = vpack.c.bf16 %v3145, %v3144
  %v3161 = vpack.c.bf16 %v3147, %v3146
  %v3162 = vpack.c.bf16 %v3149, %v3148
  %v3163 = vpack.c.bf16 %v3151, %v3150
  %v3164 = vpack.c.bf16 %v3153, %v3152
  %v3165 = vpack.c.bf16 %v3155, %v3154
  %v3166 = vpack.c.bf16 %v3157, %v3156
  %v3167 = vpack.c.bf16 %v3159, %v3158
  %s3168 = scalar_lea.vmem %s7, 104
  %v3169 = vld [vmem:[%s3168] sm:$0xf]
  %v3170 = vld [vmem:[%s3168 + $0x4] sm:$0xf]
  %v3173 = vunpack.c.l.b16 %v3169
  %v3174 = vunpack.c.l.b16 %v3170
  %v3175 = vpack.c.b16 %v3174, %v3173
  %v3178 = vsel %vm3042, %v3160, 0
  %v3181 = vsel %vm3042, %v3161, 0
  %v3184 = vsel %vm3042, %v3162, 0
  %v3187 = vsel %vm3042, %v3163, 0
  %v3190 = vsel %vm3042, %v3164, 0
  %v3193 = vsel %vm3042, %v3165, 0
  %v3196 = vsel %vm3042, %v3166, 0
  %v3199 = vsel %vm3042, %v3167, 0
  %3201 = vmatprep.subr.bf16.mxu0 0
  %3202 = vmatpush1.bf16.msra.mxu0 %v3175
  %3203 = vmatprep.subr.bf16.mxu0 0
  %3204 = vmatpush1.bf16.msra.mxu0 0
  %3205 = vmatprep.subr.bf16.mxu0 0
  %3206 = vmatpush1.bf16.msra.mxu0 0
  %3207 = vmatprep.subr.bf16.mxu0 0
  %3208 = vmatpush1.bf16.msra.mxu0 0
  %3209 = vmatprep.subr.bf16.mxu0 0
  %3210 = vmatpush1.bf16.msra.mxu0 0
  %3211 = vmatprep.subr.bf16.mxu0 0
  %3212 = vmatpush1.bf16.msra.mxu0 0
  %3213 = vmatprep.subr.bf16.mxu0 0
  %3214 = vmatpush1.bf16.msra.mxu0 0
  %3215 = vmatprep.subr.bf16.mxu0 0
  %3216 = vmatpush1.bf16.msra.mxu0 0
  %3217 = vmatprep.subr.bf16.mxu0 0
  %3218 = vmatpush1.bf16.msra.mxu0 0
  %3219 = vmatprep.subr.bf16.mxu0 0
  %3220 = vmatpush1.bf16.msra.mxu0 0
  %3221 = vmatprep.subr.bf16.mxu0 0
  %3222 = vmatpush1.bf16.msra.mxu0 0
  %3223 = vmatprep.subr.bf16.mxu0 0
  %3224 = vmatpush1.bf16.msra.mxu0 0
  %3225 = vmatprep.subr.bf16.mxu0 0
  %3226 = vmatpush1.bf16.msra.mxu0 0
  %3227 = vmatprep.subr.bf16.mxu0 0
  %3228 = vmatpush1.bf16.msra.mxu0 0
  %3229 = vmatprep.subr.bf16.mxu0 0
  %3230 = vmatpush1.bf16.msra.mxu0 0
  %3231 = vmatprep.subr.bf16.mxu0 0
  %3232 = vmatpush1.bf16.msra.mxu0 0
  %3233 = vmatprep.mubr.bf16.mxu0 0
  %3234 = vmatmul.mubr.bf16.gmra.mrb[0].mxu0 %v3178
  %v3235 = vpop.f32.mrb[0].mxu0
  %v3236 = vadd.f32 0.0, %v3235
  %v3237 = vpop.f32.mrb[0].mxu0
  %v3238 = vpop.f32.mrb[0].mxu0
  %v3239 = vadd.f32 0.0, %v3238
  %v3240 = vpop.f32.mrb[0].mxu0
  %3241 = vmatprep.mubr.bf16.mxu0 0
  %3242 = vmatmul.mubr.bf16.gmra.mrb[0].mxu0 %v3181
  %v3243 = vpop.f32.mrb[0].mxu0
  %v3244 = vadd.f32 0.0, %v3243
  %v3245 = vpop.f32.mrb[0].mxu0
  %v3246 = vpop.f32.mrb[0].mxu0
  %v3247 = vadd.f32 0.0, %v3246
  %v3248 = vpop.f32.mrb[0].mxu0
  %3249 = vmatprep.mubr.bf16.mxu0 0
  %3250 = vmatmul.mubr.bf16.gmra.mrb[0].mxu0 %v3184
  %v3251 = vpop.f32.mrb[0].mxu0
  %v3252 = vadd.f32 0.0, %v3251
  %v3253 = vpop.f32.mrb[0].mxu0
  %v3254 = vpop.f32.mrb[0].mxu0
  %v3255 = vadd.f32 0.0, %v3254
  %v3256 = vpop.f32.mrb[0].mxu0
  %3257 = vmatprep.mubr.bf16.mxu0 0
  %3258 = vmatmul.mubr.bf16.gmra.mrb[0].mxu0 %v3187
  %v3259 = vpop.f32.mrb[0].mxu0
  %v3260 = vadd.f32 0.0, %v3259
  %v3261 = vpop.f32.mrb[0].mxu0
  %v3262 = vpop.f32.mrb[0].mxu0
  %v3263 = vadd.f32 0.0, %v3262
  %v3264 = vpop.f32.mrb[0].mxu0
  %3265 = vmatprep.mubr.bf16.mxu0 0
  %3266 = vmatmul.mubr.bf16.gmra.mrb[0].mxu0 %v3190
  %v3267 = vpop.f32.mrb[0].mxu0
  %v3268 = vadd.f32 0.0, %v3267
  %v3269 = vpop.f32.mrb[0].mxu0
  %v3270 = vpop.f32.mrb[0].mxu0
  %v3271 = vadd.f32 0.0, %v3270
  %v3272 = vpop.f32.mrb[0].mxu0
  %3273 = vmatprep.mubr.bf16.mxu0 0
  %3274 = vmatmul.mubr.bf16.gmra.mrb[0].mxu0 %v3193
  %v3275 = vpop.f32.mrb[0].mxu0
  %v3276 = vadd.f32 0.0, %v3275
  %v3277 = vpop.f32.mrb[0].mxu0
  %v3278 = vpop.f32.mrb[0].mxu0
  %v3279 = vadd.f32 0.0, %v3278
  %v3280 = vpop.f32.mrb[0].mxu0
  %3281 = vmatprep.mubr.bf16.mxu0 0
  %3282 = vmatmul.mubr.bf16.gmra.mrb[0].mxu0 %v3196
  %v3283 = vpop.f32.mrb[0].mxu0
  %v3284 = vadd.f32 0.0, %v3283
  %v3285 = vpop.f32.mrb[0].mxu0
  %v3286 = vpop.f32.mrb[0].mxu0
  %v3287 = vadd.f32 0.0, %v3286
  %v3288 = vpop.f32.mrb[0].mxu0
  %3289 = vmatprep.mubr.bf16.mxu0 0
  %3290 = vmatmul.mubr.bf16.gmra.mrb[0].mxu0 %v3199
  %v3291 = vpop.f32.mrb[0].mxu0
  %v3292 = vadd.f32 0.0, %v3291
  %v3293 = vpop.f32.mrb[0].mxu0
  %v3294 = vpop.f32.mrb[0].mxu0
  %v3295 = vadd.f32 0.0, %v3294
  %v3296 = vpop.f32.mrb[0].mxu0
  %3297 = vdwg.mxu0
  %v3300 = vunpack.c.l.b16 %v3142
  %v3301 = vunpack.c.l.b16 %v3143
  %v3302 = vpack.c.b16 %v3301, %v3300
  %v3305 = vsel %vm3042, %v3133, 0
  %v3308 = vsel %vm3042, %v3134, 0
  %v3311 = vsel %vm3042, %v3135, 0
  %v3314 = vsel %vm3042, %v3136, 0
  %v3317 = vsel %vm3042, %v3137, 0
  %v3320 = vsel %vm3042, %v3138, 0
  %v3323 = vsel %vm3042, %v3139, 0
  %v3326 = vsel %vm3042, %v3140, 0
  %3328 = vmatprep.subr.bf16.mxu0 0
  %3329 = vmatpush1.bf16.msra.mxu0 %v3302
  %3330 = vmatprep.subr.bf16.mxu0 0
  %3331 = vmatpush1.bf16.msra.mxu0 0
  %3332 = vmatprep.subr.bf16.mxu0 0
  %3333 = vmatpush1.bf16.msra.mxu0 0
  %3334 = vmatprep.subr.bf16.mxu0 0
  %3335 = vmatpush1.bf16.msra.mxu0 0
  %3336 = vmatprep.subr.bf16.mxu0 0
  %3337 = vmatpush1.bf16.msra.mxu0 0
  %3338 = vmatprep.subr.bf16.mxu0 0
  %3339 = vmatpush1.bf16.msra.mxu0 0
  %3340 = vmatprep.subr.bf16.mxu0 0
  %3341 = vmatpush1.bf16.msra.mxu0 0
  %3342 = vmatprep.subr.bf16.mxu0 0
  %3343 = vmatpush1.bf16.msra.mxu0 0
  %3344 = vmatprep.subr.bf16.mxu0 0
  %3345 = vmatpush1.bf16.msra.mxu0 0
  %3346 = vmatprep.subr.bf16.mxu0 0
  %3347 = vmatpush1.bf16.msra.mxu0 0
  %3348 = vmatprep.subr.bf16.mxu0 0
  %3349 = vmatpush1.bf16.msra.mxu0 0
  %3350 = vmatprep.subr.bf16.mxu0 0
  %3351 = vmatpush1.bf16.msra.mxu0 0
  %3352 = vmatprep.subr.bf16.mxu0 0
  %3353 = vmatpush1.bf16.msra.mxu0 0
  %3354 = vmatprep.subr.bf16.mxu0 0
  %3355 = vmatpush1.bf16.msra.mxu0 0
  %3356 = vmatprep.subr.bf16.mxu0 0
  %3357 = vmatpush1.bf16.msra.mxu0 0
  %3358 = vmatprep.subr.bf16.mxu0 0
  %3359 = vmatpush1.bf16.msra.mxu0 0
  %3360 = vmatprep.mubr.bf16.mxu0 0
  %3361 = vmatmul.mubr.bf16.gmra.mrb[0].mxu0 %v3305
  %v3362 = vpop.f32.mrb[0].mxu0
  %v3363 = vadd.f32 %v3236, %v3362
  %v3364 = vpop.f32.mrb[0].mxu0
  %v3365 = vpop.f32.mrb[0].mxu0
  %v3366 = vadd.f32 %v3239, %v3365
  %v3367 = vpop.f32.mrb[0].mxu0
  %3368 = vmatprep.mubr.bf16.mxu0 0
  %3369 = vmatmul.mubr.bf16.gmra.mrb[0].mxu0 %v3308
  %v3370 = vpop.f32.mrb[0].mxu0
  %v3371 = vadd.f32 %v3244, %v3370
  %v3372 = vpop.f32.mrb[0].mxu0
  %v3373 = vpop.f32.mrb[0].mxu0
  %v3374 = vadd.f32 %v3247, %v3373
  %v3375 = vpop.f32.mrb[0].mxu0
  %3376 = vmatprep.mubr.bf16.mxu0 0
  %3377 = vmatmul.mubr.bf16.gmra.mrb[0].mxu0 %v3311
  %v3378 = vpop.f32.mrb[0].mxu0
  %v3379 = vadd.f32 %v3252, %v3378
  %v3380 = vpop.f32.mrb[0].mxu0
  %v3381 = vpop.f32.mrb[0].mxu0
  %v3382 = vadd.f32 %v3255, %v3381
  %v3383 = vpop.f32.mrb[0].mxu0
  %3384 = vmatprep.mubr.bf16.mxu0 0
  %3385 = vmatmul.mubr.bf16.gmra.mrb[0].mxu0 %v3314
  %v3386 = vpop.f32.mrb[0].mxu0
  %v3387 = vadd.f32 %v3260, %v3386
  %v3388 = vpop.f32.mrb[0].mxu0
  %v3389 = vpop.f32.mrb[0].mxu0
  %v3390 = vadd.f32 %v3263, %v3389
  %v3391 = vpop.f32.mrb[0].mxu0
  %3392 = vmatprep.mubr.bf16.mxu0 0
  %3393 = vmatmul.mubr.bf16.gmra.mrb[0].mxu0 %v3317
  %v3394 = vpop.f32.mrb[0].mxu0
  %v3395 = vadd.f32 %v3268, %v3394
  %v3396 = vpop.f32.mrb[0].mxu0
  %v3397 = vpop.f32.mrb[0].mxu0
  %v3398 = vadd.f32 %v3271, %v3397
  %v3399 = vpop.f32.mrb[0].mxu0
  %3400 = vmatprep.mubr.bf16.mxu0 0
  %3401 = vmatmul.mubr.bf16.gmra.mrb[0].mxu0 %v3320
  %v3402 = vpop.f32.mrb[0].mxu0
  %v3403 = vadd.f32 %v3276, %v3402
  %v3404 = vpop.f32.mrb[0].mxu0
  %v3405 = vpop.f32.mrb[0].mxu0
  %v3406 = vadd.f32 %v3279, %v3405
  %v3407 = vpop.f32.mrb[0].mxu0
  %3408 = vmatprep.mubr.bf16.mxu0 0
  %3409 = vmatmul.mubr.bf16.gmra.mrb[0].mxu0 %v3323
  %v3410 = vpop.f32.mrb[0].mxu0
  %v3411 = vadd.f32 %v3284, %v3410
  %v3412 = vpop.f32.mrb[0].mxu0
  %v3413 = vpop.f32.mrb[0].mxu0
  %v3414 = vadd.f32 %v3287, %v3413
  %v3415 = vpop.f32.mrb[0].mxu0
  %3416 = vmatprep.mubr.bf16.mxu0 0
  %3417 = vmatmul.mubr.bf16.gmra.mrb[0].mxu0 %v3326
  %v3418 = vpop.f32.mrb[0].mxu0
  %v3419 = vadd.f32 %v3292, %v3418
  %v3420 = vpop.f32.mrb[0].mxu0
  %v3421 = vpop.f32.mrb[0].mxu0
  %v3422 = vadd.f32 %v3295, %v3421
  %v3423 = vpop.f32.mrb[0].mxu0
  %3424 = vdwg.mxu0
  %v3425 = vld [vmem:[%s3098] sm:$0xff]
  %v3426 = vld [vmem:[%s3114] sm:$0xff]
  %v3427 = vpack.c.bf16 %v3118, %v3117
  %v3428 = vpack.c.bf16 %v3120, %v3119
  %v3429 = vpack.c.bf16 %v3122, %v3121
  %v3430 = vpack.c.bf16 %v3425, %v3123
  %v3431 = vpack.c.bf16 %v3127, %v3126
  %v3432 = vpack.c.bf16 %v3129, %v3128
  %v3433 = vpack.c.bf16 %v3131, %v3130
  %v3434 = vpack.c.bf16 %v3426, %v3132
  %s3435 = scalar_lea.vmem %s7, 56
  %v3436 = vld [vmem:[%s3435] sm:$0xf]
  %v3437 = vld [vmem:[%s3435 + $0x4] sm:$0xf]
  %v3440 = vunpack.c.l.b16 %v3436
  %v3441 = vunpack.c.l.b16 %v3437
  %v3442 = vpack.c.b16 %v3441, %v3440
  %v3445 = vsel %vm3042, %v3427, 0
  %v3448 = vsel %vm3042, %v3428, 0
  %v3451 = vsel %vm3042, %v3429, 0
  %v3454 = vsel %vm3042, %v3430, 0
  %v3457 = vsel %vm3042, %v3431, 0
  %v3460 = vsel %vm3042, %v3432, 0
  %v3463 = vsel %vm3042, %v3433, 0
  %v3466 = vsel %vm3042, %v3434, 0
  %3468 = vmatprep.subr.bf16.mxu0 0
  %3469 = vmatpush1.bf16.msra.mxu0 %v3442
  %3470 = vmatprep.subr.bf16.mxu0 0
  %3471 = vmatpush1.bf16.msra.mxu0 0
  %3472 = vmatprep.subr.bf16.mxu0 0
  %3473 = vmatpush1.bf16.msra.mxu0 0
  %3474 = vmatprep.subr.bf16.mxu0 0
  %3475 = vmatpush1.bf16.msra.mxu0 0
  %3476 = vmatprep.subr.bf16.mxu0 0
  %3477 = vmatpush1.bf16.msra.mxu0 0
  %3478 = vmatprep.subr.bf16.mxu0 0
  %3479 = vmatpush1.bf16.msra.mxu0 0
  %3480 = vmatprep.subr.bf16.mxu0 0
  %3481 = vmatpush1.bf16.msra.mxu0 0
  %3482 = vmatprep.subr.bf16.mxu0 0
  %3483 = vmatpush1.bf16.msra.mxu0 0
  %3484 = vmatprep.subr.bf16.mxu0 0
  %3485 = vmatpush1.bf16.msra.mxu0 0
  %3486 = vmatprep.subr.bf16.mxu0 0
  %3487 = vmatpush1.bf16.msra.mxu0 0
  %3488 = vmatprep.subr.bf16.mxu0 0
  %3489 = vmatpush1.bf16.msra.mxu0 0
  %3490 = vmatprep.subr.bf16.mxu0 0
  %3491 = vmatpush1.bf16.msra.mxu0 0
  %3492 = vmatprep.subr.bf16.mxu0 0
  %3493 = vmatpush1.bf16.msra.mxu0 0
  %3494 = vmatprep.subr.bf16.mxu0 0
  %3495 = vmatpush1.bf16.msra.mxu0 0
  %3496 = vmatprep.subr.bf16.mxu0 0
  %3497 = vmatpush1.bf16.msra.mxu0 0
  %3498 = vmatprep.subr.bf16.mxu0 0
  %3499 = vmatpush1.bf16.msra.mxu0 0
  %3500 = vmatprep.mubr.bf16.mxu0 0
  %3501 = vmatmul.mubr.bf16.gmra.mrb[0].mxu0 %v3445
  %v3502 = vpop.f32.mrb[0].mxu0
  %v3503 = vadd.f32 0.0, %v3502
  %v3504 = vpop.f32.mrb[0].mxu0
  %v3505 = vpop.f32.mrb[0].mxu0
  %v3506 = vadd.f32 0.0, %v3505
  %v3507 = vpop.f32.mrb[0].mxu0
  %3508 = vmatprep.mubr.bf16.mxu0 0
  %3509 = vmatmul.mubr.bf16.gmra.mrb[0].mxu0 %v3448
  %v3510 = vpop.f32.mrb[0].mxu0
  %v3511 = vadd.f32 0.0, %v3510
  %v3512 = vpop.f32.mrb[0].mxu0
  %v3513 = vpop.f32.mrb[0].mxu0
  %v3514 = vadd.f32 0.0, %v3513
  %v3515 = vpop.f32.mrb[0].mxu0
  %3516 = vmatprep.mubr.bf16.mxu0 0
  %3517 = vmatmul.mubr.bf16.gmra.mrb[0].mxu0 %v3451
  %v3518 = vpop.f32.mrb[0].mxu0
  %v3519 = vadd.f32 0.0, %v3518
  %v3520 = vpop.f32.mrb[0].mxu0
  %v3521 = vpop.f32.mrb[0].mxu0
  %v3522 = vadd.f32 0.0, %v3521
  %v3523 = vpop.f32.mrb[0].mxu0
  %3524 = vmatprep.mubr.bf16.mxu0 0
  %3525 = vmatmul.mubr.bf16.gmra.mrb[0].mxu0 %v3454
  %v3526 = vpop.f32.mrb[0].mxu0
  %v3527 = vadd.f32 0.0, %v3526
  %v3528 = vpop.f32.mrb[0].mxu0
  %v3529 = vpop.f32.mrb[0].mxu0
  %v3530 = vadd.f32 0.0, %v3529
  %v3531 = vpop.f32.mrb[0].mxu0
  %3532 = vmatprep.mubr.bf16.mxu0 0
  %3533 = vmatmul.mubr.bf16.gmra.mrb[0].mxu0 %v3457
  %v3534 = vpop.f32.mrb[0].mxu0
  %v3535 = vadd.f32 0.0, %v3534
  %v3536 = vpop.f32.mrb[0].mxu0
  %v3537 = vpop.f32.mrb[0].mxu0
  %v3538 = vadd.f32 0.0, %v3537
  %v3539 = vpop.f32.mrb[0].mxu0
  %3540 = vmatprep.mubr.bf16.mxu0 0
  %3541 = vmatmul.mubr.bf16.gmra.mrb[0].mxu0 %v3460
  %v3542 = vpop.f32.mrb[0].mxu0
  %v3543 = vadd.f32 0.0, %v3542
  %v3544 = vpop.f32.mrb[0].mxu0
  %v3545 = vpop.f32.mrb[0].mxu0
  %v3546 = vadd.f32 0.0, %v3545
  %v3547 = vpop.f32.mrb[0].mxu0
  %3548 = vmatprep.mubr.bf16.mxu0 0
  %3549 = vmatmul.mubr.bf16.gmra.mrb[0].mxu0 %v3463
  %v3550 = vpop.f32.mrb[0].mxu0
  %v3551 = vadd.f32 0.0, %v3550
  %v3552 = vpop.f32.mrb[0].mxu0
  %v3553 = vpop.f32.mrb[0].mxu0
  %v3554 = vadd.f32 0.0, %v3553
  %v3555 = vpop.f32.mrb[0].mxu0
  %3556 = vmatprep.mubr.bf16.mxu0 0
  %3557 = vmatmul.mubr.bf16.gmra.mrb[0].mxu0 %v3466
  %v3558 = vpop.f32.mrb[0].mxu0
  %v3559 = vadd.f32 0.0, %v3558
  %v3560 = vpop.f32.mrb[0].mxu0
  %v3561 = vpop.f32.mrb[0].mxu0
  %v3562 = vadd.f32 0.0, %v3561
  %v3563 = vpop.f32.mrb[0].mxu0
  %3564 = vdwg.mxu0
  %v3565 = vadd.f32 %v3363, %v3503
  %v3566 = vadd.f32 %v3366, %v3506
  %v3567 = vadd.f32 %v3371, %v3511
  %v3568 = vadd.f32 %v3374, %v3514
  %v3569 = vadd.f32 %v3379, %v3519
  %v3570 = vadd.f32 %v3382, %v3522
  %v3571 = vadd.f32 %v3387, %v3527
  %v3572 = vadd.f32 %v3390, %v3530
  %v3573 = vadd.f32 %v3395, %v3535
  %v3574 = vadd.f32 %v3398, %v3538
  %v3575 = vadd.f32 %v3403, %v3543
  %v3576 = vadd.f32 %v3406, %v3546
  %v3577 = vadd.f32 %v3411, %v3551
  %v3578 = vadd.f32 %v3414, %v3554
  %v3579 = vadd.f32 %v3419, %v3559
  %v3580 = vadd.f32 %v3422, %v3562
  %v3581 = vld [vmem:[%s3098 + $0x1] sm:$0xff]
  %v3582 = vld [vmem:[%s3114 + $0x1] sm:$0xff]
  %v3583 = vpack.c.bf16 %v3146, %v3145
  %v3584 = vpack.c.bf16 %v3148, %v3147
  %v3585 = vpack.c.bf16 %v3150, %v3149
  %v3586 = vpack.c.bf16 %v3581, %v3151
  %v3587 = vpack.c.bf16 %v3154, %v3153
  %v3588 = vpack.c.bf16 %v3156, %v3155
  %v3589 = vpack.c.bf16 %v3158, %v3157
  %v3590 = vpack.c.bf16 %v3582, %v3159
  %s3591 = scalar_lea.vmem %s7, 40
  %v3592 = vld [vmem:[%s3591] sm:$0xf]
  %v3593 = vld [vmem:[%s3591 + $0x4] sm:$0xf]
  %v3596 = vunpack.c.l.b16 %v3592
  %v3597 = vunpack.c.l.b16 %v3593
  %v3598 = vpack.c.b16 %v3597, %v3596
  %v3601 = vsel %vm3042, %v3583, 0
  %v3604 = vsel %vm3042, %v3584, 0
  %v3607 = vsel %vm3042, %v3585, 0
  %v3610 = vsel %vm3042, %v3586, 0
  %v3613 = vsel %vm3042, %v3587, 0
  %v3616 = vsel %vm3042, %v3588, 0
  %v3619 = vsel %vm3042, %v3589, 0
  %v3622 = vsel %vm3042, %v3590, 0
  %3624 = vmatprep.subr.bf16.mxu0 0
  %3625 = vmatpush1.bf16.msra.mxu0 %v3598
  %3626 = vmatprep.subr.bf16.mxu0 0
  %3627 = vmatpush1.bf16.msra.mxu0 0
  %3628 = vmatprep.subr.bf16.mxu0 0
  %3629 = vmatpush1.bf16.msra.mxu0 0
  %3630 = vmatprep.subr.bf16.mxu0 0
  %3631 = vmatpush1.bf16.msra.mxu0 0
  %3632 = vmatprep.subr.bf16.mxu0 0
  %3633 = vmatpush1.bf16.msra.mxu0 0
  %3634 = vmatprep.subr.bf16.mxu0 0
  %3635 = vmatpush1.bf16.msra.mxu0 0
  %3636 = vmatprep.subr.bf16.mxu0 0
  %3637 = vmatpush1.bf16.msra.mxu0 0
  %3638 = vmatprep.subr.bf16.mxu0 0
  %3639 = vmatpush1.bf16.msra.mxu0 0
  %3640 = vmatprep.subr.bf16.mxu0 0
  %3641 = vmatpush1.bf16.msra.mxu0 0
  %3642 = vmatprep.subr.bf16.mxu0 0
  %3643 = vmatpush1.bf16.msra.mxu0 0
  %3644 = vmatprep.subr.bf16.mxu0 0
  %3645 = vmatpush1.bf16.msra.mxu0 0
  %3646 = vmatprep.subr.bf16.mxu0 0
  %3647 = vmatpush1.bf16.msra.mxu0 0
  %3648 = vmatprep.subr.bf16.mxu0 0
  %3649 = vmatpush1.bf16.msra.mxu0 0
  %3650 = vmatprep.subr.bf16.mxu0 0
  %3651 = vmatpush1.bf16.msra.mxu0 0
  %3652 = vmatprep.subr.bf16.mxu0 0
  %3653 = vmatpush1.bf16.msra.mxu0 0
  %3654 = vmatprep.subr.bf16.mxu0 0
  %3655 = vmatpush1.bf16.msra.mxu0 0
  %3656 = vmatprep.mubr.bf16.mxu0 0
  %3657 = vmatmul.mubr.bf16.gmra.mrb[0].mxu0 %v3601
  %v3658 = vpop.f32.mrb[0].mxu0
  %v3659 = vadd.f32 0.0, %v3658
  %v3660 = vpop.f32.mrb[0].mxu0
  %v3661 = vpop.f32.mrb[0].mxu0
  %v3662 = vadd.f32 0.0, %v3661
  %v3663 = vpop.f32.mrb[0].mxu0
  %3664 = vmatprep.mubr.bf16.mxu0 0
  %3665 = vmatmul.mubr.bf16.gmra.mrb[0].mxu0 %v3604
  %v3666 = vpop.f32.mrb[0].mxu0
  %v3667 = vadd.f32 0.0, %v3666
  %v3668 = vpop.f32.mrb[0].mxu0
  %v3669 = vpop.f32.mrb[0].mxu0
  %v3670 = vadd.f32 0.0, %v3669
  %v3671 = vpop.f32.mrb[0].mxu0
  %3672 = vmatprep.mubr.bf16.mxu0 0
  %3673 = vmatmul.mubr.bf16.gmra.mrb[0].mxu0 %v3607
  %v3674 = vpop.f32.mrb[0].mxu0
  %v3675 = vadd.f32 0.0, %v3674
  %v3676 = vpop.f32.mrb[0].mxu0
  %v3677 = vpop.f32.mrb[0].mxu0
  %v3678 = vadd.f32 0.0, %v3677
  %v3679 = vpop.f32.mrb[0].mxu0
  %3680 = vmatprep.mubr.bf16.mxu0 0
  %3681 = vmatmul.mubr.bf16.gmra.mrb[0].mxu0 %v3610
  %v3682 = vpop.f32.mrb[0].mxu0
  %v3683 = vadd.f32 0.0, %v3682
  %v3684 = vpop.f32.mrb[0].mxu0
  %v3685 = vpop.f32.mrb[0].mxu0
  %v3686 = vadd.f32 0.0, %v3685
  %v3687 = vpop.f32.mrb[0].mxu0
  %3688 = vmatprep.mubr.bf16.mxu0 0
  %3689 = vmatmul.mubr.bf16.gmra.mrb[0].mxu0 %v3613
  %v3690 = vpop.f32.mrb[0].mxu0
  %v3691 = vadd.f32 0.0, %v3690
  %v3692 = vpop.f32.mrb[0].mxu0
  %v3693 = vpop.f32.mrb[0].mxu0
  %v3694 = vadd.f32 0.0, %v3693
  %v3695 = vpop.f32.mrb[0].mxu0
  %3696 = vmatprep.mubr.bf16.mxu0 0
  %3697 = vmatmul.mubr.bf16.gmra.mrb[0].mxu0 %v3616
  %v3698 = vpop.f32.mrb[0].mxu0
  %v3699 = vadd.f32 0.0, %v3698
  %v3700 = vpop.f32.mrb[0].mxu0
  %v3701 = vpop.f32.mrb[0].mxu0
  %v3702 = vadd.f32 0.0, %v3701
  %v3703 = vpop.f32.mrb[0].mxu0
  %3704 = vmatprep.mubr.bf16.mxu0 0
  %3705 = vmatmul.mubr.bf16.gmra.mrb[0].mxu0 %v3619
  %v3706 = vpop.f32.mrb[0].mxu0
  %v3707 = vadd.f32 0.0, %v3706
  %v3708 = vpop.f32.mrb[0].mxu0
  %v3709 = vpop.f32.mrb[0].mxu0
  %v3710 = vadd.f32 0.0, %v3709
  %v3711 = vpop.f32.mrb[0].mxu0
  %3712 = vmatprep.mubr.bf16.mxu0 0
  %3713 = vmatmul.mubr.bf16.gmra.mrb[0].mxu0 %v3622
  %v3714 = vpop.f32.mrb[0].mxu0
  %v3715 = vadd.f32 0.0, %v3714
  %v3716 = vpop.f32.mrb[0].mxu0
  %v3717 = vpop.f32.mrb[0].mxu0
  %v3718 = vadd.f32 0.0, %v3717
  %v3719 = vpop.f32.mrb[0].mxu0
  %3720 = vdwg.mxu0
  %v3721 = vadd.f32 %v3565, %v3659
  %v3722 = vadd.f32 %v3566, %v3662
  %v3723 = vadd.f32 %v3567, %v3667
  %v3724 = vadd.f32 %v3568, %v3670
  %v3725 = vadd.f32 %v3569, %v3675
  %v3726 = vadd.f32 %v3570, %v3678
  %v3727 = vadd.f32 %v3571, %v3683
  %v3728 = vadd.f32 %v3572, %v3686
  %v3729 = vadd.f32 %v3573, %v3691
  %v3730 = vadd.f32 %v3574, %v3694
  %v3731 = vadd.f32 %v3575, %v3699
  %v3732 = vadd.f32 %v3576, %v3702
  %v3733 = vadd.f32 %v3577, %v3707
  %v3734 = vadd.f32 %v3578, %v3710
  %v3735 = vadd.f32 %v3579, %v3715
  %v3736 = vadd.f32 %v3580, %v3718
  %v3737 = vtanh.pop %v3721
  %v3738 = vtanh.pop %v3722
  %v3739 = vtanh.pop %v3723
  %v3740 = vtanh.pop %v3724
  %v3741 = vtanh.pop %v3725
  %v3742 = vtanh.pop %v3726
  %v3743 = vtanh.pop %v3727
  %v3744 = vtanh.pop %v3728
  %v3745 = vtanh.pop %v3729
  %v3746 = vtanh.pop %v3730
  %v3747 = vtanh.pop %v3731
  %v3748 = vtanh.pop %v3732
  %v3749 = vtanh.pop %v3733
  %v3750 = vtanh.pop %v3734
  %v3751 = vtanh.pop %v3735
  %v3752 = vtanh.pop %v3736
  %vm3753 = vcmask 48128
  %3754 = vst.msk [vmem:[%s8] sm:$0xff] %vm3753, %v3737
  %3755 = vst.msk [vmem:[%s8 + $0x8] sm:$0xff] %vm3753, %v3738
  %3756 = vst.msk [vmem:[%s8 + $0x10] sm:$0xff] %vm3753, %v3739
  %3757 = vst.msk [vmem:[%s8 + $0x18] sm:$0xff] %vm3753, %v3740
  %3758 = vst.msk [vmem:[%s8 + $0x20] sm:$0xff] %vm3753, %v3741
  %3759 = vst.msk [vmem:[%s8 + $0x28] sm:$0xff] %vm3753, %v3742
  %3760 = vst.msk [vmem:[%s8 + $0x30] sm:$0xff] %vm3753, %v3743
  %3761 = vst.msk [vmem:[%s8 + $0x38] sm:$0xff] %vm3753, %v3744
  %3762 = vst.msk [vmem:[%s8 + $0x40] sm:$0xff] %vm3753, %v3745
  %3763 = vst.msk [vmem:[%s8 + $0x48] sm:$0xff] %vm3753, %v3746
  %3764 = vst.msk [vmem:[%s8 + $0x50] sm:$0xff] %vm3753, %v3747
  %3765 = vst.msk [vmem:[%s8 + $0x58] sm:$0xff] %vm3753, %v3748
  %3766 = vst.msk [vmem:[%s8 + $0x60] sm:$0xff] %vm3753, %v3749
  %3767 = vst.msk [vmem:[%s8 + $0x68] sm:$0xff] %vm3753, %v3750
  %3768 = vst.msk [vmem:[%s8 + $0x70] sm:$0xff] %vm3753, %v3751
  %3769 = vst.msk [vmem:[%s8 + $0x78] sm:$0xff] %vm3753, %v3752
  %v3770 = vld [vmem:[#allocation3 + $0x1] sm:$0xff]
  %v3771 = vld [vmem:[%s3084 + $0x1] sm:$0xff]
  %v3772 = vld [vmem:[%s3086 + $0x1] sm:$0xff]
  %v3773 = vld [vmem:[%s3088 + $0x1] sm:$0xff]
  %v3774 = vld [vmem:[%s3090 + $0x1] sm:$0xff]
  %v3775 = vld [vmem:[%s3092 + $0x1] sm:$0xff]
  %v3776 = vld [vmem:[%s3094 + $0x1] sm:$0xff]
  %v3777 = vld [vmem:[%s3096 + $0x1] sm:$0xff]
  %v3778 = vld [vmem:[%s3124 + $0x1] sm:$0xff]
  %v3779 = vld [vmem:[%s3100 + $0x1] sm:$0xff]
  %v3780 = vld [vmem:[%s3102 + $0x1] sm:$0xff]
  %v3781 = vld [vmem:[%s3104 + $0x1] sm:$0xff]
  %v3782 = vld [vmem:[%s3106 + $0x1] sm:$0xff]
  %v3783 = vld [vmem:[%s3108 + $0x1] sm:$0xff]
  %v3784 = vld [vmem:[%s3110 + $0x1] sm:$0xff]
  %v3785 = vld [vmem:[%s3112 + $0x1] sm:$0xff]
  %v3786 = vpack.c.bf16 %v3771, %v3770
  %v3787 = vpack.c.bf16 %v3773, %v3772
  %v3788 = vpack.c.bf16 %v3775, %v3774
  %v3789 = vpack.c.bf16 %v3777, %v3776
  %v3790 = vpack.c.bf16 %v3779, %v3778
  %v3791 = vpack.c.bf16 %v3781, %v3780
  %v3792 = vpack.c.bf16 %v3783, %v3782
  %v3793 = vpack.c.bf16 %v3785, %v3784
  %s3794 = scalar_lea.vmem %s7, 112
  %v3795 = vld [vmem:[%s3794] sm:$0xf]
  %v3796 = vld [vmem:[%s3794 + $0x4] sm:$0xf]
  %v3797 = vld [vmem:[#allocation3 + $0x2] sm:$0xff]
  %v3798 = vld [vmem:[%s3084 + $0x2] sm:$0xff]
  %v3799 = vld [vmem:[%s3086 + $0x2] sm:$0xff]
  %v3800 = vld [vmem:[%s3088 + $0x2] sm:$0xff]
  %v3801 = vld [vmem:[%s3090 + $0x2] sm:$0xff]
  %v3802 = vld [vmem:[%s3092 + $0x2] sm:$0xff]
  %v3803 = vld [vmem:[%s3094 + $0x2] sm:$0xff]
  %v3804 = vld [vmem:[%s3096 + $0x2] sm:$0xff]
  %v3805 = vld [vmem:[%s3124 + $0x2] sm:$0xff]
  %v3806 = vld [vmem:[%s3100 + $0x2] sm:$0xff]
  %v3807 = vld [vmem:[%s3102 + $0x2] sm:$0xff]
  %v3808 = vld [vmem:[%s3104 + $0x2] sm:$0xff]
  %v3809 = vld [vmem:[%s3106 + $0x2] sm:$0xff]
  %v3810 = vld [vmem:[%s3108 + $0x2] sm:$0xff]
  %v3811 = vld [vmem:[%s3110 + $0x2] sm:$0xff]
  %v3812 = vld [vmem:[%s3112 + $0x2] sm:$0xff]
  %v3813 = vpack.c.bf16 %v3798, %v3797
  %v3814 = vpack.c.bf16 %v3800, %v3799
  %v3815 = vpack.c.bf16 %v3802, %v3801
  %v3816 = vpack.c.bf16 %v3804, %v3803
  %v3817 = vpack.c.bf16 %v3806, %v3805
  %v3818 = vpack.c.bf16 %v3808, %v3807
  %v3819 = vpack.c.bf16 %v3810, %v3809
  %v3820 = vpack.c.bf16 %v3812, %v3811
  %s3821 = scalar_lea.vmem %s7, 96
  %v3822 = vld [vmem:[%s3821] sm:$0xf]
  %v3823 = vld [vmem:[%s3821 + $0x4] sm:$0xf]
  %v3826 = vunpack.c.l.b16 %v3822
  %v3827 = vunpack.c.l.b16 %v3823
  %v3828 = vpack.c.b16 %v3827, %v3826
  %v3831 = vsel %vm3042, %v3813, 0
  %v3834 = vsel %vm3042, %v3814, 0
  %v3837 = vsel %vm3042, %v3815, 0
  %v3840 = vsel %vm3042, %v3816, 0
  %v3843 = vsel %vm3042, %v3817, 0
  %v3846 = vsel %vm3042, %v3818, 0
  %v3849 = vsel %vm3042, %v3819, 0
  %v3852 = vsel %vm3042, %v3820, 0
  %3854 = vmatprep.subr.bf16.mxu0 0
  %3855 = vmatpush1.bf16.msra.mxu0 %v3828
  %3856 = vmatprep.subr.bf16.mxu0 0
  %3857 = vmatpush1.bf16.msra.mxu0 0
  %3858 = vmatprep.subr.bf16.mxu0 0
  %3859 = vmatpush1.bf16.msra.mxu0 0
  %3860 = vmatprep.subr.bf16.mxu0 0
  %3861 = vmatpush1.bf16.msra.mxu0 0
  %3862 = vmatprep.subr.bf16.mxu0 0
  %3863 = vmatpush1.bf16.msra.mxu0 0
  %3864 = vmatprep.subr.bf16.mxu0 0
  %3865 = vmatpush1.bf16.msra.mxu0 0
  %3866 = vmatprep.subr.bf16.mxu0 0
  %3867 = vmatpush1.bf16.msra.mxu0 0
  %3868 = vmatprep.subr.bf16.mxu0 0
  %3869 = vmatpush1.bf16.msra.mxu0 0
  %3870 = vmatprep.subr.bf16.mxu0 0
  %3871 = vmatpush1.bf16.msra.mxu0 0
  %3872 = vmatprep.subr.bf16.mxu0 0
  %3873 = vmatpush1.bf16.msra.mxu0 0
  %3874 = vmatprep.subr.bf16.mxu0 0
  %3875 = vmatpush1.bf16.msra.mxu0 0
  %3876 = vmatprep.subr.bf16.mxu0 0
  %3877 = vmatpush1.bf16.msra.mxu0 0
  %3878 = vmatprep.subr.bf16.mxu0 0
  %3879 = vmatpush1.bf16.msra.mxu0 0
  %3880 = vmatprep.subr.bf16.mxu0 0
  %3881 = vmatpush1.bf16.msra.mxu0 0
  %3882 = vmatprep.subr.bf16.mxu0 0
  %3883 = vmatpush1.bf16.msra.mxu0 0
  %3884 = vmatprep.subr.bf16.mxu0 0
  %3885 = vmatpush1.bf16.msra.mxu0 0
  %3886 = vmatprep.mubr.bf16.mxu0 0
  %3887 = vmatmul.mubr.bf16.gmra.mrb[0].mxu0 %v3831
  %v3888 = vpop.f32.mrb[0].mxu0
  %v3889 = vadd.f32 0.0, %v3888
  %v3890 = vpop.f32.mrb[0].mxu0
  %v3891 = vpop.f32.mrb[0].mxu0
  %v3892 = vadd.f32 0.0, %v3891
  %v3893 = vpop.f32.mrb[0].mxu0
  %3894 = vmatprep.mubr.bf16.mxu0 0
  %3895 = vmatmul.mubr.bf16.gmra.mrb[0].mxu0 %v3834
  %v3896 = vpop.f32.mrb[0].mxu0
  %v3897 = vadd.f32 0.0, %v3896
  %v3898 = vpop.f32.mrb[0].mxu0
  %v3899 = vpop.f32.mrb[0].mxu0
  %v3900 = vadd.f32 0.0, %v3899
  %v3901 = vpop.f32.mrb[0].mxu0
  %3902 = vmatprep.mubr.bf16.mxu0 0
  %3903 = vmatmul.mubr.bf16.gmra.mrb[0].mxu0 %v3837
  %v3904 = vpop.f32.mrb[0].mxu0
  %v3905 = vadd.f32 0.0, %v3904
  %v3906 = vpop.f32.mrb[0].mxu0
  %v3907 = vpop.f32.mrb[0].mxu0
  %v3908 = vadd.f32 0.0, %v3907
  %v3909 = vpop.f32.mrb[0].mxu0
  %3910 = vmatprep.mubr.bf16.mxu0 0
  %3911 = vmatmul.mubr.bf16.gmra.mrb[0].mxu0 %v3840
  %v3912 = vpop.f32.mrb[0].mxu0
  %v3913 = vadd.f32 0.0, %v3912
  %v3914 = vpop.f32.mrb[0].mxu0
  %v3915 = vpop.f32.mrb[0].mxu0
  %v3916 = vadd.f32 0.0, %v3915
  %v3917 = vpop.f32.mrb[0].mxu0
  %3918 = vmatprep.mubr.bf16.mxu0 0
  %3919 = vmatmul.mubr.bf16.gmra.mrb[0].mxu0 %v3843
  %v3920 = vpop.f32.mrb[0].mxu0
  %v3921 = vadd.f32 0.0, %v3920
  %v3922 = vpop.f32.mrb[0].mxu0
  %v3923 = vpop.f32.mrb[0].mxu0
  %v3924 = vadd.f32 0.0, %v3923
  %v3925 = vpop.f32.mrb[0].mxu0
  %3926 = vmatprep.mubr.bf16.mxu0 0
  %3927 = vmatmul.mubr.bf16.gmra.mrb[0].mxu0 %v3846
  %v3928 = vpop.f32.mrb[0].mxu0
  %v3929 = vadd.f32 0.0, %v3928
  %v3930 = vpop.f32.mrb[0].mxu0
  %v3931 = vpop.f32.mrb[0].mxu0
  %v3932 = vadd.f32 0.0, %v3931
  %v3933 = vpop.f32.mrb[0].mxu0
  %3934 = vmatprep.mubr.bf16.mxu0 0
  %3935 = vmatmul.mubr.bf16.gmra.mrb[0].mxu0 %v3849
  %v3936 = vpop.f32.mrb[0].mxu0
  %v3937 = vadd.f32 0.0, %v3936
  %v3938 = vpop.f32.mrb[0].mxu0
  %v3939 = vpop.f32.mrb[0].mxu0
  %v3940 = vadd.f32 0.0, %v3939
  %v3941 = vpop.f32.mrb[0].mxu0
  %3942 = vmatprep.mubr.bf16.mxu0 0
  %3943 = vmatmul.mubr.bf16.gmra.mrb[0].mxu0 %v3852
  %v3944 = vpop.f32.mrb[0].mxu0
  %v3945 = vadd.f32 0.0, %v3944
  %v3946 = vpop.f32.mrb[0].mxu0
  %v3947 = vpop.f32.mrb[0].mxu0
  %v3948 = vadd.f32 0.0, %v3947
  %v3949 = vpop.f32.mrb[0].mxu0
  %3950 = vdwg.mxu0
  %v3953 = vunpack.c.l.b16 %v3795
  %v3954 = vunpack.c.l.b16 %v3796
  %v3955 = vpack.c.b16 %v3954, %v3953
  %v3958 = vsel %vm3042, %v3786, 0
  %v3961 = vsel %vm3042, %v3787, 0
  %v3964 = vsel %vm3042, %v3788, 0
  %v3967 = vsel %vm3042, %v3789, 0
  %v3970 = vsel %vm3042, %v3790, 0
  %v3973 = vsel %vm3042, %v3791, 0
  %v3976 = vsel %vm3042, %v3792, 0
  %v3979 = vsel %vm3042, %v3793, 0
  %3981 = vmatprep.subr.bf16.mxu0 0
  %3982 = vmatpush1.bf16.msra.mxu0 %v3955
  %3983 = vmatprep.subr.bf16.mxu0 0
  %3984 = vmatpush1.bf16.msra.mxu0 0
  %3985 = vmatprep.subr.bf16.mxu0 0
  %3986 = vmatpush1.bf16.msra.mxu0 0
  %3987 = vmatprep.subr.bf16.mxu0 0
  %3988 = vmatpush1.bf16.msra.mxu0 0
  %3989 = vmatprep.subr.bf16.mxu0 0
  %3990 = vmatpush1.bf16.msra.mxu0 0
  %3991 = vmatprep.subr.bf16.mxu0 0
  %3992 = vmatpush1.bf16.msra.mxu0 0
  %3993 = vmatprep.subr.bf16.mxu0 0
  %3994 = vmatpush1.bf16.msra.mxu0 0
  %3995 = vmatprep.subr.bf16.mxu0 0
  %3996 = vmatpush1.bf16.msra.mxu0 0
  %3997 = vmatprep.subr.bf16.mxu0 0
  %3998 = vmatpush1.bf16.msra.mxu0 0
  %3999 = vmatprep.subr.bf16.mxu0 0
  %4000 = vmatpush1.bf16.msra.mxu0 0
  %4001 = vmatprep.subr.bf16.mxu0 0
  %4002 = vmatpush1.bf16.msra.mxu0 0
  %4003 = vmatprep.subr.bf16.mxu0 0
  %4004 = vmatpush1.bf16.msra.mxu0 0
  %4005 = vmatprep.subr.bf16.mxu0 0
  %4006 = vmatpush1.bf16.msra.mxu0 0
  %4007 = vmatprep.subr.bf16.mxu0 0
  %4008 = vmatpush1.bf16.msra.mxu0 0
  %4009 = vmatprep.subr.bf16.mxu0 0
  %4010 = vmatpush1.bf16.msra.mxu0 0
  %4011 = vmatprep.subr.bf16.mxu0 0
  %4012 = vmatpush1.bf16.msra.mxu0 0
  %4013 = vmatprep.mubr.bf16.mxu0 0
  %4014 = vmatmul.mubr.bf16.gmra.mrb[0].mxu0 %v3958
  %v4015 = vpop.f32.mrb[0].mxu0
  %v4016 = vadd.f32 %v3889, %v4015
  %v4017 = vpop.f32.mrb[0].mxu0
  %v4018 = vpop.f32.mrb[0].mxu0
  %v4019 = vadd.f32 %v3892, %v4018
  %v4020 = vpop.f32.mrb[0].mxu0
  %4021 = vmatprep.mubr.bf16.mxu0 0
  %4022 = vmatmul.mubr.bf16.gmra.mrb[0].mxu0 %v3961
  %v4023 = vpop.f32.mrb[0].mxu0
  %v4024 = vadd.f32 %v3897, %v4023
  %v4025 = vpop.f32.mrb[0].mxu0
  %v4026 = vpop.f32.mrb[0].mxu0
  %v4027 = vadd.f32 %v3900, %v4026
  %v4028 = vpop.f32.mrb[0].mxu0
  %4029 = vmatprep.mubr.bf16.mxu0 0
  %4030 = vmatmul.mubr.bf16.gmra.mrb[0].mxu0 %v3964
  %v4031 = vpop.f32.mrb[0].mxu0
  %v4032 = vadd.f32 %v3905, %v4031
  %v4033 = vpop.f32.mrb[0].mxu0
  %v4034 = vpop.f32.mrb[0].mxu0
  %v4035 = vadd.f32 %v3908, %v4034
  %v4036 = vpop.f32.mrb[0].mxu0
  %4037 = vmatprep.mubr.bf16.mxu0 0
  %4038 = vmatmul.mubr.bf16.gmra.mrb[0].mxu0 %v3967
  %v4039 = vpop.f32.mrb[0].mxu0
  %v4040 = vadd.f32 %v3913, %v4039
  %v4041 = vpop.f32.mrb[0].mxu0
  %v4042 = vpop.f32.mrb[0].mxu0
  %v4043 = vadd.f32 %v3916, %v4042
  %v4044 = vpop.f32.mrb[0].mxu0
  %4045 = vmatprep.mubr.bf16.mxu0 0
  %4046 = vmatmul.mubr.bf16.gmra.mrb[0].mxu0 %v3970
  %v4047 = vpop.f32.mrb[0].mxu0
  %v4048 = vadd.f32 %v3921, %v4047
  %v4049 = vpop.f32.mrb[0].mxu0
  %v4050 = vpop.f32.mrb[0].mxu0
  %v4051 = vadd.f32 %v3924, %v4050
  %v4052 = vpop.f32.mrb[0].mxu0
  %4053 = vmatprep.mubr.bf16.mxu0 0
  %4054 = vmatmul.mubr.bf16.gmra.mrb[0].mxu0 %v3973
  %v4055 = vpop.f32.mrb[0].mxu0
  %v4056 = vadd.f32 %v3929, %v4055
  %v4057 = vpop.f32.mrb[0].mxu0
  %v4058 = vpop.f32.mrb[0].mxu0
  %v4059 = vadd.f32 %v3932, %v4058
  %v4060 = vpop.f32.mrb[0].mxu0
  %4061 = vmatprep.mubr.bf16.mxu0 0
  %4062 = vmatmul.mubr.bf16.gmra.mrb[0].mxu0 %v3976
  %v4063 = vpop.f32.mrb[0].mxu0
  %v4064 = vadd.f32 %v3937, %v4063
  %v4065 = vpop.f32.mrb[0].mxu0
  %v4066 = vpop.f32.mrb[0].mxu0
  %v4067 = vadd.f32 %v3940, %v4066
  %v4068 = vpop.f32.mrb[0].mxu0
  %4069 = vmatprep.mubr.bf16.mxu0 0
  %4070 = vmatmul.mubr.bf16.gmra.mrb[0].mxu0 %v3979
  %v4071 = vpop.f32.mrb[0].mxu0
  %v4072 = vadd.f32 %v3945, %v4071
  %v4073 = vpop.f32.mrb[0].mxu0
  %v4074 = vpop.f32.mrb[0].mxu0
  %v4075 = vadd.f32 %v3948, %v4074
  %v4076 = vpop.f32.mrb[0].mxu0
  %4077 = vdwg.mxu0
  %v4078 = vld [vmem:[%s3098 + $0x1] sm:$0xff]
  %v4079 = vld [vmem:[%s3114 + $0x1] sm:$0xff]
  %v4080 = vpack.c.bf16 %v3772, %v3771
  %v4081 = vpack.c.bf16 %v3774, %v3773
  %v4082 = vpack.c.bf16 %v3776, %v3775
  %v4083 = vpack.c.bf16 %v4078, %v3777
  %v4084 = vpack.c.bf16 %v3780, %v3779
  %v4085 = vpack.c.bf16 %v3782, %v3781
  %v4086 = vpack.c.bf16 %v3784, %v3783
  %v4087 = vpack.c.bf16 %v4079, %v3785
  %s4088 = scalar_lea.vmem %s7, 48
  %v4089 = vld [vmem:[%s4088] sm:$0xf]
  %v4090 = vld [vmem:[%s4088 + $0x4] sm:$0xf]
  %v4093 = vunpack.c.l.b16 %v4089
  %v4094 = vunpack.c.l.b16 %v4090
  %v4095 = vpack.c.b16 %v4094, %v4093
  %v4098 = vsel %vm3042, %v4080, 0
  %v4101 = vsel %vm3042, %v4081, 0
  %v4104 = vsel %vm3042, %v4082, 0
  %v4107 = vsel %vm3042, %v4083, 0
  %v4110 = vsel %vm3042, %v4084, 0
  %v4113 = vsel %vm3042, %v4085, 0
  %v4116 = vsel %vm3042, %v4086, 0
  %v4119 = vsel %vm3042, %v4087, 0
  %4121 = vmatprep.subr.bf16.mxu0 0
  %4122 = vmatpush1.bf16.msra.mxu0 %v4095
  %4123 = vmatprep.subr.bf16.mxu0 0
  %4124 = vmatpush1.bf16.msra.mxu0 0
  %4125 = vmatprep.subr.bf16.mxu0 0
  %4126 = vmatpush1.bf16.msra.mxu0 0
  %4127 = vmatprep.subr.bf16.mxu0 0
  %4128 = vmatpush1.bf16.msra.mxu0 0
  %4129 = vmatprep.subr.bf16.mxu0 0
  %4130 = vmatpush1.bf16.msra.mxu0 0
  %4131 = vmatprep.subr.bf16.mxu0 0
  %4132 = vmatpush1.bf16.msra.mxu0 0
  %4133 = vmatprep.subr.bf16.mxu0 0
  %4134 = vmatpush1.bf16.msra.mxu0 0
  %4135 = vmatprep.subr.bf16.mxu0 0
  %4136 = vmatpush1.bf16.msra.mxu0 0
  %4137 = vmatprep.subr.bf16.mxu0 0
  %4138 = vmatpush1.bf16.msra.mxu0 0
  %4139 = vmatprep.subr.bf16.mxu0 0
  %4140 = vmatpush1.bf16.msra.mxu0 0
  %4141 = vmatprep.subr.bf16.mxu0 0
  %4142 = vmatpush1.bf16.msra.mxu0 0
  %4143 = vmatprep.subr.bf16.mxu0 0
  %4144 = vmatpush1.bf16.msra.mxu0 0
  %4145 = vmatprep.subr.bf16.mxu0 0
  %4146 = vmatpush1.bf16.msra.mxu0 0
  %4147 = vmatprep.subr.bf16.mxu0 0
  %4148 = vmatpush1.bf16.msra.mxu0 0
  %4149 = vmatprep.subr.bf16.mxu0 0
  %4150 = vmatpush1.bf16.msra.mxu0 0
  %4151 = vmatprep.subr.bf16.mxu0 0
  %4152 = vmatpush1.bf16.msra.mxu0 0
  %4153 = vmatprep.mubr.bf16.mxu0 0
  %4154 = vmatmul.mubr.bf16.gmra.mrb[0].mxu0 %v4098
  %v4155 = vpop.f32.mrb[0].mxu0
  %v4156 = vadd.f32 0.0, %v4155
  %v4157 = vpop.f32.mrb[0].mxu0
  %v4158 = vpop.f32.mrb[0].mxu0
  %v4159 = vadd.f32 0.0, %v4158
  %v4160 = vpop.f32.mrb[0].mxu0
  %4161 = vmatprep.mubr.bf16.mxu0 0
  %4162 = vmatmul.mubr.bf16.gmra.mrb[0].mxu0 %v4101
  %v4163 = vpop.f32.mrb[0].mxu0
  %v4164 = vadd.f32 0.0, %v4163
  %v4165 = vpop.f32.mrb[0].mxu0
  %v4166 = vpop.f32.mrb[0].mxu0
  %v4167 = vadd.f32 0.0, %v4166
  %v4168 = vpop.f32.mrb[0].mxu0
  %4169 = vmatprep.mubr.bf16.mxu0 0
  %4170 = vmatmul.mubr.bf16.gmra.mrb[0].mxu0 %v4104
  %v4171 = vpop.f32.mrb[0].mxu0
  %v4172 = vadd.f32 0.0, %v4171
  %v4173 = vpop.f32.mrb[0].mxu0
  %v4174 = vpop.f32.mrb[0].mxu0
  %v4175 = vadd.f32 0.0, %v4174
  %v4176 = vpop.f32.mrb[0].mxu0
  %4177 = vmatprep.mubr.bf16.mxu0 0
  %4178 = vmatmul.mubr.bf16.gmra.mrb[0].mxu0 %v4107
  %v4179 = vpop.f32.mrb[0].mxu0
  %v4180 = vadd.f32 0.0, %v4179
  %v4181 = vpop.f32.mrb[0].mxu0
  %v4182 = vpop.f32.mrb[0].mxu0
  %v4183 = vadd.f32 0.0, %v4182
  %v4184 = vpop.f32.mrb[0].mxu0
  %4185 = vmatprep.mubr.bf16.mxu0 0
  %4186 = vmatmul.mubr.bf16.gmra.mrb[0].mxu0 %v4110
  %v4187 = vpop.f32.mrb[0].mxu0
  %v4188 = vadd.f32 0.0, %v4187
  %v4189 = vpop.f32.mrb[0].mxu0
  %v4190 = vpop.f32.mrb[0].mxu0
  %v4191 = vadd.f32 0.0, %v4190
  %v4192 = vpop.f32.mrb[0].mxu0
  %4193 = vmatprep.mubr.bf16.mxu0 0
  %4194 = vmatmul.mubr.bf16.gmra.mrb[0].mxu0 %v4113
  %v4195 = vpop.f32.mrb[0].mxu0
  %v4196 = vadd.f32 0.0, %v4195
  %v4197 = vpop.f32.mrb[0].mxu0
  %v4198 = vpop.f32.mrb[0].mxu0
  %v4199 = vadd.f32 0.0, %v4198
  %v4200 = vpop.f32.mrb[0].mxu0
  %4201 = vmatprep.mubr.bf16.mxu0 0
  %4202 = vmatmul.mubr.bf16.gmra.mrb[0].mxu0 %v4116
  %v4203 = vpop.f32.mrb[0].mxu0
  %v4204 = vadd.f32 0.0, %v4203
  %v4205 = vpop.f32.mrb[0].mxu0
  %v4206 = vpop.f32.mrb[0].mxu0
  %v4207 = vadd.f32 0.0, %v4206
  %v4208 = vpop.f32.mrb[0].mxu0
  %4209 = vmatprep.mubr.bf16.mxu0 0
  %4210 = vmatmul.mubr.bf16.gmra.mrb[0].mxu0 %v4119
  %v4211 = vpop.f32.mrb[0].mxu0
  %v4212 = vadd.f32 0.0, %v4211
  %v4213 = vpop.f32.mrb[0].mxu0
  %v4214 = vpop.f32.mrb[0].mxu0
  %v4215 = vadd.f32 0.0, %v4214
  %v4216 = vpop.f32.mrb[0].mxu0
  %4217 = vdwg.mxu0
  %v4218 = vadd.f32 %v4016, %v4156
  %v4219 = vadd.f32 %v4019, %v4159
  %v4220 = vadd.f32 %v4024, %v4164
  %v4221 = vadd.f32 %v4027, %v4167
  %v4222 = vadd.f32 %v4032, %v4172
  %v4223 = vadd.f32 %v4035, %v4175
  %v4224 = vadd.f32 %v4040, %v4180
  %v4225 = vadd.f32 %v4043, %v4183
  %v4226 = vadd.f32 %v4048, %v4188
  %v4227 = vadd.f32 %v4051, %v4191
  %v4228 = vadd.f32 %v4056, %v4196
  %v4229 = vadd.f32 %v4059, %v4199
  %v4230 = vadd.f32 %v4064, %v4204
  %v4231 = vadd.f32 %v4067, %v4207
  %v4232 = vadd.f32 %v4072, %v4212
  %v4233 = vadd.f32 %v4075, %v4215
  %v4234 = vld [vmem:[%s3098 + $0x2] sm:$0xff]
  %v4235 = vld [vmem:[%s3114 + $0x2] sm:$0xff]
  %v4236 = vpack.c.bf16 %v3799, %v3798
  %v4237 = vpack.c.bf16 %v3801, %v3800
  %v4238 = vpack.c.bf16 %v3803, %v3802
  %v4239 = vpack.c.bf16 %v4234, %v3804
  %v4240 = vpack.c.bf16 %v3807, %v3806
  %v4241 = vpack.c.bf16 %v3809, %v3808
  %v4242 = vpack.c.bf16 %v3811, %v3810
  %v4243 = vpack.c.bf16 %v4235, %v3812
  %s4244 = scalar_lea.vmem %s7, 32
  %v4245 = vld [vmem:[%s4244] sm:$0xf]
  %v4246 = vld [vmem:[%s4244 + $0x4] sm:$0xf]
  %v4249 = vunpack.c.l.b16 %v4245
  %v4250 = vunpack.c.l.b16 %v4246
  %v4251 = vpack.c.b16 %v4250, %v4249
  %v4254 = vsel %vm3042, %v4236, 0
  %v4257 = vsel %vm3042, %v4237, 0
  %v4260 = vsel %vm3042, %v4238, 0
  %v4263 = vsel %vm3042, %v4239, 0
  %v4266 = vsel %vm3042, %v4240, 0
  %v4269 = vsel %vm3042, %v4241, 0
  %v4272 = vsel %vm3042, %v4242, 0
  %v4275 = vsel %vm3042, %v4243, 0
  %4277 = vmatprep.subr.bf16.mxu0 0
  %4278 = vmatpush1.bf16.msra.mxu0 %v4251
  %4279 = vmatprep.subr.bf16.mxu0 0
  %4280 = vmatpush1.bf16.msra.mxu0 0
  %4281 = vmatprep.subr.bf16.mxu0 0
  %4282 = vmatpush1.bf16.msra.mxu0 0
  %4283 = vmatprep.subr.bf16.mxu0 0
  %4284 = vmatpush1.bf16.msra.mxu0 0
  %4285 = vmatprep.subr.bf16.mxu0 0
  %4286 = vmatpush1.bf16.msra.mxu0 0
  %4287 = vmatprep.subr.bf16.mxu0 0
  %4288 = vmatpush1.bf16.msra.mxu0 0
  %4289 = vmatprep.subr.bf16.mxu0 0
  %4290 = vmatpush1.bf16.msra.mxu0 0
  %4291 = vmatprep.subr.bf16.mxu0 0
  %4292 = vmatpush1.bf16.msra.mxu0 0
  %4293 = vmatprep.subr.bf16.mxu0 0
  %4294 = vmatpush1.bf16.msra.mxu0 0
  %4295 = vmatprep.subr.bf16.mxu0 0
  %4296 = vmatpush1.bf16.msra.mxu0 0
  %4297 = vmatprep.subr.bf16.mxu0 0
  %4298 = vmatpush1.bf16.msra.mxu0 0
  %4299 = vmatprep.subr.bf16.mxu0 0
  %4300 = vmatpush1.bf16.msra.mxu0 0
  %4301 = vmatprep.subr.bf16.mxu0 0
  %4302 = vmatpush1.bf16.msra.mxu0 0
  %4303 = vmatprep.subr.bf16.mxu0 0
  %4304 = vmatpush1.bf16.msra.mxu0 0
  %4305 = vmatprep.subr.bf16.mxu0 0
  %4306 = vmatpush1.bf16.msra.mxu0 0
  %4307 = vmatprep.subr.bf16.mxu0 0
  %4308 = vmatpush1.bf16.msra.mxu0 0
  %4309 = vmatprep.mubr.bf16.mxu0 0
  %4310 = vmatmul.mubr.bf16.gmra.mrb[0].mxu0 %v4254
  %v4311 = vpop.f32.mrb[0].mxu0
  %v4312 = vadd.f32 0.0, %v4311
  %v4313 = vpop.f32.mrb[0].mxu0
  %v4314 = vpop.f32.mrb[0].mxu0
  %v4315 = vadd.f32 0.0, %v4314
  %v4316 = vpop.f32.mrb[0].mxu0
  %4317 = vmatprep.mubr.bf16.mxu0 0
  %4318 = vmatmul.mubr.bf16.gmra.mrb[0].mxu0 %v4257
  %v4319 = vpop.f32.mrb[0].mxu0
  %v4320 = vadd.f32 0.0, %v4319
  %v4321 = vpop.f32.mrb[0].mxu0
  %v4322 = vpop.f32.mrb[0].mxu0
  %v4323 = vadd.f32 0.0, %v4322
  %v4324 = vpop.f32.mrb[0].mxu0
  %4325 = vmatprep.mubr.bf16.mxu0 0
  %4326 = vmatmul.mubr.bf16.gmra.mrb[0].mxu0 %v4260
  %v4327 = vpop.f32.mrb[0].mxu0
  %v4328 = vadd.f32 0.0, %v4327
  %v4329 = vpop.f32.mrb[0].mxu0
  %v4330 = vpop.f32.mrb[0].mxu0
  %v4331 = vadd.f32 0.0, %v4330
  %v4332 = vpop.f32.mrb[0].mxu0
  %4333 = vmatprep.mubr.bf16.mxu0 0
  %4334 = vmatmul.mubr.bf16.gmra.mrb[0].mxu0 %v4263
  %v4335 = vpop.f32.mrb[0].mxu0
  %v4336 = vadd.f32 0.0, %v4335
  %v4337 = vpop.f32.mrb[0].mxu0
  %v4338 = vpop.f32.mrb[0].mxu0
  %v4339 = vadd.f32 0.0, %v4338
  %v4340 = vpop.f32.mrb[0].mxu0
  %4341 = vmatprep.mubr.bf16.mxu0 0
  %4342 = vmatmul.mubr.bf16.gmra.mrb[0].mxu0 %v4266
  %v4343 = vpop.f32.mrb[0].mxu0
  %v4344 = vadd.f32 0.0, %v4343
  %v4345 = vpop.f32.mrb[0].mxu0
  %v4346 = vpop.f32.mrb[0].mxu0
  %v4347 = vadd.f32 0.0, %v4346
  %v4348 = vpop.f32.mrb[0].mxu0
  %4349 = vmatprep.mubr.bf16.mxu0 0
  %4350 = vmatmul.mubr.bf16.gmra.mrb[0].mxu0 %v4269
  %v4351 = vpop.f32.mrb[0].mxu0
  %v4352 = vadd.f32 0.0, %v4351
  %v4353 = vpop.f32.mrb[0].mxu0
  %v4354 = vpop.f32.mrb[0].mxu0
  %v4355 = vadd.f32 0.0, %v4354
  %v4356 = vpop.f32.mrb[0].mxu0
  %4357 = vmatprep.mubr.bf16.mxu0 0
  %4358 = vmatmul.mubr.bf16.gmra.mrb[0].mxu0 %v4272
  %v4359 = vpop.f32.mrb[0].mxu0
  %v4360 = vadd.f32 0.0, %v4359
  %v4361 = vpop.f32.mrb[0].mxu0
  %v4362 = vpop.f32.mrb[0].mxu0
  %v4363 = vadd.f32 0.0, %v4362
  %v4364 = vpop.f32.mrb[0].mxu0
  %4365 = vmatprep.mubr.bf16.mxu0 0
  %4366 = vmatmul.mubr.bf16.gmra.mrb[0].mxu0 %v4275
  %v4367 = vpop.f32.mrb[0].mxu0
  %v4368 = vadd.f32 0.0, %v4367
  %v4369 = vpop.f32.mrb[0].mxu0
  %v4370 = vpop.f32.mrb[0].mxu0
  %v4371 = vadd.f32 0.0, %v4370
  %v4372 = vpop.f32.mrb[0].mxu0
  %4373 = vdwg.mxu0
  %v4374 = vadd.f32 %v4218, %v4312
  %v4375 = vadd.f32 %v4219, %v4315
  %v4376 = vadd.f32 %v4220, %v4320
  %v4377 = vadd.f32 %v4221, %v4323
  %v4378 = vadd.f32 %v4222, %v4328
  %v4379 = vadd.f32 %v4223, %v4331
  %v4380 = vadd.f32 %v4224, %v4336
  %v4381 = vadd.f32 %v4225, %v4339
  %v4382 = vadd.f32 %v4226, %v4344
  %v4383 = vadd.f32 %v4227, %v4347
  %v4384 = vadd.f32 %v4228, %v4352
  %v4385 = vadd.f32 %v4229, %v4355
  %v4386 = vadd.f32 %v4230, %v4360
  %v4387 = vadd.f32 %v4231, %v4363
  %v4388 = vadd.f32 %v4232, %v4368
  %v4389 = vadd.f32 %v4233, %v4371
  %v4390 = vtanh.pop %v4374
  %v4391 = vtanh.pop %v4375
  %v4392 = vtanh.pop %v4376
  %v4393 = vtanh.pop %v4377
  %v4394 = vtanh.pop %v4378
  %v4395 = vtanh.pop %v4379
  %v4396 = vtanh.pop %v4380
  %v4397 = vtanh.pop %v4381
  %v4398 = vtanh.pop %v4382
  %v4399 = vtanh.pop %v4383
  %v4400 = vtanh.pop %v4384
  %v4401 = vtanh.pop %v4385
  %v4402 = vtanh.pop %v4386
  %v4403 = vtanh.pop %v4387
  %v4404 = vtanh.pop %v4388
  %v4405 = vtanh.pop %v4389
  %s4406 = scalar_lea.vmem %s8, 128
  %4407 = vst.msk [vmem:[%s4406] sm:$0xff] %vm3753, %v4390
  %4408 = vst.msk [vmem:[%s4406 + $0x8] sm:$0xff] %vm3753, %v4391
  %4409 = vst.msk [vmem:[%s4406 + $0x10] sm:$0xff] %vm3753, %v4392
  %4410 = vst.msk [vmem:[%s4406 + $0x18] sm:$0xff] %vm3753, %v4393
  %4411 = vst.msk [vmem:[%s4406 + $0x20] sm:$0xff] %vm3753, %v4394
  %4412 = vst.msk [vmem:[%s4406 + $0x28] sm:$0xff] %vm3753, %v4395
  %4413 = vst.msk [vmem:[%s4406 + $0x30] sm:$0xff] %vm3753, %v4396
  %4414 = vst.msk [vmem:[%s4406 + $0x38] sm:$0xff] %vm3753, %v4397
  %4415 = vst.msk [vmem:[%s4406 + $0x40] sm:$0xff] %vm3753, %v4398
  %4416 = vst.msk [vmem:[%s4406 + $0x48] sm:$0xff] %vm3753, %v4399
  %4417 = vst.msk [vmem:[%s4406 + $0x50] sm:$0xff] %vm3753, %v4400
  %4418 = vst.msk [vmem:[%s4406 + $0x58] sm:$0xff] %vm3753, %v4401
  %4419 = vst.msk [vmem:[%s4406 + $0x60] sm:$0xff] %vm3753, %v4402
  %4420 = vst.msk [vmem:[%s4406 + $0x68] sm:$0xff] %vm3753, %v4403
  %4421 = vst.msk [vmem:[%s4406 + $0x70] sm:$0xff] %vm3753, %v4404
  %4422 = vst.msk [vmem:[%s4406 + $0x78] sm:$0xff] %vm3753, %v4405
  %v4423 = vld [vmem:[%s3084] sm:$0xff]
  %v4424 = vld [vmem:[%s3086] sm:$0xff]
  %v4425 = vld [vmem:[%s3088] sm:$0xff]
  %v4426 = vld [vmem:[%s3090] sm:$0xff]
  %v4427 = vld [vmem:[%s3092] sm:$0xff]
  %v4428 = vld [vmem:[%s3094] sm:$0xff]
  %v4429 = vld [vmem:[%s3096] sm:$0xff]
  %v4430 = vld [vmem:[%s3098] sm:$0xff]
  %v4431 = vld [vmem:[%s3100] sm:$0xff]
  %v4432 = vld [vmem:[%s3102] sm:$0xff]
  %v4433 = vld [vmem:[%s3104] sm:$0xff]
  %v4434 = vld [vmem:[%s3106] sm:$0xff]
  %v4435 = vld [vmem:[%s3108] sm:$0xff]
  %v4436 = vld [vmem:[%s3110] sm:$0xff]
  %v4437 = vld [vmem:[%s3112] sm:$0xff]
  %v4438 = vld [vmem:[%s3114] sm:$0xff]
  %v4439 = vpack.c.bf16 %v4424, %v4423
  %v4440 = vpack.c.bf16 %v4426, %v4425
  %v4441 = vpack.c.bf16 %v4428, %v4427
  %v4442 = vpack.c.bf16 %v4430, %v4429
  %v4443 = vpack.c.bf16 %v4432, %v4431
  %v4444 = vpack.c.bf16 %v4434, %v4433
  %v4445 = vpack.c.bf16 %v4436, %v4435
  %v4446 = vpack.c.bf16 %v4438, %v4437
  %s4447 = scalar_lea.vmem %s7, 88
  %v4448 = vld [vmem:[%s4447] sm:$0xf]
  %v4449 = vld [vmem:[%s4447 + $0x4] sm:$0xf]
  %v4450 = vld [vmem:[%s3084 + $0x1] sm:$0xff]
  %v4451 = vld [vmem:[%s3086 + $0x1] sm:$0xff]
  %v4452 = vld [vmem:[%s3088 + $0x1] sm:$0xff]
  %v4453 = vld [vmem:[%s3090 + $0x1] sm:$0xff]
  %v4454 = vld [vmem:[%s3092 + $0x1] sm:$0xff]
  %v4455 = vld [vmem:[%s3094 + $0x1] sm:$0xff]
  %v4456 = vld [vmem:[%s3096 + $0x1] sm:$0xff]
  %v4457 = vld [vmem:[%s3098 + $0x1] sm:$0xff]
  %v4458 = vld [vmem:[%s3100 + $0x1] sm:$0xff]
  %v4459 = vld [vmem:[%s3102 + $0x1] sm:$0xff]
  %v4460 = vld [vmem:[%s3104 + $0x1] sm:$0xff]
  %v4461 = vld [vmem:[%s3106 + $0x1] sm:$0xff]
  %v4462 = vld [vmem:[%s3108 + $0x1] sm:$0xff]
  %v4463 = vld [vmem:[%s3110 + $0x1] sm:$0xff]
  %v4464 = vld [vmem:[%s3112 + $0x1] sm:$0xff]
  %v4465 = vld [vmem:[%s3114 + $0x1] sm:$0xff]
  %v4466 = vpack.c.bf16 %v4451, %v4450
  %v4467 = vpack.c.bf16 %v4453, %v4452
  %v4468 = vpack.c.bf16 %v4455, %v4454
  %v4469 = vpack.c.bf16 %v4457, %v4456
  %v4470 = vpack.c.bf16 %v4459, %v4458
  %v4471 = vpack.c.bf16 %v4461, %v4460
  %v4472 = vpack.c.bf16 %v4463, %v4462
  %v4473 = vpack.c.bf16 %v4465, %v4464
  %s4474 = scalar_lea.vmem %s7, 72
  %v4475 = vld [vmem:[%s4474] sm:$0xf]
  %v4476 = vld [vmem:[%s4474 + $0x4] sm:$0xf]
  %v4479 = vunpack.c.l.b16 %v4475
  %v4480 = vunpack.c.l.b16 %v4476
  %v4481 = vpack.c.b16 %v4480, %v4479
  %v4484 = vsel %vm3042, %v4466, 0
  %v4487 = vsel %vm3042, %v4467, 0
  %v4490 = vsel %vm3042, %v4468, 0
  %v4493 = vsel %vm3042, %v4469, 0
  %v4496 = vsel %vm3042, %v4470, 0
  %v4499 = vsel %vm3042, %v4471, 0
  %v4502 = vsel %vm3042, %v4472, 0
  %v4505 = vsel %vm3042, %v4473, 0
  %4507 = vmatprep.subr.bf16.mxu0 0
  %4508 = vmatpush1.bf16.msra.mxu0 %v4481
  %4509 = vmatprep.subr.bf16.mxu0 0
  %4510 = vmatpush1.bf16.msra.mxu0 0
  %4511 = vmatprep.subr.bf16.mxu0 0
  %4512 = vmatpush1.bf16.msra.mxu0 0
  %4513 = vmatprep.subr.bf16.mxu0 0
  %4514 = vmatpush1.bf16.msra.mxu0 0
  %4515 = vmatprep.subr.bf16.mxu0 0
  %4516 = vmatpush1.bf16.msra.mxu0 0
  %4517 = vmatprep.subr.bf16.mxu0 0
  %4518 = vmatpush1.bf16.msra.mxu0 0
  %4519 = vmatprep.subr.bf16.mxu0 0
  %4520 = vmatpush1.bf16.msra.mxu0 0
  %4521 = vmatprep.subr.bf16.mxu0 0
  %4522 = vmatpush1.bf16.msra.mxu0 0
  %4523 = vmatprep.subr.bf16.mxu0 0
  %4524 = vmatpush1.bf16.msra.mxu0 0
  %4525 = vmatprep.subr.bf16.mxu0 0
  %4526 = vmatpush1.bf16.msra.mxu0 0
  %4527 = vmatprep.subr.bf16.mxu0 0
  %4528 = vmatpush1.bf16.msra.mxu0 0
  %4529 = vmatprep.subr.bf16.mxu0 0
  %4530 = vmatpush1.bf16.msra.mxu0 0
  %4531 = vmatprep.subr.bf16.mxu0 0
  %4532 = vmatpush1.bf16.msra.mxu0 0
  %4533 = vmatprep.subr.bf16.mxu0 0
  %4534 = vmatpush1.bf16.msra.mxu0 0
  %4535 = vmatprep.subr.bf16.mxu0 0
  %4536 = vmatpush1.bf16.msra.mxu0 0
  %4537 = vmatprep.subr.bf16.mxu0 0
  %4538 = vmatpush1.bf16.msra.mxu0 0
  %4539 = vmatprep.mubr.bf16.mxu0 0
  %4540 = vmatmul.mubr.bf16.gmra.mrb[0].mxu0 %v4484
  %v4541 = vpop.f32.mrb[0].mxu0
  %v4542 = vadd.f32 0.0, %v4541
  %v4543 = vpop.f32.mrb[0].mxu0
  %v4544 = vpop.f32.mrb[0].mxu0
  %v4545 = vadd.f32 0.0, %v4544
  %v4546 = vpop.f32.mrb[0].mxu0
  %4547 = vmatprep.mubr.bf16.mxu0 0
  %4548 = vmatmul.mubr.bf16.gmra.mrb[0].mxu0 %v4487
  %v4549 = vpop.f32.mrb[0].mxu0
  %v4550 = vadd.f32 0.0, %v4549
  %v4551 = vpop.f32.mrb[0].mxu0
  %v4552 = vpop.f32.mrb[0].mxu0
  %v4553 = vadd.f32 0.0, %v4552
  %v4554 = vpop.f32.mrb[0].mxu0
  %4555 = vmatprep.mubr.bf16.mxu0 0
  %4556 = vmatmul.mubr.bf16.gmra.mrb[0].mxu0 %v4490
  %v4557 = vpop.f32.mrb[0].mxu0
  %v4558 = vadd.f32 0.0, %v4557
  %v4559 = vpop.f32.mrb[0].mxu0
  %v4560 = vpop.f32.mrb[0].mxu0
  %v4561 = vadd.f32 0.0, %v4560
  %v4562 = vpop.f32.mrb[0].mxu0
  %4563 = vmatprep.mubr.bf16.mxu0 0
  %4564 = vmatmul.mubr.bf16.gmra.mrb[0].mxu0 %v4493
  %v4565 = vpop.f32.mrb[0].mxu0
  %v4566 = vadd.f32 0.0, %v4565
  %v4567 = vpop.f32.mrb[0].mxu0
  %v4568 = vpop.f32.mrb[0].mxu0
  %v4569 = vadd.f32 0.0, %v4568
  %v4570 = vpop.f32.mrb[0].mxu0
  %4571 = vmatprep.mubr.bf16.mxu0 0
  %4572 = vmatmul.mubr.bf16.gmra.mrb[0].mxu0 %v4496
  %v4573 = vpop.f32.mrb[0].mxu0
  %v4574 = vadd.f32 0.0, %v4573
  %v4575 = vpop.f32.mrb[0].mxu0
  %v4576 = vpop.f32.mrb[0].mxu0
  %v4577 = vadd.f32 0.0, %v4576
  %v4578 = vpop.f32.mrb[0].mxu0
  %4579 = vmatprep.mubr.bf16.mxu0 0
  %4580 = vmatmul.mubr.bf16.gmra.mrb[0].mxu0 %v4499
  %v4581 = vpop.f32.mrb[0].mxu0
  %v4582 = vadd.f32 0.0, %v4581
  %v4583 = vpop.f32.mrb[0].mxu0
  %v4584 = vpop.f32.mrb[0].mxu0
  %v4585 = vadd.f32 0.0, %v4584
  %v4586 = vpop.f32.mrb[0].mxu0
  %4587 = vmatprep.mubr.bf16.mxu0 0
  %4588 = vmatmul.mubr.bf16.gmra.mrb[0].mxu0 %v4502
  %v4589 = vpop.f32.mrb[0].mxu0
  %v4590 = vadd.f32 0.0, %v4589
  %v4591 = vpop.f32.mrb[0].mxu0
  %v4592 = vpop.f32.mrb[0].mxu0
  %v4593 = vadd.f32 0.0, %v4592
  %v4594 = vpop.f32.mrb[0].mxu0
  %4595 = vmatprep.mubr.bf16.mxu0 0
  %4596 = vmatmul.mubr.bf16.gmra.mrb[0].mxu0 %v4505
  %v4597 = vpop.f32.mrb[0].mxu0
  %v4598 = vadd.f32 0.0, %v4597
  %v4599 = vpop.f32.mrb[0].mxu0
  %v4600 = vpop.f32.mrb[0].mxu0
  %v4601 = vadd.f32 0.0, %v4600
  %v4602 = vpop.f32.mrb[0].mxu0
  %4603 = vdwg.mxu0
  %v4606 = vunpack.c.l.b16 %v4448
  %v4607 = vunpack.c.l.b16 %v4449
  %v4608 = vpack.c.b16 %v4607, %v4606
  %v4611 = vsel %vm3042, %v4439, 0
  %v4614 = vsel %vm3042, %v4440, 0
  %v4617 = vsel %vm3042, %v4441, 0
  %v4620 = vsel %vm3042, %v4442, 0
  %v4623 = vsel %vm3042, %v4443, 0
  %v4626 = vsel %vm3042, %v4444, 0
  %v4629 = vsel %vm3042, %v4445, 0
  %v4632 = vsel %vm3042, %v4446, 0
  %4634 = vmatprep.subr.bf16.mxu0 0
  %4635 = vmatpush1.bf16.msra.mxu0 %v4608
  %4636 = vmatprep.subr.bf16.mxu0 0
  %4637 = vmatpush1.bf16.msra.mxu0 0
  %4638 = vmatprep.subr.bf16.mxu0 0
  %4639 = vmatpush1.bf16.msra.mxu0 0
  %4640 = vmatprep.subr.bf16.mxu0 0
  %4641 = vmatpush1.bf16.msra.mxu0 0
  %4642 = vmatprep.subr.bf16.mxu0 0
  %4643 = vmatpush1.bf16.msra.mxu0 0
  %4644 = vmatprep.subr.bf16.mxu0 0
  %4645 = vmatpush1.bf16.msra.mxu0 0
  %4646 = vmatprep.subr.bf16.mxu0 0
  %4647 = vmatpush1.bf16.msra.mxu0 0
  %4648 = vmatprep.subr.bf16.mxu0 0
  %4649 = vmatpush1.bf16.msra.mxu0 0
  %4650 = vmatprep.subr.bf16.mxu0 0
  %4651 = vmatpush1.bf16.msra.mxu0 0
  %4652 = vmatprep.subr.bf16.mxu0 0
  %4653 = vmatpush1.bf16.msra.mxu0 0
  %4654 = vmatprep.subr.bf16.mxu0 0
  %4655 = vmatpush1.bf16.msra.mxu0 0
  %4656 = vmatprep.subr.bf16.mxu0 0
  %4657 = vmatpush1.bf16.msra.mxu0 0
  %4658 = vmatprep.subr.bf16.mxu0 0
  %4659 = vmatpush1.bf16.msra.mxu0 0
  %4660 = vmatprep.subr.bf16.mxu0 0
  %4661 = vmatpush1.bf16.msra.mxu0 0
  %4662 = vmatprep.subr.bf16.mxu0 0
  %4663 = vmatpush1.bf16.msra.mxu0 0
  %4664 = vmatprep.subr.bf16.mxu0 0
  %4665 = vmatpush1.bf16.msra.mxu0 0
  %4666 = vmatprep.mubr.bf16.mxu0 0
  %4667 = vmatmul.mubr.bf16.gmra.mrb[0].mxu0 %v4611
  %v4668 = vpop.f32.mrb[0].mxu0
  %v4669 = vadd.f32 %v4542, %v4668
  %v4670 = vpop.f32.mrb[0].mxu0
  %v4671 = vpop.f32.mrb[0].mxu0
  %v4672 = vadd.f32 %v4545, %v4671
  %v4673 = vpop.f32.mrb[0].mxu0
  %4674 = vmatprep.mubr.bf16.mxu0 0
  %4675 = vmatmul.mubr.bf16.gmra.mrb[0].mxu0 %v4614
  %v4676 = vpop.f32.mrb[0].mxu0
  %v4677 = vadd.f32 %v4550, %v4676
  %v4678 = vpop.f32.mrb[0].mxu0
  %v4679 = vpop.f32.mrb[0].mxu0
  %v4680 = vadd.f32 %v4553, %v4679
  %v4681 = vpop.f32.mrb[0].mxu0
  %4682 = vmatprep.mubr.bf16.mxu0 0
  %4683 = vmatmul.mubr.bf16.gmra.mrb[0].mxu0 %v4617
  %v4684 = vpop.f32.mrb[0].mxu0
  %v4685 = vadd.f32 %v4558, %v4684
  %v4686 = vpop.f32.mrb[0].mxu0
  %v4687 = vpop.f32.mrb[0].mxu0
  %v4688 = vadd.f32 %v4561, %v4687
  %v4689 = vpop.f32.mrb[0].mxu0
  %4690 = vmatprep.mubr.bf16.mxu0 0
  %4691 = vmatmul.mubr.bf16.gmra.mrb[0].mxu0 %v4620
  %v4692 = vpop.f32.mrb[0].mxu0
  %v4693 = vadd.f32 %v4566, %v4692
  %v4694 = vpop.f32.mrb[0].mxu0
  %v4695 = vpop.f32.mrb[0].mxu0
  %v4696 = vadd.f32 %v4569, %v4695
  %v4697 = vpop.f32.mrb[0].mxu0
  %4698 = vmatprep.mubr.bf16.mxu0 0
  %4699 = vmatmul.mubr.bf16.gmra.mrb[0].mxu0 %v4623
  %v4700 = vpop.f32.mrb[0].mxu0
  %v4701 = vadd.f32 %v4574, %v4700
  %v4702 = vpop.f32.mrb[0].mxu0
  %v4703 = vpop.f32.mrb[0].mxu0
  %v4704 = vadd.f32 %v4577, %v4703
  %v4705 = vpop.f32.mrb[0].mxu0
  %4706 = vmatprep.mubr.bf16.mxu0 0
  %4707 = vmatmul.mubr.bf16.gmra.mrb[0].mxu0 %v4626
  %v4708 = vpop.f32.mrb[0].mxu0
  %v4709 = vadd.f32 %v4582, %v4708
  %v4710 = vpop.f32.mrb[0].mxu0
  %v4711 = vpop.f32.mrb[0].mxu0
  %v4712 = vadd.f32 %v4585, %v4711
  %v4713 = vpop.f32.mrb[0].mxu0
  %4714 = vmatprep.mubr.bf16.mxu0 0
  %4715 = vmatmul.mubr.bf16.gmra.mrb[0].mxu0 %v4629
  %v4716 = vpop.f32.mrb[0].mxu0
  %v4717 = vadd.f32 %v4590, %v4716
  %v4718 = vpop.f32.mrb[0].mxu0
  %v4719 = vpop.f32.mrb[0].mxu0
  %v4720 = vadd.f32 %v4593, %v4719
  %v4721 = vpop.f32.mrb[0].mxu0
  %4722 = vmatprep.mubr.bf16.mxu0 0
  %4723 = vmatmul.mubr.bf16.gmra.mrb[0].mxu0 %v4632
  %v4724 = vpop.f32.mrb[0].mxu0
  %v4725 = vadd.f32 %v4598, %v4724
  %v4726 = vpop.f32.mrb[0].mxu0
  %v4727 = vpop.f32.mrb[0].mxu0
  %v4728 = vadd.f32 %v4601, %v4727
  %v4729 = vpop.f32.mrb[0].mxu0
  %4730 = vdwg.mxu0
  %s4731 = scalar_lea.vmem [#allocation3], 144
  %v4732 = vld [vmem:[%s4731] sm:$0xff]
  %s4733 = scalar_lea.vmem [#allocation3], 304
  %v4734 = vld [vmem:[%s4733] sm:$0xff]
  %v4735 = vpack.c.bf16 %v4425, %v4424
  %v4736 = vpack.c.bf16 %v4427, %v4426
  %v4737 = vpack.c.bf16 %v4429, %v4428
  %v4738 = vpack.c.bf16 %v4732, %v4430
  %v4739 = vpack.c.bf16 %v4433, %v4432
  %v4740 = vpack.c.bf16 %v4435, %v4434
  %v4741 = vpack.c.bf16 %v4437, %v4436
  %v4742 = vpack.c.bf16 %v4734, %v4438
  %s4743 = scalar_lea.vmem %s7, 24
  %v4744 = vld [vmem:[%s4743] sm:$0xf]
  %v4745 = vld [vmem:[%s4743 + $0x4] sm:$0xf]
  %v4748 = vunpack.c.l.b16 %v4744
  %v4749 = vunpack.c.l.b16 %v4745
  %v4750 = vpack.c.b16 %v4749, %v4748
  %v4753 = vsel %vm3042, %v4735, 0
  %v4756 = vsel %vm3042, %v4736, 0
  %v4759 = vsel %vm3042, %v4737, 0
  %v4762 = vsel %vm3042, %v4738, 0
  %v4765 = vsel %vm3042, %v4739, 0
  %v4768 = vsel %vm3042, %v4740, 0
  %v4771 = vsel %vm3042, %v4741, 0
  %v4774 = vsel %vm3042, %v4742, 0
  %4776 = vmatprep.subr.bf16.mxu0 0
  %4777 = vmatpush1.bf16.msra.mxu0 %v4750
  %4778 = vmatprep.subr.bf16.mxu0 0
  %4779 = vmatpush1.bf16.msra.mxu0 0
  %4780 = vmatprep.subr.bf16.mxu0 0
  %4781 = vmatpush1.bf16.msra.mxu0 0
  %4782 = vmatprep.subr.bf16.mxu0 0
  %4783 = vmatpush1.bf16.msra.mxu0 0
  %4784 = vmatprep.subr.bf16.mxu0 0
  %4785 = vmatpush1.bf16.msra.mxu0 0
  %4786 = vmatprep.subr.bf16.mxu0 0
  %4787 = vmatpush1.bf16.msra.mxu0 0
  %4788 = vmatprep.subr.bf16.mxu0 0
  %4789 = vmatpush1.bf16.msra.mxu0 0
  %4790 = vmatprep.subr.bf16.mxu0 0
  %4791 = vmatpush1.bf16.msra.mxu0 0
  %4792 = vmatprep.subr.bf16.mxu0 0
  %4793 = vmatpush1.bf16.msra.mxu0 0
  %4794 = vmatprep.subr.bf16.mxu0 0
  %4795 = vmatpush1.bf16.msra.mxu0 0
  %4796 = vmatprep.subr.bf16.mxu0 0
  %4797 = vmatpush1.bf16.msra.mxu0 0
  %4798 = vmatprep.subr.bf16.mxu0 0
  %4799 = vmatpush1.bf16.msra.mxu0 0
  %4800 = vmatprep.subr.bf16.mxu0 0
  %4801 = vmatpush1.bf16.msra.mxu0 0
  %4802 = vmatprep.subr.bf16.mxu0 0
  %4803 = vmatpush1.bf16.msra.mxu0 0
  %4804 = vmatprep.subr.bf16.mxu0 0
  %4805 = vmatpush1.bf16.msra.mxu0 0
  %4806 = vmatprep.subr.bf16.mxu0 0
  %4807 = vmatpush1.bf16.msra.mxu0 0
  %4808 = vmatprep.mubr.bf16.mxu0 0
  %4809 = vmatmul.mubr.bf16.gmra.mrb[0].mxu0 %v4753
  %v4810 = vpop.f32.mrb[0].mxu0
  %v4811 = vadd.f32 0.0, %v4810
  %v4812 = vpop.f32.mrb[0].mxu0
  %v4813 = vpop.f32.mrb[0].mxu0
  %v4814 = vadd.f32 0.0, %v4813
  %v4815 = vpop.f32.mrb[0].mxu0
  %4816 = vmatprep.mubr.bf16.mxu0 0
  %4817 = vmatmul.mubr.bf16.gmra.mrb[0].mxu0 %v4756
  %v4818 = vpop.f32.mrb[0].mxu0
  %v4819 = vadd.f32 0.0, %v4818
  %v4820 = vpop.f32.mrb[0].mxu0
  %v4821 = vpop.f32.mrb[0].mxu0
  %v4822 = vadd.f32 0.0, %v4821
  %v4823 = vpop.f32.mrb[0].mxu0
  %4824 = vmatprep.mubr.bf16.mxu0 0
  %4825 = vmatmul.mubr.bf16.gmra.mrb[0].mxu0 %v4759
  %v4826 = vpop.f32.mrb[0].mxu0
  %v4827 = vadd.f32 0.0, %v4826
  %v4828 = vpop.f32.mrb[0].mxu0
  %v4829 = vpop.f32.mrb[0].mxu0
  %v4830 = vadd.f32 0.0, %v4829
  %v4831 = vpop.f32.mrb[0].mxu0
  %4832 = vmatprep.mubr.bf16.mxu0 0
  %4833 = vmatmul.mubr.bf16.gmra.mrb[0].mxu0 %v4762
  %v4834 = vpop.f32.mrb[0].mxu0
  %v4835 = vadd.f32 0.0, %v4834
  %v4836 = vpop.f32.mrb[0].mxu0
  %v4837 = vpop.f32.mrb[0].mxu0
  %v4838 = vadd.f32 0.0, %v4837
  %v4839 = vpop.f32.mrb[0].mxu0
  %4840 = vmatprep.mubr.bf16.mxu0 0
  %4841 = vmatmul.mubr.bf16.gmra.mrb[0].mxu0 %v4765
  %v4842 = vpop.f32.mrb[0].mxu0
  %v4843 = vadd.f32 0.0, %v4842
  %v4844 = vpop.f32.mrb[0].mxu0
  %v4845 = vpop.f32.mrb[0].mxu0
  %v4846 = vadd.f32 0.0, %v4845
  %v4847 = vpop.f32.mrb[0].mxu0
  %4848 = vmatprep.mubr.bf16.mxu0 0
  %4849 = vmatmul.mubr.bf16.gmra.mrb[0].mxu0 %v4768
  %v4850 = vpop.f32.mrb[0].mxu0
  %v4851 = vadd.f32 0.0, %v4850
  %v4852 = vpop.f32.mrb[0].mxu0
  %v4853 = vpop.f32.mrb[0].mxu0
  %v4854 = vadd.f32 0.0, %v4853
  %v4855 = vpop.f32.mrb[0].mxu0
  %4856 = vmatprep.mubr.bf16.mxu0 0
  %4857 = vmatmul.mubr.bf16.gmra.mrb[0].mxu0 %v4771
  %v4858 = vpop.f32.mrb[0].mxu0
  %v4859 = vadd.f32 0.0, %v4858
  %v4860 = vpop.f32.mrb[0].mxu0
  %v4861 = vpop.f32.mrb[0].mxu0
  %v4862 = vadd.f32 0.0, %v4861
  %v4863 = vpop.f32.mrb[0].mxu0
  %4864 = vmatprep.mubr.bf16.mxu0 0
  %4865 = vmatmul.mubr.bf16.gmra.mrb[0].mxu0 %v4774
  %v4866 = vpop.f32.mrb[0].mxu0
  %v4867 = vadd.f32 0.0, %v4866
  %v4868 = vpop.f32.mrb[0].mxu0
  %v4869 = vpop.f32.mrb[0].mxu0
  %v4870 = vadd.f32 0.0, %v4869
  %v4871 = vpop.f32.mrb[0].mxu0
  %4872 = vdwg.mxu0
  %v4873 = vadd.f32 %v4669, %v4811
  %v4874 = vadd.f32 %v4672, %v4814
  %v4875 = vadd.f32 %v4677, %v4819
  %v4876 = vadd.f32 %v4680, %v4822
  %v4877 = vadd.f32 %v4685, %v4827
  %v4878 = vadd.f32 %v4688, %v4830
  %v4879 = vadd.f32 %v4693, %v4835
  %v4880 = vadd.f32 %v4696, %v4838
  %v4881 = vadd.f32 %v4701, %v4843
  %v4882 = vadd.f32 %v4704, %v4846
  %v4883 = vadd.f32 %v4709, %v4851
  %v4884 = vadd.f32 %v4712, %v4854
  %v4885 = vadd.f32 %v4717, %v4859
  %v4886 = vadd.f32 %v4720, %v4862
  %v4887 = vadd.f32 %v4725, %v4867
  %v4888 = vadd.f32 %v4728, %v4870
  %v4889 = vld [vmem:[%s4731 + $0x1] sm:$0xff]
  %v4890 = vld [vmem:[%s4733 + $0x1] sm:$0xff]
  %v4891 = vpack.c.bf16 %v4452, %v4451
  %v4892 = vpack.c.bf16 %v4454, %v4453
  %v4893 = vpack.c.bf16 %v4456, %v4455
  %v4894 = vpack.c.bf16 %v4889, %v4457
  %v4895 = vpack.c.bf16 %v4460, %v4459
  %v4896 = vpack.c.bf16 %v4462, %v4461
  %v4897 = vpack.c.bf16 %v4464, %v4463
  %v4898 = vpack.c.bf16 %v4890, %v4465
  %s4899 = scalar_lea.vmem %s7, 8
  %v4900 = vld [vmem:[%s4899] sm:$0xf]
  %v4901 = vld [vmem:[%s4899 + $0x4] sm:$0xf]
  %v4904 = vunpack.c.l.b16 %v4900
  %v4905 = vunpack.c.l.b16 %v4901
  %v4906 = vpack.c.b16 %v4905, %v4904
  %v4909 = vsel %vm3042, %v4891, 0
  %v4912 = vsel %vm3042, %v4892, 0
  %v4915 = vsel %vm3042, %v4893, 0
  %v4918 = vsel %vm3042, %v4894, 0
  %v4921 = vsel %vm3042, %v4895, 0
  %v4924 = vsel %vm3042, %v4896, 0
  %v4927 = vsel %vm3042, %v4897, 0
  %v4930 = vsel %vm3042, %v4898, 0
  %4932 = vmatprep.subr.bf16.mxu0 0
  %4933 = vmatpush1.bf16.msra.mxu0 %v4906
  %4934 = vmatprep.subr.bf16.mxu0 0
  %4935 = vmatpush1.bf16.msra.mxu0 0
  %4936 = vmatprep.subr.bf16.mxu0 0
  %4937 = vmatpush1.bf16.msra.mxu0 0
  %4938 = vmatprep.subr.bf16.mxu0 0
  %4939 = vmatpush1.bf16.msra.mxu0 0
  %4940 = vmatprep.subr.bf16.mxu0 0
  %4941 = vmatpush1.bf16.msra.mxu0 0
  %4942 = vmatprep.subr.bf16.mxu0 0
  %4943 = vmatpush1.bf16.msra.mxu0 0
  %4944 = vmatprep.subr.bf16.mxu0 0
  %4945 = vmatpush1.bf16.msra.mxu0 0
  %4946 = vmatprep.subr.bf16.mxu0 0
  %4947 = vmatpush1.bf16.msra.mxu0 0
  %4948 = vmatprep.subr.bf16.mxu0 0
  %4949 = vmatpush1.bf16.msra.mxu0 0
  %4950 = vmatprep.subr.bf16.mxu0 0
  %4951 = vmatpush1.bf16.msra.mxu0 0
  %4952 = vmatprep.subr.bf16.mxu0 0
  %4953 = vmatpush1.bf16.msra.mxu0 0
  %4954 = vmatprep.subr.bf16.mxu0 0
  %4955 = vmatpush1.bf16.msra.mxu0 0
  %4956 = vmatprep.subr.bf16.mxu0 0
  %4957 = vmatpush1.bf16.msra.mxu0 0
  %4958 = vmatprep.subr.bf16.mxu0 0
  %4959 = vmatpush1.bf16.msra.mxu0 0
  %4960 = vmatprep.subr.bf16.mxu0 0
  %4961 = vmatpush1.bf16.msra.mxu0 0
  %4962 = vmatprep.subr.bf16.mxu0 0
  %4963 = vmatpush1.bf16.msra.mxu0 0
  %4964 = vmatprep.mubr.bf16.mxu0 0
  %4965 = vmatmul.mubr.bf16.gmra.mrb[0].mxu0 %v4909
  %v4966 = vpop.f32.mrb[0].mxu0
  %v4967 = vadd.f32 0.0, %v4966
  %v4968 = vpop.f32.mrb[0].mxu0
  %v4969 = vpop.f32.mrb[0].mxu0
  %v4970 = vadd.f32 0.0, %v4969
  %v4971 = vpop.f32.mrb[0].mxu0
  %4972 = vmatprep.mubr.bf16.mxu0 0
  %4973 = vmatmul.mubr.bf16.gmra.mrb[0].mxu0 %v4912
  %v4974 = vpop.f32.mrb[0].mxu0
  %v4975 = vadd.f32 0.0, %v4974
  %v4976 = vpop.f32.mrb[0].mxu0
  %v4977 = vpop.f32.mrb[0].mxu0
  %v4978 = vadd.f32 0.0, %v4977
  %v4979 = vpop.f32.mrb[0].mxu0
  %4980 = vmatprep.mubr.bf16.mxu0 0
  %4981 = vmatmul.mubr.bf16.gmra.mrb[0].mxu0 %v4915
  %v4982 = vpop.f32.mrb[0].mxu0
  %v4983 = vadd.f32 0.0, %v4982
  %v4984 = vpop.f32.mrb[0].mxu0
  %v4985 = vpop.f32.mrb[0].mxu0
  %v4986 = vadd.f32 0.0, %v4985
  %v4987 = vpop.f32.mrb[0].mxu0
  %4988 = vmatprep.mubr.bf16.mxu0 0
  %4989 = vmatmul.mubr.bf16.gmra.mrb[0].mxu0 %v4918
  %v4990 = vpop.f32.mrb[0].mxu0
  %v4991 = vadd.f32 0.0, %v4990
  %v4992 = vpop.f32.mrb[0].mxu0
  %v4993 = vpop.f32.mrb[0].mxu0
  %v4994 = vadd.f32 0.0, %v4993
  %v4995 = vpop.f32.mrb[0].mxu0
  %4996 = vmatprep.mubr.bf16.mxu0 0
  %4997 = vmatmul.mubr.bf16.gmra.mrb[0].mxu0 %v4921
  %v4998 = vpop.f32.mrb[0].mxu0
  %v4999 = vadd.f32 0.0, %v4998
  %v5000 = vpop.f32.mrb[0].mxu0
  %v5001 = vpop.f32.mrb[0].mxu0
  %v5002 = vadd.f32 0.0, %v5001
  %v5003 = vpop.f32.mrb[0].mxu0
  %5004 = vmatprep.mubr.bf16.mxu0 0
  %5005 = vmatmul.mubr.bf16.gmra.mrb[0].mxu0 %v4924
  %v5006 = vpop.f32.mrb[0].mxu0
  %v5007 = vadd.f32 0.0, %v5006
  %v5008 = vpop.f32.mrb[0].mxu0
  %v5009 = vpop.f32.mrb[0].mxu0
  %v5010 = vadd.f32 0.0, %v5009
  %v5011 = vpop.f32.mrb[0].mxu0
  %5012 = vmatprep.mubr.bf16.mxu0 0
  %5013 = vmatmul.mubr.bf16.gmra.mrb[0].mxu0 %v4927
  %v5014 = vpop.f32.mrb[0].mxu0
  %v5015 = vadd.f32 0.0, %v5014
  %v5016 = vpop.f32.mrb[0].mxu0
  %v5017 = vpop.f32.mrb[0].mxu0
  %v5018 = vadd.f32 0.0, %v5017
  %v5019 = vpop.f32.mrb[0].mxu0
  %5020 = vmatprep.mubr.bf16.mxu0 0
  %5021 = vmatmul.mubr.bf16.gmra.mrb[0].mxu0 %v4930
  %v5022 = vpop.f32.mrb[0].mxu0
  %v5023 = vadd.f32 0.0, %v5022
  %v5024 = vpop.f32.mrb[0].mxu0
  %v5025 = vpop.f32.mrb[0].mxu0
  %v5026 = vadd.f32 0.0, %v5025
  %v5027 = vpop.f32.mrb[0].mxu0
  %5028 = vdwg.mxu0
  %v5029 = vadd.f32 %v4873, %v4967
  %v5030 = vadd.f32 %v4874, %v4970
  %v5031 = vadd.f32 %v4875, %v4975
  %v5032 = vadd.f32 %v4876, %v4978
  %v5033 = vadd.f32 %v4877, %v4983
  %v5034 = vadd.f32 %v4878, %v4986
  %v5035 = vadd.f32 %v4879, %v4991
  %v5036 = vadd.f32 %v4880, %v4994
  %v5037 = vadd.f32 %v4881, %v4999
  %v5038 = vadd.f32 %v4882, %v5002
  %v5039 = vadd.f32 %v4883, %v5007
  %v5040 = vadd.f32 %v4884, %v5010
  %v5041 = vadd.f32 %v4885, %v5015
  %v5042 = vadd.f32 %v4886, %v5018
  %v5043 = vadd.f32 %v4887, %v5023
  %v5044 = vadd.f32 %v4888, %v5026
  %v5045 = vtanh.pop %v5029
  %v5046 = vtanh.pop %v5030
  %v5047 = vtanh.pop %v5031
  %v5048 = vtanh.pop %v5032
  %v5049 = vtanh.pop %v5033
  %v5050 = vtanh.pop %v5034
  %v5051 = vtanh.pop %v5035
  %v5052 = vtanh.pop %v5036
  %v5053 = vtanh.pop %v5037
  %v5054 = vtanh.pop %v5038
  %v5055 = vtanh.pop %v5039
  %v5056 = vtanh.pop %v5040
  %v5057 = vtanh.pop %v5041
  %v5058 = vtanh.pop %v5042
  %v5059 = vtanh.pop %v5043
  %v5060 = vtanh.pop %v5044
  %s5061 = scalar_lea.vmem %s8, 256
  %5062 = vst.msk [vmem:[%s5061] sm:$0xff] %vm3753, %v5045
  %5063 = vst.msk [vmem:[%s5061 + $0x8] sm:$0xff] %vm3753, %v5046
  %5064 = vst.msk [vmem:[%s5061 + $0x10] sm:$0xff] %vm3753, %v5047
  %5065 = vst.msk [vmem:[%s5061 + $0x18] sm:$0xff] %vm3753, %v5048
  %5066 = vst.msk [vmem:[%s5061 + $0x20] sm:$0xff] %vm3753, %v5049
  %5067 = vst.msk [vmem:[%s5061 + $0x28] sm:$0xff] %vm3753, %v5050
  %5068 = vst.msk [vmem:[%s5061 + $0x30] sm:$0xff] %vm3753, %v5051
  %5069 = vst.msk [vmem:[%s5061 + $0x38] sm:$0xff] %vm3753, %v5052
  %5070 = vst.msk [vmem:[%s5061 + $0x40] sm:$0xff] %vm3753, %v5053
  %5071 = vst.msk [vmem:[%s5061 + $0x48] sm:$0xff] %vm3753, %v5054
  %5072 = vst.msk [vmem:[%s5061 + $0x50] sm:$0xff] %vm3753, %v5055
  %5073 = vst.msk [vmem:[%s5061 + $0x58] sm:$0xff] %vm3753, %v5056
  %5074 = vst.msk [vmem:[%s5061 + $0x60] sm:$0xff] %vm3753, %v5057
  %5075 = vst.msk [vmem:[%s5061 + $0x68] sm:$0xff] %vm3753, %v5058
  %5076 = vst.msk [vmem:[%s5061 + $0x70] sm:$0xff] %vm3753, %v5059
  %5077 = vst.msk [vmem:[%s5061 + $0x78] sm:$0xff] %vm3753, %v5060
  %v5078 = vld [vmem:[%s3084 + $0x1] sm:$0xff]
  %v5079 = vld [vmem:[%s3086 + $0x1] sm:$0xff]
  %v5080 = vld [vmem:[%s3088 + $0x1] sm:$0xff]
  %v5081 = vld [vmem:[%s3090 + $0x1] sm:$0xff]
  %v5082 = vld [vmem:[%s3092 + $0x1] sm:$0xff]
  %v5083 = vld [vmem:[%s3094 + $0x1] sm:$0xff]
  %v5084 = vld [vmem:[%s3096 + $0x1] sm:$0xff]
  %v5085 = vld [vmem:[%s3098 + $0x1] sm:$0xff]
  %v5086 = vld [vmem:[%s3100 + $0x1] sm:$0xff]
  %v5087 = vld [vmem:[%s3102 + $0x1] sm:$0xff]
  %v5088 = vld [vmem:[%s3104 + $0x1] sm:$0xff]
  %v5089 = vld [vmem:[%s3106 + $0x1] sm:$0xff]
  %v5090 = vld [vmem:[%s3108 + $0x1] sm:$0xff]
  %v5091 = vld [vmem:[%s3110 + $0x1] sm:$0xff]
  %v5092 = vld [vmem:[%s3112 + $0x1] sm:$0xff]
  %v5093 = vld [vmem:[%s3114 + $0x1] sm:$0xff]
  %v5094 = vpack.c.bf16 %v5079, %v5078
  %v5095 = vpack.c.bf16 %v5081, %v5080
  %v5096 = vpack.c.bf16 %v5083, %v5082
  %v5097 = vpack.c.bf16 %v5085, %v5084
  %v5098 = vpack.c.bf16 %v5087, %v5086
  %v5099 = vpack.c.bf16 %v5089, %v5088
  %v5100 = vpack.c.bf16 %v5091, %v5090
  %v5101 = vpack.c.bf16 %v5093, %v5092
  %s5102 = scalar_lea.vmem %s7, 80
  %v5103 = vld [vmem:[%s5102] sm:$0xf]
  %v5104 = vld [vmem:[%s5102 + $0x4] sm:$0xf]
  %v5105 = vld [vmem:[%s3084 + $0x2] sm:$0xff]
  %v5106 = vld [vmem:[%s3086 + $0x2] sm:$0xff]
  %v5107 = vld [vmem:[%s3088 + $0x2] sm:$0xff]
  %v5108 = vld [vmem:[%s3090 + $0x2] sm:$0xff]
  %v5109 = vld [vmem:[%s3092 + $0x2] sm:$0xff]
  %v5110 = vld [vmem:[%s3094 + $0x2] sm:$0xff]
  %v5111 = vld [vmem:[%s3096 + $0x2] sm:$0xff]
  %v5112 = vld [vmem:[%s3098 + $0x2] sm:$0xff]
  %v5113 = vld [vmem:[%s3100 + $0x2] sm:$0xff]
  %v5114 = vld [vmem:[%s3102 + $0x2] sm:$0xff]
  %v5115 = vld [vmem:[%s3104 + $0x2] sm:$0xff]
  %v5116 = vld [vmem:[%s3106 + $0x2] sm:$0xff]
  %v5117 = vld [vmem:[%s3108 + $0x2] sm:$0xff]
  %v5118 = vld [vmem:[%s3110 + $0x2] sm:$0xff]
  %v5119 = vld [vmem:[%s3112 + $0x2] sm:$0xff]
  %v5120 = vld [vmem:[%s3114 + $0x2] sm:$0xff]
  %v5121 = vpack.c.bf16 %v5106, %v5105
  %v5122 = vpack.c.bf16 %v5108, %v5107
  %v5123 = vpack.c.bf16 %v5110, %v5109
  %v5124 = vpack.c.bf16 %v5112, %v5111
  %v5125 = vpack.c.bf16 %v5114, %v5113
  %v5126 = vpack.c.bf16 %v5116, %v5115
  %v5127 = vpack.c.bf16 %v5118, %v5117
  %v5128 = vpack.c.bf16 %v5120, %v5119
  %s5129 = scalar_lea.vmem %s7, 64
  %v5130 = vld [vmem:[%s5129] sm:$0xf]
  %v5131 = vld [vmem:[%s5129 + $0x4] sm:$0xf]
  %v5134 = vunpack.c.l.b16 %v5130
  %v5135 = vunpack.c.l.b16 %v5131
  %v5136 = vpack.c.b16 %v5135, %v5134
  %v5139 = vsel %vm3042, %v5121, 0
  %v5142 = vsel %vm3042, %v5122, 0
  %v5145 = vsel %vm3042, %v5123, 0
  %v5148 = vsel %vm3042, %v5124, 0
  %v5151 = vsel %vm3042, %v5125, 0
  %v5154 = vsel %vm3042, %v5126, 0
  %v5157 = vsel %vm3042, %v5127, 0
  %v5160 = vsel %vm3042, %v5128, 0
  %5162 = vmatprep.subr.bf16.mxu0 0
  %5163 = vmatpush1.bf16.msra.mxu0 %v5136
  %5164 = vmatprep.subr.bf16.mxu0 0
  %5165 = vmatpush1.bf16.msra.mxu0 0
  %5166 = vmatprep.subr.bf16.mxu0 0
  %5167 = vmatpush1.bf16.msra.mxu0 0
  %5168 = vmatprep.subr.bf16.mxu0 0
  %5169 = vmatpush1.bf16.msra.mxu0 0
  %5170 = vmatprep.subr.bf16.mxu0 0
  %5171 = vmatpush1.bf16.msra.mxu0 0
  %5172 = vmatprep.subr.bf16.mxu0 0
  %5173 = vmatpush1.bf16.msra.mxu0 0
  %5174 = vmatprep.subr.bf16.mxu0 0
  %5175 = vmatpush1.bf16.msra.mxu0 0
  %5176 = vmatprep.subr.bf16.mxu0 0
  %5177 = vmatpush1.bf16.msra.mxu0 0
  %5178 = vmatprep.subr.bf16.mxu0 0
  %5179 = vmatpush1.bf16.msra.mxu0 0
  %5180 = vmatprep.subr.bf16.mxu0 0
  %5181 = vmatpush1.bf16.msra.mxu0 0
  %5182 = vmatprep.subr.bf16.mxu0 0
  %5183 = vmatpush1.bf16.msra.mxu0 0
  %5184 = vmatprep.subr.bf16.mxu0 0
  %5185 = vmatpush1.bf16.msra.mxu0 0
  %5186 = vmatprep.subr.bf16.mxu0 0
  %5187 = vmatpush1.bf16.msra.mxu0 0
  %5188 = vmatprep.subr.bf16.mxu0 0
  %5189 = vmatpush1.bf16.msra.mxu0 0
  %5190 = vmatprep.subr.bf16.mxu0 0
  %5191 = vmatpush1.bf16.msra.mxu0 0
  %5192 = vmatprep.subr.bf16.mxu0 0
  %5193 = vmatpush1.bf16.msra.mxu0 0
  %5194 = vmatprep.mubr.bf16.mxu0 0
  %5195 = vmatmul.mubr.bf16.gmra.mrb[0].mxu0 %v5139
  %v5196 = vpop.f32.mrb[0].mxu0
  %v5197 = vadd.f32 0.0, %v5196
  %v5198 = vpop.f32.mrb[0].mxu0
  %v5199 = vpop.f32.mrb[0].mxu0
  %v5200 = vadd.f32 0.0, %v5199
  %v5201 = vpop.f32.mrb[0].mxu0
  %5202 = vmatprep.mubr.bf16.mxu0 0
  %5203 = vmatmul.mubr.bf16.gmra.mrb[0].mxu0 %v5142
  %v5204 = vpop.f32.mrb[0].mxu0
  %v5205 = vadd.f32 0.0, %v5204
  %v5206 = vpop.f32.mrb[0].mxu0
  %v5207 = vpop.f32.mrb[0].mxu0
  %v5208 = vadd.f32 0.0, %v5207
  %v5209 = vpop.f32.mrb[0].mxu0
  %5210 = vmatprep.mubr.bf16.mxu0 0
  %5211 = vmatmul.mubr.bf16.gmra.mrb[0].mxu0 %v5145
  %v5212 = vpop.f32.mrb[0].mxu0
  %v5213 = vadd.f32 0.0, %v5212
  %v5214 = vpop.f32.mrb[0].mxu0
  %v5215 = vpop.f32.mrb[0].mxu0
  %v5216 = vadd.f32 0.0, %v5215
  %v5217 = vpop.f32.mrb[0].mxu0
  %5218 = vmatprep.mubr.bf16.mxu0 0
  %5219 = vmatmul.mubr.bf16.gmra.mrb[0].mxu0 %v5148
  %v5220 = vpop.f32.mrb[0].mxu0
  %v5221 = vadd.f32 0.0, %v5220
  %v5222 = vpop.f32.mrb[0].mxu0
  %v5223 = vpop.f32.mrb[0].mxu0
  %v5224 = vadd.f32 0.0, %v5223
  %v5225 = vpop.f32.mrb[0].mxu0
  %5226 = vmatprep.mubr.bf16.mxu0 0
  %5227 = vmatmul.mubr.bf16.gmra.mrb[0].mxu0 %v5151
  %v5228 = vpop.f32.mrb[0].mxu0
  %v5229 = vadd.f32 0.0, %v5228
  %v5230 = vpop.f32.mrb[0].mxu0
  %v5231 = vpop.f32.mrb[0].mxu0
  %v5232 = vadd.f32 0.0, %v5231
  %v5233 = vpop.f32.mrb[0].mxu0
  %5234 = vmatprep.mubr.bf16.mxu0 0
  %5235 = vmatmul.mubr.bf16.gmra.mrb[0].mxu0 %v5154
  %v5236 = vpop.f32.mrb[0].mxu0
  %v5237 = vadd.f32 0.0, %v5236
  %v5238 = vpop.f32.mrb[0].mxu0
  %v5239 = vpop.f32.mrb[0].mxu0
  %v5240 = vadd.f32 0.0, %v5239
  %v5241 = vpop.f32.mrb[0].mxu0
  %5242 = vmatprep.mubr.bf16.mxu0 0
  %5243 = vmatmul.mubr.bf16.gmra.mrb[0].mxu0 %v5157
  %v5244 = vpop.f32.mrb[0].mxu0
  %v5245 = vadd.f32 0.0, %v5244
  %v5246 = vpop.f32.mrb[0].mxu0
  %v5247 = vpop.f32.mrb[0].mxu0
  %v5248 = vadd.f32 0.0, %v5247
  %v5249 = vpop.f32.mrb[0].mxu0
  %5250 = vmatprep.mubr.bf16.mxu0 0
  %5251 = vmatmul.mubr.bf16.gmra.mrb[0].mxu0 %v5160
  %v5252 = vpop.f32.mrb[0].mxu0
  %v5253 = vadd.f32 0.0, %v5252
  %v5254 = vpop.f32.mrb[0].mxu0
  %v5255 = vpop.f32.mrb[0].mxu0
  %v5256 = vadd.f32 0.0, %v5255
  %v5257 = vpop.f32.mrb[0].mxu0
  %5258 = vdwg.mxu0
  %v5261 = vunpack.c.l.b16 %v5103
  %v5262 = vunpack.c.l.b16 %v5104
  %v5263 = vpack.c.b16 %v5262, %v5261
  %v5266 = vsel %vm3042, %v5094, 0
  %v5269 = vsel %vm3042, %v5095, 0
  %v5272 = vsel %vm3042, %v5096, 0
  %v5275 = vsel %vm3042, %v5097, 0
  %v5278 = vsel %vm3042, %v5098, 0
  %v5281 = vsel %vm3042, %v5099, 0
  %v5284 = vsel %vm3042, %v5100, 0
  %v5287 = vsel %vm3042, %v5101, 0
  %5289 = vmatprep.subr.bf16.mxu0 0
  %5290 = vmatpush1.bf16.msra.mxu0 %v5263
  %5291 = vmatprep.subr.bf16.mxu0 0
  %5292 = vmatpush1.bf16.msra.mxu0 0
  %5293 = vmatprep.subr.bf16.mxu0 0
  %5294 = vmatpush1.bf16.msra.mxu0 0
  %5295 = vmatprep.subr.bf16.mxu0 0
  %5296 = vmatpush1.bf16.msra.mxu0 0
  %5297 = vmatprep.subr.bf16.mxu0 0
  %5298 = vmatpush1.bf16.msra.mxu0 0
  %5299 = vmatprep.subr.bf16.mxu0 0
  %5300 = vmatpush1.bf16.msra.mxu0 0
  %5301 = vmatprep.subr.bf16.mxu0 0
  %5302 = vmatpush1.bf16.msra.mxu0 0
  %5303 = vmatprep.subr.bf16.mxu0 0
  %5304 = vmatpush1.bf16.msra.mxu0 0
  %5305 = vmatprep.subr.bf16.mxu0 0
  %5306 = vmatpush1.bf16.msra.mxu0 0
  %5307 = vmatprep.subr.bf16.mxu0 0
  %5308 = vmatpush1.bf16.msra.mxu0 0
  %5309 = vmatprep.subr.bf16.mxu0 0
  %5310 = vmatpush1.bf16.msra.mxu0 0
  %5311 = vmatprep.subr.bf16.mxu0 0
  %5312 = vmatpush1.bf16.msra.mxu0 0
  %5313 = vmatprep.subr.bf16.mxu0 0
  %5314 = vmatpush1.bf16.msra.mxu0 0
  %5315 = vmatprep.subr.bf16.mxu0 0
  %5316 = vmatpush1.bf16.msra.mxu0 0
  %5317 = vmatprep.subr.bf16.mxu0 0
  %5318 = vmatpush1.bf16.msra.mxu0 0
  %5319 = vmatprep.subr.bf16.mxu0 0
  %5320 = vmatpush1.bf16.msra.mxu0 0
  %5321 = vmatprep.mubr.bf16.mxu0 0
  %5322 = vmatmul.mubr.bf16.gmra.mrb[0].mxu0 %v5266
  %v5323 = vpop.f32.mrb[0].mxu0
  %v5324 = vadd.f32 %v5197, %v5323
  %v5325 = vpop.f32.mrb[0].mxu0
  %v5326 = vpop.f32.mrb[0].mxu0
  %v5327 = vadd.f32 %v5200, %v5326
  %v5328 = vpop.f32.mrb[0].mxu0
  %5329 = vmatprep.mubr.bf16.mxu0 0
  %5330 = vmatmul.mubr.bf16.gmra.mrb[0].mxu0 %v5269
  %v5331 = vpop.f32.mrb[0].mxu0
  %v5332 = vadd.f32 %v5205, %v5331
  %v5333 = vpop.f32.mrb[0].mxu0
  %v5334 = vpop.f32.mrb[0].mxu0
  %v5335 = vadd.f32 %v5208, %v5334
  %v5336 = vpop.f32.mrb[0].mxu0
  %5337 = vmatprep.mubr.bf16.mxu0 0
  %5338 = vmatmul.mubr.bf16.gmra.mrb[0].mxu0 %v5272
  %v5339 = vpop.f32.mrb[0].mxu0
  %v5340 = vadd.f32 %v5213, %v5339
  %v5341 = vpop.f32.mrb[0].mxu0
  %v5342 = vpop.f32.mrb[0].mxu0
  %v5343 = vadd.f32 %v5216, %v5342
  %v5344 = vpop.f32.mrb[0].mxu0
  %5345 = vmatprep.mubr.bf16.mxu0 0
  %5346 = vmatmul.mubr.bf16.gmra.mrb[0].mxu0 %v5275
  %v5347 = vpop.f32.mrb[0].mxu0
  %v5348 = vadd.f32 %v5221, %v5347
  %v5349 = vpop.f32.mrb[0].mxu0
  %v5350 = vpop.f32.mrb[0].mxu0
  %v5351 = vadd.f32 %v5224, %v5350
  %v5352 = vpop.f32.mrb[0].mxu0
  %5353 = vmatprep.mubr.bf16.mxu0 0
  %5354 = vmatmul.mubr.bf16.gmra.mrb[0].mxu0 %v5278
  %v5355 = vpop.f32.mrb[0].mxu0
  %v5356 = vadd.f32 %v5229, %v5355
  %v5357 = vpop.f32.mrb[0].mxu0
  %v5358 = vpop.f32.mrb[0].mxu0
  %v5359 = vadd.f32 %v5232, %v5358
  %v5360 = vpop.f32.mrb[0].mxu0
  %5361 = vmatprep.mubr.bf16.mxu0 0
  %5362 = vmatmul.mubr.bf16.gmra.mrb[0].mxu0 %v5281
  %v5363 = vpop.f32.mrb[0].mxu0
  %v5364 = vadd.f32 %v5237, %v5363
  %v5365 = vpop.f32.mrb[0].mxu0
  %v5366 = vpop.f32.mrb[0].mxu0
  %v5367 = vadd.f32 %v5240, %v5366
  %v5368 = vpop.f32.mrb[0].mxu0
  %5369 = vmatprep.mubr.bf16.mxu0 0
  %5370 = vmatmul.mubr.bf16.gmra.mrb[0].mxu0 %v5284
  %v5371 = vpop.f32.mrb[0].mxu0
  %v5372 = vadd.f32 %v5245, %v5371
  %v5373 = vpop.f32.mrb[0].mxu0
  %v5374 = vpop.f32.mrb[0].mxu0
  %v5375 = vadd.f32 %v5248, %v5374
  %v5376 = vpop.f32.mrb[0].mxu0
  %5377 = vmatprep.mubr.bf16.mxu0 0
  %5378 = vmatmul.mubr.bf16.gmra.mrb[0].mxu0 %v5287
  %v5379 = vpop.f32.mrb[0].mxu0
  %v5380 = vadd.f32 %v5253, %v5379
  %v5381 = vpop.f32.mrb[0].mxu0
  %v5382 = vpop.f32.mrb[0].mxu0
  %v5383 = vadd.f32 %v5256, %v5382
  %v5384 = vpop.f32.mrb[0].mxu0
  %5385 = vdwg.mxu0
  %v5386 = vld [vmem:[%s4731 + $0x1] sm:$0xff]
  %v5387 = vld [vmem:[%s4733 + $0x1] sm:$0xff]
  %v5388 = vpack.c.bf16 %v5080, %v5079
  %v5389 = vpack.c.bf16 %v5082, %v5081
  %v5390 = vpack.c.bf16 %v5084, %v5083
  %v5391 = vpack.c.bf16 %v5386, %v5085
  %v5392 = vpack.c.bf16 %v5088, %v5087
  %v5393 = vpack.c.bf16 %v5090, %v5089
  %v5394 = vpack.c.bf16 %v5092, %v5091
  %v5395 = vpack.c.bf16 %v5387, %v5093
  %s5396 = scalar_lea.vmem %s7, 16
  %v5397 = vld [vmem:[%s5396] sm:$0xf]
  %v5398 = vld [vmem:[%s5396 + $0x4] sm:$0xf]
  %v5401 = vunpack.c.l.b16 %v5397
  %v5402 = vunpack.c.l.b16 %v5398
  %v5403 = vpack.c.b16 %v5402, %v5401
  %v5406 = vsel %vm3042, %v5388, 0
  %v5409 = vsel %vm3042, %v5389, 0
  %v5412 = vsel %vm3042, %v5390, 0
  %v5415 = vsel %vm3042, %v5391, 0
  %v5418 = vsel %vm3042, %v5392, 0
  %v5421 = vsel %vm3042, %v5393, 0
  %v5424 = vsel %vm3042, %v5394, 0
  %v5427 = vsel %vm3042, %v5395, 0
  %5429 = vmatprep.subr.bf16.mxu0 0
  %5430 = vmatpush1.bf16.msra.mxu0 %v5403
  %5431 = vmatprep.subr.bf16.mxu0 0
  %5432 = vmatpush1.bf16.msra.mxu0 0
  %5433 = vmatprep.subr.bf16.mxu0 0
  %5434 = vmatpush1.bf16.msra.mxu0 0
  %5435 = vmatprep.subr.bf16.mxu0 0
  %5436 = vmatpush1.bf16.msra.mxu0 0
  %5437 = vmatprep.subr.bf16.mxu0 0
  %5438 = vmatpush1.bf16.msra.mxu0 0
  %5439 = vmatprep.subr.bf16.mxu0 0
  %5440 = vmatpush1.bf16.msra.mxu0 0
  %5441 = vmatprep.subr.bf16.mxu0 0
  %5442 = vmatpush1.bf16.msra.mxu0 0
  %5443 = vmatprep.subr.bf16.mxu0 0
  %5444 = vmatpush1.bf16.msra.mxu0 0
  %5445 = vmatprep.subr.bf16.mxu0 0
  %5446 = vmatpush1.bf16.msra.mxu0 0
  %5447 = vmatprep.subr.bf16.mxu0 0
  %5448 = vmatpush1.bf16.msra.mxu0 0
  %5449 = vmatprep.subr.bf16.mxu0 0
  %5450 = vmatpush1.bf16.msra.mxu0 0
  %5451 = vmatprep.subr.bf16.mxu0 0
  %5452 = vmatpush1.bf16.msra.mxu0 0
  %5453 = vmatprep.subr.bf16.mxu0 0
  %5454 = vmatpush1.bf16.msra.mxu0 0
  %5455 = vmatprep.subr.bf16.mxu0 0
  %5456 = vmatpush1.bf16.msra.mxu0 0
  %5457 = vmatprep.subr.bf16.mxu0 0
  %5458 = vmatpush1.bf16.msra.mxu0 0
  %5459 = vmatprep.subr.bf16.mxu0 0
  %5460 = vmatpush1.bf16.msra.mxu0 0
  %5461 = vmatprep.mubr.bf16.mxu0 0
  %5462 = vmatmul.mubr.bf16.gmra.mrb[0].mxu0 %v5406
  %v5463 = vpop.f32.mrb[0].mxu0
  %v5464 = vadd.f32 0.0, %v5463
  %v5465 = vpop.f32.mrb[0].mxu0
  %v5466 = vpop.f32.mrb[0].mxu0
  %v5467 = vadd.f32 0.0, %v5466
  %v5468 = vpop.f32.mrb[0].mxu0
  %5469 = vmatprep.mubr.bf16.mxu0 0
  %5470 = vmatmul.mubr.bf16.gmra.mrb[0].mxu0 %v5409
  %v5471 = vpop.f32.mrb[0].mxu0
  %v5472 = vadd.f32 0.0, %v5471
  %v5473 = vpop.f32.mrb[0].mxu0
  %v5474 = vpop.f32.mrb[0].mxu0
  %v5475 = vadd.f32 0.0, %v5474
  %v5476 = vpop.f32.mrb[0].mxu0
  %5477 = vmatprep.mubr.bf16.mxu0 0
  %5478 = vmatmul.mubr.bf16.gmra.mrb[0].mxu0 %v5412
  %v5479 = vpop.f32.mrb[0].mxu0
  %v5480 = vadd.f32 0.0, %v5479
  %v5481 = vpop.f32.mrb[0].mxu0
  %v5482 = vpop.f32.mrb[0].mxu0
  %v5483 = vadd.f32 0.0, %v5482
  %v5484 = vpop.f32.mrb[0].mxu0
  %5485 = vmatprep.mubr.bf16.mxu0 0
  %5486 = vmatmul.mubr.bf16.gmra.mrb[0].mxu0 %v5415
  %v5487 = vpop.f32.mrb[0].mxu0
  %v5488 = vadd.f32 0.0, %v5487
  %v5489 = vpop.f32.mrb[0].mxu0
  %v5490 = vpop.f32.mrb[0].mxu0
  %v5491 = vadd.f32 0.0, %v5490
  %v5492 = vpop.f32.mrb[0].mxu0
  %5493 = vmatprep.mubr.bf16.mxu0 0
  %5494 = vmatmul.mubr.bf16.gmra.mrb[0].mxu0 %v5418
  %v5495 = vpop.f32.mrb[0].mxu0
  %v5496 = vadd.f32 0.0, %v5495
  %v5497 = vpop.f32.mrb[0].mxu0
  %v5498 = vpop.f32.mrb[0].mxu0
  %v5499 = vadd.f32 0.0, %v5498
  %v5500 = vpop.f32.mrb[0].mxu0
  %5501 = vmatprep.mubr.bf16.mxu0 0
  %5502 = vmatmul.mubr.bf16.gmra.mrb[0].mxu0 %v5421
  %v5503 = vpop.f32.mrb[0].mxu0
  %v5504 = vadd.f32 0.0, %v5503
  %v5505 = vpop.f32.mrb[0].mxu0
  %v5506 = vpop.f32.mrb[0].mxu0
  %v5507 = vadd.f32 0.0, %v5506
  %v5508 = vpop.f32.mrb[0].mxu0
  %5509 = vmatprep.mubr.bf16.mxu0 0
  %5510 = vmatmul.mubr.bf16.gmra.mrb[0].mxu0 %v5424
  %v5511 = vpop.f32.mrb[0].mxu0
  %v5512 = vadd.f32 0.0, %v5511
  %v5513 = vpop.f32.mrb[0].mxu0
  %v5514 = vpop.f32.mrb[0].mxu0
  %v5515 = vadd.f32 0.0, %v5514
  %v5516 = vpop.f32.mrb[0].mxu0
  %5517 = vmatprep.mubr.bf16.mxu0 0
  %5518 = vmatmul.mubr.bf16.gmra.mrb[0].mxu0 %v5427
  %v5519 = vpop.f32.mrb[0].mxu0
  %v5520 = vadd.f32 0.0, %v5519
  %v5521 = vpop.f32.mrb[0].mxu0
  %v5522 = vpop.f32.mrb[0].mxu0
  %v5523 = vadd.f32 0.0, %v5522
  %v5524 = vpop.f32.mrb[0].mxu0
  %5525 = vdwg.mxu0
  %v5526 = vadd.f32 %v5324, %v5464
  %v5527 = vadd.f32 %v5327, %v5467
  %v5528 = vadd.f32 %v5332, %v5472
  %v5529 = vadd.f32 %v5335, %v5475
  %v5530 = vadd.f32 %v5340, %v5480
  %v5531 = vadd.f32 %v5343, %v5483
  %v5532 = vadd.f32 %v5348, %v5488
  %v5533 = vadd.f32 %v5351, %v5491
  %v5534 = vadd.f32 %v5356, %v5496
  %v5535 = vadd.f32 %v5359, %v5499
  %v5536 = vadd.f32 %v5364, %v5504
  %v5537 = vadd.f32 %v5367, %v5507
  %v5538 = vadd.f32 %v5372, %v5512
  %v5539 = vadd.f32 %v5375, %v5515
  %v5540 = vadd.f32 %v5380, %v5520
  %v5541 = vadd.f32 %v5383, %v5523
  %v5542 = vld [vmem:[%s4731 + $0x2] sm:$0xff]
  %v5543 = vld [vmem:[%s4733 + $0x2] sm:$0xff]
  %v5544 = vpack.c.bf16 %v5107, %v5106
  %v5545 = vpack.c.bf16 %v5109, %v5108
  %v5546 = vpack.c.bf16 %v5111, %v5110
  %v5547 = vpack.c.bf16 %v5542, %v5112
  %v5548 = vpack.c.bf16 %v5115, %v5114
  %v5549 = vpack.c.bf16 %v5117, %v5116
  %v5550 = vpack.c.bf16 %v5119, %v5118
  %v5551 = vpack.c.bf16 %v5543, %v5120
  %v5552 = vld [vmem:[%s7] sm:$0xf]
  %v5553 = vld [vmem:[%s7 + $0x4] sm:$0xf]
  %v5556 = vunpack.c.l.b16 %v5552
  %v5557 = vunpack.c.l.b16 %v5553
  %v5558 = vpack.c.b16 %v5557, %v5556
  %v5561 = vsel %vm3042, %v5544, 0
  %v5564 = vsel %vm3042, %v5545, 0
  %v5567 = vsel %vm3042, %v5546, 0
  %v5570 = vsel %vm3042, %v5547, 0
  %v5573 = vsel %vm3042, %v5548, 0
  %v5576 = vsel %vm3042, %v5549, 0
  %v5579 = vsel %vm3042, %v5550, 0
  %v5582 = vsel %vm3042, %v5551, 0
  %5584 = vmatprep.subr.bf16.mxu0 0
  %5585 = vmatpush1.bf16.msra.mxu0 %v5558
  %5586 = vmatprep.subr.bf16.mxu0 0
  %5587 = vmatpush1.bf16.msra.mxu0 0
  %5588 = vmatprep.subr.bf16.mxu0 0
  %5589 = vmatpush1.bf16.msra.mxu0 0
  %5590 = vmatprep.subr.bf16.mxu0 0
  %5591 = vmatpush1.bf16.msra.mxu0 0
  %5592 = vmatprep.subr.bf16.mxu0 0
  %5593 = vmatpush1.bf16.msra.mxu0 0
  %5594 = vmatprep.subr.bf16.mxu0 0
  %5595 = vmatpush1.bf16.msra.mxu0 0
  %5596 = vmatprep.subr.bf16.mxu0 0
  %5597 = vmatpush1.bf16.msra.mxu0 0
  %5598 = vmatprep.subr.bf16.mxu0 0
  %5599 = vmatpush1.bf16.msra.mxu0 0
  %5600 = vmatprep.subr.bf16.mxu0 0
  %5601 = vmatpush1.bf16.msra.mxu0 0
  %5602 = vmatprep.subr.bf16.mxu0 0
  %5603 = vmatpush1.bf16.msra.mxu0 0
  %5604 = vmatprep.subr.bf16.mxu0 0
  %5605 = vmatpush1.bf16.msra.mxu0 0
  %5606 = vmatprep.subr.bf16.mxu0 0
  %5607 = vmatpush1.bf16.msra.mxu0 0
  %5608 = vmatprep.subr.bf16.mxu0 0
  %5609 = vmatpush1.bf16.msra.mxu0 0
  %5610 = vmatprep.subr.bf16.mxu0 0
  %5611 = vmatpush1.bf16.msra.mxu0 0
  %5612 = vmatprep.subr.bf16.mxu0 0
  %5613 = vmatpush1.bf16.msra.mxu0 0
  %5614 = vmatprep.subr.bf16.mxu0 0
  %5615 = vmatpush1.bf16.msra.mxu0 0
  %5616 = vmatprep.mubr.bf16.mxu0 0
  %5617 = vmatmul.mubr.bf16.gmra.mrb[0].mxu0 %v5561
  %v5618 = vpop.f32.mrb[0].mxu0
  %v5619 = vadd.f32 0.0, %v5618
  %v5620 = vpop.f32.mrb[0].mxu0
  %v5621 = vpop.f32.mrb[0].mxu0
  %v5622 = vadd.f32 0.0, %v5621
  %v5623 = vpop.f32.mrb[0].mxu0
  %5624 = vmatprep.mubr.bf16.mxu0 0
  %5625 = vmatmul.mubr.bf16.gmra.mrb[0].mxu0 %v5564
  %v5626 = vpop.f32.mrb[0].mxu0
  %v5627 = vadd.f32 0.0, %v5626
  %v5628 = vpop.f32.mrb[0].mxu0
  %v5629 = vpop.f32.mrb[0].mxu0
  %v5630 = vadd.f32 0.0, %v5629
  %v5631 = vpop.f32.mrb[0].mxu0
  %5632 = vmatprep.mubr.bf16.mxu0 0
  %5633 = vmatmul.mubr.bf16.gmra.mrb[0].mxu0 %v5567
  %v5634 = vpop.f32.mrb[0].mxu0
  %v5635 = vadd.f32 0.0, %v5634
  %v5636 = vpop.f32.mrb[0].mxu0
  %v5637 = vpop.f32.mrb[0].mxu0
  %v5638 = vadd.f32 0.0, %v5637
  %v5639 = vpop.f32.mrb[0].mxu0
  %5640 = vmatprep.mubr.bf16.mxu0 0
  %5641 = vmatmul.mubr.bf16.gmra.mrb[0].mxu0 %v5570
  %v5642 = vpop.f32.mrb[0].mxu0
  %v5643 = vadd.f32 0.0, %v5642
  %v5644 = vpop.f32.mrb[0].mxu0
  %v5645 = vpop.f32.mrb[0].mxu0
  %v5646 = vadd.f32 0.0, %v5645
  %v5647 = vpop.f32.mrb[0].mxu0
  %5648 = vmatprep.mubr.bf16.mxu0 0
  %5649 = vmatmul.mubr.bf16.gmra.mrb[0].mxu0 %v5573
  %v5650 = vpop.f32.mrb[0].mxu0
  %v5651 = vadd.f32 0.0, %v5650
  %v5652 = vpop.f32.mrb[0].mxu0
  %v5653 = vpop.f32.mrb[0].mxu0
  %v5654 = vadd.f32 0.0, %v5653
  %v5655 = vpop.f32.mrb[0].mxu0
  %5656 = vmatprep.mubr.bf16.mxu0 0
  %5657 = vmatmul.mubr.bf16.gmra.mrb[0].mxu0 %v5576
  %v5658 = vpop.f32.mrb[0].mxu0
  %v5659 = vadd.f32 0.0, %v5658
  %v5660 = vpop.f32.mrb[0].mxu0
  %v5661 = vpop.f32.mrb[0].mxu0
  %v5662 = vadd.f32 0.0, %v5661
  %v5663 = vpop.f32.mrb[0].mxu0
  %5664 = vmatprep.mubr.bf16.mxu0 0
  %5665 = vmatmul.mubr.bf16.gmra.mrb[0].mxu0 %v5579
  %v5666 = vpop.f32.mrb[0].mxu0
  %v5667 = vadd.f32 0.0, %v5666
  %v5668 = vpop.f32.mrb[0].mxu0
  %v5669 = vpop.f32.mrb[0].mxu0
  %v5670 = vadd.f32 0.0, %v5669
  %v5671 = vpop.f32.mrb[0].mxu0
  %5672 = vmatprep.mubr.bf16.mxu0 0
  %5673 = vmatmul.mubr.bf16.gmra.mrb[0].mxu0 %v5582
  %v5674 = vpop.f32.mrb[0].mxu0
  %v5675 = vadd.f32 0.0, %v5674
  %v5676 = vpop.f32.mrb[0].mxu0
  %v5677 = vpop.f32.mrb[0].mxu0
  %v5678 = vadd.f32 0.0, %v5677
  %v5679 = vpop.f32.mrb[0].mxu0
  %5680 = vdwg.mxu0
  %v5681 = vadd.f32 %v5526, %v5619
  %v5682 = vadd.f32 %v5527, %v5622
  %v5683 = vadd.f32 %v5528, %v5627
  %v5684 = vadd.f32 %v5529, %v5630
  %v5685 = vadd.f32 %v5530, %v5635
  %v5686 = vadd.f32 %v5531, %v5638
  %v5687 = vadd.f32 %v5532, %v5643
  %v5688 = vadd.f32 %v5533, %v5646
  %v5689 = vadd.f32 %v5534, %v5651
  %v5690 = vadd.f32 %v5535, %v5654
  %v5691 = vadd.f32 %v5536, %v5659
  %v5692 = vadd.f32 %v5537, %v5662
  %v5693 = vadd.f32 %v5538, %v5667
  %v5694 = vadd.f32 %v5539, %v5670
  %v5695 = vadd.f32 %v5540, %v5675
  %v5696 = vadd.f32 %v5541, %v5678
  %v5697 = vtanh.pop %v5681
  %v5698 = vtanh.pop %v5682
  %v5699 = vtanh.pop %v5683
  %v5700 = vtanh.pop %v5684
  %v5701 = vtanh.pop %v5685
  %v5702 = vtanh.pop %v5686
  %v5703 = vtanh.pop %v5687
  %v5704 = vtanh.pop %v5688
  %v5705 = vtanh.pop %v5689
  %v5706 = vtanh.pop %v5690
  %v5707 = vtanh.pop %v5691
  %v5708 = vtanh.pop %v5692
  %v5709 = vtanh.pop %v5693
  %v5710 = vtanh.pop %v5694
  %v5711 = vtanh.pop %v5695
  %v5712 = vtanh.pop %v5696
  %s5713 = scalar_lea.vmem %s8, 384
  %5714 = vst.msk [vmem:[%s5713] sm:$0xff] %vm3753, %v5697
  %5715 = vst.msk [vmem:[%s5713 + $0x8] sm:$0xff] %vm3753, %v5698
  %5716 = vst.msk [vmem:[%s5713 + $0x10] sm:$0xff] %vm3753, %v5699
  %5717 = vst.msk [vmem:[%s5713 + $0x18] sm:$0xff] %vm3753, %v5700
  %5718 = vst.msk [vmem:[%s5713 + $0x20] sm:$0xff] %vm3753, %v5701
  %5719 = vst.msk [vmem:[%s5713 + $0x28] sm:$0xff] %vm3753, %v5702
  %5720 = vst.msk [vmem:[%s5713 + $0x30] sm:$0xff] %vm3753, %v5703
  %5721 = vst.msk [vmem:[%s5713 + $0x38] sm:$0xff] %vm3753, %v5704
  %5722 = vst.msk [vmem:[%s5713 + $0x40] sm:$0xff] %vm3753, %v5705
  %5723 = vst.msk [vmem:[%s5713 + $0x48] sm:$0xff] %vm3753, %v5706
  %5724 = vst.msk [vmem:[%s5713 + $0x50] sm:$0xff] %vm3753, %v5707
  %5725 = vst.msk [vmem:[%s5713 + $0x58] sm:$0xff] %vm3753, %v5708
  %5726 = vst.msk [vmem:[%s5713 + $0x60] sm:$0xff] %vm3753, %v5709
  %5727 = vst.msk [vmem:[%s5713 + $0x68] sm:$0xff] %vm3753, %v5710
  %5728 = vst.msk [vmem:[%s5713 + $0x70] sm:$0xff] %vm3753, %v5711
  %5729 = vst.msk [vmem:[%s5713 + $0x78] sm:$0xff] %vm3753, %v5712
  // Predicated region
  $region34: #{_lambda_.1} parent=0 // pred_check
    _
  $region35: #{_lambda_.1} parent=0 // pred_check_branch
    %5731 = sbr.rel (0) target = $region37
  $region36: #{_lambda_.1} parent=0 // pred_region
    _
  $region37: #{_lambda_.1} parent=0 // pred_fallthru
    _
  // Predicated region
  $region38: #{_lambda_.1} parent=0 // pred_check
    _
  $region39: #{_lambda_.1} parent=0 // pred_check_branch
    %5733 = sbr.rel (0) target = $region41
  $region40: #{_lambda_.1} parent=0 // pred_region
    _
  $region41: #{_lambda_.1} parent=0 // pred_fallthru
    _

</llo_original>
